<compile_context>
chip_gen: v7x
topology: tpu7x:2x2x1
jax: 0.10.0
libtpu: 0.0.40
codegen_flags: <defaults>
</compile_context>

<pallas_src>
import functools

import jax
import jax.numpy as jnp
from jax import lax
from jax.experimental import pallas as pl
from jax.experimental.pallas import tpu as pltpu

EPS = 1e-5  # PyTorch LayerNorm default eps


# --------------------------------------------------------------------------
# Weight slab packing: every parameter goes into one [R, 128] f32 array at a
# static, 8-aligned row offset.  The kernel reads it back with static slices.
# --------------------------------------------------------------------------
def _round8(r):
    return -(-r // 8) * 8


class _SlabPacker:
    WIDTH = 128

    def __init__(self):
        self._chunks = []
        self._rows = 0

    def add(self, arr):
        arr = jnp.asarray(arr, jnp.float32)
        if arr.ndim == 1:
            arr = arr.reshape(1, -1)
        assert arr.ndim == 2 and arr.shape[1] <= self.WIDTH, arr.shape
        off = self._rows
        self._chunks.append((off, arr))
        self._rows += _round8(arr.shape[0])
        return (off, int(arr.shape[0]), int(arr.shape[1]))

    def finalize(self):
        total = max(_round8(self._rows), 8)
        slab = jnp.zeros((total, self.WIDTH), jnp.float32)
        for off, arr in self._chunks:
            slab = slab.at[off:off + arr.shape[0], :arr.shape[1]].set(arr)
        return slab


def _ld(ref, spec):
    off, r, c = spec
    return ref[off:off + r, :c]


# --------------------------------------------------------------------------
# Single fused kernel: all T / S / N layers + OutputLayer, whole batch.
# --------------------------------------------------------------------------
def _fused_forward_kernel(x_ref, w_ref, o_ref, *, meta, out_meta, B, n):
    cur = x_ref[...].astype(jnp.float32)          # [B, T, n, c0]

    for m in meta:
        if m["kind"] == "T":
            # Gated (GLU) dilated temporal conv.  Residual is pre-folded into
            # the P-half of the tap-1 weight; P and Q are separate operands so
            # no lane-slice of a fused 2*c_out result is needed.
            dia, c_in, c_out = m["dia"], m["c_in"], m["c_out"]
            t_out = cur.shape[1] - dia
            x0 = cur[:, :t_out]
            x1 = cur[:, dia:dia + t_out]
            w0p = _ld(w_ref, m["w0p"])
            w0q = _ld(w_ref, m["w0q"])
            w1p = _ld(w_ref, m["w1p"])
            w1q = _ld(w_ref, m["w1q"])
            bp = _ld(w_ref, m["bp"])
            bq = _ld(w_ref, m["bq"])
            if c_in == 1:
                # K=1 matmul would waste the MXU -> VPU broadcast-multiplies.
                p = x0 * w0p + x1 * w1p + bp
                q = x0 * w0q + x1 * w1q + bq
                cur = p * jax.nn.sigmoid(q)
            else:
                rows = B * t_out * n
                x0f = x0.reshape(rows, c_in)
                x1f = x1.reshape(rows, c_in)
                p = (jnp.dot(x0f, w0p, preferred_element_type=jnp.float32)
                     + jnp.dot(x1f, w1p, preferred_element_type=jnp.float32)
                     + bp)
                q = (jnp.dot(x0f, w0q, preferred_element_type=jnp.float32)
                     + jnp.dot(x1f, w1q, preferred_element_type=jnp.float32)
                     + bq)
                cur = (p * jax.nn.sigmoid(q)).reshape(B, t_out, n, c_out)

        elif m["kind"] == "S":
            # Graph conv: relu(A_hat @ X @ W + b).
            #   X@W      : one flat [B*t*n, c] matmul.
            #   A_hat @ .: done in the transposed domain: (A X)^T = X^T A^T,
            #              i.e. ONE contraction [B*t*c, n] @ A_hat^T, framed by
            #              two cheap minor-dim (XLU) transposes.  No
            #              broadcast_to of A, no B*t tiny batched matmuls.
            w = _ld(w_ref, m["w"])
            b = _ld(w_ref, m["b"])
            at = _ld(w_ref, m["at"])                       # A_hat^T [n, n]
            t_cur, c = cur.shape[1], cur.shape[3]
            bt = B * t_cur
            xw = jnp.dot(cur.reshape(bt * n, c), w,
                         preferred_element_type=jnp.float32)
            xwT = jnp.swapaxes(xw.reshape(bt, n, c), -1, -2)   # [bt, c, n]
            yT = jnp.dot(xwT.reshape(bt * c, n), at,
                         preferred_element_type=jnp.float32)   # [bt*c, n]
            y = jnp.swapaxes(yT.reshape(bt, c, n), -1, -2)     # [bt, n, c]
            cur = jnp.maximum(y.reshape(B, t_cur, n, c) + b, 0.0)

        else:  # 'N': LayerNorm over [n, c] per (batch, time step).
            # TODO(synk): nn.Dropout is identity at inference; training-mode
            # dropout is not implemented.
            g = _ld(w_ref, m["gamma"])                     # [n, c]
            be = _ld(w_ref, m["beta"])                     # [n, c]
            c = cur.shape[3]
            inv = 1.0 / (n * c)
            s = jnp.sum(jnp.sum(cur, axis=3, keepdims=True),
                        axis=2, keepdims=True)             # [B, t, 1, 1]
            mu = s * inv
            d = cur - mu
            v = jnp.sum(jnp.sum(d * d, axis=3, keepdims=True),
                        axis=2, keepdims=True) * inv
            cur = d * lax.rsqrt(v + EPS) * g + be

    # ---- OutputLayer: full-T conv -> LayerNorm([n,c]) -> 1x1 -> 1x1 to 1 ch.
    # Kept channel-major (c in sublanes, n in lanes): the full-T conv is ONE
    # matmul at K = t_fin*c, and the final result is a lane-dense [1, n] row.
    t_fin, c = cur.shape[1], cur.shape[3]
    w1r = _ld(w_ref, out_meta["w1"])      # [t_fin*c, c]
    b1c = _ld(w_ref, out_meta["b1"])      # [c, 1]
    gT = _ld(w_ref, out_meta["gamma"])    # [c, n]  (pre-transposed)
    beT = _ld(w_ref, out_meta["beta"])    # [c, n]
    w2T = _ld(w_ref, out_meta["w2"])      # [c, c]  (pre-transposed)
    b2c = _ld(w_ref, out_meta["b2"])      # [c, 1]
    wfc = _ld(w_ref, out_meta["wfc"])     # [c, 1]
    bfc = _ld(w_ref, out_meta["bfc"])     # [1, 1]

    curK = jnp.swapaxes(cur, -1, -2).reshape(B, t_fin * c, n)  # [B, t*c, n]
    w1rT = w1r.T                                               # [c, t*c], hoisted
    inv = 1.0 / (n * c)
    rows = []
    for b in range(B):                                         # B is tiny & static
        h1T = jnp.dot(w1rT, curK[b],
                      preferred_element_type=jnp.float32) + b1c    # [c, n]
        s = jnp.sum(jnp.sum(h1T, axis=1, keepdims=True),
                    axis=0, keepdims=True)
        mu = s * inv
        d = h1T - mu
        v = jnp.sum(jnp.sum(d * d, axis=1, keepdims=True),
                    axis=0, keepdims=True) * inv
        hnT = d * lax.rsqrt(v + EPS) * gT + beT
        h2T = jnp.dot(w2T, hnT, preferred_element_type=jnp.float32) + b2c
        # Final 1x1 conv to one channel: VPU mul + sublane reduce.
        yb = jnp.sum(h2T * wfc, axis=0, keepdims=True) + bfc       # [1, n]
        rows.append(yb)
    o_ref[...] = jnp.concatenate(rows, axis=0)                     # [B, n]


# --------------------------------------------------------------------------
# Wrapper: pack/fold all weights into one slab, build the fused pallas_call.
# --------------------------------------------------------------------------
def _pack_params(layer_params, out_params, a_hat):
    """Pack every parameter (and A_hat^T) into one [R,128] slab + static meta.

    The temporal residual branch (identity / zero-pad / 1x1 projection) is
    folded into the P-half of the tap-1 conv weight:
        P + x1 @ r  ==  x0 @ w0_P + x1 @ (w1_P + r) + b_P
    so the kernel never spends a matmul (or a concat) on it.
    """
    pk = _SlabPacker()
    at_spec = pk.add(a_hat.T)          # transposed adjacency, shared by all 'S'
    meta = []
    for p in layer_params:
        if p["kind"] == "T":
            w, b, r = p["w"], p["b"], p["r"]   # [2,c_in,2c_out], [2c_out], [c_in,c_out]
            c_in, c_out = w.shape[1], w.shape[2] // 2
            meta.append(dict(
                kind="T", dia=int(p["dia"]), c_in=int(c_in), c_out=int(c_out),
                w0p=pk.add(w[0, :, :c_out]),
                w0q=pk.add(w[0, :, c_out:]),
                w1p=pk.add(w[1, :, :c_out] + r),   # residual folded into P tap-1
                w1q=pk.add(w[1, :, c_out:]),
                bp=pk.add(b[:c_out]),
                bq=pk.add(b[c_out:])))
        elif p["kind"] == "S":
            c = p["w"].shape[0]
            assert c % 8 == 0, "spatial layer channels must be a multiple of 8"
            meta.append(dict(kind="S", w=pk.add(p["w"]), b=pk.add(p["b"]),
                             at=at_spec))
        else:
            meta.append(dict(kind="N", gamma=pk.add(p["gamma"]),
                             beta=pk.add(p["beta"])))
    t_fin, c, _ = out_params["w1"].shape
    assert c % 8 == 0, "output-layer channels must be a multiple of 8"
    out_meta = dict(
        w1=pk.add(out_params["w1"].reshape(t_fin * c, c)),
        b1=pk.add(out_params["b1"].reshape(c, 1)),
        gamma=pk.add(out_params["gamma"].T),
        beta=pk.add(out_params["beta"].T),
        w2=pk.add(out_params["w2"].T),
        b2=pk.add(out_params["b2"].reshape(c, 1)),
        wfc=pk.add(out_params["wfc"].reshape(c, 1)),
        bfc=pk.add(out_params["bfc"].reshape(1, 1)),
    )
    return pk.finalize(), tuple(meta), out_meta


def stgcn_wave_forward(x_nchw, layer_params, out_params, a_hat):
    """Fused STGCN_WAVE forward: ONE pallas_call, whole batch, one weight DMA."""
    B, c0, T, n = x_nchw.shape
    assert n % 8 == 0, "num_nodes must be a multiple of 8 for this kernel"
    x = jnp.transpose(x_nchw, (0, 2, 3, 1)).astype(jnp.float32)   # [B, T, n, c0]
    slab, meta, out_meta = _pack_params(layer_params, out_params, a_hat)

    kernel = functools.partial(_fused_forward_kernel, meta=meta,
                               out_meta=out_meta, B=int(B), n=int(n))
    out = pl.pallas_call(
        kernel,
        out_shape=jax.ShapeDtypeStruct((B, n), jnp.float32),
        in_specs=[pl.BlockSpec(memory_space=pltpu.MemorySpace.VMEM),
                  pl.BlockSpec(memory_space=pltpu.MemorySpace.VMEM)],
        out_specs=pl.BlockSpec(memory_space=pltpu.MemorySpace.VMEM),
    )(x, slab)
    return out.reshape(B, 1, 1, n)                   # NCHW [B, 1, 1, n]


# --------------------------------------------------------------------------
# Pure-JAX reference (same math) used only to sanity-check the fused kernel.
# --------------------------------------------------------------------------
def reference_forward(x_nchw, layer_params, out_params, a_hat):
    x = jnp.transpose(x_nchw, (0, 2, 3, 1)).astype(jnp.float32)
    for p in layer_params:
        if p["kind"] == "T":
            dia = p["dia"]
            t_out = x.shape[1] - dia
            x0, x1 = x[:, :t_out], x[:, dia:dia + t_out]
            z = (jnp.einsum("btnc,cd->btnd", x0, p["w"][0])
                 + jnp.einsum("btnc,cd->btnd", x1, p["w"][1]) + p["b"])
            c_out = p["r"].shape[1]
            pp, qq = z[..., :c_out], z[..., c_out:]
            xs = jnp.einsum("btnc,cd->btnd", x1, p["r"])
            x = (pp + xs) * jax.nn.sigmoid(qq)
        elif p["kind"] == "S":
            xw = jnp.einsum("btnc,cd->btnd", x, p["w"])
            ax = jnp.einsum("mn,btnd->btmd", a_hat, xw)
            x = jnp.maximum(ax + p["b"], 0.0)
        else:
            mu = jnp.mean(x, axis=(2, 3), keepdims=True)
            var = jnp.mean((x - mu) ** 2, axis=(2, 3), keepdims=True)
            x = (x - mu) * lax.rsqrt(var + EPS) * p["gamma"] + p["beta"]
    h1 = jnp.einsum("btnc,tcd->bnd", x, out_params["w1"]) + out_params["b1"]
    mu = jnp.mean(h1, axis=(1, 2), keepdims=True)
    var = jnp.mean((h1 - mu) ** 2, axis=(1, 2), keepdims=True)
    hn = (h1 - mu) * lax.rsqrt(var + EPS) * out_params["gamma"] + out_params["beta"]
    h2 = jnp.einsum("bnc,cd->bnd", hn, out_params["w2"]) + out_params["b2"]
    y = jnp.einsum("bnc,co->bno", h2, out_params["wfc"]) + out_params["bfc"]
    return jnp.transpose(y, (0, 2, 1))[:, None]      # [B, 1, 1, n]


# --------------------------------------------------------------------------
# Deterministic parameter construction (matches __init__ shapes)
# --------------------------------------------------------------------------
def init_params(key, c, T, n, control_str):
    keys = iter(jax.random.split(key, 8 * len(control_str) + 32))
    layer_params = []
    c_index, diapower = 0, 0
    for ch in control_str:
        if ch == "T":
            c_in, c_out = c[c_index], c[c_index + 1]
            dia = 2 ** diapower
            w = jax.random.normal(next(keys), (2, c_in, 2 * c_out),
                                  jnp.float32) / jnp.sqrt(2.0 * c_in)
            b = 0.01 * jax.random.normal(next(keys), (2 * c_out,), jnp.float32)
            if c_in > c_out:       # 1x1 conv residual projection
                r = jax.random.normal(next(keys), (c_in, c_out),
                                      jnp.float32) / jnp.sqrt(1.0 * c_in)
            elif c_in < c_out:     # zero-pad channels
                r = jnp.concatenate(
                    [jnp.eye(c_in, dtype=jnp.float32),
                     jnp.zeros((c_in, c_out - c_in), jnp.float32)], axis=1)
            else:
                r = jnp.eye(c_in, dtype=jnp.float32)
            layer_params.append(dict(kind="T", w=w, b=b, r=r, dia=dia))
            diapower += 1
            c_index += 1
        elif ch == "S":
            cc = c[c_index]
            w = jax.random.normal(next(keys), (cc, cc), jnp.float32) / jnp.sqrt(1.0 * cc)
            b = 0.01 * jax.random.normal(next(keys), (cc,), jnp.float32)
            layer_params.append(dict(kind="S", w=w, b=b))
        elif ch == "N":
            cc = c[c_index]
            gamma = 1.0 + 0.1 * jax.random.normal(next(keys), (n, cc), jnp.float32)
            beta = 0.1 * jax.random.normal(next(keys), (n, cc), jnp.float32)
            layer_params.append(dict(kind="N", gamma=gamma, beta=beta))

    t_out = T + 1 - 2 ** diapower
    cc = c[c_index]
    out_params = dict(
        w1=jax.random.normal(next(keys), (t_out, cc, cc), jnp.float32)
           / jnp.sqrt(1.0 * t_out * cc),
        b1=0.01 * jax.random.normal(next(keys), (cc,), jnp.float32),
        gamma=1.0 + 0.1 * jax.random.normal(next(keys), (n, cc), jnp.float32),
        beta=0.1 * jax.random.normal(next(keys), (n, cc), jnp.float32),
        w2=jax.random.normal(next(keys), (cc, cc), jnp.float32) / jnp.sqrt(1.0 * cc),
        b2=0.01 * jax.random.normal(next(keys), (cc,), jnp.float32),
        wfc=jax.random.normal(next(keys), (cc, 1), jnp.float32) / jnp.sqrt(1.0 * cc),
        bfc=0.01 * jax.random.normal(next(keys), (1,), jnp.float32),
    )
    return layer_params, out_params, t_out


def make_graph(key, n):
    a = (jax.random.uniform(key, (n, n)) < 0.3).astype(jnp.float32)
    a = jnp.maximum(a, a.T)
    a = jnp.maximum(a, jnp.eye(n, dtype=jnp.float32))      # self-loops
    dinv = 1.0 / jnp.sqrt(a.sum(axis=1))
    return dinv[:, None] * a * dinv[None, :]                # D^-1/2 A D^-1/2


if __name__ == "__main__":
    # Small, self-consistent config:  c=[1,16,32,64], T=12, n=16, 'TNTSTN'
    B, T, n = 2, 12, 16
    c = [1, 16, 32, 64]
    control_str = "TNTSTN"          # dilations 1, 2, 4 -> T_out = 12 + 1 - 8 = 5

    root = jax.random.PRNGKey(0)
    k_x, k_p, k_g = jax.random.split(root, 3)

    x = jax.random.normal(k_x, (B, 1, T, n), jnp.float32)   # NCHW, like PyTorch
    layer_params, out_params, _ = init_params(k_p, c, T, n, control_str)
    a_hat = make_graph(k_g, n)

    y = stgcn_wave_forward(x, layer_params, out_params, a_hat)
    y = jax.block_until_ready(y)
    assert y.shape == (B, 1, 1, n), y.shape

    y_ref = jax.block_until_ready(
        reference_forward(x, layer_params, out_params, a_hat))
    assert jnp.allclose(y, y_ref, rtol=2e-3, atol=2e-3), (
        float(jnp.max(jnp.abs(y - y_ref))))

    print("KERNEL_OK")
</pallas_src>

<mosaic_0001>
module attributes {stable_mosaic.version = 11 : i64} {
  func.func @_fused_forward_kernel(%arg0: memref<2x12x16x1xf32, #tpu.memory_space<vmem>>, %arg1: memref<1104x128xf32, #tpu.memory_space<vmem>>, %arg2: memref<2x16xf32, #tpu.memory_space<vmem>>) attributes {dimension_semantics = [], scalar_prefetch = 0 : i64, scratch_operands = 0 : i64, tpu.core_type = #tpu.core_type<tc>} {
    %c0 = arith.constant 0 : index
    %c0_0 = arith.constant 0 : index
    %c0_1 = arith.constant 0 : index
    %c0_2 = arith.constant 0 : index
    %0 = vector.load %arg0[%c0, %c0_0, %c0_1, %c0_2] : memref<2x12x16x1xf32, #tpu.memory_space<vmem>>, vector<2x12x16x1xf32>
    %1 = vector.extract_strided_slice %0 {offsets = [0, 0, 0, 0], sizes = [2, 11, 16, 1], strides = [1, 1, 1, 1]} : vector<2x12x16x1xf32> to vector<2x11x16x1xf32>
    %2 = vector.extract_strided_slice %0 {offsets = [0, 1, 0, 0], sizes = [2, 11, 16, 1], strides = [1, 1, 1, 1]} : vector<2x12x16x1xf32> to vector<2x11x16x1xf32>
    %c16 = arith.constant 16 : index
    %c0_3 = arith.constant 0 : index
    %3 = vector.load %arg1[%c16, %c0_3] : memref<1104x128xf32, #tpu.memory_space<vmem>>, vector<1x16xf32>
    %c24 = arith.constant 24 : index
    %c0_4 = arith.constant 0 : index
    %4 = vector.load %arg1[%c24, %c0_4] : memref<1104x128xf32, #tpu.memory_space<vmem>>, vector<1x16xf32>
    %c32 = arith.constant 32 : index
    %c0_5 = arith.constant 0 : index
    %5 = vector.load %arg1[%c32, %c0_5] : memref<1104x128xf32, #tpu.memory_space<vmem>>, vector<1x16xf32>
    %c40 = arith.constant 40 : index
    %c0_6 = arith.constant 0 : index
    %6 = vector.load %arg1[%c40, %c0_6] : memref<1104x128xf32, #tpu.memory_space<vmem>>, vector<1x16xf32>
    %c48 = arith.constant 48 : index
    %c0_7 = arith.constant 0 : index
    %7 = vector.load %arg1[%c48, %c0_7] : memref<1104x128xf32, #tpu.memory_space<vmem>>, vector<1x16xf32>
    %c56 = arith.constant 56 : index
    %c0_8 = arith.constant 0 : index
    %8 = vector.load %arg1[%c56, %c0_8] : memref<1104x128xf32, #tpu.memory_space<vmem>>, vector<1x16xf32>
    %9 = vector.shape_cast %3 : vector<1x16xf32> to vector<1x1x1x16xf32>
    %10 = vector.broadcast %1 : vector<2x11x16x1xf32> to vector<2x11x16x16xf32>
    %11 = vector.broadcast %9 : vector<1x1x1x16xf32> to vector<2x11x16x16xf32>
    %12 = arith.mulf %10, %11 : vector<2x11x16x16xf32>
    %13 = vector.shape_cast %5 : vector<1x16xf32> to vector<1x1x1x16xf32>
    %14 = vector.broadcast %2 : vector<2x11x16x1xf32> to vector<2x11x16x16xf32>
    %15 = vector.broadcast %13 : vector<1x1x1x16xf32> to vector<2x11x16x16xf32>
    %16 = arith.mulf %14, %15 : vector<2x11x16x16xf32>
    %17 = arith.addf %12, %16 : vector<2x11x16x16xf32>
    %18 = vector.shape_cast %7 : vector<1x16xf32> to vector<1x1x1x16xf32>
    %19 = vector.broadcast %18 : vector<1x1x1x16xf32> to vector<2x11x16x16xf32>
    %20 = arith.addf %17, %19 : vector<2x11x16x16xf32>
    %21 = vector.shape_cast %4 : vector<1x16xf32> to vector<1x1x1x16xf32>
    %22 = vector.broadcast %1 : vector<2x11x16x1xf32> to vector<2x11x16x16xf32>
    %23 = vector.broadcast %21 : vector<1x1x1x16xf32> to vector<2x11x16x16xf32>
    %24 = arith.mulf %22, %23 : vector<2x11x16x16xf32>
    %25 = vector.shape_cast %6 : vector<1x16xf32> to vector<1x1x1x16xf32>
    %26 = vector.broadcast %2 : vector<2x11x16x1xf32> to vector<2x11x16x16xf32>
    %27 = vector.broadcast %25 : vector<1x1x1x16xf32> to vector<2x11x16x16xf32>
    %28 = arith.mulf %26, %27 : vector<2x11x16x16xf32>
    %29 = arith.addf %24, %28 : vector<2x11x16x16xf32>
    %30 = vector.shape_cast %8 : vector<1x16xf32> to vector<1x1x1x16xf32>
    %31 = vector.broadcast %30 : vector<1x1x1x16xf32> to vector<2x11x16x16xf32>
    %32 = arith.addf %29, %31 : vector<2x11x16x16xf32>
    %33 = arith.negf %32 : vector<2x11x16x16xf32>
    %34 = math.exp %33 : vector<2x11x16x16xf32>
    %cst = arith.constant 1.000000e+00 : f32
    %35 = vector.broadcast %cst : f32 to vector<2x11x16x16xf32>
    %36 = arith.addf %35, %34 : vector<2x11x16x16xf32>
    %37 = arith.divf %35, %36 : vector<2x11x16x16xf32>
    %38 = arith.mulf %20, %37 : vector<2x11x16x16xf32>
    %c64 = arith.constant 64 : index
    %c0_9 = arith.constant 0 : index
    %39 = vector.load %arg1[%c64, %c0_9] : memref<1104x128xf32, #tpu.memory_space<vmem>>, vector<16x16xf32>
    %c80 = arith.constant 80 : index
    %c0_10 = arith.constant 0 : index
    %40 = vector.load %arg1[%c80, %c0_10] : memref<1104x128xf32, #tpu.memory_space<vmem>>, vector<16x16xf32>
    %cst_11 = arith.constant dense<0.000000e+00> : vector<2x11x16xf32>
    %41 = vector.multi_reduction <add>, %38, %cst_11 [3] : vector<2x11x16x16xf32> to vector<2x11x16xf32>
    %42 = vector.shape_cast %41 : vector<2x11x16xf32> to vector<2x11x16x1xf32>
    %cst_12 = arith.constant dense<0.000000e+00> : vector<2x11x1xf32>
    %43 = vector.multi_reduction <add>, %42, %cst_12 [2] : vector<2x11x16x1xf32> to vector<2x11x1xf32>
    %44 = vector.shape_cast %43 : vector<2x11x1xf32> to vector<2x11x1x1xf32>
    %cst_13 = arith.constant 3.906250e-03 : f32
    %45 = vector.broadcast %cst_13 : f32 to vector<2x11x1x1xf32>
    %46 = arith.mulf %44, %45 : vector<2x11x1x1xf32>
    %47 = vector.broadcast %46 : vector<2x11x1x1xf32> to vector<2x11x16x16xf32>
    %48 = arith.subf %38, %47 : vector<2x11x16x16xf32>
    %49 = arith.mulf %48, %48 : vector<2x11x16x16xf32>
    %cst_14 = arith.constant dense<0.000000e+00> : vector<2x11x16xf32>
    %50 = vector.multi_reduction <add>, %49, %cst_14 [3] : vector<2x11x16x16xf32> to vector<2x11x16xf32>
    %51 = vector.shape_cast %50 : vector<2x11x16xf32> to vector<2x11x16x1xf32>
    %cst_15 = arith.constant dense<0.000000e+00> : vector<2x11x1xf32>
    %52 = vector.multi_reduction <add>, %51, %cst_15 [2] : vector<2x11x16x1xf32> to vector<2x11x1xf32>
    %53 = vector.shape_cast %52 : vector<2x11x1xf32> to vector<2x11x1x1xf32>
    %cst_16 = arith.constant 3.906250e-03 : f32
    %54 = vector.broadcast %cst_16 : f32 to vector<2x11x1x1xf32>
    %55 = arith.mulf %53, %54 : vector<2x11x1x1xf32>
    %cst_17 = arith.constant 9.99999974E-6 : f32
    %56 = vector.broadcast %cst_17 : f32 to vector<2x11x1x1xf32>
    %57 = arith.addf %55, %56 : vector<2x11x1x1xf32>
    %58 = math.rsqrt %57 : vector<2x11x1x1xf32>
    %59 = vector.broadcast %58 : vector<2x11x1x1xf32> to vector<2x11x16x16xf32>
    %60 = arith.mulf %48, %59 : vector<2x11x16x16xf32>
    %61 = vector.shape_cast %39 : vector<16x16xf32> to vector<1x1x16x16xf32>
    %62 = vector.broadcast %61 : vector<1x1x16x16xf32> to vector<2x11x16x16xf32>
    %63 = arith.mulf %60, %62 : vector<2x11x16x16xf32>
    %64 = vector.shape_cast %40 : vector<16x16xf32> to vector<1x1x16x16xf32>
    %65 = vector.broadcast %64 : vector<1x1x16x16xf32> to vector<2x11x16x16xf32>
    %66 = arith.addf %63, %65 : vector<2x11x16x16xf32>
    %67 = vector.extract_strided_slice %66 {offsets = [0, 0, 0, 0], sizes = [2, 9, 16, 16], strides = [1, 1, 1, 1]} : vector<2x11x16x16xf32> to vector<2x9x16x16xf32>
    %68 = vector.extract_strided_slice %66 {offsets = [0, 2, 0, 0], sizes = [2, 9, 16, 16], strides = [1, 1, 1, 1]} : vector<2x11x16x16xf32> to vector<2x9x16x16xf32>
    %c96 = arith.constant 96 : index
    %c0_18 = arith.constant 0 : index
    %69 = vector.load %arg1[%c96, %c0_18] : memref<1104x128xf32, #tpu.memory_space<vmem>>, vector<16x32xf32>
    %c112 = arith.constant 112 : index
    %c0_19 = arith.constant 0 : index
    %70 = vector.load %arg1[%c112, %c0_19] : memref<1104x128xf32, #tpu.memory_space<vmem>>, vector<16x32xf32>
    %c128 = arith.constant 128 : index
    %c0_20 = arith.constant 0 : index
    %71 = vector.load %arg1[%c128, %c0_20] : memref<1104x128xf32, #tpu.memory_space<vmem>>, vector<16x32xf32>
    %c144 = arith.constant 144 : index
    %c0_21 = arith.constant 0 : index
    %72 = vector.load %arg1[%c144, %c0_21] : memref<1104x128xf32, #tpu.memory_space<vmem>>, vector<16x32xf32>
    %c160 = arith.constant 160 : index
    %c0_22 = arith.constant 0 : index
    %73 = vector.load %arg1[%c160, %c0_22] : memref<1104x128xf32, #tpu.memory_space<vmem>>, vector<1x32xf32>
    %c168 = arith.constant 168 : index
    %c0_23 = arith.constant 0 : index
    %74 = vector.load %arg1[%c168, %c0_23] : memref<1104x128xf32, #tpu.memory_space<vmem>>, vector<1x32xf32>
    %75 = vector.shape_cast %67 : vector<2x9x16x16xf32> to vector<288x16xf32>
    %76 = vector.shape_cast %68 : vector<2x9x16x16xf32> to vector<288x16xf32>
    %cst_24 = arith.constant dense<0.000000e+00> : vector<288x32xf32>
    %77 = tpu.matmul %75, %69, %cst_24 {dimension_numbers = #tpu.dot_dimension_numbers<[1], [0], [0], [1], [0, 0, 1, 1], [], []>} : vector<288x16xf32>, vector<16x32xf32>, vector<288x32xf32> -> vector<288x32xf32>
    %cst_25 = arith.constant dense<0.000000e+00> : vector<288x32xf32>
    %78 = tpu.matmul %76, %71, %cst_25 {dimension_numbers = #tpu.dot_dimension_numbers<[1], [0], [0], [1], [0, 0, 1, 1], [], []>} : vector<288x16xf32>, vector<16x32xf32>, vector<288x32xf32> -> vector<288x32xf32>
    %79 = arith.addf %77, %78 : vector<288x32xf32>
    %80 = vector.broadcast %73 : vector<1x32xf32> to vector<288x32xf32>
    %81 = arith.addf %79, %80 : vector<288x32xf32>
    %cst_26 = arith.constant dense<0.000000e+00> : vector<288x32xf32>
    %82 = tpu.matmul %75, %70, %cst_26 {dimension_numbers = #tpu.dot_dimension_numbers<[1], [0], [0], [1], [0, 0, 1, 1], [], []>} : vector<288x16xf32>, vector<16x32xf32>, vector<288x32xf32> -> vector<288x32xf32>
    %cst_27 = arith.constant dense<0.000000e+00> : vector<288x32xf32>
    %83 = tpu.matmul %76, %72, %cst_27 {dimension_numbers = #tpu.dot_dimension_numbers<[1], [0], [0], [1], [0, 0, 1, 1], [], []>} : vector<288x16xf32>, vector<16x32xf32>, vector<288x32xf32> -> vector<288x32xf32>
    %84 = arith.addf %82, %83 : vector<288x32xf32>
    %85 = vector.broadcast %74 : vector<1x32xf32> to vector<288x32xf32>
    %86 = arith.addf %84, %85 : vector<288x32xf32>
    %87 = arith.negf %86 : vector<288x32xf32>
    %88 = math.exp %87 : vector<288x32xf32>
    %cst_28 = arith.constant 1.000000e+00 : f32
    %89 = vector.broadcast %cst_28 : f32 to vector<288x32xf32>
    %90 = arith.addf %89, %88 : vector<288x32xf32>
    %91 = arith.divf %89, %90 : vector<288x32xf32>
    %92 = arith.mulf %81, %91 : vector<288x32xf32>
    %93 = vector.shape_cast %92 : vector<288x32xf32> to vector<2x9x16x32xf32>
    %c176 = arith.constant 176 : index
    %c0_29 = arith.constant 0 : index
    %94 = vector.load %arg1[%c176, %c0_29] : memref<1104x128xf32, #tpu.memory_space<vmem>>, vector<32x32xf32>
    %c208 = arith.constant 208 : index
    %c0_30 = arith.constant 0 : index
    %95 = vector.load %arg1[%c208, %c0_30] : memref<1104x128xf32, #tpu.memory_space<vmem>>, vector<1x32xf32>
    %c0_31 = arith.constant 0 : index
    %c0_32 = arith.constant 0 : index
    %96 = vector.load %arg1[%c0_31, %c0_32] : memref<1104x128xf32, #tpu.memory_space<vmem>>, vector<16x16xf32>
    %97 = vector.shape_cast %93 : vector<2x9x16x32xf32> to vector<288x32xf32>
    %cst_33 = arith.constant dense<0.000000e+00> : vector<288x32xf32>
    %98 = tpu.matmul %97, %94, %cst_33 {dimension_numbers = #tpu.dot_dimension_numbers<[1], [0], [0], [1], [0, 0, 1, 1], [], []>} : vector<288x32xf32>, vector<32x32xf32>, vector<288x32xf32> -> vector<288x32xf32>
    %99 = vector.shape_cast %98 : vector<288x32xf32> to vector<18x16x32xf32>
    %100 = tpu.transpose %99, [0, 2, 1] : vector<18x16x32xf32> -> vector<18x32x16xf32>
    %101 = vector.shape_cast %100 : vector<18x32x16xf32> to vector<576x16xf32>
    %cst_34 = arith.constant dense<0.000000e+00> : vector<576x16xf32>
    %102 = tpu.matmul %101, %96, %cst_34 {dimension_numbers = #tpu.dot_dimension_numbers<[1], [0], [0], [1], [0, 0, 1, 1], [], []>} : vector<576x16xf32>, vector<16x16xf32>, vector<576x16xf32> -> vector<576x16xf32>
    %103 = vector.shape_cast %102 : vector<576x16xf32> to vector<18x32x16xf32>
    %104 = tpu.transpose %103, [0, 2, 1] : vector<18x32x16xf32> -> vector<18x16x32xf32>
    %105 = vector.shape_cast %104 : vector<18x16x32xf32> to vector<2x9x16x32xf32>
    %106 = vector.shape_cast %95 : vector<1x32xf32> to vector<1x1x1x32xf32>
    %107 = vector.broadcast %106 : vector<1x1x1x32xf32> to vector<2x9x16x32xf32>
    %108 = arith.addf %105, %107 : vector<2x9x16x32xf32>
    %cst_35 = arith.constant 0.000000e+00 : f32
    %109 = vector.broadcast %cst_35 : f32 to vector<2x9x16x32xf32>
    %110 = arith.maximumf %108, %109 : vector<2x9x16x32xf32>
    %111 = vector.extract_strided_slice %110 {offsets = [0, 0, 0, 0], sizes = [2, 5, 16, 32], strides = [1, 1, 1, 1]} : vector<2x9x16x32xf32> to vector<2x5x16x32xf32>
    %112 = vector.extract_strided_slice %110 {offsets = [0, 4, 0, 0], sizes = [2, 5, 16, 32], strides = [1, 1, 1, 1]} : vector<2x9x16x32xf32> to vector<2x5x16x32xf32>
    %c216 = arith.constant 216 : index
    %c0_36 = arith.constant 0 : index
    %113 = vector.load %arg1[%c216, %c0_36] : memref<1104x128xf32, #tpu.memory_space<vmem>>, vector<32x64xf32>
    %c248 = arith.constant 248 : index
    %c0_37 = arith.constant 0 : index
    %114 = vector.load %arg1[%c248, %c0_37] : memref<1104x128xf32, #tpu.memory_space<vmem>>, vector<32x64xf32>
    %c280 = arith.constant 280 : index
    %c0_38 = arith.constant 0 : index
    %115 = vector.load %arg1[%c280, %c0_38] : memref<1104x128xf32, #tpu.memory_space<vmem>>, vector<32x64xf32>
    %c312 = arith.constant 312 : index
    %c0_39 = arith.constant 0 : index
    %116 = vector.load %arg1[%c312, %c0_39] : memref<1104x128xf32, #tpu.memory_space<vmem>>, vector<32x64xf32>
    %c344 = arith.constant 344 : index
    %c0_40 = arith.constant 0 : index
    %117 = vector.load %arg1[%c344, %c0_40] : memref<1104x128xf32, #tpu.memory_space<vmem>>, vector<1x64xf32>
    %c352 = arith.constant 352 : index
    %c0_41 = arith.constant 0 : index
    %118 = vector.load %arg1[%c352, %c0_41] : memref<1104x128xf32, #tpu.memory_space<vmem>>, vector<1x64xf32>
    %119 = vector.shape_cast %111 : vector<2x5x16x32xf32> to vector<160x32xf32>
    %120 = vector.shape_cast %112 : vector<2x5x16x32xf32> to vector<160x32xf32>
    %cst_42 = arith.constant dense<0.000000e+00> : vector<160x64xf32>
    %121 = tpu.matmul %119, %113, %cst_42 {dimension_numbers = #tpu.dot_dimension_numbers<[1], [0], [0], [1], [0, 0, 1, 1], [], []>} : vector<160x32xf32>, vector<32x64xf32>, vector<160x64xf32> -> vector<160x64xf32>
    %cst_43 = arith.constant dense<0.000000e+00> : vector<160x64xf32>
    %122 = tpu.matmul %120, %115, %cst_43 {dimension_numbers = #tpu.dot_dimension_numbers<[1], [0], [0], [1], [0, 0, 1, 1], [], []>} : vector<160x32xf32>, vector<32x64xf32>, vector<160x64xf32> -> vector<160x64xf32>
    %123 = arith.addf %121, %122 : vector<160x64xf32>
    %124 = vector.broadcast %117 : vector<1x64xf32> to vector<160x64xf32>
    %125 = arith.addf %123, %124 : vector<160x64xf32>
    %cst_44 = arith.constant dense<0.000000e+00> : vector<160x64xf32>
    %126 = tpu.matmul %119, %114, %cst_44 {dimension_numbers = #tpu.dot_dimension_numbers<[1], [0], [0], [1], [0, 0, 1, 1], [], []>} : vector<160x32xf32>, vector<32x64xf32>, vector<160x64xf32> -> vector<160x64xf32>
    %cst_45 = arith.constant dense<0.000000e+00> : vector<160x64xf32>
    %127 = tpu.matmul %120, %116, %cst_45 {dimension_numbers = #tpu.dot_dimension_numbers<[1], [0], [0], [1], [0, 0, 1, 1], [], []>} : vector<160x32xf32>, vector<32x64xf32>, vector<160x64xf32> -> vector<160x64xf32>
    %128 = arith.addf %126, %127 : vector<160x64xf32>
    %129 = vector.broadcast %118 : vector<1x64xf32> to vector<160x64xf32>
    %130 = arith.addf %128, %129 : vector<160x64xf32>
    %131 = arith.negf %130 : vector<160x64xf32>
    %132 = math.exp %131 : vector<160x64xf32>
    %cst_46 = arith.constant 1.000000e+00 : f32
    %133 = vector.broadcast %cst_46 : f32 to vector<160x64xf32>
    %134 = arith.addf %133, %132 : vector<160x64xf32>
    %135 = arith.divf %133, %134 : vector<160x64xf32>
    %136 = arith.mulf %125, %135 : vector<160x64xf32>
    %137 = vector.shape_cast %136 : vector<160x64xf32> to vector<2x5x16x64xf32>
    %c360 = arith.constant 360 : index
    %c0_47 = arith.constant 0 : index
    %138 = vector.load %arg1[%c360, %c0_47] : memref<1104x128xf32, #tpu.memory_space<vmem>>, vector<16x64xf32>
    %c376 = arith.constant 376 : index
    %c0_48 = arith.constant 0 : index
    %139 = vector.load %arg1[%c376, %c0_48] : memref<1104x128xf32, #tpu.memory_space<vmem>>, vector<16x64xf32>
    %cst_49 = arith.constant dense<0.000000e+00> : vector<2x5x16xf32>
    %140 = vector.multi_reduction <add>, %137, %cst_49 [3] : vector<2x5x16x64xf32> to vector<2x5x16xf32>
    %141 = vector.shape_cast %140 : vector<2x5x16xf32> to vector<2x5x16x1xf32>
    %cst_50 = arith.constant dense<0.000000e+00> : vector<2x5x1xf32>
    %142 = vector.multi_reduction <add>, %141, %cst_50 [2] : vector<2x5x16x1xf32> to vector<2x5x1xf32>
    %143 = vector.shape_cast %142 : vector<2x5x1xf32> to vector<2x5x1x1xf32>
    %cst_51 = arith.constant 9.765625E-4 : f32
    %144 = vector.broadcast %cst_51 : f32 to vector<2x5x1x1xf32>
    %145 = arith.mulf %143, %144 : vector<2x5x1x1xf32>
    %146 = vector.broadcast %145 : vector<2x5x1x1xf32> to vector<2x5x16x64xf32>
    %147 = arith.subf %137, %146 : vector<2x5x16x64xf32>
    %148 = arith.mulf %147, %147 : vector<2x5x16x64xf32>
    %cst_52 = arith.constant dense<0.000000e+00> : vector<2x5x16xf32>
    %149 = vector.multi_reduction <add>, %148, %cst_52 [3] : vector<2x5x16x64xf32> to vector<2x5x16xf32>
    %150 = vector.shape_cast %149 : vector<2x5x16xf32> to vector<2x5x16x1xf32>
    %cst_53 = arith.constant dense<0.000000e+00> : vector<2x5x1xf32>
    %151 = vector.multi_reduction <add>, %150, %cst_53 [2] : vector<2x5x16x1xf32> to vector<2x5x1xf32>
    %152 = vector.shape_cast %151 : vector<2x5x1xf32> to vector<2x5x1x1xf32>
    %cst_54 = arith.constant 9.765625E-4 : f32
    %153 = vector.broadcast %cst_54 : f32 to vector<2x5x1x1xf32>
    %154 = arith.mulf %152, %153 : vector<2x5x1x1xf32>
    %cst_55 = arith.constant 9.99999974E-6 : f32
    %155 = vector.broadcast %cst_55 : f32 to vector<2x5x1x1xf32>
    %156 = arith.addf %154, %155 : vector<2x5x1x1xf32>
    %157 = math.rsqrt %156 : vector<2x5x1x1xf32>
    %158 = vector.broadcast %157 : vector<2x5x1x1xf32> to vector<2x5x16x64xf32>
    %159 = arith.mulf %147, %158 : vector<2x5x16x64xf32>
    %160 = vector.shape_cast %138 : vector<16x64xf32> to vector<1x1x16x64xf32>
    %161 = vector.broadcast %160 : vector<1x1x16x64xf32> to vector<2x5x16x64xf32>
    %162 = arith.mulf %159, %161 : vector<2x5x16x64xf32>
    %163 = vector.shape_cast %139 : vector<16x64xf32> to vector<1x1x16x64xf32>
    %164 = vector.broadcast %163 : vector<1x1x16x64xf32> to vector<2x5x16x64xf32>
    %165 = arith.addf %162, %164 : vector<2x5x16x64xf32>
    %c392 = arith.constant 392 : index
    %c0_56 = arith.constant 0 : index
    %166 = vector.load %arg1[%c392, %c0_56] : memref<1104x128xf32, #tpu.memory_space<vmem>>, vector<320x64xf32>
    %c712 = arith.constant 712 : index
    %c0_57 = arith.constant 0 : index
    %167 = vector.load %arg1[%c712, %c0_57] : memref<1104x128xf32, #tpu.memory_space<vmem>>, vector<64x1xf32>
    %c776 = arith.constant 776 : index
    %c0_58 = arith.constant 0 : index
    %168 = vector.load %arg1[%c776, %c0_58] : memref<1104x128xf32, #tpu.memory_space<vmem>>, vector<64x16xf32>
    %c840 = arith.constant 840 : index
    %c0_59 = arith.constant 0 : index
    %169 = vector.load %arg1[%c840, %c0_59] : memref<1104x128xf32, #tpu.memory_space<vmem>>, vector<64x16xf32>
    %c904 = arith.constant 904 : index
    %c0_60 = arith.constant 0 : index
    %170 = vector.load %arg1[%c904, %c0_60] : memref<1104x128xf32, #tpu.memory_space<vmem>>, vector<64x64xf32>
    %c968 = arith.constant 968 : index
    %c0_61 = arith.constant 0 : index
    %171 = vector.load %arg1[%c968, %c0_61] : memref<1104x128xf32, #tpu.memory_space<vmem>>, vector<64x1xf32>
    %c1032 = arith.constant 1032 : index
    %c0_62 = arith.constant 0 : index
    %172 = vector.load %arg1[%c1032, %c0_62] : memref<1104x128xf32, #tpu.memory_space<vmem>>, vector<64x1xf32>
    %c1096 = arith.constant 1096 : index
    %c0_63 = arith.constant 0 : index
    %173 = vector.load %arg1[%c1096, %c0_63] : memref<1104x128xf32, #tpu.memory_space<vmem>>, vector<1x1xf32>
    %174 = tpu.transpose %165, [0, 1, 3, 2] : vector<2x5x16x64xf32> -> vector<2x5x64x16xf32>
    %175 = vector.shape_cast %174 : vector<2x5x64x16xf32> to vector<2x320x16xf32>
    %176 = tpu.transpose %166, [1, 0] : vector<320x64xf32> -> vector<64x320xf32>
    %177 = vector.extract_strided_slice %175 {offsets = [0, 0, 0], sizes = [1, 320, 16], strides = [1, 1, 1]} : vector<2x320x16xf32> to vector<1x320x16xf32>
    %178 = vector.shape_cast %177 : vector<1x320x16xf32> to vector<320x16xf32>
    %cst_64 = arith.constant dense<0.000000e+00> : vector<64x16xf32>
    %179 = tpu.matmul %176, %178, %cst_64 {dimension_numbers = #tpu.dot_dimension_numbers<[1], [0], [0], [1], [0, 0, 1, 1], [], []>} : vector<64x320xf32>, vector<320x16xf32>, vector<64x16xf32> -> vector<64x16xf32>
    %180 = vector.broadcast %167 : vector<64x1xf32> to vector<64x16xf32>
    %181 = arith.addf %179, %180 : vector<64x16xf32>
    %cst_65 = arith.constant dense<0.000000e+00> : vector<64xf32>
    %182 = vector.multi_reduction <add>, %181, %cst_65 [1] : vector<64x16xf32> to vector<64xf32>
    %183 = vector.shape_cast %182 : vector<64xf32> to vector<64x1xf32>
    %cst_66 = arith.constant dense<0.000000e+00> : vector<1xf32>
    %184 = vector.multi_reduction <add>, %183, %cst_66 [0] : vector<64x1xf32> to vector<1xf32>
    %185 = vector.shape_cast %184 : vector<1xf32> to vector<1x1xf32>
    %cst_67 = arith.constant 9.765625E-4 : f32
    %186 = vector.broadcast %cst_67 : f32 to vector<1x1xf32>
    %187 = arith.mulf %185, %186 : vector<1x1xf32>
    %188 = vector.broadcast %187 : vector<1x1xf32> to vector<64x16xf32>
    %189 = arith.subf %181, %188 : vector<64x16xf32>
    %190 = arith.mulf %189, %189 : vector<64x16xf32>
    %cst_68 = arith.constant dense<0.000000e+00> : vector<64xf32>
    %191 = vector.multi_reduction <add>, %190, %cst_68 [1] : vector<64x16xf32> to vector<64xf32>
    %192 = vector.shape_cast %191 : vector<64xf32> to vector<64x1xf32>
    %cst_69 = arith.constant dense<0.000000e+00> : vector<1xf32>
    %193 = vector.multi_reduction <add>, %192, %cst_69 [0] : vector<64x1xf32> to vector<1xf32>
    %194 = vector.shape_cast %193 : vector<1xf32> to vector<1x1xf32>
    %cst_70 = arith.constant 9.765625E-4 : f32
    %195 = vector.broadcast %cst_70 : f32 to vector<1x1xf32>
    %196 = arith.mulf %194, %195 : vector<1x1xf32>
    %cst_71 = arith.constant 9.99999974E-6 : f32
    %197 = vector.broadcast %cst_71 : f32 to vector<1x1xf32>
    %198 = arith.addf %196, %197 : vector<1x1xf32>
    %199 = math.rsqrt %198 : vector<1x1xf32>
    %200 = vector.broadcast %199 : vector<1x1xf32> to vector<64x16xf32>
    %201 = arith.mulf %189, %200 : vector<64x16xf32>
    %202 = arith.mulf %201, %168 : vector<64x16xf32>
    %203 = arith.addf %202, %169 : vector<64x16xf32>
    %cst_72 = arith.constant dense<0.000000e+00> : vector<64x16xf32>
    %204 = tpu.matmul %170, %203, %cst_72 {dimension_numbers = #tpu.dot_dimension_numbers<[1], [0], [0], [1], [0, 0, 1, 1], [], []>} : vector<64x64xf32>, vector<64x16xf32>, vector<64x16xf32> -> vector<64x16xf32>
    %205 = vector.broadcast %171 : vector<64x1xf32> to vector<64x16xf32>
    %206 = arith.addf %204, %205 : vector<64x16xf32>
    %207 = vector.broadcast %172 : vector<64x1xf32> to vector<64x16xf32>
    %208 = arith.mulf %206, %207 : vector<64x16xf32>
    %cst_73 = arith.constant dense<0.000000e+00> : vector<16xf32>
    %209 = vector.multi_reduction <add>, %208, %cst_73 [0] : vector<64x16xf32> to vector<16xf32>
    %210 = vector.shape_cast %209 : vector<16xf32> to vector<1x16xf32>
    %211 = vector.broadcast %173 : vector<1x1xf32> to vector<1x16xf32>
    %212 = arith.addf %210, %211 : vector<1x16xf32>
    %213 = vector.extract_strided_slice %175 {offsets = [1, 0, 0], sizes = [1, 320, 16], strides = [1, 1, 1]} : vector<2x320x16xf32> to vector<1x320x16xf32>
    %214 = vector.shape_cast %213 : vector<1x320x16xf32> to vector<320x16xf32>
    %cst_74 = arith.constant dense<0.000000e+00> : vector<64x16xf32>
    %215 = tpu.matmul %176, %214, %cst_74 {dimension_numbers = #tpu.dot_dimension_numbers<[1], [0], [0], [1], [0, 0, 1, 1], [], []>} : vector<64x320xf32>, vector<320x16xf32>, vector<64x16xf32> -> vector<64x16xf32>
    %216 = vector.broadcast %167 : vector<64x1xf32> to vector<64x16xf32>
    %217 = arith.addf %215, %216 : vector<64x16xf32>
    %cst_75 = arith.constant dense<0.000000e+00> : vector<64xf32>
    %218 = vector.multi_reduction <add>, %217, %cst_75 [1] : vector<64x16xf32> to vector<64xf32>
    %219 = vector.shape_cast %218 : vector<64xf32> to vector<64x1xf32>
    %cst_76 = arith.constant dense<0.000000e+00> : vector<1xf32>
    %220 = vector.multi_reduction <add>, %219, %cst_76 [0] : vector<64x1xf32> to vector<1xf32>
    %221 = vector.shape_cast %220 : vector<1xf32> to vector<1x1xf32>
    %cst_77 = arith.constant 9.765625E-4 : f32
    %222 = vector.broadcast %cst_77 : f32 to vector<1x1xf32>
    %223 = arith.mulf %221, %222 : vector<1x1xf32>
    %224 = vector.broadcast %223 : vector<1x1xf32> to vector<64x16xf32>
    %225 = arith.subf %217, %224 : vector<64x16xf32>
    %226 = arith.mulf %225, %225 : vector<64x16xf32>
    %cst_78 = arith.constant dense<0.000000e+00> : vector<64xf32>
    %227 = vector.multi_reduction <add>, %226, %cst_78 [1] : vector<64x16xf32> to vector<64xf32>
    %228 = vector.shape_cast %227 : vector<64xf32> to vector<64x1xf32>
    %cst_79 = arith.constant dense<0.000000e+00> : vector<1xf32>
    %229 = vector.multi_reduction <add>, %228, %cst_79 [0] : vector<64x1xf32> to vector<1xf32>
    %230 = vector.shape_cast %229 : vector<1xf32> to vector<1x1xf32>
    %cst_80 = arith.constant 9.765625E-4 : f32
    %231 = vector.broadcast %cst_80 : f32 to vector<1x1xf32>
    %232 = arith.mulf %230, %231 : vector<1x1xf32>
    %cst_81 = arith.constant 9.99999974E-6 : f32
    %233 = vector.broadcast %cst_81 : f32 to vector<1x1xf32>
    %234 = arith.addf %232, %233 : vector<1x1xf32>
    %235 = math.rsqrt %234 : vector<1x1xf32>
    %236 = vector.broadcast %235 : vector<1x1xf32> to vector<64x16xf32>
    %237 = arith.mulf %225, %236 : vector<64x16xf32>
    %238 = arith.mulf %237, %168 : vector<64x16xf32>
    %239 = arith.addf %238, %169 : vector<64x16xf32>
    %cst_82 = arith.constant dense<0.000000e+00> : vector<64x16xf32>
    %240 = tpu.matmul %170, %239, %cst_82 {dimension_numbers = #tpu.dot_dimension_numbers<[1], [0], [0], [1], [0, 0, 1, 1], [], []>} : vector<64x64xf32>, vector<64x16xf32>, vector<64x16xf32> -> vector<64x16xf32>
    %241 = vector.broadcast %171 : vector<64x1xf32> to vector<64x16xf32>
    %242 = arith.addf %240, %241 : vector<64x16xf32>
    %243 = vector.broadcast %172 : vector<64x1xf32> to vector<64x16xf32>
    %244 = arith.mulf %242, %243 : vector<64x16xf32>
    %cst_83 = arith.constant dense<0.000000e+00> : vector<16xf32>
    %245 = vector.multi_reduction <add>, %244, %cst_83 [0] : vector<64x16xf32> to vector<16xf32>
    %246 = vector.shape_cast %245 : vector<16xf32> to vector<1x16xf32>
    %247 = vector.broadcast %173 : vector<1x1xf32> to vector<1x16xf32>
    %248 = arith.addf %246, %247 : vector<1x16xf32>
    %249 = tpu.concatenate %212, %248 in 0 : vector<1x16xf32>, vector<1x16xf32> -> vector<2x16xf32>
    %c0_84 = arith.constant 0 : index
    %c0_85 = arith.constant 0 : index
    %250 = vector.load %arg2[%c0_84, %c0_85] : memref<2x16xf32, #tpu.memory_space<vmem>>, vector<2x16xf32>
    tpu.vector_store %arg2[%c0_84, %c0_85], %249 {strides = array<i32>} : memref<2x16xf32, #tpu.memory_space<vmem>>, vector<2x16xf32>,
    return
  }
}

</mosaic_0001>

<llo_original>
// kernel: tpu_custom_call.1
$region0: #{tpu_custom_call.1}
  #allocation0 [shape = 'u32[]', space=smem, size = 0x4, offset = 0x4, fixed_abs, tag = 'smem constant byte address 0x4 - core index']
  #allocation1 [shape = 'u32[144,128]{1,0:T(1,128)}', space=vmem, size = 0x12000, scoped, tag = 'internal scratch']
  %s0 = inlined_call_operand.vmem [shape: f32[2,12,16,1], index: 0, kind: input, shape index: {}]
  %s1 = inlined_call_operand.hbm [shape: f32[1104,128], index: 1, kind: input, shape index: {}]
  %s2 = inlined_call_operand.hbm [shape: f32[2,16], index: 2, kind: output, shape index: {}]
  %s3 = sld [smem:[#allocation0]]
  $region22: #{tpu_custom_call.1} parent=0
    _
  %s5 = ssub.s32 1, %s3
  %s6 = scalar_select 0, %s5, %s3
  $region1: #{tpu_custom_call.1} parent=0
    #allocation2 [shape = 'u8[565248]{0}', space=vmem, size = 0x8a000, scoped, tag = 'input window, operand 1, single buffered']
    #allocation3 [shape = 's32[1]{0}', space=sflag, size = 0x4, scoped, tag = 'scoped memory for tpu_custom_call.1']
    #allocation4 [shape = 's32[1]{0}', space=sflag, size = 0x4, scoped, tag = 'scoped memory for tpu_custom_call.1']
    #allocation5 [shape = 'u8[1024]{0}', space=vmem, size = 0x400, scoped, tag = 'output window, operand 0, single buffered']
    %7 = vsyncpa [#allocation3], 0
    %8 = vsyncpa [#allocation4], 0
    // Predicated region
    $region2: #{tpu_custom_call.1} parent=1 // pred_check
      _
    $region3: #{tpu_custom_call.1} parent=1 // pred_check_branch
      %10 = sbr.rel (0) target = $region5
    $region4: #{tpu_custom_call.1} parent=1 // pred_region
      _
    $region5: #{tpu_custom_call.1} parent=1 // pred_fallthru
      _
    // Predicated region
    $region6: #{tpu_custom_call.1} parent=1 // pred_check
      _
    $region7: #{tpu_custom_call.1} parent=1 // pred_check_branch
      %12 = sbr.rel (0) target = $region9
    $region8: #{tpu_custom_call.1} parent=1 // pred_region
      %s14 = ssub.s32 17664, 17664
      %15 = vsyncadd [#allocation3], %s14
      %s16 = sshll.u32 [#allocation2], 4
      %s17 = int_to_ptr.vmem [resolvable:$true] %s16
      %22 = dma.hbm_to_vmem [thread:$0]  %s1, 17664, %s17, [#allocation3], 128, 128, 8
    $region9: #{tpu_custom_call.1} parent=1 // pred_fallthru
      _
    // Predicated region
    $region10: #{tpu_custom_call.1} parent=1 // pred_check
      _
    $region11: #{tpu_custom_call.1} parent=1 // pred_check_branch
      %24 = sbr.rel (0) target = $region13
    $region12: #{tpu_custom_call.1} parent=1 // pred_region
      %25 = dma.done [#allocation3], 17664
    $region13: #{tpu_custom_call.1} parent=1 // pred_fallthru
      _
    %v26 = vld [vmem:[%s0] sm:$0xff]
    %v27 = vld [vmem:[%s0 + $0x8] sm:$0xff]
    %v28 = vld [vmem:[%s0 + $0x10] sm:$0xff]
    %v29 = vld [vmem:[%s0 + $0x18] sm:$0xff]
    %v30 = vld [vmem:[%s0 + $0x20] sm:$0xff]
    %v31 = vld [vmem:[%s0 + $0x28] sm:$0xff]
    %v32 = vld [vmem:[%s0 + $0x30] sm:$0xff]
    %v33 = vld [vmem:[%s0 + $0x38] sm:$0xff]
    %v34 = vld [vmem:[%s0 + $0x40] sm:$0xff]
    %v35 = vld [vmem:[%s0 + $0x48] sm:$0xff]
    %v36 = vld [vmem:[%s0 + $0x50] sm:$0xff]
    %v37 = vld [vmem:[%s0 + $0x58] sm:$0xff]
    %v38 = vld [vmem:[%s0 + $0x60] sm:$0xff]
    %v39 = vld [vmem:[%s0 + $0x68] sm:$0xff]
    %v40 = vld [vmem:[%s0 + $0x70] sm:$0xff]
    %v41 = vld [vmem:[%s0 + $0x78] sm:$0xff]
    %v42 = vld [vmem:[%s0 + $0x80] sm:$0xff]
    %v43 = vld [vmem:[%s0 + $0x88] sm:$0xff]
    %v44 = vld [vmem:[%s0 + $0x90] sm:$0xff]
    %v45 = vld [vmem:[%s0 + $0x98] sm:$0xff]
    %v46 = vld [vmem:[%s0 + $0xa0] sm:$0xff]
    %v47 = vld [vmem:[%s0 + $0xa8] sm:$0xff]
    %v48 = vld [vmem:[%s0 + $0xb0] sm:$0xff]
    %v49 = vld [vmem:[%s0 + $0xb8] sm:$0xff]
    %v50 = vld [vmem:[%s0 + $0xc0] sm:$0xff]
    %v51 = vld [vmem:[%s0 + $0xc8] sm:$0xff]
    %v52 = vld [vmem:[%s0 + $0xd0] sm:$0xff]
    %v53 = vld [vmem:[%s0 + $0xd8] sm:$0xff]
    %v54 = vld [vmem:[%s0 + $0xe0] sm:$0xff]
    %v55 = vld [vmem:[%s0 + $0xe8] sm:$0xff]
    %v56 = vld [vmem:[%s0 + $0xf0] sm:$0xff]
    %v57 = vld [vmem:[%s0 + $0xf8] sm:$0xff]
    %v58 = vld [vmem:[%s0 + $0x100] sm:$0xff]
    %v59 = vld [vmem:[%s0 + $0x108] sm:$0xff]
    %v60 = vld [vmem:[%s0 + $0x110] sm:$0xff]
    %v61 = vld [vmem:[%s0 + $0x118] sm:$0xff]
    %v62 = vld [vmem:[%s0 + $0x120] sm:$0xff]
    %v63 = vld [vmem:[%s0 + $0x128] sm:$0xff]
    %v64 = vld [vmem:[%s0 + $0x130] sm:$0xff]
    %v65 = vld [vmem:[%s0 + $0x138] sm:$0xff]
    %v66 = vld [vmem:[%s0 + $0x140] sm:$0xff]
    %v67 = vld [vmem:[%s0 + $0x148] sm:$0xff]
    %v68 = vld [vmem:[%s0 + $0x150] sm:$0xff]
    %v69 = vld [vmem:[%s0 + $0x158] sm:$0xff]
    %v70 = vld [vmem:[%s0 + $0x160] sm:$0xff]
    %v71 = vld [vmem:[%s0 + $0x168] sm:$0xff]
    %v72 = vld [vmem:[%s0 + $0x170] sm:$0xff]
    %v73 = vld [vmem:[%s0 + $0x178] sm:$0xff]
    %v74 = vld [vmem:[#allocation2 + $0x10] sm:$0x1]
    %v75 = vld [vmem:[#allocation2 + $0x18] sm:$0x1]
    %v76 = vld [vmem:[#allocation2 + $0x20] sm:$0x1]
    %v77 = vld [vmem:[#allocation2 + $0x28] sm:$0x1]
    %v78 = vld [vmem:[#allocation2 + $0x30] sm:$0x1]
    %v79 = vld [vmem:[#allocation2 + $0x38] sm:$0x1]
    %81 = vset.pattern.permute.xlu0 0
    %82 = vperm.xlu0 %81, %v26
    %v83 = vpop.permute.xlu0 %82
    %86 = vset.pattern.permute.xlu0 0
    %87 = vperm.xlu0 %86, %v27
    %v88 = vpop.permute.xlu0 %87
    %91 = vset.pattern.permute.xlu0 0
    %92 = vperm.xlu0 %91, %v28
    %v93 = vpop.permute.xlu0 %92
    %96 = vset.pattern.permute.xlu0 0
    %97 = vperm.xlu0 %96, %v29
    %v98 = vpop.permute.xlu0 %97
    %101 = vset.pattern.permute.xlu0 0
    %102 = vperm.xlu0 %101, %v30
    %v103 = vpop.permute.xlu0 %102
    %106 = vset.pattern.permute.xlu0 0
    %107 = vperm.xlu0 %106, %v31
    %v108 = vpop.permute.xlu0 %107
    %111 = vset.pattern.permute.xlu0 0
    %112 = vperm.xlu0 %111, %v32
    %v113 = vpop.permute.xlu0 %112
    %116 = vset.pattern.permute.xlu0 0
    %117 = vperm.xlu0 %116, %v33
    %v118 = vpop.permute.xlu0 %117
    %121 = vset.pattern.permute.xlu0 0
    %122 = vperm.xlu0 %121, %v34
    %v123 = vpop.permute.xlu0 %122
    %126 = vset.pattern.permute.xlu0 0
    %127 = vperm.xlu0 %126, %v35
    %v128 = vpop.permute.xlu0 %127
    %131 = vset.pattern.permute.xlu0 0
    %132 = vperm.xlu0 %131, %v36
    %v133 = vpop.permute.xlu0 %132
    %136 = vset.pattern.permute.xlu0 0
    %137 = vperm.xlu0 %136, %v37
    %v138 = vpop.permute.xlu0 %137
    %141 = vset.pattern.permute.xlu0 0
    %142 = vperm.xlu0 %141, %v38
    %v143 = vpop.permute.xlu0 %142
    %146 = vset.pattern.permute.xlu0 0
    %147 = vperm.xlu0 %146, %v39
    %v148 = vpop.permute.xlu0 %147
    %151 = vset.pattern.permute.xlu0 0
    %152 = vperm.xlu0 %151, %v40
    %v153 = vpop.permute.xlu0 %152
    %156 = vset.pattern.permute.xlu0 0
    %157 = vperm.xlu0 %156, %v41
    %v158 = vpop.permute.xlu0 %157
    %161 = vset.pattern.permute.xlu0 0
    %162 = vperm.xlu0 %161, %v42
    %v163 = vpop.permute.xlu0 %162
    %166 = vset.pattern.permute.xlu0 0
    %167 = vperm.xlu0 %166, %v43
    %v168 = vpop.permute.xlu0 %167
    %171 = vset.pattern.permute.xlu0 0
    %172 = vperm.xlu0 %171, %v44
    %v173 = vpop.permute.xlu0 %172
    %176 = vset.pattern.permute.xlu0 0
    %177 = vperm.xlu0 %176, %v45
    %v178 = vpop.permute.xlu0 %177
    %181 = vset.pattern.permute.xlu0 0
    %182 = vperm.xlu0 %181, %v46
    %v183 = vpop.permute.xlu0 %182
    %186 = vset.pattern.permute.xlu0 0
    %187 = vperm.xlu0 %186, %v47
    %v188 = vpop.permute.xlu0 %187
    %191 = vset.pattern.permute.xlu0 0
    %192 = vperm.xlu0 %191, %v50
    %v193 = vpop.permute.xlu0 %192
    %196 = vset.pattern.permute.xlu0 0
    %197 = vperm.xlu0 %196, %v51
    %v198 = vpop.permute.xlu0 %197
    %201 = vset.pattern.permute.xlu0 0
    %202 = vperm.xlu0 %201, %v52
    %v203 = vpop.permute.xlu0 %202
    %206 = vset.pattern.permute.xlu0 0
    %207 = vperm.xlu0 %206, %v53
    %v208 = vpop.permute.xlu0 %207
    %211 = vset.pattern.permute.xlu0 0
    %212 = vperm.xlu0 %211, %v54
    %v213 = vpop.permute.xlu0 %212
    %216 = vset.pattern.permute.xlu0 0
    %217 = vperm.xlu0 %216, %v55
    %v218 = vpop.permute.xlu0 %217
    %221 = vset.pattern.permute.xlu0 0
    %222 = vperm.xlu0 %221, %v56
    %v223 = vpop.permute.xlu0 %222
    %226 = vset.pattern.permute.xlu0 0
    %227 = vperm.xlu0 %226, %v57
    %v228 = vpop.permute.xlu0 %227
    %231 = vset.pattern.permute.xlu0 0
    %232 = vperm.xlu0 %231, %v58
    %v233 = vpop.permute.xlu0 %232
    %236 = vset.pattern.permute.xlu0 0
    %237 = vperm.xlu0 %236, %v59
    %v238 = vpop.permute.xlu0 %237
    %241 = vset.pattern.permute.xlu0 0
    %242 = vperm.xlu0 %241, %v60
    %v243 = vpop.permute.xlu0 %242
    %246 = vset.pattern.permute.xlu0 0
    %247 = vperm.xlu0 %246, %v61
    %v248 = vpop.permute.xlu0 %247
    %251 = vset.pattern.permute.xlu0 0
    %252 = vperm.xlu0 %251, %v62
    %v253 = vpop.permute.xlu0 %252
    %256 = vset.pattern.permute.xlu0 0
    %257 = vperm.xlu0 %256, %v63
    %v258 = vpop.permute.xlu0 %257
    %261 = vset.pattern.permute.xlu0 0
    %262 = vperm.xlu0 %261, %v64
    %v263 = vpop.permute.xlu0 %262
    %266 = vset.pattern.permute.xlu0 0
    %267 = vperm.xlu0 %266, %v65
    %v268 = vpop.permute.xlu0 %267
    %271 = vset.pattern.permute.xlu0 0
    %272 = vperm.xlu0 %271, %v66
    %v273 = vpop.permute.xlu0 %272
    %276 = vset.pattern.permute.xlu0 0
    %277 = vperm.xlu0 %276, %v67
    %v278 = vpop.permute.xlu0 %277
    %281 = vset.pattern.permute.xlu0 0
    %282 = vperm.xlu0 %281, %v68
    %v283 = vpop.permute.xlu0 %282
    %286 = vset.pattern.permute.xlu0 0
    %287 = vperm.xlu0 %286, %v69
    %v288 = vpop.permute.xlu0 %287
    %291 = vset.pattern.permute.xlu0 0
    %292 = vperm.xlu0 %291, %v70
    %v293 = vpop.permute.xlu0 %292
    %296 = vset.pattern.permute.xlu0 0
    %297 = vperm.xlu0 %296, %v71
    %v298 = vpop.permute.xlu0 %297
    %v300 = vlaneseq
    %v301 = vshrl.u32 %v300, 7
    %v302 = vsub.s32 0, %v301
    %v303 = vrot.slane %v74, %v302
    %v304 = vmul.f32 %v83, %v303
    %v305 = vmul.f32 %v88, %v303
    %v306 = vmul.f32 %v93, %v303
    %v307 = vmul.f32 %v98, %v303
    %v308 = vmul.f32 %v103, %v303
    %v309 = vmul.f32 %v108, %v303
    %v310 = vmul.f32 %v113, %v303
    %v311 = vmul.f32 %v118, %v303
    %v312 = vmul.f32 %v123, %v303
    %v313 = vmul.f32 %v128, %v303
    %v314 = vmul.f32 %v133, %v303
    %v315 = vmul.f32 %v138, %v303
    %v316 = vmul.f32 %v143, %v303
    %v317 = vmul.f32 %v148, %v303
    %v318 = vmul.f32 %v153, %v303
    %v319 = vmul.f32 %v158, %v303
    %v320 = vmul.f32 %v163, %v303
    %v321 = vmul.f32 %v168, %v303
    %v322 = vmul.f32 %v173, %v303
    %v323 = vmul.f32 %v178, %v303
    %v324 = vmul.f32 %v183, %v303
    %v325 = vmul.f32 %v188, %v303
    %v326 = vmul.f32 %v193, %v303
    %v327 = vmul.f32 %v198, %v303
    %v328 = vmul.f32 %v203, %v303
    %v329 = vmul.f32 %v208, %v303
    %v330 = vmul.f32 %v213, %v303
    %v331 = vmul.f32 %v218, %v303
    %v332 = vmul.f32 %v223, %v303
    %v333 = vmul.f32 %v228, %v303
    %v334 = vmul.f32 %v233, %v303
    %v335 = vmul.f32 %v238, %v303
    %v336 = vmul.f32 %v243, %v303
    %v337 = vmul.f32 %v248, %v303
    %v338 = vmul.f32 %v253, %v303
    %v339 = vmul.f32 %v258, %v303
    %v340 = vmul.f32 %v263, %v303
    %v341 = vmul.f32 %v268, %v303
    %v342 = vmul.f32 %v273, %v303
    %v343 = vmul.f32 %v278, %v303
    %v344 = vmul.f32 %v283, %v303
    %v345 = vmul.f32 %v288, %v303
    %v346 = vmul.f32 %v293, %v303
    %v347 = vmul.f32 %v298, %v303
    %349 = vset.pattern.permute.xlu0 0
    %350 = vperm.xlu0 %349, %v48
    %v351 = vpop.permute.xlu0 %350
    %354 = vset.pattern.permute.xlu0 0
    %355 = vperm.xlu0 %354, %v49
    %v356 = vpop.permute.xlu0 %355
    %359 = vset.pattern.permute.xlu0 0
    %360 = vperm.xlu0 %359, %v72
    %v361 = vpop.permute.xlu0 %360
    %364 = vset.pattern.permute.xlu0 0
    %365 = vperm.xlu0 %364, %v73
    %v366 = vpop.permute.xlu0 %365
    %v368 = vlaneseq
    %v369 = vshrl.u32 %v368, 7
    %v370 = vsub.s32 0, %v369
    %v371 = vrot.slane %v76, %v370
    %v372 = vmul.f32 %v93, %v371
    %v373 = vmul.f32 %v98, %v371
    %v374 = vmul.f32 %v103, %v371
    %v375 = vmul.f32 %v108, %v371
    %v376 = vmul.f32 %v113, %v371
    %v377 = vmul.f32 %v118, %v371
    %v378 = vmul.f32 %v123, %v371
    %v379 = vmul.f32 %v128, %v371
    %v380 = vmul.f32 %v133, %v371
    %v381 = vmul.f32 %v138, %v371
    %v382 = vmul.f32 %v143, %v371
    %v383 = vmul.f32 %v148, %v371
    %v384 = vmul.f32 %v153, %v371
    %v385 = vmul.f32 %v158, %v371
    %v386 = vmul.f32 %v163, %v371
    %v387 = vmul.f32 %v168, %v371
    %v388 = vmul.f32 %v173, %v371
    %v389 = vmul.f32 %v178, %v371
    %v390 = vmul.f32 %v183, %v371
    %v391 = vmul.f32 %v188, %v371
    %v392 = vmul.f32 %v351, %v371
    %v393 = vmul.f32 %v356, %v371
    %v394 = vmul.f32 %v203, %v371
    %v395 = vmul.f32 %v208, %v371
    %v396 = vmul.f32 %v213, %v371
    %v397 = vmul.f32 %v218, %v371
    %v398 = vmul.f32 %v223, %v371
    %v399 = vmul.f32 %v228, %v371
    %v400 = vmul.f32 %v233, %v371
    %v401 = vmul.f32 %v238, %v371
    %v402 = vmul.f32 %v243, %v371
    %v403 = vmul.f32 %v248, %v371
    %v404 = vmul.f32 %v253, %v371
    %v405 = vmul.f32 %v258, %v371
    %v406 = vmul.f32 %v263, %v371
    %v407 = vmul.f32 %v268, %v371
    %v408 = vmul.f32 %v273, %v371
    %v409 = vmul.f32 %v278, %v371
    %v410 = vmul.f32 %v283, %v371
    %v411 = vmul.f32 %v288, %v371
    %v412 = vmul.f32 %v293, %v371
    %v413 = vmul.f32 %v298, %v371
    %v414 = vmul.f32 %v361, %v371
    %v415 = vmul.f32 %v366, %v371
    %v416 = vadd.f32 %v304, %v372
    %v417 = vadd.f32 %v305, %v373
    %v418 = vadd.f32 %v306, %v374
    %v419 = vadd.f32 %v307, %v375
    %v420 = vadd.f32 %v308, %v376
    %v421 = vadd.f32 %v309, %v377
    %v422 = vadd.f32 %v310, %v378
    %v423 = vadd.f32 %v311, %v379
    %v424 = vadd.f32 %v312, %v380
    %v425 = vadd.f32 %v313, %v381
    %v426 = vadd.f32 %v314, %v382
    %v427 = vadd.f32 %v315, %v383
    %v428 = vadd.f32 %v316, %v384
    %v429 = vadd.f32 %v317, %v385
    %v430 = vadd.f32 %v318, %v386
    %v431 = vadd.f32 %v319, %v387
    %v432 = vadd.f32 %v320, %v388
    %v433 = vadd.f32 %v321, %v389
    %v434 = vadd.f32 %v322, %v390
    %v435 = vadd.f32 %v323, %v391
    %v436 = vadd.f32 %v324, %v392
    %v437 = vadd.f32 %v325, %v393
    %v438 = vadd.f32 %v326, %v394
    %v439 = vadd.f32 %v327, %v395
    %v440 = vadd.f32 %v328, %v396
    %v441 = vadd.f32 %v329, %v397
    %v442 = vadd.f32 %v330, %v398
    %v443 = vadd.f32 %v331, %v399
    %v444 = vadd.f32 %v332, %v400
    %v445 = vadd.f32 %v333, %v401
    %v446 = vadd.f32 %v334, %v402
    %v447 = vadd.f32 %v335, %v403
    %v448 = vadd.f32 %v336, %v404
    %v449 = vadd.f32 %v337, %v405
    %v450 = vadd.f32 %v338, %v406
    %v451 = vadd.f32 %v339, %v407
    %v452 = vadd.f32 %v340, %v408
    %v453 = vadd.f32 %v341, %v409
    %v454 = vadd.f32 %v342, %v410
    %v455 = vadd.f32 %v343, %v411
    %v456 = vadd.f32 %v344, %v412
    %v457 = vadd.f32 %v345, %v413
    %v458 = vadd.f32 %v346, %v414
    %v459 = vadd.f32 %v347, %v415
    %v460 = vlaneseq
    %v461 = vshrl.u32 %v460, 7
    %v462 = vsub.s32 0, %v461
    %v463 = vrot.slane %v78, %v462
    %v464 = vadd.f32 %v416, %v463
    %v465 = vadd.f32 %v417, %v463
    %v466 = vadd.f32 %v418, %v463
    %v467 = vadd.f32 %v419, %v463
    %v468 = vadd.f32 %v420, %v463
    %v469 = vadd.f32 %v421, %v463
    %v470 = vadd.f32 %v422, %v463
    %v471 = vadd.f32 %v423, %v463
    %v472 = vadd.f32 %v424, %v463
    %v473 = vadd.f32 %v425, %v463
    %v474 = vadd.f32 %v426, %v463
    %v475 = vadd.f32 %v427, %v463
    %v476 = vadd.f32 %v428, %v463
    %v477 = vadd.f32 %v429, %v463
    %v478 = vadd.f32 %v430, %v463
    %v479 = vadd.f32 %v431, %v463
    %v480 = vadd.f32 %v432, %v463
    %v481 = vadd.f32 %v433, %v463
    %v482 = vadd.f32 %v434, %v463
    %v483 = vadd.f32 %v435, %v463
    %v484 = vadd.f32 %v436, %v463
    %v485 = vadd.f32 %v437, %v463
    %v486 = vadd.f32 %v438, %v463
    %v487 = vadd.f32 %v439, %v463
    %v488 = vadd.f32 %v440, %v463
    %v489 = vadd.f32 %v441, %v463
    %v490 = vadd.f32 %v442, %v463
    %v491 = vadd.f32 %v443, %v463
    %v492 = vadd.f32 %v444, %v463
    %v493 = vadd.f32 %v445, %v463
    %v494 = vadd.f32 %v446, %v463
    %v495 = vadd.f32 %v447, %v463
    %v496 = vadd.f32 %v448, %v463
    %v497 = vadd.f32 %v449, %v463
    %v498 = vadd.f32 %v450, %v463
    %v499 = vadd.f32 %v451, %v463
    %v500 = vadd.f32 %v452, %v463
    %v501 = vadd.f32 %v453, %v463
    %v502 = vadd.f32 %v454, %v463
    %v503 = vadd.f32 %v455, %v463
    %v504 = vadd.f32 %v456, %v463
    %v505 = vadd.f32 %v457, %v463
    %v506 = vadd.f32 %v458, %v463
    %v507 = vadd.f32 %v459, %v463
    %v508 = vlaneseq
    %v509 = vshrl.u32 %v508, 7
    %v510 = vsub.s32 0, %v509
    %v511 = vrot.slane %v75, %v510
    %v512 = vmul.f32 %v83, %v511
    %v513 = vmul.f32 %v88, %v511
    %v514 = vmul.f32 %v93, %v511
    %v515 = vmul.f32 %v98, %v511
    %v516 = vmul.f32 %v103, %v511
    %v517 = vmul.f32 %v108, %v511
    %v518 = vmul.f32 %v113, %v511
    %v519 = vmul.f32 %v118, %v511
    %v520 = vmul.f32 %v123, %v511
    %v521 = vmul.f32 %v128, %v511
    %v522 = vmul.f32 %v133, %v511
    %v523 = vmul.f32 %v138, %v511
    %v524 = vmul.f32 %v143, %v511
    %v525 = vmul.f32 %v148, %v511
    %v526 = vmul.f32 %v153, %v511
    %v527 = vmul.f32 %v158, %v511
    %v528 = vmul.f32 %v163, %v511
    %v529 = vmul.f32 %v168, %v511
    %v530 = vmul.f32 %v173, %v511
    %v531 = vmul.f32 %v178, %v511
    %v532 = vmul.f32 %v183, %v511
    %v533 = vmul.f32 %v188, %v511
    %v534 = vmul.f32 %v193, %v511
    %v535 = vmul.f32 %v198, %v511
    %v536 = vmul.f32 %v203, %v511
    %v537 = vmul.f32 %v208, %v511
    %v538 = vmul.f32 %v213, %v511
    %v539 = vmul.f32 %v218, %v511
    %v540 = vmul.f32 %v223, %v511
    %v541 = vmul.f32 %v228, %v511
    %v542 = vmul.f32 %v233, %v511
    %v543 = vmul.f32 %v238, %v511
    %v544 = vmul.f32 %v243, %v511
    %v545 = vmul.f32 %v248, %v511
    %v546 = vmul.f32 %v253, %v511
    %v547 = vmul.f32 %v258, %v511
    %v548 = vmul.f32 %v263, %v511
    %v549 = vmul.f32 %v268, %v511
    %v550 = vmul.f32 %v273, %v511
    %v551 = vmul.f32 %v278, %v511
    %v552 = vmul.f32 %v283, %v511
    %v553 = vmul.f32 %v288, %v511
    %v554 = vmul.f32 %v293, %v511
    %v555 = vmul.f32 %v298, %v511
    %v556 = vlaneseq
    %v557 = vshrl.u32 %v556, 7
    %v558 = vsub.s32 0, %v557
    %v559 = vrot.slane %v77, %v558
    %v560 = vmul.f32 %v93, %v559
    %v561 = vmul.f32 %v98, %v559
    %v562 = vmul.f32 %v103, %v559
    %v563 = vmul.f32 %v108, %v559
    %v564 = vmul.f32 %v113, %v559
    %v565 = vmul.f32 %v118, %v559
    %v566 = vmul.f32 %v123, %v559
    %v567 = vmul.f32 %v128, %v559
    %v568 = vmul.f32 %v133, %v559
    %v569 = vmul.f32 %v138, %v559
    %v570 = vmul.f32 %v143, %v559
    %v571 = vmul.f32 %v148, %v559
    %v572 = vmul.f32 %v153, %v559
    %v573 = vmul.f32 %v158, %v559
    %v574 = vmul.f32 %v163, %v559
    %v575 = vmul.f32 %v168, %v559
    %v576 = vmul.f32 %v173, %v559
    %v577 = vmul.f32 %v178, %v559
    %v578 = vmul.f32 %v183, %v559
    %v579 = vmul.f32 %v188, %v559
    %v580 = vmul.f32 %v351, %v559
    %v581 = vmul.f32 %v356, %v559
    %v582 = vmul.f32 %v203, %v559
    %v583 = vmul.f32 %v208, %v559
    %v584 = vmul.f32 %v213, %v559
    %v585 = vmul.f32 %v218, %v559
    %v586 = vmul.f32 %v223, %v559
    %v587 = vmul.f32 %v228, %v559
    %v588 = vmul.f32 %v233, %v559
    %v589 = vmul.f32 %v238, %v559
    %v590 = vmul.f32 %v243, %v559
    %v591 = vmul.f32 %v248, %v559
    %v592 = vmul.f32 %v253, %v559
    %v593 = vmul.f32 %v258, %v559
    %v594 = vmul.f32 %v263, %v559
    %v595 = vmul.f32 %v268, %v559
    %v596 = vmul.f32 %v273, %v559
    %v597 = vmul.f32 %v278, %v559
    %v598 = vmul.f32 %v283, %v559
    %v599 = vmul.f32 %v288, %v559
    %v600 = vmul.f32 %v293, %v559
    %v601 = vmul.f32 %v298, %v559
    %v602 = vmul.f32 %v361, %v559
    %v603 = vmul.f32 %v366, %v559
    %v604 = vadd.f32 %v512, %v560
    %v605 = vadd.f32 %v513, %v561
    %v606 = vadd.f32 %v514, %v562
    %v607 = vadd.f32 %v515, %v563
    %v608 = vadd.f32 %v516, %v564
    %v609 = vadd.f32 %v517, %v565
    %v610 = vadd.f32 %v518, %v566
    %v611 = vadd.f32 %v519, %v567
    %v612 = vadd.f32 %v520, %v568
    %v613 = vadd.f32 %v521, %v569
    %v614 = vadd.f32 %v522, %v570
    %v615 = vadd.f32 %v523, %v571
    %v616 = vadd.f32 %v524, %v572
    %v617 = vadd.f32 %v525, %v573
    %v618 = vadd.f32 %v526, %v574
    %v619 = vadd.f32 %v527, %v575
    %v620 = vadd.f32 %v528, %v576
    %v621 = vadd.f32 %v529, %v577
    %v622 = vadd.f32 %v530, %v578
    %v623 = vadd.f32 %v531, %v579
    %v624 = vadd.f32 %v532, %v580
    %v625 = vadd.f32 %v533, %v581
    %v626 = vadd.f32 %v534, %v582
    %v627 = vadd.f32 %v535, %v583
    %v628 = vadd.f32 %v536, %v584
    %v629 = vadd.f32 %v537, %v585
    %v630 = vadd.f32 %v538, %v586
    %v631 = vadd.f32 %v539, %v587
    %v632 = vadd.f32 %v540, %v588
    %v633 = vadd.f32 %v541, %v589
    %v634 = vadd.f32 %v542, %v590
    %v635 = vadd.f32 %v543, %v591
    %v636 = vadd.f32 %v544, %v592
    %v637 = vadd.f32 %v545, %v593
    %v638 = vadd.f32 %v546, %v594
    %v639 = vadd.f32 %v547, %v595
    %v640 = vadd.f32 %v548, %v596
    %v641 = vadd.f32 %v549, %v597
    %v642 = vadd.f32 %v550, %v598
    %v643 = vadd.f32 %v551, %v599
    %v644 = vadd.f32 %v552, %v600
    %v645 = vadd.f32 %v553, %v601
    %v646 = vadd.f32 %v554, %v602
    %v647 = vadd.f32 %v555, %v603
    %v648 = vlaneseq
    %v649 = vshrl.u32 %v648, 7
    %v650 = vsub.s32 0, %v649
    %v651 = vrot.slane %v79, %v650
    %v652 = vadd.f32 %v604, %v651
    %v653 = vadd.f32 %v605, %v651
    %v654 = vadd.f32 %v606, %v651
    %v655 = vadd.f32 %v607, %v651
    %v656 = vadd.f32 %v608, %v651
    %v657 = vadd.f32 %v609, %v651
    %v658 = vadd.f32 %v610, %v651
    %v659 = vadd.f32 %v611, %v651
    %v660 = vadd.f32 %v612, %v651
    %v661 = vadd.f32 %v613, %v651
    %v662 = vadd.f32 %v614, %v651
    %v663 = vadd.f32 %v615, %v651
    %v664 = vadd.f32 %v616, %v651
    %v665 = vadd.f32 %v617, %v651
    %v666 = vadd.f32 %v618, %v651
    %v667 = vadd.f32 %v619, %v651
    %v668 = vadd.f32 %v620, %v651
    %v669 = vadd.f32 %v621, %v651
    %v670 = vadd.f32 %v622, %v651
    %v671 = vadd.f32 %v623, %v651
    %v672 = vadd.f32 %v624, %v651
    %v673 = vadd.f32 %v625, %v651
    %v674 = vadd.f32 %v626, %v651
    %v675 = vadd.f32 %v627, %v651
    %v676 = vadd.f32 %v628, %v651
    %v677 = vadd.f32 %v629, %v651
    %v678 = vadd.f32 %v630, %v651
    %v679 = vadd.f32 %v631, %v651
    %v680 = vadd.f32 %v632, %v651
    %v681 = vadd.f32 %v633, %v651
    %v682 = vadd.f32 %v634, %v651
    %v683 = vadd.f32 %v635, %v651
    %v684 = vadd.f32 %v636, %v651
    %v685 = vadd.f32 %v637, %v651
    %v686 = vadd.f32 %v638, %v651
    %v687 = vadd.f32 %v639, %v651
    %v688 = vadd.f32 %v640, %v651
    %v689 = vadd.f32 %v641, %v651
    %v690 = vadd.f32 %v642, %v651
    %v691 = vadd.f32 %v643, %v651
    %v692 = vadd.f32 %v644, %v651
    %v693 = vadd.f32 %v645, %v651
    %v694 = vadd.f32 %v646, %v651
    %v695 = vadd.f32 %v647, %v651
    %v696 = vxor.u32 %v652, 2147483648
    %v697 = vxor.u32 %v653, 2147483648
    %v698 = vxor.u32 %v654, 2147483648
    %v699 = vxor.u32 %v655, 2147483648
    %v700 = vxor.u32 %v656, 2147483648
    %v701 = vxor.u32 %v657, 2147483648
    %v702 = vxor.u32 %v658, 2147483648
    %v703 = vxor.u32 %v659, 2147483648
    %v704 = vxor.u32 %v660, 2147483648
    %v705 = vxor.u32 %v661, 2147483648
    %v706 = vxor.u32 %v662, 2147483648
    %v707 = vxor.u32 %v663, 2147483648
    %v708 = vxor.u32 %v664, 2147483648
    %v709 = vxor.u32 %v665, 2147483648
    %v710 = vxor.u32 %v666, 2147483648
    %v711 = vxor.u32 %v667, 2147483648
    %v712 = vxor.u32 %v668, 2147483648
    %v713 = vxor.u32 %v669, 2147483648
    %v714 = vxor.u32 %v670, 2147483648
    %v715 = vxor.u32 %v671, 2147483648
    %v716 = vxor.u32 %v672, 2147483648
    %v717 = vxor.u32 %v673, 2147483648
    %v718 = vxor.u32 %v674, 2147483648
    %v719 = vxor.u32 %v675, 2147483648
    %v720 = vxor.u32 %v676, 2147483648
    %v721 = vxor.u32 %v677, 2147483648
    %v722 = vxor.u32 %v678, 2147483648
    %v723 = vxor.u32 %v679, 2147483648
    %v724 = vxor.u32 %v680, 2147483648
    %v725 = vxor.u32 %v681, 2147483648
    %v726 = vxor.u32 %v682, 2147483648
    %v727 = vxor.u32 %v683, 2147483648
    %v728 = vxor.u32 %v684, 2147483648
    %v729 = vxor.u32 %v685, 2147483648
    %v730 = vxor.u32 %v686, 2147483648
    %v731 = vxor.u32 %v687, 2147483648
    %v732 = vxor.u32 %v688, 2147483648
    %v733 = vxor.u32 %v689, 2147483648
    %v734 = vxor.u32 %v690, 2147483648
    %v735 = vxor.u32 %v691, 2147483648
    %v736 = vxor.u32 %v692, 2147483648
    %v737 = vxor.u32 %v693, 2147483648
    %v738 = vxor.u32 %v694, 2147483648
    %v739 = vxor.u32 %v695, 2147483648
    %v740 = vmul.f32 %v696, 1.442695
    %v741 = vpow.pop %v740
    %v742 = vmul.f32 %v697, 1.442695
    %v743 = vpow.pop %v742
    %v744 = vmul.f32 %v698, 1.442695
    %v745 = vpow.pop %v744
    %v746 = vmul.f32 %v699, 1.442695
    %v747 = vpow.pop %v746
    %v748 = vmul.f32 %v700, 1.442695
    %v749 = vpow.pop %v748
    %v750 = vmul.f32 %v701, 1.442695
    %v751 = vpow.pop %v750
    %v752 = vmul.f32 %v702, 1.442695
    %v753 = vpow.pop %v752
    %v754 = vmul.f32 %v703, 1.442695
    %v755 = vpow.pop %v754
    %v756 = vmul.f32 %v704, 1.442695
    %v757 = vpow.pop %v756
    %v758 = vmul.f32 %v705, 1.442695
    %v759 = vpow.pop %v758
    %v760 = vmul.f32 %v706, 1.442695
    %v761 = vpow.pop %v760
    %v762 = vmul.f32 %v707, 1.442695
    %v763 = vpow.pop %v762
    %v764 = vmul.f32 %v708, 1.442695
    %v765 = vpow.pop %v764
    %v766 = vmul.f32 %v709, 1.442695
    %v767 = vpow.pop %v766
    %v768 = vmul.f32 %v710, 1.442695
    %v769 = vpow.pop %v768
    %v770 = vmul.f32 %v711, 1.442695
    %v771 = vpow.pop %v770
    %v772 = vmul.f32 %v712, 1.442695
    %v773 = vpow.pop %v772
    %v774 = vmul.f32 %v713, 1.442695
    %v775 = vpow.pop %v774
    %v776 = vmul.f32 %v714, 1.442695
    %v777 = vpow.pop %v776
    %v778 = vmul.f32 %v715, 1.442695
    %v779 = vpow.pop %v778
    %v780 = vmul.f32 %v716, 1.442695
    %v781 = vpow.pop %v780
    %v782 = vmul.f32 %v717, 1.442695
    %v783 = vpow.pop %v782
    %v784 = vmul.f32 %v718, 1.442695
    %v785 = vpow.pop %v784
    %v786 = vmul.f32 %v719, 1.442695
    %v787 = vpow.pop %v786
    %v788 = vmul.f32 %v720, 1.442695
    %v789 = vpow.pop %v788
    %v790 = vmul.f32 %v721, 1.442695
    %v791 = vpow.pop %v790
    %v792 = vmul.f32 %v722, 1.442695
    %v793 = vpow.pop %v792
    %v794 = vmul.f32 %v723, 1.442695
    %v795 = vpow.pop %v794
    %v796 = vmul.f32 %v724, 1.442695
    %v797 = vpow.pop %v796
    %v798 = vmul.f32 %v725, 1.442695
    %v799 = vpow.pop %v798
    %v800 = vmul.f32 %v726, 1.442695
    %v801 = vpow.pop %v800
    %v802 = vmul.f32 %v727, 1.442695
    %v803 = vpow.pop %v802
    %v804 = vmul.f32 %v728, 1.442695
    %v805 = vpow.pop %v804
    %v806 = vmul.f32 %v729, 1.442695
    %v807 = vpow.pop %v806
    %v808 = vmul.f32 %v730, 1.442695
    %v809 = vpow.pop %v808
    %v810 = vmul.f32 %v731, 1.442695
    %v811 = vpow.pop %v810
    %v812 = vmul.f32 %v732, 1.442695
    %v813 = vpow.pop %v812
    %v814 = vmul.f32 %v733, 1.442695
    %v815 = vpow.pop %v814
    %v816 = vmul.f32 %v734, 1.442695
    %v817 = vpow.pop %v816
    %v818 = vmul.f32 %v735, 1.442695
    %v819 = vpow.pop %v818
    %v820 = vmul.f32 %v736, 1.442695
    %v821 = vpow.pop %v820
    %v822 = vmul.f32 %v737, 1.442695
    %v823 = vpow.pop %v822
    %v824 = vmul.f32 %v738, 1.442695
    %v825 = vpow.pop %v824
    %v826 = vmul.f32 %v739, 1.442695
    %v827 = vpow.pop %v826
    %v828 = vadd.f32 %v741, 1.0
    %v829 = vadd.f32 %v743, 1.0
    %v830 = vadd.f32 %v745, 1.0
    %v831 = vadd.f32 %v747, 1.0
    %v832 = vadd.f32 %v749, 1.0
    %v833 = vadd.f32 %v751, 1.0
    %v834 = vadd.f32 %v753, 1.0
    %v835 = vadd.f32 %v755, 1.0
    %v836 = vadd.f32 %v757, 1.0
    %v837 = vadd.f32 %v759, 1.0
    %v838 = vadd.f32 %v761, 1.0
    %v839 = vadd.f32 %v763, 1.0
    %v840 = vadd.f32 %v765, 1.0
    %v841 = vadd.f32 %v767, 1.0
    %v842 = vadd.f32 %v769, 1.0
    %v843 = vadd.f32 %v771, 1.0
    %v844 = vadd.f32 %v773, 1.0
    %v845 = vadd.f32 %v775, 1.0
    %v846 = vadd.f32 %v777, 1.0
    %v847 = vadd.f32 %v779, 1.0
    %v848 = vadd.f32 %v781, 1.0
    %v849 = vadd.f32 %v783, 1.0
    %v850 = vadd.f32 %v785, 1.0
    %v851 = vadd.f32 %v787, 1.0
    %v852 = vadd.f32 %v789, 1.0
    %v853 = vadd.f32 %v791, 1.0
    %v854 = vadd.f32 %v793, 1.0
    %v855 = vadd.f32 %v795, 1.0
    %v856 = vadd.f32 %v797, 1.0
    %v857 = vadd.f32 %v799, 1.0
    %v858 = vadd.f32 %v801, 1.0
    %v859 = vadd.f32 %v803, 1.0
    %v860 = vadd.f32 %v805, 1.0
    %v861 = vadd.f32 %v807, 1.0
    %v862 = vadd.f32 %v809, 1.0
    %v863 = vadd.f32 %v811, 1.0
    %v864 = vadd.f32 %v813, 1.0
    %v865 = vadd.f32 %v815, 1.0
    %v866 = vadd.f32 %v817, 1.0
    %v867 = vadd.f32 %v819, 1.0
    %v868 = vadd.f32 %v821, 1.0
    %v869 = vadd.f32 %v823, 1.0
    %v870 = vadd.f32 %v825, 1.0
    %v871 = vadd.f32 %v827, 1.0
    %v872 = vrcp.pop %v828
    %v873 = vmul.f32 1.0, %v872
    %v874 = vrcp.pop %v829
    %v875 = vmul.f32 1.0, %v874
    %v876 = vrcp.pop %v830
    %v877 = vmul.f32 1.0, %v876
    %v878 = vrcp.pop %v831
    %v879 = vmul.f32 1.0, %v878
    %v880 = vrcp.pop %v832
    %v881 = vmul.f32 1.0, %v880
    %v882 = vrcp.pop %v833
    %v883 = vmul.f32 1.0, %v882
    %v884 = vrcp.pop %v834
    %v885 = vmul.f32 1.0, %v884
    %v886 = vrcp.pop %v835
    %v887 = vmul.f32 1.0, %v886
    %v888 = vrcp.pop %v836
    %v889 = vmul.f32 1.0, %v888
    %v890 = vrcp.pop %v837
    %v891 = vmul.f32 1.0, %v890
    %v892 = vrcp.pop %v838
    %v893 = vmul.f32 1.0, %v892
    %v894 = vrcp.pop %v839
    %v895 = vmul.f32 1.0, %v894
    %v896 = vrcp.pop %v840
    %v897 = vmul.f32 1.0, %v896
    %v898 = vrcp.pop %v841
    %v899 = vmul.f32 1.0, %v898
    %v900 = vrcp.pop %v842
    %v901 = vmul.f32 1.0, %v900
    %v902 = vrcp.pop %v843
    %v903 = vmul.f32 1.0, %v902
    %v904 = vrcp.pop %v844
    %v905 = vmul.f32 1.0, %v904
    %v906 = vrcp.pop %v845
    %v907 = vmul.f32 1.0, %v906
    %v908 = vrcp.pop %v846
    %v909 = vmul.f32 1.0, %v908
    %v910 = vrcp.pop %v847
    %v911 = vmul.f32 1.0, %v910
    %v912 = vrcp.pop %v848
    %v913 = vmul.f32 1.0, %v912
    %v914 = vrcp.pop %v849
    %v915 = vmul.f32 1.0, %v914
    %v916 = vrcp.pop %v850
    %v917 = vmul.f32 1.0, %v916
    %v918 = vrcp.pop %v851
    %v919 = vmul.f32 1.0, %v918
    %v920 = vrcp.pop %v852
    %v921 = vmul.f32 1.0, %v920
    %v922 = vrcp.pop %v853
    %v923 = vmul.f32 1.0, %v922
    %v924 = vrcp.pop %v854
    %v925 = vmul.f32 1.0, %v924
    %v926 = vrcp.pop %v855
    %v927 = vmul.f32 1.0, %v926
    %v928 = vrcp.pop %v856
    %v929 = vmul.f32 1.0, %v928
    %v930 = vrcp.pop %v857
    %v931 = vmul.f32 1.0, %v930
    %v932 = vrcp.pop %v858
    %v933 = vmul.f32 1.0, %v932
    %v934 = vrcp.pop %v859
    %v935 = vmul.f32 1.0, %v934
    %v936 = vrcp.pop %v860
    %v937 = vmul.f32 1.0, %v936
    %v938 = vrcp.pop %v861
    %v939 = vmul.f32 1.0, %v938
    %v940 = vrcp.pop %v862
    %v941 = vmul.f32 1.0, %v940
    %v942 = vrcp.pop %v863
    %v943 = vmul.f32 1.0, %v942
    %v944 = vrcp.pop %v864
    %v945 = vmul.f32 1.0, %v944
    %v946 = vrcp.pop %v865
    %v947 = vmul.f32 1.0, %v946
    %v948 = vrcp.pop %v866
    %v949 = vmul.f32 1.0, %v948
    %v950 = vrcp.pop %v867
    %v951 = vmul.f32 1.0, %v950
    %v952 = vrcp.pop %v868
    %v953 = vmul.f32 1.0, %v952
    %v954 = vrcp.pop %v869
    %v955 = vmul.f32 1.0, %v954
    %v956 = vrcp.pop %v870
    %v957 = vmul.f32 1.0, %v956
    %v958 = vrcp.pop %v871
    %v959 = vmul.f32 1.0, %v958
    %v960 = vmul.f32 %v464, %v873
    %v961 = vmul.f32 %v465, %v875
    %v962 = vmul.f32 %v466, %v877
    %v963 = vmul.f32 %v467, %v879
    %v964 = vmul.f32 %v468, %v881
    %v965 = vmul.f32 %v469, %v883
    %v966 = vmul.f32 %v470, %v885
    %v967 = vmul.f32 %v471, %v887
    %v968 = vmul.f32 %v472, %v889
    %v969 = vmul.f32 %v473, %v891
    %v970 = vmul.f32 %v474, %v893
    %v971 = vmul.f32 %v475, %v895
    %v972 = vmul.f32 %v476, %v897
    %v973 = vmul.f32 %v477, %v899
    %v974 = vmul.f32 %v478, %v901
    %v975 = vmul.f32 %v479, %v903
    %v976 = vmul.f32 %v480, %v905
    %v977 = vmul.f32 %v481, %v907
    %v978 = vmul.f32 %v482, %v909
    %v979 = vmul.f32 %v483, %v911
    %v980 = vmul.f32 %v484, %v913
    %v981 = vmul.f32 %v485, %v915
    %v982 = vmul.f32 %v486, %v917
    %v983 = vmul.f32 %v487, %v919
    %v984 = vmul.f32 %v488, %v921
    %v985 = vmul.f32 %v489, %v923
    %v986 = vmul.f32 %v490, %v925
    %v987 = vmul.f32 %v491, %v927
    %v988 = vmul.f32 %v492, %v929
    %v989 = vmul.f32 %v493, %v931
    %v990 = vmul.f32 %v494, %v933
    %v991 = vmul.f32 %v495, %v935
    %v992 = vmul.f32 %v496, %v937
    %v993 = vmul.f32 %v497, %v939
    %v994 = vmul.f32 %v498, %v941
    %v995 = vmul.f32 %v499, %v943
    %v996 = vmul.f32 %v500, %v945
    %v997 = vmul.f32 %v501, %v947
    %v998 = vmul.f32 %v502, %v949
    %v999 = vmul.f32 %v503, %v951
    %v1000 = vmul.f32 %v504, %v953
    %v1001 = vmul.f32 %v505, %v955
    %v1002 = vmul.f32 %v506, %v957
    %v1003 = vmul.f32 %v507, %v959
    %v1004 = vld [vmem:[#allocation2 + $0x40] sm:$0xff]
    %v1005 = vld [vmem:[#allocation2 + $0x48] sm:$0xff]
    %v1006 = vld [vmem:[#allocation2 + $0x50] sm:$0xff]
    %v1007 = vld [vmem:[#allocation2 + $0x58] sm:$0xff]
    %vm1008 = vcmask 130048
    %v1009 = vsel %vm1008, %v960, 0.0
    %1010 = vadd.xlane.f32.xlu0 %v1009
    %v1011 = vpop.xlane.xlu0 %1010
    %v1012 = vsel %vm1008, %v961, 0.0
    %1013 = vadd.xlane.f32.xlu0 %v1012
    %v1014 = vpop.xlane.xlu0 %1013
    %v1015 = vsel %vm1008, %v962, 0.0
    %1016 = vadd.xlane.f32.xlu0 %v1015
    %v1017 = vpop.xlane.xlu0 %1016
    %v1018 = vsel %vm1008, %v963, 0.0
    %1019 = vadd.xlane.f32.xlu0 %v1018
    %v1020 = vpop.xlane.xlu0 %1019
    %v1021 = vsel %vm1008, %v964, 0.0
    %1022 = vadd.xlane.f32.xlu0 %v1021
    %v1023 = vpop.xlane.xlu0 %1022
    %v1024 = vsel %vm1008, %v965, 0.0
    %1025 = vadd.xlane.f32.xlu0 %v1024
    %v1026 = vpop.xlane.xlu0 %1025
    %v1027 = vsel %vm1008, %v966, 0.0
    %1028 = vadd.xlane.f32.xlu0 %v1027
    %v1029 = vpop.xlane.xlu0 %1028
    %v1030 = vsel %vm1008, %v967, 0.0
    %1031 = vadd.xlane.f32.xlu0 %v1030
    %v1032 = vpop.xlane.xlu0 %1031
    %v1033 = vsel %vm1008, %v968, 0.0
    %1034 = vadd.xlane.f32.xlu0 %v1033
    %v1035 = vpop.xlane.xlu0 %1034
    %v1036 = vsel %vm1008, %v969, 0.0
    %1037 = vadd.xlane.f32.xlu0 %v1036
    %v1038 = vpop.xlane.xlu0 %1037
    %v1039 = vsel %vm1008, %v970, 0.0
    %1040 = vadd.xlane.f32.xlu0 %v1039
    %v1041 = vpop.xlane.xlu0 %1040
    %v1042 = vsel %vm1008, %v971, 0.0
    %1043 = vadd.xlane.f32.xlu0 %v1042
    %v1044 = vpop.xlane.xlu0 %1043
    %v1045 = vsel %vm1008, %v972, 0.0
    %1046 = vadd.xlane.f32.xlu0 %v1045
    %v1047 = vpop.xlane.xlu0 %1046
    %v1048 = vsel %vm1008, %v973, 0.0
    %1049 = vadd.xlane.f32.xlu0 %v1048
    %v1050 = vpop.xlane.xlu0 %1049
    %v1051 = vsel %vm1008, %v974, 0.0
    %1052 = vadd.xlane.f32.xlu0 %v1051
    %v1053 = vpop.xlane.xlu0 %1052
    %v1054 = vsel %vm1008, %v975, 0.0
    %1055 = vadd.xlane.f32.xlu0 %v1054
    %v1056 = vpop.xlane.xlu0 %1055
    %v1057 = vsel %vm1008, %v976, 0.0
    %1058 = vadd.xlane.f32.xlu0 %v1057
    %v1059 = vpop.xlane.xlu0 %1058
    %v1060 = vsel %vm1008, %v977, 0.0
    %1061 = vadd.xlane.f32.xlu0 %v1060
    %v1062 = vpop.xlane.xlu0 %1061
    %v1063 = vsel %vm1008, %v978, 0.0
    %1064 = vadd.xlane.f32.xlu0 %v1063
    %v1065 = vpop.xlane.xlu0 %1064
    %v1066 = vsel %vm1008, %v979, 0.0
    %1067 = vadd.xlane.f32.xlu0 %v1066
    %v1068 = vpop.xlane.xlu0 %1067
    %v1069 = vsel %vm1008, %v980, 0.0
    %1070 = vadd.xlane.f32.xlu0 %v1069
    %v1071 = vpop.xlane.xlu0 %1070
    %v1072 = vsel %vm1008, %v981, 0.0
    %1073 = vadd.xlane.f32.xlu0 %v1072
    %v1074 = vpop.xlane.xlu0 %1073
    %v1075 = vsel %vm1008, %v982, 0.0
    %1076 = vadd.xlane.f32.xlu0 %v1075
    %v1077 = vpop.xlane.xlu0 %1076
    %v1078 = vsel %vm1008, %v983, 0.0
    %1079 = vadd.xlane.f32.xlu0 %v1078
    %v1080 = vpop.xlane.xlu0 %1079
    %v1081 = vsel %vm1008, %v984, 0.0
    %1082 = vadd.xlane.f32.xlu0 %v1081
    %v1083 = vpop.xlane.xlu0 %1082
    %v1084 = vsel %vm1008, %v985, 0.0
    %1085 = vadd.xlane.f32.xlu0 %v1084
    %v1086 = vpop.xlane.xlu0 %1085
    %v1087 = vsel %vm1008, %v986, 0.0
    %1088 = vadd.xlane.f32.xlu0 %v1087
    %v1089 = vpop.xlane.xlu0 %1088
    %v1090 = vsel %vm1008, %v987, 0.0
    %1091 = vadd.xlane.f32.xlu0 %v1090
    %v1092 = vpop.xlane.xlu0 %1091
    %v1093 = vsel %vm1008, %v988, 0.0
    %1094 = vadd.xlane.f32.xlu0 %v1093
    %v1095 = vpop.xlane.xlu0 %1094
    %v1096 = vsel %vm1008, %v989, 0.0
    %1097 = vadd.xlane.f32.xlu0 %v1096
    %v1098 = vpop.xlane.xlu0 %1097
    %v1099 = vsel %vm1008, %v990, 0.0
    %1100 = vadd.xlane.f32.xlu0 %v1099
    %v1101 = vpop.xlane.xlu0 %1100
    %v1102 = vsel %vm1008, %v991, 0.0
    %1103 = vadd.xlane.f32.xlu0 %v1102
    %v1104 = vpop.xlane.xlu0 %1103
    %v1105 = vsel %vm1008, %v992, 0.0
    %1106 = vadd.xlane.f32.xlu0 %v1105
    %v1107 = vpop.xlane.xlu0 %1106
    %v1108 = vsel %vm1008, %v993, 0.0
    %1109 = vadd.xlane.f32.xlu0 %v1108
    %v1110 = vpop.xlane.xlu0 %1109
    %v1111 = vsel %vm1008, %v994, 0.0
    %1112 = vadd.xlane.f32.xlu0 %v1111
    %v1113 = vpop.xlane.xlu0 %1112
    %v1114 = vsel %vm1008, %v995, 0.0
    %1115 = vadd.xlane.f32.xlu0 %v1114
    %v1116 = vpop.xlane.xlu0 %1115
    %v1117 = vsel %vm1008, %v996, 0.0
    %1118 = vadd.xlane.f32.xlu0 %v1117
    %v1119 = vpop.xlane.xlu0 %1118
    %v1120 = vsel %vm1008, %v997, 0.0
    %1121 = vadd.xlane.f32.xlu0 %v1120
    %v1122 = vpop.xlane.xlu0 %1121
    %v1123 = vsel %vm1008, %v998, 0.0
    %1124 = vadd.xlane.f32.xlu0 %v1123
    %v1125 = vpop.xlane.xlu0 %1124
    %v1126 = vsel %vm1008, %v999, 0.0
    %1127 = vadd.xlane.f32.xlu0 %v1126
    %v1128 = vpop.xlane.xlu0 %1127
    %v1129 = vsel %vm1008, %v1000, 0.0
    %1130 = vadd.xlane.f32.xlu0 %v1129
    %v1131 = vpop.xlane.xlu0 %1130
    %v1132 = vsel %vm1008, %v1001, 0.0
    %1133 = vadd.xlane.f32.xlu0 %v1132
    %v1134 = vpop.xlane.xlu0 %1133
    %v1135 = vsel %vm1008, %v1002, 0.0
    %1136 = vadd.xlane.f32.xlu0 %v1135
    %v1137 = vpop.xlane.xlu0 %1136
    %v1138 = vsel %vm1008, %v1003, 0.0
    %1139 = vadd.xlane.f32.xlu0 %v1138
    %v1140 = vpop.xlane.xlu0 %1139
    %v1141 = vadd.f32 %v1011, %v1014
    %v1142 = vrot.slane %v1141, 4
    %v1143 = vadd.f32 %v1141, %v1142
    %v1144 = vrot.slane %v1143, 2
    %v1145 = vadd.f32 %v1143, %v1144
    %v1146 = vrot.slane %v1145, 1
    %v1147 = vadd.f32 %v1145, %v1146
    %v1148 = vadd.f32 %v1017, %v1020
    %v1149 = vrot.slane %v1148, 4
    %v1150 = vadd.f32 %v1148, %v1149
    %v1151 = vrot.slane %v1150, 2
    %v1152 = vadd.f32 %v1150, %v1151
    %v1153 = vrot.slane %v1152, 1
    %v1154 = vadd.f32 %v1152, %v1153
    %v1155 = vadd.f32 %v1023, %v1026
    %v1156 = vrot.slane %v1155, 4
    %v1157 = vadd.f32 %v1155, %v1156
    %v1158 = vrot.slane %v1157, 2
    %v1159 = vadd.f32 %v1157, %v1158
    %v1160 = vrot.slane %v1159, 1
    %v1161 = vadd.f32 %v1159, %v1160
    %v1162 = vadd.f32 %v1029, %v1032
    %v1163 = vrot.slane %v1162, 4
    %v1164 = vadd.f32 %v1162, %v1163
    %v1165 = vrot.slane %v1164, 2
    %v1166 = vadd.f32 %v1164, %v1165
    %v1167 = vrot.slane %v1166, 1
    %v1168 = vadd.f32 %v1166, %v1167
    %v1169 = vadd.f32 %v1035, %v1038
    %v1170 = vrot.slane %v1169, 4
    %v1171 = vadd.f32 %v1169, %v1170
    %v1172 = vrot.slane %v1171, 2
    %v1173 = vadd.f32 %v1171, %v1172
    %v1174 = vrot.slane %v1173, 1
    %v1175 = vadd.f32 %v1173, %v1174
    %v1176 = vadd.f32 %v1041, %v1044
    %v1177 = vrot.slane %v1176, 4
    %v1178 = vadd.f32 %v1176, %v1177
    %v1179 = vrot.slane %v1178, 2
    %v1180 = vadd.f32 %v1178, %v1179
    %v1181 = vrot.slane %v1180, 1
    %v1182 = vadd.f32 %v1180, %v1181
    %v1183 = vadd.f32 %v1047, %v1050
    %v1184 = vrot.slane %v1183, 4
    %v1185 = vadd.f32 %v1183, %v1184
    %v1186 = vrot.slane %v1185, 2
    %v1187 = vadd.f32 %v1185, %v1186
    %v1188 = vrot.slane %v1187, 1
    %v1189 = vadd.f32 %v1187, %v1188
    %v1190 = vadd.f32 %v1053, %v1056
    %v1191 = vrot.slane %v1190, 4
    %v1192 = vadd.f32 %v1190, %v1191
    %v1193 = vrot.slane %v1192, 2
    %v1194 = vadd.f32 %v1192, %v1193
    %v1195 = vrot.slane %v1194, 1
    %v1196 = vadd.f32 %v1194, %v1195
    %v1197 = vadd.f32 %v1059, %v1062
    %v1198 = vrot.slane %v1197, 4
    %v1199 = vadd.f32 %v1197, %v1198
    %v1200 = vrot.slane %v1199, 2
    %v1201 = vadd.f32 %v1199, %v1200
    %v1202 = vrot.slane %v1201, 1
    %v1203 = vadd.f32 %v1201, %v1202
    %v1204 = vadd.f32 %v1065, %v1068
    %v1205 = vrot.slane %v1204, 4
    %v1206 = vadd.f32 %v1204, %v1205
    %v1207 = vrot.slane %v1206, 2
    %v1208 = vadd.f32 %v1206, %v1207
    %v1209 = vrot.slane %v1208, 1
    %v1210 = vadd.f32 %v1208, %v1209
    %v1211 = vadd.f32 %v1071, %v1074
    %v1212 = vrot.slane %v1211, 4
    %v1213 = vadd.f32 %v1211, %v1212
    %v1214 = vrot.slane %v1213, 2
    %v1215 = vadd.f32 %v1213, %v1214
    %v1216 = vrot.slane %v1215, 1
    %v1217 = vadd.f32 %v1215, %v1216
    %v1218 = vadd.f32 %v1077, %v1080
    %v1219 = vrot.slane %v1218, 4
    %v1220 = vadd.f32 %v1218, %v1219
    %v1221 = vrot.slane %v1220, 2
    %v1222 = vadd.f32 %v1220, %v1221
    %v1223 = vrot.slane %v1222, 1
    %v1224 = vadd.f32 %v1222, %v1223
    %v1225 = vadd.f32 %v1083, %v1086
    %v1226 = vrot.slane %v1225, 4
    %v1227 = vadd.f32 %v1225, %v1226
    %v1228 = vrot.slane %v1227, 2
    %v1229 = vadd.f32 %v1227, %v1228
    %v1230 = vrot.slane %v1229, 1
    %v1231 = vadd.f32 %v1229, %v1230
    %v1232 = vadd.f32 %v1089, %v1092
    %v1233 = vrot.slane %v1232, 4
    %v1234 = vadd.f32 %v1232, %v1233
    %v1235 = vrot.slane %v1234, 2
    %v1236 = vadd.f32 %v1234, %v1235
    %v1237 = vrot.slane %v1236, 1
    %v1238 = vadd.f32 %v1236, %v1237
    %v1239 = vadd.f32 %v1095, %v1098
    %v1240 = vrot.slane %v1239, 4
    %v1241 = vadd.f32 %v1239, %v1240
    %v1242 = vrot.slane %v1241, 2
    %v1243 = vadd.f32 %v1241, %v1242
    %v1244 = vrot.slane %v1243, 1
    %v1245 = vadd.f32 %v1243, %v1244
    %v1246 = vadd.f32 %v1101, %v1104
    %v1247 = vrot.slane %v1246, 4
    %v1248 = vadd.f32 %v1246, %v1247
    %v1249 = vrot.slane %v1248, 2
    %v1250 = vadd.f32 %v1248, %v1249
    %v1251 = vrot.slane %v1250, 1
    %v1252 = vadd.f32 %v1250, %v1251
    %v1253 = vadd.f32 %v1107, %v1110
    %v1254 = vrot.slane %v1253, 4
    %v1255 = vadd.f32 %v1253, %v1254
    %v1256 = vrot.slane %v1255, 2
    %v1257 = vadd.f32 %v1255, %v1256
    %v1258 = vrot.slane %v1257, 1
    %v1259 = vadd.f32 %v1257, %v1258
    %v1260 = vadd.f32 %v1113, %v1116
    %v1261 = vrot.slane %v1260, 4
    %v1262 = vadd.f32 %v1260, %v1261
    %v1263 = vrot.slane %v1262, 2
    %v1264 = vadd.f32 %v1262, %v1263
    %v1265 = vrot.slane %v1264, 1
    %v1266 = vadd.f32 %v1264, %v1265
    %v1267 = vadd.f32 %v1119, %v1122
    %v1268 = vrot.slane %v1267, 4
    %v1269 = vadd.f32 %v1267, %v1268
    %v1270 = vrot.slane %v1269, 2
    %v1271 = vadd.f32 %v1269, %v1270
    %v1272 = vrot.slane %v1271, 1
    %v1273 = vadd.f32 %v1271, %v1272
    %v1274 = vadd.f32 %v1125, %v1128
    %v1275 = vrot.slane %v1274, 4
    %v1276 = vadd.f32 %v1274, %v1275
    %v1277 = vrot.slane %v1276, 2
    %v1278 = vadd.f32 %v1276, %v1277
    %v1279 = vrot.slane %v1278, 1
    %v1280 = vadd.f32 %v1278, %v1279
    %v1281 = vadd.f32 %v1131, %v1134
    %v1282 = vrot.slane %v1281, 4
    %v1283 = vadd.f32 %v1281, %v1282
    %v1284 = vrot.slane %v1283, 2
    %v1285 = vadd.f32 %v1283, %v1284
    %v1286 = vrot.slane %v1285, 1
    %v1287 = vadd.f32 %v1285, %v1286
    %v1288 = vadd.f32 %v1137, %v1140
    %v1289 = vrot.slane %v1288, 4
    %v1290 = vadd.f32 %v1288, %v1289
    %v1291 = vrot.slane %v1290, 2
    %v1292 = vadd.f32 %v1290, %v1291
    %v1293 = vrot.slane %v1292, 1
    %v1294 = vadd.f32 %v1292, %v1293
    %v1295 = vmul.f32 %v1147, 0.00390625
    %v1296 = vmul.f32 %v1154, 0.00390625
    %v1297 = vmul.f32 %v1161, 0.00390625
    %v1298 = vmul.f32 %v1168, 0.00390625
    %v1299 = vmul.f32 %v1175, 0.00390625
    %v1300 = vmul.f32 %v1182, 0.00390625
    %v1301 = vmul.f32 %v1189, 0.00390625
    %v1302 = vmul.f32 %v1196, 0.00390625
    %v1303 = vmul.f32 %v1203, 0.00390625
    %v1304 = vmul.f32 %v1210, 0.00390625
    %v1305 = vmul.f32 %v1217, 0.00390625
    %v1306 = vmul.f32 %v1224, 0.00390625
    %v1307 = vmul.f32 %v1231, 0.00390625
    %v1308 = vmul.f32 %v1238, 0.00390625
    %v1309 = vmul.f32 %v1245, 0.00390625
    %v1310 = vmul.f32 %v1252, 0.00390625
    %v1311 = vmul.f32 %v1259, 0.00390625
    %v1312 = vmul.f32 %v1266, 0.00390625
    %v1313 = vmul.f32 %v1273, 0.00390625
    %v1314 = vmul.f32 %v1280, 0.00390625
    %v1315 = vmul.f32 %v1287, 0.00390625
    %v1316 = vmul.f32 %v1294, 0.00390625
    %v1317 = vsub.f32 %v960, %v1295
    %v1318 = vsub.f32 %v961, %v1295
    %v1319 = vsub.f32 %v962, %v1296
    %v1320 = vsub.f32 %v963, %v1296
    %v1321 = vsub.f32 %v964, %v1297
    %v1322 = vsub.f32 %v965, %v1297
    %v1323 = vsub.f32 %v966, %v1298
    %v1324 = vsub.f32 %v967, %v1298
    %v1325 = vsub.f32 %v968, %v1299
    %v1326 = vsub.f32 %v969, %v1299
    %v1327 = vsub.f32 %v970, %v1300
    %v1328 = vsub.f32 %v971, %v1300
    %v1329 = vsub.f32 %v972, %v1301
    %v1330 = vsub.f32 %v973, %v1301
    %v1331 = vsub.f32 %v974, %v1302
    %v1332 = vsub.f32 %v975, %v1302
    %v1333 = vsub.f32 %v976, %v1303
    %v1334 = vsub.f32 %v977, %v1303
    %v1335 = vsub.f32 %v978, %v1304
    %v1336 = vsub.f32 %v979, %v1304
    %v1337 = vsub.f32 %v980, %v1305
    %v1338 = vsub.f32 %v981, %v1305
    %v1339 = vsub.f32 %v982, %v1306
    %v1340 = vsub.f32 %v983, %v1306
    %v1341 = vsub.f32 %v984, %v1307
    %v1342 = vsub.f32 %v985, %v1307
    %v1343 = vsub.f32 %v986, %v1308
    %v1344 = vsub.f32 %v987, %v1308
    %v1345 = vsub.f32 %v988, %v1309
    %v1346 = vsub.f32 %v989, %v1309
    %v1347 = vsub.f32 %v990, %v1310
    %v1348 = vsub.f32 %v991, %v1310
    %v1349 = vsub.f32 %v992, %v1311
    %v1350 = vsub.f32 %v993, %v1311
    %v1351 = vsub.f32 %v994, %v1312
    %v1352 = vsub.f32 %v995, %v1312
    %v1353 = vsub.f32 %v996, %v1313
    %v1354 = vsub.f32 %v997, %v1313
    %v1355 = vsub.f32 %v998, %v1314
    %v1356 = vsub.f32 %v999, %v1314
    %v1357 = vsub.f32 %v1000, %v1315
    %v1358 = vsub.f32 %v1001, %v1315
    %v1359 = vsub.f32 %v1002, %v1316
    %v1360 = vsub.f32 %v1003, %v1316
    %v1361 = vmul.f32 %v1317, %v1317
    %v1362 = vmul.f32 %v1318, %v1318
    %v1363 = vmul.f32 %v1319, %v1319
    %v1364 = vmul.f32 %v1320, %v1320
    %v1365 = vmul.f32 %v1321, %v1321
    %v1366 = vmul.f32 %v1322, %v1322
    %v1367 = vmul.f32 %v1323, %v1323
    %v1368 = vmul.f32 %v1324, %v1324
    %v1369 = vmul.f32 %v1325, %v1325
    %v1370 = vmul.f32 %v1326, %v1326
    %v1371 = vmul.f32 %v1327, %v1327
    %v1372 = vmul.f32 %v1328, %v1328
    %v1373 = vmul.f32 %v1329, %v1329
    %v1374 = vmul.f32 %v1330, %v1330
    %v1375 = vmul.f32 %v1331, %v1331
    %v1376 = vmul.f32 %v1332, %v1332
    %v1377 = vmul.f32 %v1333, %v1333
    %v1378 = vmul.f32 %v1334, %v1334
    %v1379 = vmul.f32 %v1335, %v1335
    %v1380 = vmul.f32 %v1336, %v1336
    %v1381 = vmul.f32 %v1337, %v1337
    %v1382 = vmul.f32 %v1338, %v1338
    %v1383 = vmul.f32 %v1339, %v1339
    %v1384 = vmul.f32 %v1340, %v1340
    %v1385 = vmul.f32 %v1341, %v1341
    %v1386 = vmul.f32 %v1342, %v1342
    %v1387 = vmul.f32 %v1343, %v1343
    %v1388 = vmul.f32 %v1344, %v1344
    %v1389 = vmul.f32 %v1345, %v1345
    %v1390 = vmul.f32 %v1346, %v1346
    %v1391 = vmul.f32 %v1347, %v1347
    %v1392 = vmul.f32 %v1348, %v1348
    %v1393 = vmul.f32 %v1349, %v1349
    %v1394 = vmul.f32 %v1350, %v1350
    %v1395 = vmul.f32 %v1351, %v1351
    %v1396 = vmul.f32 %v1352, %v1352
    %v1397 = vmul.f32 %v1353, %v1353
    %v1398 = vmul.f32 %v1354, %v1354
    %v1399 = vmul.f32 %v1355, %v1355
    %v1400 = vmul.f32 %v1356, %v1356
    %v1401 = vmul.f32 %v1357, %v1357
    %v1402 = vmul.f32 %v1358, %v1358
    %v1403 = vmul.f32 %v1359, %v1359
    %v1404 = vmul.f32 %v1360, %v1360
    %v1405 = vsel %vm1008, %v1361, 0.0
    %1406 = vadd.xlane.f32.xlu0 %v1405
    %v1407 = vpop.xlane.xlu0 %1406
    %v1408 = vsel %vm1008, %v1362, 0.0
    %1409 = vadd.xlane.f32.xlu0 %v1408
    %v1410 = vpop.xlane.xlu0 %1409
    %v1411 = vsel %vm1008, %v1363, 0.0
    %1412 = vadd.xlane.f32.xlu0 %v1411
    %v1413 = vpop.xlane.xlu0 %1412
    %v1414 = vsel %vm1008, %v1364, 0.0
    %1415 = vadd.xlane.f32.xlu0 %v1414
    %v1416 = vpop.xlane.xlu0 %1415
    %v1417 = vsel %vm1008, %v1365, 0.0
    %1418 = vadd.xlane.f32.xlu0 %v1417
    %v1419 = vpop.xlane.xlu0 %1418
    %v1420 = vsel %vm1008, %v1366, 0.0
    %1421 = vadd.xlane.f32.xlu0 %v1420
    %v1422 = vpop.xlane.xlu0 %1421
    %v1423 = vsel %vm1008, %v1367, 0.0
    %1424 = vadd.xlane.f32.xlu0 %v1423
    %v1425 = vpop.xlane.xlu0 %1424
    %v1426 = vsel %vm1008, %v1368, 0.0
    %1427 = vadd.xlane.f32.xlu0 %v1426
    %v1428 = vpop.xlane.xlu0 %1427
    %v1429 = vsel %vm1008, %v1369, 0.0
    %1430 = vadd.xlane.f32.xlu0 %v1429
    %v1431 = vpop.xlane.xlu0 %1430
    %v1432 = vsel %vm1008, %v1370, 0.0
    %1433 = vadd.xlane.f32.xlu0 %v1432
    %v1434 = vpop.xlane.xlu0 %1433
    %v1435 = vsel %vm1008, %v1371, 0.0
    %1436 = vadd.xlane.f32.xlu0 %v1435
    %v1437 = vpop.xlane.xlu0 %1436
    %v1438 = vsel %vm1008, %v1372, 0.0
    %1439 = vadd.xlane.f32.xlu0 %v1438
    %v1440 = vpop.xlane.xlu0 %1439
    %v1441 = vsel %vm1008, %v1373, 0.0
    %1442 = vadd.xlane.f32.xlu0 %v1441
    %v1443 = vpop.xlane.xlu0 %1442
    %v1444 = vsel %vm1008, %v1374, 0.0
    %1445 = vadd.xlane.f32.xlu0 %v1444
    %v1446 = vpop.xlane.xlu0 %1445
    %v1447 = vsel %vm1008, %v1375, 0.0
    %1448 = vadd.xlane.f32.xlu0 %v1447
    %v1449 = vpop.xlane.xlu0 %1448
    %v1450 = vsel %vm1008, %v1376, 0.0
    %1451 = vadd.xlane.f32.xlu0 %v1450
    %v1452 = vpop.xlane.xlu0 %1451
    %v1453 = vsel %vm1008, %v1377, 0.0
    %1454 = vadd.xlane.f32.xlu0 %v1453
    %v1455 = vpop.xlane.xlu0 %1454
    %v1456 = vsel %vm1008, %v1378, 0.0
    %1457 = vadd.xlane.f32.xlu0 %v1456
    %v1458 = vpop.xlane.xlu0 %1457
    %v1459 = vsel %vm1008, %v1379, 0.0
    %1460 = vadd.xlane.f32.xlu0 %v1459
    %v1461 = vpop.xlane.xlu0 %1460
    %v1462 = vsel %vm1008, %v1380, 0.0
    %1463 = vadd.xlane.f32.xlu0 %v1462
    %v1464 = vpop.xlane.xlu0 %1463
    %v1465 = vsel %vm1008, %v1381, 0.0
    %1466 = vadd.xlane.f32.xlu0 %v1465
    %v1467 = vpop.xlane.xlu0 %1466
    %v1468 = vsel %vm1008, %v1382, 0.0
    %1469 = vadd.xlane.f32.xlu0 %v1468
    %v1470 = vpop.xlane.xlu0 %1469
    %v1471 = vsel %vm1008, %v1383, 0.0
    %1472 = vadd.xlane.f32.xlu0 %v1471
    %v1473 = vpop.xlane.xlu0 %1472
    %v1474 = vsel %vm1008, %v1384, 0.0
    %1475 = vadd.xlane.f32.xlu0 %v1474
    %v1476 = vpop.xlane.xlu0 %1475
    %v1477 = vsel %vm1008, %v1385, 0.0
    %1478 = vadd.xlane.f32.xlu0 %v1477
    %v1479 = vpop.xlane.xlu0 %1478
    %v1480 = vsel %vm1008, %v1386, 0.0
    %1481 = vadd.xlane.f32.xlu0 %v1480
    %v1482 = vpop.xlane.xlu0 %1481
    %v1483 = vsel %vm1008, %v1387, 0.0
    %1484 = vadd.xlane.f32.xlu0 %v1483
    %v1485 = vpop.xlane.xlu0 %1484
    %v1486 = vsel %vm1008, %v1388, 0.0
    %1487 = vadd.xlane.f32.xlu0 %v1486
    %v1488 = vpop.xlane.xlu0 %1487
    %v1489 = vsel %vm1008, %v1389, 0.0
    %1490 = vadd.xlane.f32.xlu0 %v1489
    %v1491 = vpop.xlane.xlu0 %1490
    %v1492 = vsel %vm1008, %v1390, 0.0
    %1493 = vadd.xlane.f32.xlu0 %v1492
    %v1494 = vpop.xlane.xlu0 %1493
    %v1495 = vsel %vm1008, %v1391, 0.0
    %1496 = vadd.xlane.f32.xlu0 %v1495
    %v1497 = vpop.xlane.xlu0 %1496
    %v1498 = vsel %vm1008, %v1392, 0.0
    %1499 = vadd.xlane.f32.xlu0 %v1498
    %v1500 = vpop.xlane.xlu0 %1499
    %v1501 = vsel %vm1008, %v1393, 0.0
    %1502 = vadd.xlane.f32.xlu0 %v1501
    %v1503 = vpop.xlane.xlu0 %1502
    %v1504 = vsel %vm1008, %v1394, 0.0
    %1505 = vadd.xlane.f32.xlu0 %v1504
    %v1506 = vpop.xlane.xlu0 %1505
    %v1507 = vsel %vm1008, %v1395, 0.0
    %1508 = vadd.xlane.f32.xlu0 %v1507
    %v1509 = vpop.xlane.xlu0 %1508
    %v1510 = vsel %vm1008, %v1396, 0.0
    %1511 = vadd.xlane.f32.xlu0 %v1510
    %v1512 = vpop.xlane.xlu0 %1511
    %v1513 = vsel %vm1008, %v1397, 0.0
    %1514 = vadd.xlane.f32.xlu0 %v1513
    %v1515 = vpop.xlane.xlu0 %1514
    %v1516 = vsel %vm1008, %v1398, 0.0
    %1517 = vadd.xlane.f32.xlu0 %v1516
    %v1518 = vpop.xlane.xlu0 %1517
    %v1519 = vsel %vm1008, %v1399, 0.0
    %1520 = vadd.xlane.f32.xlu0 %v1519
    %v1521 = vpop.xlane.xlu0 %1520
    %v1522 = vsel %vm1008, %v1400, 0.0
    %1523 = vadd.xlane.f32.xlu0 %v1522
    %v1524 = vpop.xlane.xlu0 %1523
    %v1525 = vsel %vm1008, %v1401, 0.0
    %1526 = vadd.xlane.f32.xlu0 %v1525
    %v1527 = vpop.xlane.xlu0 %1526
    %v1528 = vsel %vm1008, %v1402, 0.0
    %1529 = vadd.xlane.f32.xlu0 %v1528
    %v1530 = vpop.xlane.xlu0 %1529
    %v1531 = vsel %vm1008, %v1403, 0.0
    %1532 = vadd.xlane.f32.xlu0 %v1531
    %v1533 = vpop.xlane.xlu0 %1532
    %v1534 = vsel %vm1008, %v1404, 0.0
    %1535 = vadd.xlane.f32.xlu0 %v1534
    %v1536 = vpop.xlane.xlu0 %1535
    %v1537 = vadd.f32 %v1407, %v1410
    %v1538 = vrot.slane %v1537, 4
    %v1539 = vadd.f32 %v1537, %v1538
    %v1540 = vrot.slane %v1539, 2
    %v1541 = vadd.f32 %v1539, %v1540
    %v1542 = vrot.slane %v1541, 1
    %v1543 = vadd.f32 %v1541, %v1542
    %v1544 = vadd.f32 %v1413, %v1416
    %v1545 = vrot.slane %v1544, 4
    %v1546 = vadd.f32 %v1544, %v1545
    %v1547 = vrot.slane %v1546, 2
    %v1548 = vadd.f32 %v1546, %v1547
    %v1549 = vrot.slane %v1548, 1
    %v1550 = vadd.f32 %v1548, %v1549
    %v1551 = vadd.f32 %v1419, %v1422
    %v1552 = vrot.slane %v1551, 4
    %v1553 = vadd.f32 %v1551, %v1552
    %v1554 = vrot.slane %v1553, 2
    %v1555 = vadd.f32 %v1553, %v1554
    %v1556 = vrot.slane %v1555, 1
    %v1557 = vadd.f32 %v1555, %v1556
    %v1558 = vadd.f32 %v1425, %v1428
    %v1559 = vrot.slane %v1558, 4
    %v1560 = vadd.f32 %v1558, %v1559
    %v1561 = vrot.slane %v1560, 2
    %v1562 = vadd.f32 %v1560, %v1561
    %v1563 = vrot.slane %v1562, 1
    %v1564 = vadd.f32 %v1562, %v1563
    %v1565 = vadd.f32 %v1431, %v1434
    %v1566 = vrot.slane %v1565, 4
    %v1567 = vadd.f32 %v1565, %v1566
    %v1568 = vrot.slane %v1567, 2
    %v1569 = vadd.f32 %v1567, %v1568
    %v1570 = vrot.slane %v1569, 1
    %v1571 = vadd.f32 %v1569, %v1570
    %v1572 = vadd.f32 %v1437, %v1440
    %v1573 = vrot.slane %v1572, 4
    %v1574 = vadd.f32 %v1572, %v1573
    %v1575 = vrot.slane %v1574, 2
    %v1576 = vadd.f32 %v1574, %v1575
    %v1577 = vrot.slane %v1576, 1
    %v1578 = vadd.f32 %v1576, %v1577
    %v1579 = vadd.f32 %v1443, %v1446
    %v1580 = vrot.slane %v1579, 4
    %v1581 = vadd.f32 %v1579, %v1580
    %v1582 = vrot.slane %v1581, 2
    %v1583 = vadd.f32 %v1581, %v1582
    %v1584 = vrot.slane %v1583, 1
    %v1585 = vadd.f32 %v1583, %v1584
    %v1586 = vadd.f32 %v1449, %v1452
    %v1587 = vrot.slane %v1586, 4
    %v1588 = vadd.f32 %v1586, %v1587
    %v1589 = vrot.slane %v1588, 2
    %v1590 = vadd.f32 %v1588, %v1589
    %v1591 = vrot.slane %v1590, 1
    %v1592 = vadd.f32 %v1590, %v1591
    %v1593 = vadd.f32 %v1455, %v1458
    %v1594 = vrot.slane %v1593, 4
    %v1595 = vadd.f32 %v1593, %v1594
    %v1596 = vrot.slane %v1595, 2
    %v1597 = vadd.f32 %v1595, %v1596
    %v1598 = vrot.slane %v1597, 1
    %v1599 = vadd.f32 %v1597, %v1598
    %v1600 = vadd.f32 %v1461, %v1464
    %v1601 = vrot.slane %v1600, 4
    %v1602 = vadd.f32 %v1600, %v1601
    %v1603 = vrot.slane %v1602, 2
    %v1604 = vadd.f32 %v1602, %v1603
    %v1605 = vrot.slane %v1604, 1
    %v1606 = vadd.f32 %v1604, %v1605
    %v1607 = vadd.f32 %v1467, %v1470
    %v1608 = vrot.slane %v1607, 4
    %v1609 = vadd.f32 %v1607, %v1608
    %v1610 = vrot.slane %v1609, 2
    %v1611 = vadd.f32 %v1609, %v1610
    %v1612 = vrot.slane %v1611, 1
    %v1613 = vadd.f32 %v1611, %v1612
    %v1614 = vadd.f32 %v1473, %v1476
    %v1615 = vrot.slane %v1614, 4
    %v1616 = vadd.f32 %v1614, %v1615
    %v1617 = vrot.slane %v1616, 2
    %v1618 = vadd.f32 %v1616, %v1617
    %v1619 = vrot.slane %v1618, 1
    %v1620 = vadd.f32 %v1618, %v1619
    %v1621 = vadd.f32 %v1479, %v1482
    %v1622 = vrot.slane %v1621, 4
    %v1623 = vadd.f32 %v1621, %v1622
    %v1624 = vrot.slane %v1623, 2
    %v1625 = vadd.f32 %v1623, %v1624
    %v1626 = vrot.slane %v1625, 1
    %v1627 = vadd.f32 %v1625, %v1626
    %v1628 = vadd.f32 %v1485, %v1488
    %v1629 = vrot.slane %v1628, 4
    %v1630 = vadd.f32 %v1628, %v1629
    %v1631 = vrot.slane %v1630, 2
    %v1632 = vadd.f32 %v1630, %v1631
    %v1633 = vrot.slane %v1632, 1
    %v1634 = vadd.f32 %v1632, %v1633
    %v1635 = vadd.f32 %v1491, %v1494
    %v1636 = vrot.slane %v1635, 4
    %v1637 = vadd.f32 %v1635, %v1636
    %v1638 = vrot.slane %v1637, 2
    %v1639 = vadd.f32 %v1637, %v1638
    %v1640 = vrot.slane %v1639, 1
    %v1641 = vadd.f32 %v1639, %v1640
    %v1642 = vadd.f32 %v1497, %v1500
    %v1643 = vrot.slane %v1642, 4
    %v1644 = vadd.f32 %v1642, %v1643
    %v1645 = vrot.slane %v1644, 2
    %v1646 = vadd.f32 %v1644, %v1645
    %v1647 = vrot.slane %v1646, 1
    %v1648 = vadd.f32 %v1646, %v1647
    %v1649 = vadd.f32 %v1503, %v1506
    %v1650 = vrot.slane %v1649, 4
    %v1651 = vadd.f32 %v1649, %v1650
    %v1652 = vrot.slane %v1651, 2
    %v1653 = vadd.f32 %v1651, %v1652
    %v1654 = vrot.slane %v1653, 1
    %v1655 = vadd.f32 %v1653, %v1654
    %v1656 = vadd.f32 %v1509, %v1512
    %v1657 = vrot.slane %v1656, 4
    %v1658 = vadd.f32 %v1656, %v1657
    %v1659 = vrot.slane %v1658, 2
    %v1660 = vadd.f32 %v1658, %v1659
    %v1661 = vrot.slane %v1660, 1
    %v1662 = vadd.f32 %v1660, %v1661
    %v1663 = vadd.f32 %v1515, %v1518
    %v1664 = vrot.slane %v1663, 4
    %v1665 = vadd.f32 %v1663, %v1664
    %v1666 = vrot.slane %v1665, 2
    %v1667 = vadd.f32 %v1665, %v1666
    %v1668 = vrot.slane %v1667, 1
    %v1669 = vadd.f32 %v1667, %v1668
    %v1670 = vadd.f32 %v1521, %v1524
    %v1671 = vrot.slane %v1670, 4
    %v1672 = vadd.f32 %v1670, %v1671
    %v1673 = vrot.slane %v1672, 2
    %v1674 = vadd.f32 %v1672, %v1673
    %v1675 = vrot.slane %v1674, 1
    %v1676 = vadd.f32 %v1674, %v1675
    %v1677 = vadd.f32 %v1527, %v1530
    %v1678 = vrot.slane %v1677, 4
    %v1679 = vadd.f32 %v1677, %v1678
    %v1680 = vrot.slane %v1679, 2
    %v1681 = vadd.f32 %v1679, %v1680
    %v1682 = vrot.slane %v1681, 1
    %v1683 = vadd.f32 %v1681, %v1682
    %v1684 = vadd.f32 %v1533, %v1536
    %v1685 = vrot.slane %v1684, 4
    %v1686 = vadd.f32 %v1684, %v1685
    %v1687 = vrot.slane %v1686, 2
    %v1688 = vadd.f32 %v1686, %v1687
    %v1689 = vrot.slane %v1688, 1
    %v1690 = vadd.f32 %v1688, %v1689
    %v1691 = vmul.f32 %v1543, 0.00390625
    %v1692 = vmul.f32 %v1550, 0.00390625
    %v1693 = vmul.f32 %v1557, 0.00390625
    %v1694 = vmul.f32 %v1564, 0.00390625
    %v1695 = vmul.f32 %v1571, 0.00390625
    %v1696 = vmul.f32 %v1578, 0.00390625
    %v1697 = vmul.f32 %v1585, 0.00390625
    %v1698 = vmul.f32 %v1592, 0.00390625
    %v1699 = vmul.f32 %v1599, 0.00390625
    %v1700 = vmul.f32 %v1606, 0.00390625
    %v1701 = vmul.f32 %v1613, 0.00390625
    %v1702 = vmul.f32 %v1620, 0.00390625
    %v1703 = vmul.f32 %v1627, 0.00390625
    %v1704 = vmul.f32 %v1634, 0.00390625
    %v1705 = vmul.f32 %v1641, 0.00390625
    %v1706 = vmul.f32 %v1648, 0.00390625
    %v1707 = vmul.f32 %v1655, 0.00390625
    %v1708 = vmul.f32 %v1662, 0.00390625
    %v1709 = vmul.f32 %v1669, 0.00390625
    %v1710 = vmul.f32 %v1676, 0.00390625
    %v1711 = vmul.f32 %v1683, 0.00390625
    %v1712 = vmul.f32 %v1690, 0.00390625
    %v1713 = vadd.f32 %v1691, 1e-05
    %v1714 = vadd.f32 %v1692, 1e-05
    %v1715 = vadd.f32 %v1693, 1e-05
    %v1716 = vadd.f32 %v1694, 1e-05
    %v1717 = vadd.f32 %v1695, 1e-05
    %v1718 = vadd.f32 %v1696, 1e-05
    %v1719 = vadd.f32 %v1697, 1e-05
    %v1720 = vadd.f32 %v1698, 1e-05
    %v1721 = vadd.f32 %v1699, 1e-05
    %v1722 = vadd.f32 %v1700, 1e-05
    %v1723 = vadd.f32 %v1701, 1e-05
    %v1724 = vadd.f32 %v1702, 1e-05
    %v1725 = vadd.f32 %v1703, 1e-05
    %v1726 = vadd.f32 %v1704, 1e-05
    %v1727 = vadd.f32 %v1705, 1e-05
    %v1728 = vadd.f32 %v1706, 1e-05
    %v1729 = vadd.f32 %v1707, 1e-05
    %v1730 = vadd.f32 %v1708, 1e-05
    %v1731 = vadd.f32 %v1709, 1e-05
    %v1732 = vadd.f32 %v1710, 1e-05
    %v1733 = vadd.f32 %v1711, 1e-05
    %v1734 = vadd.f32 %v1712, 1e-05
    %v1735 = vrsqrt.pop %v1713
    %v1736 = vrsqrt.pop %v1714
    %v1737 = vrsqrt.pop %v1715
    %v1738 = vrsqrt.pop %v1716
    %v1739 = vrsqrt.pop %v1717
    %v1740 = vrsqrt.pop %v1718
    %v1741 = vrsqrt.pop %v1719
    %v1742 = vrsqrt.pop %v1720
    %v1743 = vrsqrt.pop %v1721
    %v1744 = vrsqrt.pop %v1722
    %v1745 = vrsqrt.pop %v1723
    %v1746 = vrsqrt.pop %v1724
    %v1747 = vrsqrt.pop %v1725
    %v1748 = vrsqrt.pop %v1726
    %v1749 = vrsqrt.pop %v1727
    %v1750 = vrsqrt.pop %v1728
    %v1751 = vrsqrt.pop %v1729
    %v1752 = vrsqrt.pop %v1730
    %v1753 = vrsqrt.pop %v1731
    %v1754 = vrsqrt.pop %v1732
    %v1755 = vrsqrt.pop %v1733
    %v1756 = vrsqrt.pop %v1734
    %v1757 = vmul.f32 %v1317, %v1735
    %v1758 = vmul.f32 %v1318, %v1735
    %v1759 = vmul.f32 %v1319, %v1736
    %v1760 = vmul.f32 %v1320, %v1736
    %v1761 = vmul.f32 %v1321, %v1737
    %v1762 = vmul.f32 %v1322, %v1737
    %v1763 = vmul.f32 %v1323, %v1738
    %v1764 = vmul.f32 %v1324, %v1738
    %v1765 = vmul.f32 %v1325, %v1739
    %v1766 = vmul.f32 %v1326, %v1739
    %v1767 = vmul.f32 %v1327, %v1740
    %v1768 = vmul.f32 %v1328, %v1740
    %v1769 = vmul.f32 %v1329, %v1741
    %v1770 = vmul.f32 %v1330, %v1741
    %v1771 = vmul.f32 %v1331, %v1742
    %v1772 = vmul.f32 %v1332, %v1742
    %v1773 = vmul.f32 %v1333, %v1743
    %v1774 = vmul.f32 %v1334, %v1743
    %v1775 = vmul.f32 %v1335, %v1744
    %v1776 = vmul.f32 %v1336, %v1744
    %v1777 = vmul.f32 %v1337, %v1745
    %v1778 = vmul.f32 %v1338, %v1745
    %v1779 = vmul.f32 %v1339, %v1746
    %v1780 = vmul.f32 %v1340, %v1746
    %v1781 = vmul.f32 %v1341, %v1747
    %v1782 = vmul.f32 %v1342, %v1747
    %v1783 = vmul.f32 %v1343, %v1748
    %v1784 = vmul.f32 %v1344, %v1748
    %v1785 = vmul.f32 %v1345, %v1749
    %v1786 = vmul.f32 %v1346, %v1749
    %v1787 = vmul.f32 %v1347, %v1750
    %v1788 = vmul.f32 %v1348, %v1750
    %v1789 = vmul.f32 %v1349, %v1751
    %v1790 = vmul.f32 %v1350, %v1751
    %v1791 = vmul.f32 %v1351, %v1752
    %v1792 = vmul.f32 %v1352, %v1752
    %v1793 = vmul.f32 %v1353, %v1753
    %v1794 = vmul.f32 %v1354, %v1753
    %v1795 = vmul.f32 %v1355, %v1754
    %v1796 = vmul.f32 %v1356, %v1754
    %v1797 = vmul.f32 %v1357, %v1755
    %v1798 = vmul.f32 %v1358, %v1755
    %v1799 = vmul.f32 %v1359, %v1756
    %v1800 = vmul.f32 %v1360, %v1756
    %v1801 = vmul.f32 %v1757, %v1004
    %v1802 = vmul.f32 %v1758, %v1005
    %v1803 = vmul.f32 %v1759, %v1004
    %v1804 = vmul.f32 %v1760, %v1005
    %v1805 = vmul.f32 %v1761, %v1004
    %v1806 = vmul.f32 %v1762, %v1005
    %v1807 = vmul.f32 %v1763, %v1004
    %v1808 = vmul.f32 %v1764, %v1005
    %v1809 = vmul.f32 %v1765, %v1004
    %v1810 = vmul.f32 %v1766, %v1005
    %v1811 = vmul.f32 %v1767, %v1004
    %v1812 = vmul.f32 %v1768, %v1005
    %v1813 = vmul.f32 %v1769, %v1004
    %v1814 = vmul.f32 %v1770, %v1005
    %v1815 = vmul.f32 %v1771, %v1004
    %v1816 = vmul.f32 %v1772, %v1005
    %v1817 = vmul.f32 %v1773, %v1004
    %v1818 = vmul.f32 %v1774, %v1005
    %v1819 = vmul.f32 %v1775, %v1004
    %v1820 = vmul.f32 %v1776, %v1005
    %v1821 = vmul.f32 %v1777, %v1004
    %v1822 = vmul.f32 %v1778, %v1005
    %v1823 = vmul.f32 %v1779, %v1004
    %v1824 = vmul.f32 %v1780, %v1005
    %v1825 = vmul.f32 %v1781, %v1004
    %v1826 = vmul.f32 %v1782, %v1005
    %v1827 = vmul.f32 %v1783, %v1004
    %v1828 = vmul.f32 %v1784, %v1005
    %v1829 = vmul.f32 %v1785, %v1004
    %v1830 = vmul.f32 %v1786, %v1005
    %v1831 = vmul.f32 %v1787, %v1004
    %v1832 = vmul.f32 %v1788, %v1005
    %v1833 = vmul.f32 %v1789, %v1004
    %v1834 = vmul.f32 %v1790, %v1005
    %v1835 = vmul.f32 %v1791, %v1004
    %v1836 = vmul.f32 %v1792, %v1005
    %v1837 = vmul.f32 %v1793, %v1004
    %v1838 = vmul.f32 %v1794, %v1005
    %v1839 = vmul.f32 %v1795, %v1004
    %v1840 = vmul.f32 %v1796, %v1005
    %v1841 = vmul.f32 %v1797, %v1004
    %v1842 = vmul.f32 %v1798, %v1005
    %v1843 = vmul.f32 %v1799, %v1004
    %v1844 = vmul.f32 %v1800, %v1005
    %v1845 = vadd.f32 %v1801, %v1006
    %v1846 = vadd.f32 %v1802, %v1007
    %v1847 = vadd.f32 %v1803, %v1006
    %v1848 = vadd.f32 %v1804, %v1007
    %v1849 = vadd.f32 %v1805, %v1006
    %v1850 = vadd.f32 %v1806, %v1007
    %v1851 = vadd.f32 %v1807, %v1006
    %v1852 = vadd.f32 %v1808, %v1007
    %v1853 = vadd.f32 %v1809, %v1006
    %v1854 = vadd.f32 %v1810, %v1007
    %v1855 = vadd.f32 %v1811, %v1006
    %v1856 = vadd.f32 %v1812, %v1007
    %v1857 = vadd.f32 %v1813, %v1006
    %v1858 = vadd.f32 %v1814, %v1007
    %v1859 = vadd.f32 %v1815, %v1006
    %v1860 = vadd.f32 %v1816, %v1007
    %v1861 = vadd.f32 %v1817, %v1006
    %v1862 = vadd.f32 %v1818, %v1007
    %v1863 = vadd.f32 %v1819, %v1006
    %v1864 = vadd.f32 %v1820, %v1007
    %v1865 = vadd.f32 %v1821, %v1006
    %v1866 = vadd.f32 %v1822, %v1007
    %v1867 = vadd.f32 %v1823, %v1006
    %v1868 = vadd.f32 %v1824, %v1007
    %v1869 = vadd.f32 %v1825, %v1006
    %v1870 = vadd.f32 %v1826, %v1007
    %v1871 = vadd.f32 %v1827, %v1006
    %v1872 = vadd.f32 %v1828, %v1007
    %v1873 = vadd.f32 %v1829, %v1006
    %v1874 = vadd.f32 %v1830, %v1007
    %v1875 = vadd.f32 %v1831, %v1006
    %v1876 = vadd.f32 %v1832, %v1007
    %v1877 = vadd.f32 %v1833, %v1006
    %v1878 = vadd.f32 %v1834, %v1007
    %v1879 = vadd.f32 %v1835, %v1006
    %v1880 = vadd.f32 %v1836, %v1007
    %v1881 = vadd.f32 %v1837, %v1006
    %v1882 = vadd.f32 %v1838, %v1007
    %v1883 = vadd.f32 %v1839, %v1006
    %v1884 = vadd.f32 %v1840, %v1007
    %v1885 = vadd.f32 %v1841, %v1006
    %v1886 = vadd.f32 %v1842, %v1007
    %v1887 = vadd.f32 %v1843, %v1006
    %v1888 = vadd.f32 %v1844, %v1007
    %v1889 = vld [vmem:[#allocation2 + $0x60] sm:$0xff]
    %v1890 = vld [vmem:[#allocation2 + $0x68] sm:$0xff]
    %v1891 = vld [vmem:[#allocation2 + $0x70] sm:$0xff]
    %v1892 = vld [vmem:[#allocation2 + $0x78] sm:$0xff]
    %v1893 = vld [vmem:[#allocation2 + $0x80] sm:$0xff]
    %v1894 = vld [vmem:[#allocation2 + $0x88] sm:$0xff]
    %v1895 = vld [vmem:[#allocation2 + $0x90] sm:$0xff]
    %v1896 = vld [vmem:[#allocation2 + $0x98] sm:$0xff]
    %v1897 = vld [vmem:[#allocation2 + $0xa0] sm:$0x1]
    %v1898 = vld [vmem:[#allocation2 + $0xa8] sm:$0x1]
    %v1900 = vsel %vm1008, %v1849, 0
    %v1903 = vsel %vm1008, %v1850, 0
    %v1906 = vsel %vm1008, %v1851, 0
    %v1909 = vsel %vm1008, %v1852, 0
    %v1912 = vsel %vm1008, %v1853, 0
    %v1915 = vsel %vm1008, %v1854, 0
    %v1918 = vsel %vm1008, %v1855, 0
    %v1921 = vsel %vm1008, %v1856, 0
    %v1924 = vsel %vm1008, %v1857, 0
    %v1927 = vsel %vm1008, %v1858, 0
    %v1930 = vsel %vm1008, %v1859, 0
    %v1933 = vsel %vm1008, %v1860, 0
    %v1936 = vsel %vm1008, %v1861, 0
    %v1939 = vsel %vm1008, %v1862, 0
    %v1942 = vsel %vm1008, %v1863, 0
    %v1945 = vsel %vm1008, %v1864, 0
    %v1948 = vsel %vm1008, %v1865, 0
    %v1951 = vsel %vm1008, %v1866, 0
    %v1954 = vsel %vm1008, %v1871, 0
    %v1957 = vsel %vm1008, %v1872, 0
    %v1960 = vsel %vm1008, %v1873, 0
    %v1963 = vsel %vm1008, %v1874, 0
    %v1966 = vsel %vm1008, %v1875, 0
    %v1969 = vsel %vm1008, %v1876, 0
    %v1972 = vsel %vm1008, %v1877, 0
    %v1975 = vsel %vm1008, %v1878, 0
    %v1978 = vsel %vm1008, %v1879, 0
    %v1981 = vsel %vm1008, %v1880, 0
    %v1984 = vsel %vm1008, %v1881, 0
    %v1987 = vsel %vm1008, %v1882, 0
    %v1990 = vsel %vm1008, %v1883, 0
    %v1993 = vsel %vm1008, %v1884, 0
    %v1996 = vsel %vm1008, %v1885, 0
    %v1999 = vsel %vm1008, %v1886, 0
    %v2002 = vsel %vm1008, %v1887, 0
    %v2005 = vsel %vm1008, %v1888, 0
    %2007 = vmatprep.subr.mxu0 0.0
    %2008 = vmatpush1.msra.mxu0 %v1893
    %2009 = vmatprep.subr.mxu0 0.0
    %2010 = vmatpush1.msra.mxu0 %v1894
    %2011 = vmatprep.subr.mxu0 0.0
    %2012 = vmatpush1.msra.mxu0 0.0
    %2013 = vmatprep.subr.mxu0 0.0
    %2014 = vmatpush1.msra.mxu0 0.0
    %2015 = vmatprep.subr.mxu0 0.0
    %2016 = vmatpush1.msra.mxu0 0.0
    %2017 = vmatprep.subr.mxu0 0.0
    %2018 = vmatpush1.msra.mxu0 0.0
    %2019 = vmatprep.subr.mxu0 0.0
    %2020 = vmatpush1.msra.mxu0 0.0
    %2021 = vmatprep.subr.mxu0 0.0
    %2022 = vmatpush1.msra.mxu0 0.0
    %2023 = vmatprep.subr.mxu0 0.0
    %2024 = vmatpush1.msra.mxu0 0.0
    %2025 = vmatprep.subr.mxu0 0.0
    %2026 = vmatpush1.msra.mxu0 0.0
    %2027 = vmatprep.subr.mxu0 0.0
    %2028 = vmatpush1.msra.mxu0 0.0
    %2029 = vmatprep.subr.mxu0 0.0
    %2030 = vmatpush1.msra.mxu0 0.0
    %2031 = vmatprep.subr.mxu0 0.0
    %2032 = vmatpush1.msra.mxu0 0.0
    %2033 = vmatprep.subr.mxu0 0.0
    %2034 = vmatpush1.msra.mxu0 0.0
    %2035 = vmatprep.subr.mxu0 0.0
    %2036 = vmatpush1.msra.mxu0 0.0
    %2037 = vmatprep.subr.mxu0 0.0
    %2038 = vmatpush1.msra.mxu0 0.0
    %2039 = vmatprep.subr.mxu0 0.0
    %2040 = vmatpush1.msra.mxu0 0.0
    %2041 = vmatprep.subr.mxu0 0.0
    %2042 = vmatpush1.msra.mxu0 0.0
    %2043 = vmatprep.subr.mxu0 0.0
    %2044 = vmatpush1.msra.mxu0 0.0
    %2045 = vmatprep.subr.mxu0 0.0
    %2046 = vmatpush1.msra.mxu0 0.0
    %2047 = vmatprep.subr.mxu0 0.0
    %2048 = vmatpush1.msra.mxu0 0.0
    %2049 = vmatprep.subr.mxu0 0.0
    %2050 = vmatpush1.msra.mxu0 0.0
    %2051 = vmatprep.subr.mxu0 0.0
    %2052 = vmatpush1.msra.mxu0 0.0
    %2053 = vmatprep.subr.mxu0 0.0
    %2054 = vmatpush1.msra.mxu0 0.0
    %2055 = vmatprep.subr.mxu0 0.0
    %2056 = vmatpush1.msra.mxu0 0.0
    %2057 = vmatprep.subr.mxu0 0.0
    %2058 = vmatpush1.msra.mxu0 0.0
    %2059 = vmatprep.subr.mxu0 0.0
    %2060 = vmatpush1.msra.mxu0 0.0
    %2061 = vmatprep.subr.mxu0 0.0
    %2062 = vmatpush1.msra.mxu0 0.0
    %2063 = vmatprep.subr.mxu0 0.0
    %2064 = vmatpush1.msra.mxu0 0.0
    %2065 = vmatprep.subr.mxu0 0.0
    %2066 = vmatpush1.msra.mxu0 0.0
    %2067 = vmatprep.subr.mxu0 0.0
    %2068 = vmatpush1.msra.mxu0 0.0
    %2069 = vmatprep.subr.mxu0 0.0
    %2070 = vmatpush1.msra.mxu0 0.0
    %2071 = vmatprep.mubr.f32.mxu0 0.0
    %2072 = vmatmul.mubr.f32.gmra.mrb[0].mxu0 %v1900
    %v2073 = vpop.f32.mrb[0].mxu0
    %v2074 = vadd.f32 0.0, %v2073
    %v2075 = vpop.f32.mrb[0].mxu0
    %2076 = vmatprep.mubr.f32.mxu0 0.0
    %2077 = vmatmul.mubr.f32.gmra.mrb[0].mxu0 %v1903
    %v2078 = vpop.f32.mrb[0].mxu0
    %v2079 = vadd.f32 0.0, %v2078
    %v2080 = vpop.f32.mrb[0].mxu0
    %2081 = vmatprep.mubr.f32.mxu0 0.0
    %2082 = vmatmul.mubr.f32.gmra.mrb[0].mxu0 %v1906
    %v2083 = vpop.f32.mrb[0].mxu0
    %v2084 = vadd.f32 0.0, %v2083
    %v2085 = vpop.f32.mrb[0].mxu0
    %2086 = vmatprep.mubr.f32.mxu0 0.0
    %2087 = vmatmul.mubr.f32.gmra.mrb[0].mxu0 %v1909
    %v2088 = vpop.f32.mrb[0].mxu0
    %v2089 = vadd.f32 0.0, %v2088
    %v2090 = vpop.f32.mrb[0].mxu0
    %2091 = vmatprep.mubr.f32.mxu0 0.0
    %2092 = vmatmul.mubr.f32.gmra.mrb[0].mxu0 %v1912
    %v2093 = vpop.f32.mrb[0].mxu0
    %v2094 = vadd.f32 0.0, %v2093
    %v2095 = vpop.f32.mrb[0].mxu0
    %2096 = vmatprep.mubr.f32.mxu0 0.0
    %2097 = vmatmul.mubr.f32.gmra.mrb[0].mxu0 %v1915
    %v2098 = vpop.f32.mrb[0].mxu0
    %v2099 = vadd.f32 0.0, %v2098
    %v2100 = vpop.f32.mrb[0].mxu0
    %2101 = vmatprep.mubr.f32.mxu0 0.0
    %2102 = vmatmul.mubr.f32.gmra.mrb[0].mxu0 %v1918
    %v2103 = vpop.f32.mrb[0].mxu0
    %v2104 = vadd.f32 0.0, %v2103
    %v2105 = vpop.f32.mrb[0].mxu0
    %2106 = vmatprep.mubr.f32.mxu0 0.0
    %2107 = vmatmul.mubr.f32.gmra.mrb[0].mxu0 %v1921
    %v2108 = vpop.f32.mrb[0].mxu0
    %v2109 = vadd.f32 0.0, %v2108
    %v2110 = vpop.f32.mrb[0].mxu0
    %2111 = vmatprep.mubr.f32.mxu0 0.0
    %2112 = vmatmul.mubr.f32.gmra.mrb[0].mxu0 %v1924
    %v2113 = vpop.f32.mrb[0].mxu0
    %v2114 = vadd.f32 0.0, %v2113
    %v2115 = vpop.f32.mrb[0].mxu0
    %2116 = vmatprep.mubr.f32.mxu0 0.0
    %2117 = vmatmul.mubr.f32.gmra.mrb[0].mxu0 %v1927
    %v2118 = vpop.f32.mrb[0].mxu0
    %v2119 = vadd.f32 0.0, %v2118
    %v2120 = vpop.f32.mrb[0].mxu0
    %2121 = vmatprep.mubr.f32.mxu0 0.0
    %2122 = vmatmul.mubr.f32.gmra.mrb[0].mxu0 %v1930
    %v2123 = vpop.f32.mrb[0].mxu0
    %v2124 = vadd.f32 0.0, %v2123
    %v2125 = vpop.f32.mrb[0].mxu0
    %2126 = vmatprep.mubr.f32.mxu0 0.0
    %2127 = vmatmul.mubr.f32.gmra.mrb[0].mxu0 %v1933
    %v2128 = vpop.f32.mrb[0].mxu0
    %v2129 = vadd.f32 0.0, %v2128
    %v2130 = vpop.f32.mrb[0].mxu0
    %2131 = vmatprep.mubr.f32.mxu0 0.0
    %2132 = vmatmul.mubr.f32.gmra.mrb[0].mxu0 %v1936
    %v2133 = vpop.f32.mrb[0].mxu0
    %v2134 = vadd.f32 0.0, %v2133
    %v2135 = vpop.f32.mrb[0].mxu0
    %2136 = vmatprep.mubr.f32.mxu0 0.0
    %2137 = vmatmul.mubr.f32.gmra.mrb[0].mxu0 %v1939
    %v2138 = vpop.f32.mrb[0].mxu0
    %v2139 = vadd.f32 0.0, %v2138
    %v2140 = vpop.f32.mrb[0].mxu0
    %2141 = vmatprep.mubr.f32.mxu0 0.0
    %2142 = vmatmul.mubr.f32.gmra.mrb[0].mxu0 %v1942
    %v2143 = vpop.f32.mrb[0].mxu0
    %v2144 = vadd.f32 0.0, %v2143
    %v2145 = vpop.f32.mrb[0].mxu0
    %2146 = vmatprep.mubr.f32.mxu0 0.0
    %2147 = vmatmul.mubr.f32.gmra.mrb[0].mxu0 %v1945
    %v2148 = vpop.f32.mrb[0].mxu0
    %v2149 = vadd.f32 0.0, %v2148
    %v2150 = vpop.f32.mrb[0].mxu0
    %2151 = vmatprep.mubr.f32.mxu0 0.0
    %2152 = vmatmul.mubr.f32.gmra.mrb[0].mxu0 %v1948
    %v2153 = vpop.f32.mrb[0].mxu0
    %v2154 = vadd.f32 0.0, %v2153
    %v2155 = vpop.f32.mrb[0].mxu0
    %2156 = vmatprep.mubr.f32.mxu0 0.0
    %2157 = vmatmul.mubr.f32.gmra.mrb[0].mxu0 %v1951
    %v2158 = vpop.f32.mrb[0].mxu0
    %v2159 = vadd.f32 0.0, %v2158
    %v2160 = vpop.f32.mrb[0].mxu0
    %2161 = vmatprep.mubr.f32.mxu0 0.0
    %2162 = vmatmul.mubr.f32.gmra.mrb[0].mxu0 %v1954
    %v2163 = vpop.f32.mrb[0].mxu0
    %v2164 = vadd.f32 0.0, %v2163
    %v2165 = vpop.f32.mrb[0].mxu0
    %2166 = vmatprep.mubr.f32.mxu0 0.0
    %2167 = vmatmul.mubr.f32.gmra.mrb[0].mxu0 %v1957
    %v2168 = vpop.f32.mrb[0].mxu0
    %v2169 = vadd.f32 0.0, %v2168
    %v2170 = vpop.f32.mrb[0].mxu0
    %2171 = vmatprep.mubr.f32.mxu0 0.0
    %2172 = vmatmul.mubr.f32.gmra.mrb[0].mxu0 %v1960
    %v2173 = vpop.f32.mrb[0].mxu0
    %v2174 = vadd.f32 0.0, %v2173
    %v2175 = vpop.f32.mrb[0].mxu0
    %2176 = vmatprep.mubr.f32.mxu0 0.0
    %2177 = vmatmul.mubr.f32.gmra.mrb[0].mxu0 %v1963
    %v2178 = vpop.f32.mrb[0].mxu0
    %v2179 = vadd.f32 0.0, %v2178
    %v2180 = vpop.f32.mrb[0].mxu0
    %2181 = vmatprep.mubr.f32.mxu0 0.0
    %2182 = vmatmul.mubr.f32.gmra.mrb[0].mxu0 %v1966
    %v2183 = vpop.f32.mrb[0].mxu0
    %v2184 = vadd.f32 0.0, %v2183
    %v2185 = vpop.f32.mrb[0].mxu0
    %2186 = vmatprep.mubr.f32.mxu0 0.0
    %2187 = vmatmul.mubr.f32.gmra.mrb[0].mxu0 %v1969
    %v2188 = vpop.f32.mrb[0].mxu0
    %v2189 = vadd.f32 0.0, %v2188
    %v2190 = vpop.f32.mrb[0].mxu0
    %2191 = vmatprep.mubr.f32.mxu0 0.0
    %2192 = vmatmul.mubr.f32.gmra.mrb[0].mxu0 %v1972
    %v2193 = vpop.f32.mrb[0].mxu0
    %v2194 = vadd.f32 0.0, %v2193
    %v2195 = vpop.f32.mrb[0].mxu0
    %2196 = vmatprep.mubr.f32.mxu0 0.0
    %2197 = vmatmul.mubr.f32.gmra.mrb[0].mxu0 %v1975
    %v2198 = vpop.f32.mrb[0].mxu0
    %v2199 = vadd.f32 0.0, %v2198
    %v2200 = vpop.f32.mrb[0].mxu0
    %2201 = vmatprep.mubr.f32.mxu0 0.0
    %2202 = vmatmul.mubr.f32.gmra.mrb[0].mxu0 %v1978
    %v2203 = vpop.f32.mrb[0].mxu0
    %v2204 = vadd.f32 0.0, %v2203
    %v2205 = vpop.f32.mrb[0].mxu0
    %2206 = vmatprep.mubr.f32.mxu0 0.0
    %2207 = vmatmul.mubr.f32.gmra.mrb[0].mxu0 %v1981
    %v2208 = vpop.f32.mrb[0].mxu0
    %v2209 = vadd.f32 0.0, %v2208
    %v2210 = vpop.f32.mrb[0].mxu0
    %2211 = vmatprep.mubr.f32.mxu0 0.0
    %2212 = vmatmul.mubr.f32.gmra.mrb[0].mxu0 %v1984
    %v2213 = vpop.f32.mrb[0].mxu0
    %v2214 = vadd.f32 0.0, %v2213
    %v2215 = vpop.f32.mrb[0].mxu0
    %2216 = vmatprep.mubr.f32.mxu0 0.0
    %2217 = vmatmul.mubr.f32.gmra.mrb[0].mxu0 %v1987
    %v2218 = vpop.f32.mrb[0].mxu0
    %v2219 = vadd.f32 0.0, %v2218
    %v2220 = vpop.f32.mrb[0].mxu0
    %2221 = vmatprep.mubr.f32.mxu0 0.0
    %2222 = vmatmul.mubr.f32.gmra.mrb[0].mxu0 %v1990
    %v2223 = vpop.f32.mrb[0].mxu0
    %v2224 = vadd.f32 0.0, %v2223
    %v2225 = vpop.f32.mrb[0].mxu0
    %2226 = vmatprep.mubr.f32.mxu0 0.0
    %2227 = vmatmul.mubr.f32.gmra.mrb[0].mxu0 %v1993
    %v2228 = vpop.f32.mrb[0].mxu0
    %v2229 = vadd.f32 0.0, %v2228
    %v2230 = vpop.f32.mrb[0].mxu0
    %2231 = vmatprep.mubr.f32.mxu0 0.0
    %2232 = vmatmul.mubr.f32.gmra.mrb[0].mxu0 %v1996
    %v2233 = vpop.f32.mrb[0].mxu0
    %v2234 = vadd.f32 0.0, %v2233
    %v2235 = vpop.f32.mrb[0].mxu0
    %2236 = vmatprep.mubr.f32.mxu0 0.0
    %2237 = vmatmul.mubr.f32.gmra.mrb[0].mxu0 %v1999
    %v2238 = vpop.f32.mrb[0].mxu0
    %v2239 = vadd.f32 0.0, %v2238
    %v2240 = vpop.f32.mrb[0].mxu0
    %2241 = vmatprep.mubr.f32.mxu0 0.0
    %2242 = vmatmul.mubr.f32.gmra.mrb[0].mxu0 %v2002
    %v2243 = vpop.f32.mrb[0].mxu0
    %v2244 = vadd.f32 0.0, %v2243
    %v2245 = vpop.f32.mrb[0].mxu0
    %2246 = vmatprep.mubr.f32.mxu0 0.0
    %2247 = vmatmul.mubr.f32.gmra.mrb[0].mxu0 %v2005
    %v2248 = vpop.f32.mrb[0].mxu0
    %v2249 = vadd.f32 0.0, %v2248
    %v2250 = vpop.f32.mrb[0].mxu0
    %2251 = vdwg.mxu0
    %v2253 = vsel %vm1008, %v1845, 0
    %v2256 = vsel %vm1008, %v1846, 0
    %v2259 = vsel %vm1008, %v1847, 0
    %v2262 = vsel %vm1008, %v1848, 0
    %v2265 = vsel %vm1008, %v1867, 0
    %v2268 = vsel %vm1008, %v1868, 0
    %v2271 = vsel %vm1008, %v1869, 0
    %v2274 = vsel %vm1008, %v1870, 0
    %2276 = vmatprep.subr.mxu0 0.0
    %2277 = vmatpush1.msra.mxu0 %v1889
    %2278 = vmatprep.subr.mxu0 0.0
    %2279 = vmatpush1.msra.mxu0 %v1890
    %2280 = vmatprep.subr.mxu0 0.0
    %2281 = vmatpush1.msra.mxu0 0.0
    %2282 = vmatprep.subr.mxu0 0.0
    %2283 = vmatpush1.msra.mxu0 0.0
    %2284 = vmatprep.subr.mxu0 0.0
    %2285 = vmatpush1.msra.mxu0 0.0
    %2286 = vmatprep.subr.mxu0 0.0
    %2287 = vmatpush1.msra.mxu0 0.0
    %2288 = vmatprep.subr.mxu0 0.0
    %2289 = vmatpush1.msra.mxu0 0.0
    %2290 = vmatprep.subr.mxu0 0.0
    %2291 = vmatpush1.msra.mxu0 0.0
    %2292 = vmatprep.subr.mxu0 0.0
    %2293 = vmatpush1.msra.mxu0 0.0
    %2294 = vmatprep.subr.mxu0 0.0
    %2295 = vmatpush1.msra.mxu0 0.0
    %2296 = vmatprep.subr.mxu0 0.0
    %2297 = vmatpush1.msra.mxu0 0.0
    %2298 = vmatprep.subr.mxu0 0.0
    %2299 = vmatpush1.msra.mxu0 0.0
    %2300 = vmatprep.subr.mxu0 0.0
    %2301 = vmatpush1.msra.mxu0 0.0
    %2302 = vmatprep.subr.mxu0 0.0
    %2303 = vmatpush1.msra.mxu0 0.0
    %2304 = vmatprep.subr.mxu0 0.0
    %2305 = vmatpush1.msra.mxu0 0.0
    %2306 = vmatprep.subr.mxu0 0.0
    %2307 = vmatpush1.msra.mxu0 0.0
    %2308 = vmatprep.subr.mxu0 0.0
    %2309 = vmatpush1.msra.mxu0 0.0
    %2310 = vmatprep.subr.mxu0 0.0
    %2311 = vmatpush1.msra.mxu0 0.0
    %2312 = vmatprep.subr.mxu0 0.0
    %2313 = vmatpush1.msra.mxu0 0.0
    %2314 = vmatprep.subr.mxu0 0.0
    %2315 = vmatpush1.msra.mxu0 0.0
    %2316 = vmatprep.subr.mxu0 0.0
    %2317 = vmatpush1.msra.mxu0 0.0
    %2318 = vmatprep.subr.mxu0 0.0
    %2319 = vmatpush1.msra.mxu0 0.0
    %2320 = vmatprep.subr.mxu0 0.0
    %2321 = vmatpush1.msra.mxu0 0.0
    %2322 = vmatprep.subr.mxu0 0.0
    %2323 = vmatpush1.msra.mxu0 0.0
    %2324 = vmatprep.subr.mxu0 0.0
    %2325 = vmatpush1.msra.mxu0 0.0
    %2326 = vmatprep.subr.mxu0 0.0
    %2327 = vmatpush1.msra.mxu0 0.0
    %2328 = vmatprep.subr.mxu0 0.0
    %2329 = vmatpush1.msra.mxu0 0.0
    %2330 = vmatprep.subr.mxu0 0.0
    %2331 = vmatpush1.msra.mxu0 0.0
    %2332 = vmatprep.subr.mxu0 0.0
    %2333 = vmatpush1.msra.mxu0 0.0
    %2334 = vmatprep.subr.mxu0 0.0
    %2335 = vmatpush1.msra.mxu0 0.0
    %2336 = vmatprep.subr.mxu0 0.0
    %2337 = vmatpush1.msra.mxu0 0.0
    %2338 = vmatprep.subr.mxu0 0.0
    %2339 = vmatpush1.msra.mxu0 0.0
    %2340 = vmatprep.mubr.f32.mxu0 0.0
    %2341 = vmatmul.mubr.f32.gmra.mrb[0].mxu0 %v2253
    %v2342 = vpop.f32.mrb[0].mxu0
    %v2343 = vadd.f32 %v2074, %v2342
    %v2344 = vpop.f32.mrb[0].mxu0
    %2345 = vmatprep.mubr.f32.mxu0 0.0
    %2346 = vmatmul.mubr.f32.gmra.mrb[0].mxu0 %v2256
    %v2347 = vpop.f32.mrb[0].mxu0
    %v2348 = vadd.f32 %v2079, %v2347
    %v2349 = vpop.f32.mrb[0].mxu0
    %2350 = vmatprep.mubr.f32.mxu0 0.0
    %2351 = vmatmul.mubr.f32.gmra.mrb[0].mxu0 %v2259
    %v2352 = vpop.f32.mrb[0].mxu0
    %v2353 = vadd.f32 %v2084, %v2352
    %v2354 = vpop.f32.mrb[0].mxu0
    %2355 = vmatprep.mubr.f32.mxu0 0.0
    %2356 = vmatmul.mubr.f32.gmra.mrb[0].mxu0 %v2262
    %v2357 = vpop.f32.mrb[0].mxu0
    %v2358 = vadd.f32 %v2089, %v2357
    %v2359 = vpop.f32.mrb[0].mxu0
    %2360 = vmatprep.mubr.f32.mxu0 0.0
    %2361 = vmatmul.mubr.f32.gmra.mrb[0].mxu0 %v1900
    %v2362 = vpop.f32.mrb[0].mxu0
    %v2363 = vadd.f32 %v2094, %v2362
    %v2364 = vpop.f32.mrb[0].mxu0
    %2365 = vmatprep.mubr.f32.mxu0 0.0
    %2366 = vmatmul.mubr.f32.gmra.mrb[0].mxu0 %v1903
    %v2367 = vpop.f32.mrb[0].mxu0
    %v2368 = vadd.f32 %v2099, %v2367
    %v2369 = vpop.f32.mrb[0].mxu0
    %2370 = vmatprep.mubr.f32.mxu0 0.0
    %2371 = vmatmul.mubr.f32.gmra.mrb[0].mxu0 %v1906
    %v2372 = vpop.f32.mrb[0].mxu0
    %v2373 = vadd.f32 %v2104, %v2372
    %v2374 = vpop.f32.mrb[0].mxu0
    %2375 = vmatprep.mubr.f32.mxu0 0.0
    %2376 = vmatmul.mubr.f32.gmra.mrb[0].mxu0 %v1909
    %v2377 = vpop.f32.mrb[0].mxu0
    %v2378 = vadd.f32 %v2109, %v2377
    %v2379 = vpop.f32.mrb[0].mxu0
    %2380 = vmatprep.mubr.f32.mxu0 0.0
    %2381 = vmatmul.mubr.f32.gmra.mrb[0].mxu0 %v1912
    %v2382 = vpop.f32.mrb[0].mxu0
    %v2383 = vadd.f32 %v2114, %v2382
    %v2384 = vpop.f32.mrb[0].mxu0
    %2385 = vmatprep.mubr.f32.mxu0 0.0
    %2386 = vmatmul.mubr.f32.gmra.mrb[0].mxu0 %v1915
    %v2387 = vpop.f32.mrb[0].mxu0
    %v2388 = vadd.f32 %v2119, %v2387
    %v2389 = vpop.f32.mrb[0].mxu0
    %2390 = vmatprep.mubr.f32.mxu0 0.0
    %2391 = vmatmul.mubr.f32.gmra.mrb[0].mxu0 %v1918
    %v2392 = vpop.f32.mrb[0].mxu0
    %v2393 = vadd.f32 %v2124, %v2392
    %v2394 = vpop.f32.mrb[0].mxu0
    %2395 = vmatprep.mubr.f32.mxu0 0.0
    %2396 = vmatmul.mubr.f32.gmra.mrb[0].mxu0 %v1921
    %v2397 = vpop.f32.mrb[0].mxu0
    %v2398 = vadd.f32 %v2129, %v2397
    %v2399 = vpop.f32.mrb[0].mxu0
    %2400 = vmatprep.mubr.f32.mxu0 0.0
    %2401 = vmatmul.mubr.f32.gmra.mrb[0].mxu0 %v1924
    %v2402 = vpop.f32.mrb[0].mxu0
    %v2403 = vadd.f32 %v2134, %v2402
    %v2404 = vpop.f32.mrb[0].mxu0
    %2405 = vmatprep.mubr.f32.mxu0 0.0
    %2406 = vmatmul.mubr.f32.gmra.mrb[0].mxu0 %v1927
    %v2407 = vpop.f32.mrb[0].mxu0
    %v2408 = vadd.f32 %v2139, %v2407
    %v2409 = vpop.f32.mrb[0].mxu0
    %2410 = vmatprep.mubr.f32.mxu0 0.0
    %2411 = vmatmul.mubr.f32.gmra.mrb[0].mxu0 %v1930
    %v2412 = vpop.f32.mrb[0].mxu0
    %v2413 = vadd.f32 %v2144, %v2412
    %v2414 = vpop.f32.mrb[0].mxu0
    %2415 = vmatprep.mubr.f32.mxu0 0.0
    %2416 = vmatmul.mubr.f32.gmra.mrb[0].mxu0 %v1933
    %v2417 = vpop.f32.mrb[0].mxu0
    %v2418 = vadd.f32 %v2149, %v2417
    %v2419 = vpop.f32.mrb[0].mxu0
    %2420 = vmatprep.mubr.f32.mxu0 0.0
    %2421 = vmatmul.mubr.f32.gmra.mrb[0].mxu0 %v1936
    %v2422 = vpop.f32.mrb[0].mxu0
    %v2423 = vadd.f32 %v2154, %v2422
    %v2424 = vpop.f32.mrb[0].mxu0
    %2425 = vmatprep.mubr.f32.mxu0 0.0
    %2426 = vmatmul.mubr.f32.gmra.mrb[0].mxu0 %v1939
    %v2427 = vpop.f32.mrb[0].mxu0
    %v2428 = vadd.f32 %v2159, %v2427
    %v2429 = vpop.f32.mrb[0].mxu0
    %2430 = vmatprep.mubr.f32.mxu0 0.0
    %2431 = vmatmul.mubr.f32.gmra.mrb[0].mxu0 %v2265
    %v2432 = vpop.f32.mrb[0].mxu0
    %v2433 = vadd.f32 %v2164, %v2432
    %v2434 = vpop.f32.mrb[0].mxu0
    %2435 = vmatprep.mubr.f32.mxu0 0.0
    %2436 = vmatmul.mubr.f32.gmra.mrb[0].mxu0 %v2268
    %v2437 = vpop.f32.mrb[0].mxu0
    %v2438 = vadd.f32 %v2169, %v2437
    %v2439 = vpop.f32.mrb[0].mxu0
    %2440 = vmatprep.mubr.f32.mxu0 0.0
    %2441 = vmatmul.mubr.f32.gmra.mrb[0].mxu0 %v2271
    %v2442 = vpop.f32.mrb[0].mxu0
    %v2443 = vadd.f32 %v2174, %v2442
    %v2444 = vpop.f32.mrb[0].mxu0
    %2445 = vmatprep.mubr.f32.mxu0 0.0
    %2446 = vmatmul.mubr.f32.gmra.mrb[0].mxu0 %v2274
    %v2447 = vpop.f32.mrb[0].mxu0
    %v2448 = vadd.f32 %v2179, %v2447
    %v2449 = vpop.f32.mrb[0].mxu0
    %2450 = vmatprep.mubr.f32.mxu0 0.0
    %2451 = vmatmul.mubr.f32.gmra.mrb[0].mxu0 %v1954
    %v2452 = vpop.f32.mrb[0].mxu0
    %v2453 = vadd.f32 %v2184, %v2452
    %v2454 = vpop.f32.mrb[0].mxu0
    %2455 = vmatprep.mubr.f32.mxu0 0.0
    %2456 = vmatmul.mubr.f32.gmra.mrb[0].mxu0 %v1957
    %v2457 = vpop.f32.mrb[0].mxu0
    %v2458 = vadd.f32 %v2189, %v2457
    %v2459 = vpop.f32.mrb[0].mxu0
    %2460 = vmatprep.mubr.f32.mxu0 0.0
    %2461 = vmatmul.mubr.f32.gmra.mrb[0].mxu0 %v1960
    %v2462 = vpop.f32.mrb[0].mxu0
    %v2463 = vadd.f32 %v2194, %v2462
    %v2464 = vpop.f32.mrb[0].mxu0
    %2465 = vmatprep.mubr.f32.mxu0 0.0
    %2466 = vmatmul.mubr.f32.gmra.mrb[0].mxu0 %v1963
    %v2467 = vpop.f32.mrb[0].mxu0
    %v2468 = vadd.f32 %v2199, %v2467
    %v2469 = vpop.f32.mrb[0].mxu0
    %2470 = vmatprep.mubr.f32.mxu0 0.0
    %2471 = vmatmul.mubr.f32.gmra.mrb[0].mxu0 %v1966
    %v2472 = vpop.f32.mrb[0].mxu0
    %v2473 = vadd.f32 %v2204, %v2472
    %v2474 = vpop.f32.mrb[0].mxu0
    %2475 = vmatprep.mubr.f32.mxu0 0.0
    %2476 = vmatmul.mubr.f32.gmra.mrb[0].mxu0 %v1969
    %v2477 = vpop.f32.mrb[0].mxu0
    %v2478 = vadd.f32 %v2209, %v2477
    %v2479 = vpop.f32.mrb[0].mxu0
    %2480 = vmatprep.mubr.f32.mxu0 0.0
    %2481 = vmatmul.mubr.f32.gmra.mrb[0].mxu0 %v1972
    %v2482 = vpop.f32.mrb[0].mxu0
    %v2483 = vadd.f32 %v2214, %v2482
    %v2484 = vpop.f32.mrb[0].mxu0
    %2485 = vmatprep.mubr.f32.mxu0 0.0
    %2486 = vmatmul.mubr.f32.gmra.mrb[0].mxu0 %v1975
    %v2487 = vpop.f32.mrb[0].mxu0
    %v2488 = vadd.f32 %v2219, %v2487
    %v2489 = vpop.f32.mrb[0].mxu0
    %2490 = vmatprep.mubr.f32.mxu0 0.0
    %2491 = vmatmul.mubr.f32.gmra.mrb[0].mxu0 %v1978
    %v2492 = vpop.f32.mrb[0].mxu0
    %v2493 = vadd.f32 %v2224, %v2492
    %v2494 = vpop.f32.mrb[0].mxu0
    %2495 = vmatprep.mubr.f32.mxu0 0.0
    %2496 = vmatmul.mubr.f32.gmra.mrb[0].mxu0 %v1981
    %v2497 = vpop.f32.mrb[0].mxu0
    %v2498 = vadd.f32 %v2229, %v2497
    %v2499 = vpop.f32.mrb[0].mxu0
    %2500 = vmatprep.mubr.f32.mxu0 0.0
    %2501 = vmatmul.mubr.f32.gmra.mrb[0].mxu0 %v1984
    %v2502 = vpop.f32.mrb[0].mxu0
    %v2503 = vadd.f32 %v2234, %v2502
    %v2504 = vpop.f32.mrb[0].mxu0
    %2505 = vmatprep.mubr.f32.mxu0 0.0
    %2506 = vmatmul.mubr.f32.gmra.mrb[0].mxu0 %v1987
    %v2507 = vpop.f32.mrb[0].mxu0
    %v2508 = vadd.f32 %v2239, %v2507
    %v2509 = vpop.f32.mrb[0].mxu0
    %2510 = vmatprep.mubr.f32.mxu0 0.0
    %2511 = vmatmul.mubr.f32.gmra.mrb[0].mxu0 %v1990
    %v2512 = vpop.f32.mrb[0].mxu0
    %v2513 = vadd.f32 %v2244, %v2512
    %v2514 = vpop.f32.mrb[0].mxu0
    %2515 = vmatprep.mubr.f32.mxu0 0.0
    %2516 = vmatmul.mubr.f32.gmra.mrb[0].mxu0 %v1993
    %v2517 = vpop.f32.mrb[0].mxu0
    %v2518 = vadd.f32 %v2249, %v2517
    %v2519 = vpop.f32.mrb[0].mxu0
    %2520 = vdwg.mxu0
    %v2521 = vlaneseq
    %v2522 = vshrl.u32 %v2521, 7
    %v2523 = vsub.s32 0, %v2522
    %v2524 = vrot.slane %v1897, %v2523
    %v2525 = vadd.f32 %v2343, %v2524
    %v2526 = vadd.f32 %v2348, %v2524
    %v2527 = vadd.f32 %v2353, %v2524
    %v2528 = vadd.f32 %v2358, %v2524
    %v2529 = vadd.f32 %v2363, %v2524
    %v2530 = vadd.f32 %v2368, %v2524
    %v2531 = vadd.f32 %v2373, %v2524
    %v2532 = vadd.f32 %v2378, %v2524
    %v2533 = vadd.f32 %v2383, %v2524
    %v2534 = vadd.f32 %v2388, %v2524
    %v2535 = vadd.f32 %v2393, %v2524
    %v2536 = vadd.f32 %v2398, %v2524
    %v2537 = vadd.f32 %v2403, %v2524
    %v2538 = vadd.f32 %v2408, %v2524
    %v2539 = vadd.f32 %v2413, %v2524
    %v2540 = vadd.f32 %v2418, %v2524
    %v2541 = vadd.f32 %v2423, %v2524
    %v2542 = vadd.f32 %v2428, %v2524
    %v2543 = vadd.f32 %v2433, %v2524
    %v2544 = vadd.f32 %v2438, %v2524
    %v2545 = vadd.f32 %v2443, %v2524
    %v2546 = vadd.f32 %v2448, %v2524
    %v2547 = vadd.f32 %v2453, %v2524
    %v2548 = vadd.f32 %v2458, %v2524
    %v2549 = vadd.f32 %v2463, %v2524
    %v2550 = vadd.f32 %v2468, %v2524
    %v2551 = vadd.f32 %v2473, %v2524
    %v2552 = vadd.f32 %v2478, %v2524
    %v2553 = vadd.f32 %v2483, %v2524
    %v2554 = vadd.f32 %v2488, %v2524
    %v2555 = vadd.f32 %v2493, %v2524
    %v2556 = vadd.f32 %v2498, %v2524
    %v2557 = vadd.f32 %v2503, %v2524
    %v2558 = vadd.f32 %v2508, %v2524
    %v2559 = vadd.f32 %v2513, %v2524
    %v2560 = vadd.f32 %v2518, %v2524
    %2561 = vmatprep.subr.mxu0 0.0
    %2562 = vmatpush1.msra.mxu0 %v1895
    %2563 = vmatprep.subr.mxu0 0.0
    %2564 = vmatpush1.msra.mxu0 %v1896
    %2565 = vmatprep.subr.mxu0 0.0
    %2566 = vmatpush1.msra.mxu0 0.0
    %2567 = vmatprep.subr.mxu0 0.0
    %2568 = vmatpush1.msra.mxu0 0.0
    %2569 = vmatprep.subr.mxu0 0.0
    %2570 = vmatpush1.msra.mxu0 0.0
    %2571 = vmatprep.subr.mxu0 0.0
    %2572 = vmatpush1.msra.mxu0 0.0
    %2573 = vmatprep.subr.mxu0 0.0
    %2574 = vmatpush1.msra.mxu0 0.0
    %2575 = vmatprep.subr.mxu0 0.0
    %2576 = vmatpush1.msra.mxu0 0.0
    %2577 = vmatprep.subr.mxu0 0.0
    %2578 = vmatpush1.msra.mxu0 0.0
    %2579 = vmatprep.subr.mxu0 0.0
    %2580 = vmatpush1.msra.mxu0 0.0
    %2581 = vmatprep.subr.mxu0 0.0
    %2582 = vmatpush1.msra.mxu0 0.0
    %2583 = vmatprep.subr.mxu0 0.0
    %2584 = vmatpush1.msra.mxu0 0.0
    %2585 = vmatprep.subr.mxu0 0.0
    %2586 = vmatpush1.msra.mxu0 0.0
    %2587 = vmatprep.subr.mxu0 0.0
    %2588 = vmatpush1.msra.mxu0 0.0
    %2589 = vmatprep.subr.mxu0 0.0
    %2590 = vmatpush1.msra.mxu0 0.0
    %2591 = vmatprep.subr.mxu0 0.0
    %2592 = vmatpush1.msra.mxu0 0.0
    %2593 = vmatprep.subr.mxu0 0.0
    %2594 = vmatpush1.msra.mxu0 0.0
    %2595 = vmatprep.subr.mxu0 0.0
    %2596 = vmatpush1.msra.mxu0 0.0
    %2597 = vmatprep.subr.mxu0 0.0
    %2598 = vmatpush1.msra.mxu0 0.0
    %2599 = vmatprep.subr.mxu0 0.0
    %2600 = vmatpush1.msra.mxu0 0.0
    %2601 = vmatprep.subr.mxu0 0.0
    %2602 = vmatpush1.msra.mxu0 0.0
    %2603 = vmatprep.subr.mxu0 0.0
    %2604 = vmatpush1.msra.mxu0 0.0
    %2605 = vmatprep.subr.mxu0 0.0
    %2606 = vmatpush1.msra.mxu0 0.0
    %2607 = vmatprep.subr.mxu0 0.0
    %2608 = vmatpush1.msra.mxu0 0.0
    %2609 = vmatprep.subr.mxu0 0.0
    %2610 = vmatpush1.msra.mxu0 0.0
    %2611 = vmatprep.subr.mxu0 0.0
    %2612 = vmatpush1.msra.mxu0 0.0
    %2613 = vmatprep.subr.mxu0 0.0
    %2614 = vmatpush1.msra.mxu0 0.0
    %2615 = vmatprep.subr.mxu0 0.0
    %2616 = vmatpush1.msra.mxu0 0.0
    %2617 = vmatprep.subr.mxu0 0.0
    %2618 = vmatpush1.msra.mxu0 0.0
    %2619 = vmatprep.subr.mxu0 0.0
    %2620 = vmatpush1.msra.mxu0 0.0
    %2621 = vmatprep.subr.mxu0 0.0
    %2622 = vmatpush1.msra.mxu0 0.0
    %2623 = vmatprep.subr.mxu0 0.0
    %2624 = vmatpush1.msra.mxu0 0.0
    %2625 = vmatprep.mubr.f32.mxu0 0.0
    %2626 = vmatmul.mubr.f32.gmra.mrb[0].mxu0 %v1900
    %v2627 = vpop.f32.mrb[0].mxu0
    %v2628 = vadd.f32 0.0, %v2627
    %v2629 = vpop.f32.mrb[0].mxu0
    %2630 = vmatprep.mubr.f32.mxu0 0.0
    %2631 = vmatmul.mubr.f32.gmra.mrb[0].mxu0 %v1903
    %v2632 = vpop.f32.mrb[0].mxu0
    %v2633 = vadd.f32 0.0, %v2632
    %v2634 = vpop.f32.mrb[0].mxu0
    %2635 = vmatprep.mubr.f32.mxu0 0.0
    %2636 = vmatmul.mubr.f32.gmra.mrb[0].mxu0 %v1906
    %v2637 = vpop.f32.mrb[0].mxu0
    %v2638 = vadd.f32 0.0, %v2637
    %v2639 = vpop.f32.mrb[0].mxu0
    %2640 = vmatprep.mubr.f32.mxu0 0.0
    %2641 = vmatmul.mubr.f32.gmra.mrb[0].mxu0 %v1909
    %v2642 = vpop.f32.mrb[0].mxu0
    %v2643 = vadd.f32 0.0, %v2642
    %v2644 = vpop.f32.mrb[0].mxu0
    %2645 = vmatprep.mubr.f32.mxu0 0.0
    %2646 = vmatmul.mubr.f32.gmra.mrb[0].mxu0 %v1912
    %v2647 = vpop.f32.mrb[0].mxu0
    %v2648 = vadd.f32 0.0, %v2647
    %v2649 = vpop.f32.mrb[0].mxu0
    %2650 = vmatprep.mubr.f32.mxu0 0.0
    %2651 = vmatmul.mubr.f32.gmra.mrb[0].mxu0 %v1915
    %v2652 = vpop.f32.mrb[0].mxu0
    %v2653 = vadd.f32 0.0, %v2652
    %v2654 = vpop.f32.mrb[0].mxu0
    %2655 = vmatprep.mubr.f32.mxu0 0.0
    %2656 = vmatmul.mubr.f32.gmra.mrb[0].mxu0 %v1918
    %v2657 = vpop.f32.mrb[0].mxu0
    %v2658 = vadd.f32 0.0, %v2657
    %v2659 = vpop.f32.mrb[0].mxu0
    %2660 = vmatprep.mubr.f32.mxu0 0.0
    %2661 = vmatmul.mubr.f32.gmra.mrb[0].mxu0 %v1921
    %v2662 = vpop.f32.mrb[0].mxu0
    %v2663 = vadd.f32 0.0, %v2662
    %v2664 = vpop.f32.mrb[0].mxu0
    %2665 = vmatprep.mubr.f32.mxu0 0.0
    %2666 = vmatmul.mubr.f32.gmra.mrb[0].mxu0 %v1924
    %v2667 = vpop.f32.mrb[0].mxu0
    %v2668 = vadd.f32 0.0, %v2667
    %v2669 = vpop.f32.mrb[0].mxu0
    %2670 = vmatprep.mubr.f32.mxu0 0.0
    %2671 = vmatmul.mubr.f32.gmra.mrb[0].mxu0 %v1927
    %v2672 = vpop.f32.mrb[0].mxu0
    %v2673 = vadd.f32 0.0, %v2672
    %v2674 = vpop.f32.mrb[0].mxu0
    %2675 = vmatprep.mubr.f32.mxu0 0.0
    %2676 = vmatmul.mubr.f32.gmra.mrb[0].mxu0 %v1930
    %v2677 = vpop.f32.mrb[0].mxu0
    %v2678 = vadd.f32 0.0, %v2677
    %v2679 = vpop.f32.mrb[0].mxu0
    %2680 = vmatprep.mubr.f32.mxu0 0.0
    %2681 = vmatmul.mubr.f32.gmra.mrb[0].mxu0 %v1933
    %v2682 = vpop.f32.mrb[0].mxu0
    %v2683 = vadd.f32 0.0, %v2682
    %v2684 = vpop.f32.mrb[0].mxu0
    %2685 = vmatprep.mubr.f32.mxu0 0.0
    %2686 = vmatmul.mubr.f32.gmra.mrb[0].mxu0 %v1936
    %v2687 = vpop.f32.mrb[0].mxu0
    %v2688 = vadd.f32 0.0, %v2687
    %v2689 = vpop.f32.mrb[0].mxu0
    %2690 = vmatprep.mubr.f32.mxu0 0.0
    %2691 = vmatmul.mubr.f32.gmra.mrb[0].mxu0 %v1939
    %v2692 = vpop.f32.mrb[0].mxu0
    %v2693 = vadd.f32 0.0, %v2692
    %v2694 = vpop.f32.mrb[0].mxu0
    %2695 = vmatprep.mubr.f32.mxu0 0.0
    %2696 = vmatmul.mubr.f32.gmra.mrb[0].mxu0 %v1942
    %v2697 = vpop.f32.mrb[0].mxu0
    %v2698 = vadd.f32 0.0, %v2697
    %v2699 = vpop.f32.mrb[0].mxu0
    %2700 = vmatprep.mubr.f32.mxu0 0.0
    %2701 = vmatmul.mubr.f32.gmra.mrb[0].mxu0 %v1945
    %v2702 = vpop.f32.mrb[0].mxu0
    %v2703 = vadd.f32 0.0, %v2702
    %v2704 = vpop.f32.mrb[0].mxu0
    %2705 = vmatprep.mubr.f32.mxu0 0.0
    %2706 = vmatmul.mubr.f32.gmra.mrb[0].mxu0 %v1948
    %v2707 = vpop.f32.mrb[0].mxu0
    %v2708 = vadd.f32 0.0, %v2707
    %v2709 = vpop.f32.mrb[0].mxu0
    %2710 = vmatprep.mubr.f32.mxu0 0.0
    %2711 = vmatmul.mubr.f32.gmra.mrb[0].mxu0 %v1951
    %v2712 = vpop.f32.mrb[0].mxu0
    %v2713 = vadd.f32 0.0, %v2712
    %v2714 = vpop.f32.mrb[0].mxu0
    %2715 = vmatprep.mubr.f32.mxu0 0.0
    %2716 = vmatmul.mubr.f32.gmra.mrb[0].mxu0 %v1954
    %v2717 = vpop.f32.mrb[0].mxu0
    %v2718 = vadd.f32 0.0, %v2717
    %v2719 = vpop.f32.mrb[0].mxu0
    %2720 = vmatprep.mubr.f32.mxu0 0.0
    %2721 = vmatmul.mubr.f32.gmra.mrb[0].mxu0 %v1957
    %v2722 = vpop.f32.mrb[0].mxu0
    %v2723 = vadd.f32 0.0, %v2722
    %v2724 = vpop.f32.mrb[0].mxu0
    %2725 = vmatprep.mubr.f32.mxu0 0.0
    %2726 = vmatmul.mubr.f32.gmra.mrb[0].mxu0 %v1960
    %v2727 = vpop.f32.mrb[0].mxu0
    %v2728 = vadd.f32 0.0, %v2727
    %v2729 = vpop.f32.mrb[0].mxu0
    %2730 = vmatprep.mubr.f32.mxu0 0.0
    %2731 = vmatmul.mubr.f32.gmra.mrb[0].mxu0 %v1963
    %v2732 = vpop.f32.mrb[0].mxu0
    %v2733 = vadd.f32 0.0, %v2732
    %v2734 = vpop.f32.mrb[0].mxu0
    %2735 = vmatprep.mubr.f32.mxu0 0.0
    %2736 = vmatmul.mubr.f32.gmra.mrb[0].mxu0 %v1966
    %v2737 = vpop.f32.mrb[0].mxu0
    %v2738 = vadd.f32 0.0, %v2737
    %v2739 = vpop.f32.mrb[0].mxu0
    %2740 = vmatprep.mubr.f32.mxu0 0.0
    %2741 = vmatmul.mubr.f32.gmra.mrb[0].mxu0 %v1969
    %v2742 = vpop.f32.mrb[0].mxu0
    %v2743 = vadd.f32 0.0, %v2742
    %v2744 = vpop.f32.mrb[0].mxu0
    %2745 = vmatprep.mubr.f32.mxu0 0.0
    %2746 = vmatmul.mubr.f32.gmra.mrb[0].mxu0 %v1972
    %v2747 = vpop.f32.mrb[0].mxu0
    %v2748 = vadd.f32 0.0, %v2747
    %v2749 = vpop.f32.mrb[0].mxu0
    %2750 = vmatprep.mubr.f32.mxu0 0.0
    %2751 = vmatmul.mubr.f32.gmra.mrb[0].mxu0 %v1975
    %v2752 = vpop.f32.mrb[0].mxu0
    %v2753 = vadd.f32 0.0, %v2752
    %v2754 = vpop.f32.mrb[0].mxu0
    %2755 = vmatprep.mubr.f32.mxu0 0.0
    %2756 = vmatmul.mubr.f32.gmra.mrb[0].mxu0 %v1978
    %v2757 = vpop.f32.mrb[0].mxu0
    %v2758 = vadd.f32 0.0, %v2757
    %v2759 = vpop.f32.mrb[0].mxu0
    %2760 = vmatprep.mubr.f32.mxu0 0.0
    %2761 = vmatmul.mubr.f32.gmra.mrb[0].mxu0 %v1981
    %v2762 = vpop.f32.mrb[0].mxu0
    %v2763 = vadd.f32 0.0, %v2762
    %v2764 = vpop.f32.mrb[0].mxu0
    %2765 = vmatprep.mubr.f32.mxu0 0.0
    %2766 = vmatmul.mubr.f32.gmra.mrb[0].mxu0 %v1984
    %v2767 = vpop.f32.mrb[0].mxu0
    %v2768 = vadd.f32 0.0, %v2767
    %v2769 = vpop.f32.mrb[0].mxu0
    %2770 = vmatprep.mubr.f32.mxu0 0.0
    %2771 = vmatmul.mubr.f32.gmra.mrb[0].mxu0 %v1987
    %v2772 = vpop.f32.mrb[0].mxu0
    %v2773 = vadd.f32 0.0, %v2772
    %v2774 = vpop.f32.mrb[0].mxu0
    %2775 = vmatprep.mubr.f32.mxu0 0.0
    %2776 = vmatmul.mubr.f32.gmra.mrb[0].mxu0 %v1990
    %v2777 = vpop.f32.mrb[0].mxu0
    %v2778 = vadd.f32 0.0, %v2777
    %v2779 = vpop.f32.mrb[0].mxu0
    %2780 = vmatprep.mubr.f32.mxu0 0.0
    %2781 = vmatmul.mubr.f32.gmra.mrb[0].mxu0 %v1993
    %v2782 = vpop.f32.mrb[0].mxu0
    %v2783 = vadd.f32 0.0, %v2782
    %v2784 = vpop.f32.mrb[0].mxu0
    %2785 = vmatprep.mubr.f32.mxu0 0.0
    %2786 = vmatmul.mubr.f32.gmra.mrb[0].mxu0 %v1996
    %v2787 = vpop.f32.mrb[0].mxu0
    %v2788 = vadd.f32 0.0, %v2787
    %v2789 = vpop.f32.mrb[0].mxu0
    %2790 = vmatprep.mubr.f32.mxu0 0.0
    %2791 = vmatmul.mubr.f32.gmra.mrb[0].mxu0 %v1999
    %v2792 = vpop.f32.mrb[0].mxu0
    %v2793 = vadd.f32 0.0, %v2792
    %v2794 = vpop.f32.mrb[0].mxu0
    %2795 = vmatprep.mubr.f32.mxu0 0.0
    %2796 = vmatmul.mubr.f32.gmra.mrb[0].mxu0 %v2002
    %v2797 = vpop.f32.mrb[0].mxu0
    %v2798 = vadd.f32 0.0, %v2797
    %v2799 = vpop.f32.mrb[0].mxu0
    %2800 = vmatprep.mubr.f32.mxu0 0.0
    %2801 = vmatmul.mubr.f32.gmra.mrb[0].mxu0 %v2005
    %v2802 = vpop.f32.mrb[0].mxu0
    %v2803 = vadd.f32 0.0, %v2802
    %v2804 = vpop.f32.mrb[0].mxu0
    %2805 = vdwg.mxu0
    %2806 = vmatprep.subr.mxu0 0.0
    %2807 = vmatpush1.msra.mxu0 %v1891
    %2808 = vmatprep.subr.mxu0 0.0
    %2809 = vmatpush1.msra.mxu0 %v1892
    %2810 = vmatprep.subr.mxu0 0.0
    %2811 = vmatpush1.msra.mxu0 0.0
    %2812 = vmatprep.subr.mxu0 0.0
    %2813 = vmatpush1.msra.mxu0 0.0
    %2814 = vmatprep.subr.mxu0 0.0
    %2815 = vmatpush1.msra.mxu0 0.0
    %2816 = vmatprep.subr.mxu0 0.0
    %2817 = vmatpush1.msra.mxu0 0.0
    %2818 = vmatprep.subr.mxu0 0.0
    %2819 = vmatpush1.msra.mxu0 0.0
    %2820 = vmatprep.subr.mxu0 0.0
    %2821 = vmatpush1.msra.mxu0 0.0
    %2822 = vmatprep.subr.mxu0 0.0
    %2823 = vmatpush1.msra.mxu0 0.0
    %2824 = vmatprep.subr.mxu0 0.0
    %2825 = vmatpush1.msra.mxu0 0.0
    %2826 = vmatprep.subr.mxu0 0.0
    %2827 = vmatpush1.msra.mxu0 0.0
    %2828 = vmatprep.subr.mxu0 0.0
    %2829 = vmatpush1.msra.mxu0 0.0
    %2830 = vmatprep.subr.mxu0 0.0
    %2831 = vmatpush1.msra.mxu0 0.0
    %2832 = vmatprep.subr.mxu0 0.0
    %2833 = vmatpush1.msra.mxu0 0.0
    %2834 = vmatprep.subr.mxu0 0.0
    %2835 = vmatpush1.msra.mxu0 0.0
    %2836 = vmatprep.subr.mxu0 0.0
    %2837 = vmatpush1.msra.mxu0 0.0
    %2838 = vmatprep.subr.mxu0 0.0
    %2839 = vmatpush1.msra.mxu0 0.0
    %2840 = vmatprep.subr.mxu0 0.0
    %2841 = vmatpush1.msra.mxu0 0.0
    %2842 = vmatprep.subr.mxu0 0.0
    %2843 = vmatpush1.msra.mxu0 0.0
    %2844 = vmatprep.subr.mxu0 0.0
    %2845 = vmatpush1.msra.mxu0 0.0
    %2846 = vmatprep.subr.mxu0 0.0
    %2847 = vmatpush1.msra.mxu0 0.0
    %2848 = vmatprep.subr.mxu0 0.0
    %2849 = vmatpush1.msra.mxu0 0.0
    %2850 = vmatprep.subr.mxu0 0.0
    %2851 = vmatpush1.msra.mxu0 0.0
    %2852 = vmatprep.subr.mxu0 0.0
    %2853 = vmatpush1.msra.mxu0 0.0
    %2854 = vmatprep.subr.mxu0 0.0
    %2855 = vmatpush1.msra.mxu0 0.0
    %2856 = vmatprep.subr.mxu0 0.0
    %2857 = vmatpush1.msra.mxu0 0.0
    %2858 = vmatprep.subr.mxu0 0.0
    %2859 = vmatpush1.msra.mxu0 0.0
    %2860 = vmatprep.subr.mxu0 0.0
    %2861 = vmatpush1.msra.mxu0 0.0
    %2862 = vmatprep.subr.mxu0 0.0
    %2863 = vmatpush1.msra.mxu0 0.0
    %2864 = vmatprep.subr.mxu0 0.0
    %2865 = vmatpush1.msra.mxu0 0.0
    %2866 = vmatprep.subr.mxu0 0.0
    %2867 = vmatpush1.msra.mxu0 0.0
    %2868 = vmatprep.subr.mxu0 0.0
    %2869 = vmatpush1.msra.mxu0 0.0
    %2870 = vmatprep.mubr.f32.mxu0 0.0
    %2871 = vmatmul.mubr.f32.gmra.mrb[0].mxu0 %v2253
    %v2872 = vpop.f32.mrb[0].mxu0
    %v2873 = vadd.f32 %v2628, %v2872
    %v2874 = vpop.f32.mrb[0].mxu0
    %2875 = vmatprep.mubr.f32.mxu0 0.0
    %2876 = vmatmul.mubr.f32.gmra.mrb[0].mxu0 %v2256
    %v2877 = vpop.f32.mrb[0].mxu0
    %v2878 = vadd.f32 %v2633, %v2877
    %v2879 = vpop.f32.mrb[0].mxu0
    %2880 = vmatprep.mubr.f32.mxu0 0.0
    %2881 = vmatmul.mubr.f32.gmra.mrb[0].mxu0 %v2259
    %v2882 = vpop.f32.mrb[0].mxu0
    %v2883 = vadd.f32 %v2638, %v2882
    %v2884 = vpop.f32.mrb[0].mxu0
    %2885 = vmatprep.mubr.f32.mxu0 0.0
    %2886 = vmatmul.mubr.f32.gmra.mrb[0].mxu0 %v2262
    %v2887 = vpop.f32.mrb[0].mxu0
    %v2888 = vadd.f32 %v2643, %v2887
    %v2889 = vpop.f32.mrb[0].mxu0
    %2890 = vmatprep.mubr.f32.mxu0 0.0
    %2891 = vmatmul.mubr.f32.gmra.mrb[0].mxu0 %v1900
    %v2892 = vpop.f32.mrb[0].mxu0
    %v2893 = vadd.f32 %v2648, %v2892
    %v2894 = vpop.f32.mrb[0].mxu0
    %2895 = vmatprep.mubr.f32.mxu0 0.0
    %2896 = vmatmul.mubr.f32.gmra.mrb[0].mxu0 %v1903
    %v2897 = vpop.f32.mrb[0].mxu0
    %v2898 = vadd.f32 %v2653, %v2897
    %v2899 = vpop.f32.mrb[0].mxu0
    %2900 = vmatprep.mubr.f32.mxu0 0.0
    %2901 = vmatmul.mubr.f32.gmra.mrb[0].mxu0 %v1906
    %v2902 = vpop.f32.mrb[0].mxu0
    %v2903 = vadd.f32 %v2658, %v2902
    %v2904 = vpop.f32.mrb[0].mxu0
    %2905 = vmatprep.mubr.f32.mxu0 0.0
    %2906 = vmatmul.mubr.f32.gmra.mrb[0].mxu0 %v1909
    %v2907 = vpop.f32.mrb[0].mxu0
    %v2908 = vadd.f32 %v2663, %v2907
    %v2909 = vpop.f32.mrb[0].mxu0
    %2910 = vmatprep.mubr.f32.mxu0 0.0
    %2911 = vmatmul.mubr.f32.gmra.mrb[0].mxu0 %v1912
    %v2912 = vpop.f32.mrb[0].mxu0
    %v2913 = vadd.f32 %v2668, %v2912
    %v2914 = vpop.f32.mrb[0].mxu0
    %2915 = vmatprep.mubr.f32.mxu0 0.0
    %2916 = vmatmul.mubr.f32.gmra.mrb[0].mxu0 %v1915
    %v2917 = vpop.f32.mrb[0].mxu0
    %v2918 = vadd.f32 %v2673, %v2917
    %v2919 = vpop.f32.mrb[0].mxu0
    %2920 = vmatprep.mubr.f32.mxu0 0.0
    %2921 = vmatmul.mubr.f32.gmra.mrb[0].mxu0 %v1918
    %v2922 = vpop.f32.mrb[0].mxu0
    %v2923 = vadd.f32 %v2678, %v2922
    %v2924 = vpop.f32.mrb[0].mxu0
    %2925 = vmatprep.mubr.f32.mxu0 0.0
    %2926 = vmatmul.mubr.f32.gmra.mrb[0].mxu0 %v1921
    %v2927 = vpop.f32.mrb[0].mxu0
    %v2928 = vadd.f32 %v2683, %v2927
    %v2929 = vpop.f32.mrb[0].mxu0
    %2930 = vmatprep.mubr.f32.mxu0 0.0
    %2931 = vmatmul.mubr.f32.gmra.mrb[0].mxu0 %v1924
    %v2932 = vpop.f32.mrb[0].mxu0
    %v2933 = vadd.f32 %v2688, %v2932
    %v2934 = vpop.f32.mrb[0].mxu0
    %2935 = vmatprep.mubr.f32.mxu0 0.0
    %2936 = vmatmul.mubr.f32.gmra.mrb[0].mxu0 %v1927
    %v2937 = vpop.f32.mrb[0].mxu0
    %v2938 = vadd.f32 %v2693, %v2937
    %v2939 = vpop.f32.mrb[0].mxu0
    %2940 = vmatprep.mubr.f32.mxu0 0.0
    %2941 = vmatmul.mubr.f32.gmra.mrb[0].mxu0 %v1930
    %v2942 = vpop.f32.mrb[0].mxu0
    %v2943 = vadd.f32 %v2698, %v2942
    %v2944 = vpop.f32.mrb[0].mxu0
    %2945 = vmatprep.mubr.f32.mxu0 0.0
    %2946 = vmatmul.mubr.f32.gmra.mrb[0].mxu0 %v1933
    %v2947 = vpop.f32.mrb[0].mxu0
    %v2948 = vadd.f32 %v2703, %v2947
    %v2949 = vpop.f32.mrb[0].mxu0
    %2950 = vmatprep.mubr.f32.mxu0 0.0
    %2951 = vmatmul.mubr.f32.gmra.mrb[0].mxu0 %v1936
    %v2952 = vpop.f32.mrb[0].mxu0
    %v2953 = vadd.f32 %v2708, %v2952
    %v2954 = vpop.f32.mrb[0].mxu0
    %2955 = vmatprep.mubr.f32.mxu0 0.0
    %2956 = vmatmul.mubr.f32.gmra.mrb[0].mxu0 %v1939
    %v2957 = vpop.f32.mrb[0].mxu0
    %v2958 = vadd.f32 %v2713, %v2957
    %v2959 = vpop.f32.mrb[0].mxu0
    %2960 = vmatprep.mubr.f32.mxu0 0.0
    %2961 = vmatmul.mubr.f32.gmra.mrb[0].mxu0 %v2265
    %v2962 = vpop.f32.mrb[0].mxu0
    %v2963 = vadd.f32 %v2718, %v2962
    %v2964 = vpop.f32.mrb[0].mxu0
    %2965 = vmatprep.mubr.f32.mxu0 0.0
    %2966 = vmatmul.mubr.f32.gmra.mrb[0].mxu0 %v2268
    %v2967 = vpop.f32.mrb[0].mxu0
    %v2968 = vadd.f32 %v2723, %v2967
    %v2969 = vpop.f32.mrb[0].mxu0
    %2970 = vmatprep.mubr.f32.mxu0 0.0
    %2971 = vmatmul.mubr.f32.gmra.mrb[0].mxu0 %v2271
    %v2972 = vpop.f32.mrb[0].mxu0
    %v2973 = vadd.f32 %v2728, %v2972
    %v2974 = vpop.f32.mrb[0].mxu0
    %2975 = vmatprep.mubr.f32.mxu0 0.0
    %2976 = vmatmul.mubr.f32.gmra.mrb[0].mxu0 %v2274
    %v2977 = vpop.f32.mrb[0].mxu0
    %v2978 = vadd.f32 %v2733, %v2977
    %v2979 = vpop.f32.mrb[0].mxu0
    %2980 = vmatprep.mubr.f32.mxu0 0.0
    %2981 = vmatmul.mubr.f32.gmra.mrb[0].mxu0 %v1954
    %v2982 = vpop.f32.mrb[0].mxu0
    %v2983 = vadd.f32 %v2738, %v2982
    %v2984 = vpop.f32.mrb[0].mxu0
    %2985 = vmatprep.mubr.f32.mxu0 0.0
    %2986 = vmatmul.mubr.f32.gmra.mrb[0].mxu0 %v1957
    %v2987 = vpop.f32.mrb[0].mxu0
    %v2988 = vadd.f32 %v2743, %v2987
    %v2989 = vpop.f32.mrb[0].mxu0
    %2990 = vmatprep.mubr.f32.mxu0 0.0
    %2991 = vmatmul.mubr.f32.gmra.mrb[0].mxu0 %v1960
    %v2992 = vpop.f32.mrb[0].mxu0
    %v2993 = vadd.f32 %v2748, %v2992
    %v2994 = vpop.f32.mrb[0].mxu0
    %2995 = vmatprep.mubr.f32.mxu0 0.0
    %2996 = vmatmul.mubr.f32.gmra.mrb[0].mxu0 %v1963
    %v2997 = vpop.f32.mrb[0].mxu0
    %v2998 = vadd.f32 %v2753, %v2997
    %v2999 = vpop.f32.mrb[0].mxu0
    %3000 = vmatprep.mubr.f32.mxu0 0.0
    %3001 = vmatmul.mubr.f32.gmra.mrb[0].mxu0 %v1966
    %v3002 = vpop.f32.mrb[0].mxu0
    %v3003 = vadd.f32 %v2758, %v3002
    %v3004 = vpop.f32.mrb[0].mxu0
    %3005 = vmatprep.mubr.f32.mxu0 0.0
    %3006 = vmatmul.mubr.f32.gmra.mrb[0].mxu0 %v1969
    %v3007 = vpop.f32.mrb[0].mxu0
    %v3008 = vadd.f32 %v2763, %v3007
    %v3009 = vpop.f32.mrb[0].mxu0
    %3010 = vmatprep.mubr.f32.mxu0 0.0
    %3011 = vmatmul.mubr.f32.gmra.mrb[0].mxu0 %v1972
    %v3012 = vpop.f32.mrb[0].mxu0
    %v3013 = vadd.f32 %v2768, %v3012
    %v3014 = vpop.f32.mrb[0].mxu0
    %3015 = vmatprep.mubr.f32.mxu0 0.0
    %3016 = vmatmul.mubr.f32.gmra.mrb[0].mxu0 %v1975
    %v3017 = vpop.f32.mrb[0].mxu0
    %v3018 = vadd.f32 %v2773, %v3017
    %v3019 = vpop.f32.mrb[0].mxu0
    %3020 = vmatprep.mubr.f32.mxu0 0.0
    %3021 = vmatmul.mubr.f32.gmra.mrb[0].mxu0 %v1978
    %v3022 = vpop.f32.mrb[0].mxu0
    %v3023 = vadd.f32 %v2778, %v3022
    %v3024 = vpop.f32.mrb[0].mxu0
    %3025 = vmatprep.mubr.f32.mxu0 0.0
    %3026 = vmatmul.mubr.f32.gmra.mrb[0].mxu0 %v1981
    %v3027 = vpop.f32.mrb[0].mxu0
    %v3028 = vadd.f32 %v2783, %v3027
    %v3029 = vpop.f32.mrb[0].mxu0
    %3030 = vmatprep.mubr.f32.mxu0 0.0
    %3031 = vmatmul.mubr.f32.gmra.mrb[0].mxu0 %v1984
    %v3032 = vpop.f32.mrb[0].mxu0
    %v3033 = vadd.f32 %v2788, %v3032
    %v3034 = vpop.f32.mrb[0].mxu0
    %3035 = vmatprep.mubr.f32.mxu0 0.0
    %3036 = vmatmul.mubr.f32.gmra.mrb[0].mxu0 %v1987
    %v3037 = vpop.f32.mrb[0].mxu0
    %v3038 = vadd.f32 %v2793, %v3037
    %v3039 = vpop.f32.mrb[0].mxu0
    %3040 = vmatprep.mubr.f32.mxu0 0.0
    %3041 = vmatmul.mubr.f32.gmra.mrb[0].mxu0 %v1990
    %v3042 = vpop.f32.mrb[0].mxu0
    %v3043 = vadd.f32 %v2798, %v3042
    %v3044 = vpop.f32.mrb[0].mxu0
    %3045 = vmatprep.mubr.f32.mxu0 0.0
    %3046 = vmatmul.mubr.f32.gmra.mrb[0].mxu0 %v1993
    %v3047 = vpop.f32.mrb[0].mxu0
    %v3048 = vadd.f32 %v2803, %v3047
    %v3049 = vpop.f32.mrb[0].mxu0
    %3050 = vdwg.mxu0
    %v3051 = vlaneseq
    %v3052 = vshrl.u32 %v3051, 7
    %v3053 = vsub.s32 0, %v3052
    %v3054 = vrot.slane %v1898, %v3053
    %v3055 = vadd.f32 %v2873, %v3054
    %v3056 = vadd.f32 %v2878, %v3054
    %v3057 = vadd.f32 %v2883, %v3054
    %v3058 = vadd.f32 %v2888, %v3054
    %v3059 = vadd.f32 %v2893, %v3054
    %v3060 = vadd.f32 %v2898, %v3054
    %v3061 = vadd.f32 %v2903, %v3054
    %v3062 = vadd.f32 %v2908, %v3054
    %v3063 = vadd.f32 %v2913, %v3054
    %v3064 = vadd.f32 %v2918, %v3054
    %v3065 = vadd.f32 %v2923, %v3054
    %v3066 = vadd.f32 %v2928, %v3054
    %v3067 = vadd.f32 %v2933, %v3054
    %v3068 = vadd.f32 %v2938, %v3054
    %v3069 = vadd.f32 %v2943, %v3054
    %v3070 = vadd.f32 %v2948, %v3054
    %v3071 = vadd.f32 %v2953, %v3054
    %v3072 = vadd.f32 %v2958, %v3054
    %v3073 = vadd.f32 %v2963, %v3054
    %v3074 = vadd.f32 %v2968, %v3054
    %v3075 = vadd.f32 %v2973, %v3054
    %v3076 = vadd.f32 %v2978, %v3054
    %v3077 = vadd.f32 %v2983, %v3054
    %v3078 = vadd.f32 %v2988, %v3054
    %v3079 = vadd.f32 %v2993, %v3054
    %v3080 = vadd.f32 %v2998, %v3054
    %v3081 = vadd.f32 %v3003, %v3054
    %v3082 = vadd.f32 %v3008, %v3054
    %v3083 = vadd.f32 %v3013, %v3054
    %v3084 = vadd.f32 %v3018, %v3054
    %v3085 = vadd.f32 %v3023, %v3054
    %v3086 = vadd.f32 %v3028, %v3054
    %v3087 = vadd.f32 %v3033, %v3054
    %v3088 = vadd.f32 %v3038, %v3054
    %v3089 = vadd.f32 %v3043, %v3054
    %v3090 = vadd.f32 %v3048, %v3054
    %v3091 = vxor.u32 %v3055, 2147483648
    %v3092 = vxor.u32 %v3056, 2147483648
    %v3093 = vxor.u32 %v3057, 2147483648
    %v3094 = vxor.u32 %v3058, 2147483648
    %v3095 = vxor.u32 %v3059, 2147483648
    %v3096 = vxor.u32 %v3060, 2147483648
    %v3097 = vxor.u32 %v3061, 2147483648
    %v3098 = vxor.u32 %v3062, 2147483648
    %v3099 = vxor.u32 %v3063, 2147483648
    %v3100 = vxor.u32 %v3064, 2147483648
    %v3101 = vxor.u32 %v3065, 2147483648
    %v3102 = vxor.u32 %v3066, 2147483648
    %v3103 = vxor.u32 %v3067, 2147483648
    %v3104 = vxor.u32 %v3068, 2147483648
    %v3105 = vxor.u32 %v3069, 2147483648
    %v3106 = vxor.u32 %v3070, 2147483648
    %v3107 = vxor.u32 %v3071, 2147483648
    %v3108 = vxor.u32 %v3072, 2147483648
    %v3109 = vxor.u32 %v3073, 2147483648
    %v3110 = vxor.u32 %v3074, 2147483648
    %v3111 = vxor.u32 %v3075, 2147483648
    %v3112 = vxor.u32 %v3076, 2147483648
    %v3113 = vxor.u32 %v3077, 2147483648
    %v3114 = vxor.u32 %v3078, 2147483648
    %v3115 = vxor.u32 %v3079, 2147483648
    %v3116 = vxor.u32 %v3080, 2147483648
    %v3117 = vxor.u32 %v3081, 2147483648
    %v3118 = vxor.u32 %v3082, 2147483648
    %v3119 = vxor.u32 %v3083, 2147483648
    %v3120 = vxor.u32 %v3084, 2147483648
    %v3121 = vxor.u32 %v3085, 2147483648
    %v3122 = vxor.u32 %v3086, 2147483648
    %v3123 = vxor.u32 %v3087, 2147483648
    %v3124 = vxor.u32 %v3088, 2147483648
    %v3125 = vxor.u32 %v3089, 2147483648
    %v3126 = vxor.u32 %v3090, 2147483648
    %v3127 = vmul.f32 %v3091, 1.442695
    %v3128 = vpow.pop %v3127
    %v3129 = vmul.f32 %v3092, 1.442695
    %v3130 = vpow.pop %v3129
    %v3131 = vmul.f32 %v3093, 1.442695
    %v3132 = vpow.pop %v3131
    %v3133 = vmul.f32 %v3094, 1.442695
    %v3134 = vpow.pop %v3133
    %v3135 = vmul.f32 %v3095, 1.442695
    %v3136 = vpow.pop %v3135
    %v3137 = vmul.f32 %v3096, 1.442695
    %v3138 = vpow.pop %v3137
    %v3139 = vmul.f32 %v3097, 1.442695
    %v3140 = vpow.pop %v3139
    %v3141 = vmul.f32 %v3098, 1.442695
    %v3142 = vpow.pop %v3141
    %v3143 = vmul.f32 %v3099, 1.442695
    %v3144 = vpow.pop %v3143
    %v3145 = vmul.f32 %v3100, 1.442695
    %v3146 = vpow.pop %v3145
    %v3147 = vmul.f32 %v3101, 1.442695
    %v3148 = vpow.pop %v3147
    %v3149 = vmul.f32 %v3102, 1.442695
    %v3150 = vpow.pop %v3149
    %v3151 = vmul.f32 %v3103, 1.442695
    %v3152 = vpow.pop %v3151
    %v3153 = vmul.f32 %v3104, 1.442695
    %v3154 = vpow.pop %v3153
    %v3155 = vmul.f32 %v3105, 1.442695
    %v3156 = vpow.pop %v3155
    %v3157 = vmul.f32 %v3106, 1.442695
    %v3158 = vpow.pop %v3157
    %v3159 = vmul.f32 %v3107, 1.442695
    %v3160 = vpow.pop %v3159
    %v3161 = vmul.f32 %v3108, 1.442695
    %v3162 = vpow.pop %v3161
    %v3163 = vmul.f32 %v3109, 1.442695
    %v3164 = vpow.pop %v3163
    %v3165 = vmul.f32 %v3110, 1.442695
    %v3166 = vpow.pop %v3165
    %v3167 = vmul.f32 %v3111, 1.442695
    %v3168 = vpow.pop %v3167
    %v3169 = vmul.f32 %v3112, 1.442695
    %v3170 = vpow.pop %v3169
    %v3171 = vmul.f32 %v3113, 1.442695
    %v3172 = vpow.pop %v3171
    %v3173 = vmul.f32 %v3114, 1.442695
    %v3174 = vpow.pop %v3173
    %v3175 = vmul.f32 %v3115, 1.442695
    %v3176 = vpow.pop %v3175
    %v3177 = vmul.f32 %v3116, 1.442695
    %v3178 = vpow.pop %v3177
    %v3179 = vmul.f32 %v3117, 1.442695
    %v3180 = vpow.pop %v3179
    %v3181 = vmul.f32 %v3118, 1.442695
    %v3182 = vpow.pop %v3181
    %v3183 = vmul.f32 %v3119, 1.442695
    %v3184 = vpow.pop %v3183
    %v3185 = vmul.f32 %v3120, 1.442695
    %v3186 = vpow.pop %v3185
    %v3187 = vmul.f32 %v3121, 1.442695
    %v3188 = vpow.pop %v3187
    %v3189 = vmul.f32 %v3122, 1.442695
    %v3190 = vpow.pop %v3189
    %v3191 = vmul.f32 %v3123, 1.442695
    %v3192 = vpow.pop %v3191
    %v3193 = vmul.f32 %v3124, 1.442695
    %v3194 = vpow.pop %v3193
    %v3195 = vmul.f32 %v3125, 1.442695
    %v3196 = vpow.pop %v3195
    %v3197 = vmul.f32 %v3126, 1.442695
    %v3198 = vpow.pop %v3197
    %v3199 = vadd.f32 %v3128, 1.0
    %v3200 = vadd.f32 %v3130, 1.0
    %v3201 = vadd.f32 %v3132, 1.0
    %v3202 = vadd.f32 %v3134, 1.0
    %v3203 = vadd.f32 %v3136, 1.0
    %v3204 = vadd.f32 %v3138, 1.0
    %v3205 = vadd.f32 %v3140, 1.0
    %v3206 = vadd.f32 %v3142, 1.0
    %v3207 = vadd.f32 %v3144, 1.0
    %v3208 = vadd.f32 %v3146, 1.0
    %v3209 = vadd.f32 %v3148, 1.0
    %v3210 = vadd.f32 %v3150, 1.0
    %v3211 = vadd.f32 %v3152, 1.0
    %v3212 = vadd.f32 %v3154, 1.0
    %v3213 = vadd.f32 %v3156, 1.0
    %v3214 = vadd.f32 %v3158, 1.0
    %v3215 = vadd.f32 %v3160, 1.0
    %v3216 = vadd.f32 %v3162, 1.0
    %v3217 = vadd.f32 %v3164, 1.0
    %v3218 = vadd.f32 %v3166, 1.0
    %v3219 = vadd.f32 %v3168, 1.0
    %v3220 = vadd.f32 %v3170, 1.0
    %v3221 = vadd.f32 %v3172, 1.0
    %v3222 = vadd.f32 %v3174, 1.0
    %v3223 = vadd.f32 %v3176, 1.0
    %v3224 = vadd.f32 %v3178, 1.0
    %v3225 = vadd.f32 %v3180, 1.0
    %v3226 = vadd.f32 %v3182, 1.0
    %v3227 = vadd.f32 %v3184, 1.0
    %v3228 = vadd.f32 %v3186, 1.0
    %v3229 = vadd.f32 %v3188, 1.0
    %v3230 = vadd.f32 %v3190, 1.0
    %v3231 = vadd.f32 %v3192, 1.0
    %v3232 = vadd.f32 %v3194, 1.0
    %v3233 = vadd.f32 %v3196, 1.0
    %v3234 = vadd.f32 %v3198, 1.0
    %v3235 = vrcp.pop %v3199
    %v3236 = vmul.f32 1.0, %v3235
    %v3237 = vrcp.pop %v3200
    %v3238 = vmul.f32 1.0, %v3237
    %v3239 = vrcp.pop %v3201
    %v3240 = vmul.f32 1.0, %v3239
    %v3241 = vrcp.pop %v3202
    %v3242 = vmul.f32 1.0, %v3241
    %v3243 = vrcp.pop %v3203
    %v3244 = vmul.f32 1.0, %v3243
    %v3245 = vrcp.pop %v3204
    %v3246 = vmul.f32 1.0, %v3245
    %v3247 = vrcp.pop %v3205
    %v3248 = vmul.f32 1.0, %v3247
    %v3249 = vrcp.pop %v3206
    %v3250 = vmul.f32 1.0, %v3249
    %v3251 = vrcp.pop %v3207
    %v3252 = vmul.f32 1.0, %v3251
    %v3253 = vrcp.pop %v3208
    %v3254 = vmul.f32 1.0, %v3253
    %v3255 = vrcp.pop %v3209
    %v3256 = vmul.f32 1.0, %v3255
    %v3257 = vrcp.pop %v3210
    %v3258 = vmul.f32 1.0, %v3257
    %v3259 = vrcp.pop %v3211
    %v3260 = vmul.f32 1.0, %v3259
    %v3261 = vrcp.pop %v3212
    %v3262 = vmul.f32 1.0, %v3261
    %v3263 = vrcp.pop %v3213
    %v3264 = vmul.f32 1.0, %v3263
    %v3265 = vrcp.pop %v3214
    %v3266 = vmul.f32 1.0, %v3265
    %v3267 = vrcp.pop %v3215
    %v3268 = vmul.f32 1.0, %v3267
    %v3269 = vrcp.pop %v3216
    %v3270 = vmul.f32 1.0, %v3269
    %v3271 = vrcp.pop %v3217
    %v3272 = vmul.f32 1.0, %v3271
    %v3273 = vrcp.pop %v3218
    %v3274 = vmul.f32 1.0, %v3273
    %v3275 = vrcp.pop %v3219
    %v3276 = vmul.f32 1.0, %v3275
    %v3277 = vrcp.pop %v3220
    %v3278 = vmul.f32 1.0, %v3277
    %v3279 = vrcp.pop %v3221
    %v3280 = vmul.f32 1.0, %v3279
    %v3281 = vrcp.pop %v3222
    %v3282 = vmul.f32 1.0, %v3281
    %v3283 = vrcp.pop %v3223
    %v3284 = vmul.f32 1.0, %v3283
    %v3285 = vrcp.pop %v3224
    %v3286 = vmul.f32 1.0, %v3285
    %v3287 = vrcp.pop %v3225
    %v3288 = vmul.f32 1.0, %v3287
    %v3289 = vrcp.pop %v3226
    %v3290 = vmul.f32 1.0, %v3289
    %v3291 = vrcp.pop %v3227
    %v3292 = vmul.f32 1.0, %v3291
    %v3293 = vrcp.pop %v3228
    %v3294 = vmul.f32 1.0, %v3293
    %v3295 = vrcp.pop %v3229
    %v3296 = vmul.f32 1.0, %v3295
    %v3297 = vrcp.pop %v3230
    %v3298 = vmul.f32 1.0, %v3297
    %v3299 = vrcp.pop %v3231
    %v3300 = vmul.f32 1.0, %v3299
    %v3301 = vrcp.pop %v3232
    %v3302 = vmul.f32 1.0, %v3301
    %v3303 = vrcp.pop %v3233
    %v3304 = vmul.f32 1.0, %v3303
    %v3305 = vrcp.pop %v3234
    %v3306 = vmul.f32 1.0, %v3305
    %v3307 = vmul.f32 %v2525, %v3236
    %v3308 = vmul.f32 %v2526, %v3238
    %v3309 = vmul.f32 %v2527, %v3240
    %v3310 = vmul.f32 %v2528, %v3242
    %v3311 = vmul.f32 %v2529, %v3244
    %v3312 = vmul.f32 %v2530, %v3246
    %v3313 = vmul.f32 %v2531, %v3248
    %v3314 = vmul.f32 %v2532, %v3250
    %v3315 = vmul.f32 %v2533, %v3252
    %v3316 = vmul.f32 %v2534, %v3254
    %v3317 = vmul.f32 %v2535, %v3256
    %v3318 = vmul.f32 %v2536, %v3258
    %v3319 = vmul.f32 %v2537, %v3260
    %v3320 = vmul.f32 %v2538, %v3262
    %v3321 = vmul.f32 %v2539, %v3264
    %v3322 = vmul.f32 %v2540, %v3266
    %v3323 = vmul.f32 %v2541, %v3268
    %v3324 = vmul.f32 %v2542, %v3270
    %v3325 = vmul.f32 %v2543, %v3272
    %v3326 = vmul.f32 %v2544, %v3274
    %v3327 = vmul.f32 %v2545, %v3276
    %v3328 = vmul.f32 %v2546, %v3278
    %v3329 = vmul.f32 %v2547, %v3280
    %v3330 = vmul.f32 %v2548, %v3282
    %v3331 = vmul.f32 %v2549, %v3284
    %v3332 = vmul.f32 %v2550, %v3286
    %v3333 = vmul.f32 %v2551, %v3288
    %v3334 = vmul.f32 %v2552, %v3290
    %v3335 = vmul.f32 %v2553, %v3292
    %v3336 = vmul.f32 %v2554, %v3294
    %v3337 = vmul.f32 %v2555, %v3296
    %v3338 = vmul.f32 %v2556, %v3298
    %v3339 = vmul.f32 %v2557, %v3300
    %v3340 = vmul.f32 %v2558, %v3302
    %v3341 = vmul.f32 %v2559, %v3304
    %v3342 = vmul.f32 %v2560, %v3306
    %v3343 = vld [vmem:[#allocation2 + $0xb0] sm:$0xff]
    %v3344 = vld [vmem:[#allocation2 + $0xb8] sm:$0xff]
    %v3345 = vld [vmem:[#allocation2 + $0xc0] sm:$0xff]
    %v3346 = vld [vmem:[#allocation2 + $0xc8] sm:$0xff]
    %v3347 = vld [vmem:[#allocation2 + $0xd0] sm:$0x1]
    %v3348 = vld [vmem:[#allocation2] sm:$0xff]
    %v3349 = vld [vmem:[#allocation2 + $0x8] sm:$0xff]
    %vm3350 = vcmask 261120
    %v3352 = vsel %vm3350, %v3307, 0
    %v3355 = vsel %vm3350, %v3308, 0
    %v3358 = vsel %vm3350, %v3309, 0
    %v3361 = vsel %vm3350, %v3310, 0
    %v3364 = vsel %vm3350, %v3311, 0
    %v3367 = vsel %vm3350, %v3312, 0
    %v3370 = vsel %vm3350, %v3313, 0
    %v3373 = vsel %vm3350, %v3314, 0
    %v3376 = vsel %vm3350, %v3315, 0
    %v3379 = vsel %vm3350, %v3316, 0
    %v3382 = vsel %vm3350, %v3317, 0
    %v3385 = vsel %vm3350, %v3318, 0
    %v3388 = vsel %vm3350, %v3319, 0
    %v3391 = vsel %vm3350, %v3320, 0
    %v3394 = vsel %vm3350, %v3321, 0
    %v3397 = vsel %vm3350, %v3322, 0
    %v3400 = vsel %vm3350, %v3323, 0
    %v3403 = vsel %vm3350, %v3324, 0
    %v3406 = vsel %vm3350, %v3325, 0
    %v3409 = vsel %vm3350, %v3326, 0
    %v3412 = vsel %vm3350, %v3327, 0
    %v3415 = vsel %vm3350, %v3328, 0
    %v3418 = vsel %vm3350, %v3329, 0
    %v3421 = vsel %vm3350, %v3330, 0
    %v3424 = vsel %vm3350, %v3331, 0
    %v3427 = vsel %vm3350, %v3332, 0
    %v3430 = vsel %vm3350, %v3333, 0
    %v3433 = vsel %vm3350, %v3334, 0
    %v3436 = vsel %vm3350, %v3335, 0
    %v3439 = vsel %vm3350, %v3336, 0
    %v3442 = vsel %vm3350, %v3337, 0
    %v3445 = vsel %vm3350, %v3338, 0
    %v3448 = vsel %vm3350, %v3339, 0
    %v3451 = vsel %vm3350, %v3340, 0
    %v3454 = vsel %vm3350, %v3341, 0
    %v3457 = vsel %vm3350, %v3342, 0
    %3459 = vmatprep.subr.mxu0 0.0
    %3460 = vmatpush1.msra.mxu0 %v3343
    %3461 = vmatprep.subr.mxu0 0.0
    %3462 = vmatpush1.msra.mxu0 %v3344
    %3463 = vmatprep.subr.mxu0 0.0
    %3464 = vmatpush1.msra.mxu0 %v3345
    %3465 = vmatprep.subr.mxu0 0.0
    %3466 = vmatpush1.msra.mxu0 %v3346
    %3467 = vmatprep.subr.mxu0 0.0
    %3468 = vmatpush1.msra.mxu0 0.0
    %3469 = vmatprep.subr.mxu0 0.0
    %3470 = vmatpush1.msra.mxu0 0.0
    %3471 = vmatprep.subr.mxu0 0.0
    %3472 = vmatpush1.msra.mxu0 0.0
    %3473 = vmatprep.subr.mxu0 0.0
    %3474 = vmatpush1.msra.mxu0 0.0
    %3475 = vmatprep.subr.mxu0 0.0
    %3476 = vmatpush1.msra.mxu0 0.0
    %3477 = vmatprep.subr.mxu0 0.0
    %3478 = vmatpush1.msra.mxu0 0.0
    %3479 = vmatprep.subr.mxu0 0.0
    %3480 = vmatpush1.msra.mxu0 0.0
    %3481 = vmatprep.subr.mxu0 0.0
    %3482 = vmatpush1.msra.mxu0 0.0
    %3483 = vmatprep.subr.mxu0 0.0
    %3484 = vmatpush1.msra.mxu0 0.0
    %3485 = vmatprep.subr.mxu0 0.0
    %3486 = vmatpush1.msra.mxu0 0.0
    %3487 = vmatprep.subr.mxu0 0.0
    %3488 = vmatpush1.msra.mxu0 0.0
    %3489 = vmatprep.subr.mxu0 0.0
    %3490 = vmatpush1.msra.mxu0 0.0
    %3491 = vmatprep.subr.mxu0 0.0
    %3492 = vmatpush1.msra.mxu0 0.0
    %3493 = vmatprep.subr.mxu0 0.0
    %3494 = vmatpush1.msra.mxu0 0.0
    %3495 = vmatprep.subr.mxu0 0.0
    %3496 = vmatpush1.msra.mxu0 0.0
    %3497 = vmatprep.subr.mxu0 0.0
    %3498 = vmatpush1.msra.mxu0 0.0
    %3499 = vmatprep.subr.mxu0 0.0
    %3500 = vmatpush1.msra.mxu0 0.0
    %3501 = vmatprep.subr.mxu0 0.0
    %3502 = vmatpush1.msra.mxu0 0.0
    %3503 = vmatprep.subr.mxu0 0.0
    %3504 = vmatpush1.msra.mxu0 0.0
    %3505 = vmatprep.subr.mxu0 0.0
    %3506 = vmatpush1.msra.mxu0 0.0
    %3507 = vmatprep.subr.mxu0 0.0
    %3508 = vmatpush1.msra.mxu0 0.0
    %3509 = vmatprep.subr.mxu0 0.0
    %3510 = vmatpush1.msra.mxu0 0.0
    %3511 = vmatprep.subr.mxu0 0.0
    %3512 = vmatpush1.msra.mxu0 0.0
    %3513 = vmatprep.subr.mxu0 0.0
    %3514 = vmatpush1.msra.mxu0 0.0
    %3515 = vmatprep.subr.mxu0 0.0
    %3516 = vmatpush1.msra.mxu0 0.0
    %3517 = vmatprep.subr.mxu0 0.0
    %3518 = vmatpush1.msra.mxu0 0.0
    %3519 = vmatprep.subr.mxu0 0.0
    %3520 = vmatpush1.msra.mxu0 0.0
    %3521 = vmatprep.subr.mxu0 0.0
    %3522 = vmatpush1.msra.mxu0 0.0
    %3523 = vmatprep.mubr.f32.mxu0 0.0
    %3524 = vmatmul.mubr.f32.gmra.mrb[0].mxu0 %v3352
    %v3525 = vpop.f32.mrb[0].mxu0
    %v3526 = vadd.f32 0.0, %v3525
    %v3527 = vpop.f32.mrb[0].mxu0
    %3528 = vmatprep.mubr.f32.mxu0 0.0
    %3529 = vmatmul.mubr.f32.gmra.mrb[0].mxu0 %v3355
    %v3530 = vpop.f32.mrb[0].mxu0
    %v3531 = vadd.f32 0.0, %v3530
    %v3532 = vpop.f32.mrb[0].mxu0
    %3533 = vmatprep.mubr.f32.mxu0 0.0
    %3534 = vmatmul.mubr.f32.gmra.mrb[0].mxu0 %v3358
    %v3535 = vpop.f32.mrb[0].mxu0
    %v3536 = vadd.f32 0.0, %v3535
    %v3537 = vpop.f32.mrb[0].mxu0
    %3538 = vmatprep.mubr.f32.mxu0 0.0
    %3539 = vmatmul.mubr.f32.gmra.mrb[0].mxu0 %v3361
    %v3540 = vpop.f32.mrb[0].mxu0
    %v3541 = vadd.f32 0.0, %v3540
    %v3542 = vpop.f32.mrb[0].mxu0
    %3543 = vmatprep.mubr.f32.mxu0 0.0
    %3544 = vmatmul.mubr.f32.gmra.mrb[0].mxu0 %v3364
    %v3545 = vpop.f32.mrb[0].mxu0
    %v3546 = vadd.f32 0.0, %v3545
    %v3547 = vpop.f32.mrb[0].mxu0
    %3548 = vmatprep.mubr.f32.mxu0 0.0
    %3549 = vmatmul.mubr.f32.gmra.mrb[0].mxu0 %v3367
    %v3550 = vpop.f32.mrb[0].mxu0
    %v3551 = vadd.f32 0.0, %v3550
    %v3552 = vpop.f32.mrb[0].mxu0
    %3553 = vmatprep.mubr.f32.mxu0 0.0
    %3554 = vmatmul.mubr.f32.gmra.mrb[0].mxu0 %v3370
    %v3555 = vpop.f32.mrb[0].mxu0
    %v3556 = vadd.f32 0.0, %v3555
    %v3557 = vpop.f32.mrb[0].mxu0
    %3558 = vmatprep.mubr.f32.mxu0 0.0
    %3559 = vmatmul.mubr.f32.gmra.mrb[0].mxu0 %v3373
    %v3560 = vpop.f32.mrb[0].mxu0
    %v3561 = vadd.f32 0.0, %v3560
    %v3562 = vpop.f32.mrb[0].mxu0
    %3563 = vmatprep.mubr.f32.mxu0 0.0
    %3564 = vmatmul.mubr.f32.gmra.mrb[0].mxu0 %v3376
    %v3565 = vpop.f32.mrb[0].mxu0
    %v3566 = vadd.f32 0.0, %v3565
    %v3567 = vpop.f32.mrb[0].mxu0
    %3568 = vmatprep.mubr.f32.mxu0 0.0
    %3569 = vmatmul.mubr.f32.gmra.mrb[0].mxu0 %v3379
    %v3570 = vpop.f32.mrb[0].mxu0
    %v3571 = vadd.f32 0.0, %v3570
    %v3572 = vpop.f32.mrb[0].mxu0
    %3573 = vmatprep.mubr.f32.mxu0 0.0
    %3574 = vmatmul.mubr.f32.gmra.mrb[0].mxu0 %v3382
    %v3575 = vpop.f32.mrb[0].mxu0
    %v3576 = vadd.f32 0.0, %v3575
    %v3577 = vpop.f32.mrb[0].mxu0
    %3578 = vmatprep.mubr.f32.mxu0 0.0
    %3579 = vmatmul.mubr.f32.gmra.mrb[0].mxu0 %v3385
    %v3580 = vpop.f32.mrb[0].mxu0
    %v3581 = vadd.f32 0.0, %v3580
    %v3582 = vpop.f32.mrb[0].mxu0
    %3583 = vmatprep.mubr.f32.mxu0 0.0
    %3584 = vmatmul.mubr.f32.gmra.mrb[0].mxu0 %v3388
    %v3585 = vpop.f32.mrb[0].mxu0
    %v3586 = vadd.f32 0.0, %v3585
    %v3587 = vpop.f32.mrb[0].mxu0
    %3588 = vmatprep.mubr.f32.mxu0 0.0
    %3589 = vmatmul.mubr.f32.gmra.mrb[0].mxu0 %v3391
    %v3590 = vpop.f32.mrb[0].mxu0
    %v3591 = vadd.f32 0.0, %v3590
    %v3592 = vpop.f32.mrb[0].mxu0
    %3593 = vmatprep.mubr.f32.mxu0 0.0
    %3594 = vmatmul.mubr.f32.gmra.mrb[0].mxu0 %v3394
    %v3595 = vpop.f32.mrb[0].mxu0
    %v3596 = vadd.f32 0.0, %v3595
    %v3597 = vpop.f32.mrb[0].mxu0
    %3598 = vmatprep.mubr.f32.mxu0 0.0
    %3599 = vmatmul.mubr.f32.gmra.mrb[0].mxu0 %v3397
    %v3600 = vpop.f32.mrb[0].mxu0
    %v3601 = vadd.f32 0.0, %v3600
    %v3602 = vpop.f32.mrb[0].mxu0
    %3603 = vmatprep.mubr.f32.mxu0 0.0
    %3604 = vmatmul.mubr.f32.gmra.mrb[0].mxu0 %v3400
    %v3605 = vpop.f32.mrb[0].mxu0
    %v3606 = vadd.f32 0.0, %v3605
    %v3607 = vpop.f32.mrb[0].mxu0
    %3608 = vmatprep.mubr.f32.mxu0 0.0
    %3609 = vmatmul.mubr.f32.gmra.mrb[0].mxu0 %v3403
    %v3610 = vpop.f32.mrb[0].mxu0
    %v3611 = vadd.f32 0.0, %v3610
    %v3612 = vpop.f32.mrb[0].mxu0
    %3613 = vmatprep.mubr.f32.mxu0 0.0
    %3614 = vmatmul.mubr.f32.gmra.mrb[0].mxu0 %v3406
    %v3615 = vpop.f32.mrb[0].mxu0
    %v3616 = vadd.f32 0.0, %v3615
    %v3617 = vpop.f32.mrb[0].mxu0
    %3618 = vmatprep.mubr.f32.mxu0 0.0
    %3619 = vmatmul.mubr.f32.gmra.mrb[0].mxu0 %v3409
    %v3620 = vpop.f32.mrb[0].mxu0
    %v3621 = vadd.f32 0.0, %v3620
    %v3622 = vpop.f32.mrb[0].mxu0
    %3623 = vmatprep.mubr.f32.mxu0 0.0
    %3624 = vmatmul.mubr.f32.gmra.mrb[0].mxu0 %v3412
    %v3625 = vpop.f32.mrb[0].mxu0
    %v3626 = vadd.f32 0.0, %v3625
    %v3627 = vpop.f32.mrb[0].mxu0
    %3628 = vmatprep.mubr.f32.mxu0 0.0
    %3629 = vmatmul.mubr.f32.gmra.mrb[0].mxu0 %v3415
    %v3630 = vpop.f32.mrb[0].mxu0
    %v3631 = vadd.f32 0.0, %v3630
    %v3632 = vpop.f32.mrb[0].mxu0
    %3633 = vmatprep.mubr.f32.mxu0 0.0
    %3634 = vmatmul.mubr.f32.gmra.mrb[0].mxu0 %v3418
    %v3635 = vpop.f32.mrb[0].mxu0
    %v3636 = vadd.f32 0.0, %v3635
    %v3637 = vpop.f32.mrb[0].mxu0
    %3638 = vmatprep.mubr.f32.mxu0 0.0
    %3639 = vmatmul.mubr.f32.gmra.mrb[0].mxu0 %v3421
    %v3640 = vpop.f32.mrb[0].mxu0
    %v3641 = vadd.f32 0.0, %v3640
    %v3642 = vpop.f32.mrb[0].mxu0
    %3643 = vmatprep.mubr.f32.mxu0 0.0
    %3644 = vmatmul.mubr.f32.gmra.mrb[0].mxu0 %v3424
    %v3645 = vpop.f32.mrb[0].mxu0
    %v3646 = vadd.f32 0.0, %v3645
    %v3647 = vpop.f32.mrb[0].mxu0
    %3648 = vmatprep.mubr.f32.mxu0 0.0
    %3649 = vmatmul.mubr.f32.gmra.mrb[0].mxu0 %v3427
    %v3650 = vpop.f32.mrb[0].mxu0
    %v3651 = vadd.f32 0.0, %v3650
    %v3652 = vpop.f32.mrb[0].mxu0
    %3653 = vmatprep.mubr.f32.mxu0 0.0
    %3654 = vmatmul.mubr.f32.gmra.mrb[0].mxu0 %v3430
    %v3655 = vpop.f32.mrb[0].mxu0
    %v3656 = vadd.f32 0.0, %v3655
    %v3657 = vpop.f32.mrb[0].mxu0
    %3658 = vmatprep.mubr.f32.mxu0 0.0
    %3659 = vmatmul.mubr.f32.gmra.mrb[0].mxu0 %v3433
    %v3660 = vpop.f32.mrb[0].mxu0
    %v3661 = vadd.f32 0.0, %v3660
    %v3662 = vpop.f32.mrb[0].mxu0
    %3663 = vmatprep.mubr.f32.mxu0 0.0
    %3664 = vmatmul.mubr.f32.gmra.mrb[0].mxu0 %v3436
    %v3665 = vpop.f32.mrb[0].mxu0
    %v3666 = vadd.f32 0.0, %v3665
    %v3667 = vpop.f32.mrb[0].mxu0
    %3668 = vmatprep.mubr.f32.mxu0 0.0
    %3669 = vmatmul.mubr.f32.gmra.mrb[0].mxu0 %v3439
    %v3670 = vpop.f32.mrb[0].mxu0
    %v3671 = vadd.f32 0.0, %v3670
    %v3672 = vpop.f32.mrb[0].mxu0
    %3673 = vmatprep.mubr.f32.mxu0 0.0
    %3674 = vmatmul.mubr.f32.gmra.mrb[0].mxu0 %v3442
    %v3675 = vpop.f32.mrb[0].mxu0
    %v3676 = vadd.f32 0.0, %v3675
    %v3677 = vpop.f32.mrb[0].mxu0
    %3678 = vmatprep.mubr.f32.mxu0 0.0
    %3679 = vmatmul.mubr.f32.gmra.mrb[0].mxu0 %v3445
    %v3680 = vpop.f32.mrb[0].mxu0
    %v3681 = vadd.f32 0.0, %v3680
    %v3682 = vpop.f32.mrb[0].mxu0
    %3683 = vmatprep.mubr.f32.mxu0 0.0
    %3684 = vmatmul.mubr.f32.gmra.mrb[0].mxu0 %v3448
    %v3685 = vpop.f32.mrb[0].mxu0
    %v3686 = vadd.f32 0.0, %v3685
    %v3687 = vpop.f32.mrb[0].mxu0
    %3688 = vmatprep.mubr.f32.mxu0 0.0
    %3689 = vmatmul.mubr.f32.gmra.mrb[0].mxu0 %v3451
    %v3690 = vpop.f32.mrb[0].mxu0
    %v3691 = vadd.f32 0.0, %v3690
    %v3692 = vpop.f32.mrb[0].mxu0
    %3693 = vmatprep.mubr.f32.mxu0 0.0
    %3694 = vmatmul.mubr.f32.gmra.mrb[0].mxu0 %v3454
    %v3695 = vpop.f32.mrb[0].mxu0
    %v3696 = vadd.f32 0.0, %v3695
    %v3697 = vpop.f32.mrb[0].mxu0
    %3698 = vmatprep.mubr.f32.mxu0 0.0
    %3699 = vmatmul.mubr.f32.gmra.mrb[0].mxu0 %v3457
    %v3700 = vpop.f32.mrb[0].mxu0
    %v3701 = vadd.f32 0.0, %v3700
    %v3702 = vpop.f32.mrb[0].mxu0
    %3703 = vdwg.mxu0
    %3704 = vxpose.xlu0.b32.start [1/16] %v3526, 128
    %3705 = vxpose.xlu0.b32.cont [2/16] %v3531, 128
    %3706 = vxpose.xlu0.b32.cont [3/16] 0.0, 128
    %3707 = vxpose.xlu0.b32.cont [4/16] 0.0, 128
    %3708 = vxpose.xlu0.b32.cont [5/16] 0.0, 128
    %3709 = vxpose.xlu0.b32.cont [6/16] 0.0, 128
    %3710 = vxpose.xlu0.b32.cont [7/16] 0.0, 128
    %3711 = vxpose.xlu0.b32.cont [8/16] 0.0, 128
    %3712 = vxpose.xlu0.b32.cont [9/16] 0.0, 128
    %3713 = vxpose.xlu0.b32.cont [10/16] 0.0, 128
    %3714 = vxpose.xlu0.b32.cont [11/16] 0.0, 128
    %3715 = vxpose.xlu0.b32.cont [12/16] 0.0, 128
    %3716 = vxpose.xlu0.b32.cont [13/16] 0.0, 128
    %3717 = vxpose.xlu0.b32.cont [14/16] 0.0, 128
    %3718 = vxpose.xlu0.b32.cont [15/16] 0.0, 128
    %3719 = vxpose.xlu0.b32.end [16/16] 0.0, 128
    %v3720 = vpop.trf.xlu0
    %v3721 = vpop.trf.xlu0
    %v3722 = vpop.trf.xlu0
    %v3723 = vpop.trf.xlu0
    %v3724 = vpop.trf.xlu0
    %v3725 = vpop.trf.xlu0
    %v3726 = vpop.trf.xlu0
    %v3727 = vpop.trf.xlu0
    %v3728 = vpop.trf.xlu0
    %v3729 = vpop.trf.xlu0
    %v3730 = vpop.trf.xlu0
    %v3731 = vpop.trf.xlu0
    %v3732 = vpop.trf.xlu0
    %v3733 = vpop.trf.xlu0
    %v3734 = vpop.trf.xlu0
    %v3735 = vpop.trf.xlu0
    %3736 = vxpose.xlu0.b32.start [1/16] %v3536, 128
    %3737 = vxpose.xlu0.b32.cont [2/16] %v3541, 128
    %3738 = vxpose.xlu0.b32.cont [3/16] 0.0, 128
    %3739 = vxpose.xlu0.b32.cont [4/16] 0.0, 128
    %3740 = vxpose.xlu0.b32.cont [5/16] 0.0, 128
    %3741 = vxpose.xlu0.b32.cont [6/16] 0.0, 128
    %3742 = vxpose.xlu0.b32.cont [7/16] 0.0, 128
    %3743 = vxpose.xlu0.b32.cont [8/16] 0.0, 128
    %3744 = vxpose.xlu0.b32.cont [9/16] 0.0, 128
    %3745 = vxpose.xlu0.b32.cont [10/16] 0.0, 128
    %3746 = vxpose.xlu0.b32.cont [11/16] 0.0, 128
    %3747 = vxpose.xlu0.b32.cont [12/16] 0.0, 128
    %3748 = vxpose.xlu0.b32.cont [13/16] 0.0, 128
    %3749 = vxpose.xlu0.b32.cont [14/16] 0.0, 128
    %3750 = vxpose.xlu0.b32.cont [15/16] 0.0, 128
    %3751 = vxpose.xlu0.b32.end [16/16] 0.0, 128
    %v3752 = vpop.trf.xlu0
    %v3753 = vpop.trf.xlu0
    %v3754 = vpop.trf.xlu0
    %v3755 = vpop.trf.xlu0
    %v3756 = vpop.trf.xlu0
    %v3757 = vpop.trf.xlu0
    %v3758 = vpop.trf.xlu0
    %v3759 = vpop.trf.xlu0
    %v3760 = vpop.trf.xlu0
    %v3761 = vpop.trf.xlu0
    %v3762 = vpop.trf.xlu0
    %v3763 = vpop.trf.xlu0
    %v3764 = vpop.trf.xlu0
    %v3765 = vpop.trf.xlu0
    %v3766 = vpop.trf.xlu0
    %v3767 = vpop.trf.xlu0
    %3768 = vxpose.xlu0.b32.start [1/16] %v3546, 128
    %3769 = vxpose.xlu0.b32.cont [2/16] %v3551, 128
    %3770 = vxpose.xlu0.b32.cont [3/16] 0.0, 128
    %3771 = vxpose.xlu0.b32.cont [4/16] 0.0, 128
    %3772 = vxpose.xlu0.b32.cont [5/16] 0.0, 128
    %3773 = vxpose.xlu0.b32.cont [6/16] 0.0, 128
    %3774 = vxpose.xlu0.b32.cont [7/16] 0.0, 128
    %3775 = vxpose.xlu0.b32.cont [8/16] 0.0, 128
    %3776 = vxpose.xlu0.b32.cont [9/16] 0.0, 128
    %3777 = vxpose.xlu0.b32.cont [10/16] 0.0, 128
    %3778 = vxpose.xlu0.b32.cont [11/16] 0.0, 128
    %3779 = vxpose.xlu0.b32.cont [12/16] 0.0, 128
    %3780 = vxpose.xlu0.b32.cont [13/16] 0.0, 128
    %3781 = vxpose.xlu0.b32.cont [14/16] 0.0, 128
    %3782 = vxpose.xlu0.b32.cont [15/16] 0.0, 128
    %3783 = vxpose.xlu0.b32.end [16/16] 0.0, 128
    %v3784 = vpop.trf.xlu0
    %v3785 = vpop.trf.xlu0
    %v3786 = vpop.trf.xlu0
    %v3787 = vpop.trf.xlu0
    %v3788 = vpop.trf.xlu0
    %v3789 = vpop.trf.xlu0
    %v3790 = vpop.trf.xlu0
    %v3791 = vpop.trf.xlu0
    %v3792 = vpop.trf.xlu0
    %v3793 = vpop.trf.xlu0
    %v3794 = vpop.trf.xlu0
    %v3795 = vpop.trf.xlu0
    %v3796 = vpop.trf.xlu0
    %v3797 = vpop.trf.xlu0
    %v3798 = vpop.trf.xlu0
    %v3799 = vpop.trf.xlu0
    %3800 = vxpose.xlu0.b32.start [1/16] %v3556, 128
    %3801 = vxpose.xlu0.b32.cont [2/16] %v3561, 128
    %3802 = vxpose.xlu0.b32.cont [3/16] 0.0, 128
    %3803 = vxpose.xlu0.b32.cont [4/16] 0.0, 128
    %3804 = vxpose.xlu0.b32.cont [5/16] 0.0, 128
    %3805 = vxpose.xlu0.b32.cont [6/16] 0.0, 128
    %3806 = vxpose.xlu0.b32.cont [7/16] 0.0, 128
    %3807 = vxpose.xlu0.b32.cont [8/16] 0.0, 128
    %3808 = vxpose.xlu0.b32.cont [9/16] 0.0, 128
    %3809 = vxpose.xlu0.b32.cont [10/16] 0.0, 128
    %3810 = vxpose.xlu0.b32.cont [11/16] 0.0, 128
    %3811 = vxpose.xlu0.b32.cont [12/16] 0.0, 128
    %3812 = vxpose.xlu0.b32.cont [13/16] 0.0, 128
    %3813 = vxpose.xlu0.b32.cont [14/16] 0.0, 128
    %3814 = vxpose.xlu0.b32.cont [15/16] 0.0, 128
    %3815 = vxpose.xlu0.b32.end [16/16] 0.0, 128
    %v3816 = vpop.trf.xlu0
    %v3817 = vpop.trf.xlu0
    %v3818 = vpop.trf.xlu0
    %v3819 = vpop.trf.xlu0
    %v3820 = vpop.trf.xlu0
    %v3821 = vpop.trf.xlu0
    %v3822 = vpop.trf.xlu0
    %v3823 = vpop.trf.xlu0
    %v3824 = vpop.trf.xlu0
    %v3825 = vpop.trf.xlu0
    %v3826 = vpop.trf.xlu0
    %v3827 = vpop.trf.xlu0
    %v3828 = vpop.trf.xlu0
    %v3829 = vpop.trf.xlu0
    %v3830 = vpop.trf.xlu0
    %v3831 = vpop.trf.xlu0
    %3832 = vxpose.xlu0.b32.start [1/16] %v3566, 128
    %3833 = vxpose.xlu0.b32.cont [2/16] %v3571, 128
    %3834 = vxpose.xlu0.b32.cont [3/16] 0.0, 128
    %3835 = vxpose.xlu0.b32.cont [4/16] 0.0, 128
    %3836 = vxpose.xlu0.b32.cont [5/16] 0.0, 128
    %3837 = vxpose.xlu0.b32.cont [6/16] 0.0, 128
    %3838 = vxpose.xlu0.b32.cont [7/16] 0.0, 128
    %3839 = vxpose.xlu0.b32.cont [8/16] 0.0, 128
    %3840 = vxpose.xlu0.b32.cont [9/16] 0.0, 128
    %3841 = vxpose.xlu0.b32.cont [10/16] 0.0, 128
    %3842 = vxpose.xlu0.b32.cont [11/16] 0.0, 128
    %3843 = vxpose.xlu0.b32.cont [12/16] 0.0, 128
    %3844 = vxpose.xlu0.b32.cont [13/16] 0.0, 128
    %3845 = vxpose.xlu0.b32.cont [14/16] 0.0, 128
    %3846 = vxpose.xlu0.b32.cont [15/16] 0.0, 128
    %3847 = vxpose.xlu0.b32.end [16/16] 0.0, 128
    %v3848 = vpop.trf.xlu0
    %v3849 = vpop.trf.xlu0
    %v3850 = vpop.trf.xlu0
    %v3851 = vpop.trf.xlu0
    %v3852 = vpop.trf.xlu0
    %v3853 = vpop.trf.xlu0
    %v3854 = vpop.trf.xlu0
    %v3855 = vpop.trf.xlu0
    %v3856 = vpop.trf.xlu0
    %v3857 = vpop.trf.xlu0
    %v3858 = vpop.trf.xlu0
    %v3859 = vpop.trf.xlu0
    %v3860 = vpop.trf.xlu0
    %v3861 = vpop.trf.xlu0
    %v3862 = vpop.trf.xlu0
    %v3863 = vpop.trf.xlu0
    %3864 = vxpose.xlu0.b32.start [1/16] %v3576, 128
    %3865 = vxpose.xlu0.b32.cont [2/16] %v3581, 128
    %3866 = vxpose.xlu0.b32.cont [3/16] 0.0, 128
    %3867 = vxpose.xlu0.b32.cont [4/16] 0.0, 128
    %3868 = vxpose.xlu0.b32.cont [5/16] 0.0, 128
    %3869 = vxpose.xlu0.b32.cont [6/16] 0.0, 128
    %3870 = vxpose.xlu0.b32.cont [7/16] 0.0, 128
    %3871 = vxpose.xlu0.b32.cont [8/16] 0.0, 128
    %3872 = vxpose.xlu0.b32.cont [9/16] 0.0, 128
    %3873 = vxpose.xlu0.b32.cont [10/16] 0.0, 128
    %3874 = vxpose.xlu0.b32.cont [11/16] 0.0, 128
    %3875 = vxpose.xlu0.b32.cont [12/16] 0.0, 128
    %3876 = vxpose.xlu0.b32.cont [13/16] 0.0, 128
    %3877 = vxpose.xlu0.b32.cont [14/16] 0.0, 128
    %3878 = vxpose.xlu0.b32.cont [15/16] 0.0, 128
    %3879 = vxpose.xlu0.b32.end [16/16] 0.0, 128
    %v3880 = vpop.trf.xlu0
    %v3881 = vpop.trf.xlu0
    %v3882 = vpop.trf.xlu0
    %v3883 = vpop.trf.xlu0
    %v3884 = vpop.trf.xlu0
    %v3885 = vpop.trf.xlu0
    %v3886 = vpop.trf.xlu0
    %v3887 = vpop.trf.xlu0
    %v3888 = vpop.trf.xlu0
    %v3889 = vpop.trf.xlu0
    %v3890 = vpop.trf.xlu0
    %v3891 = vpop.trf.xlu0
    %v3892 = vpop.trf.xlu0
    %v3893 = vpop.trf.xlu0
    %v3894 = vpop.trf.xlu0
    %v3895 = vpop.trf.xlu0
    %3896 = vxpose.xlu0.b32.start [1/16] %v3586, 128
    %3897 = vxpose.xlu0.b32.cont [2/16] %v3591, 128
    %3898 = vxpose.xlu0.b32.cont [3/16] 0.0, 128
    %3899 = vxpose.xlu0.b32.cont [4/16] 0.0, 128
    %3900 = vxpose.xlu0.b32.cont [5/16] 0.0, 128
    %3901 = vxpose.xlu0.b32.cont [6/16] 0.0, 128
    %3902 = vxpose.xlu0.b32.cont [7/16] 0.0, 128
    %3903 = vxpose.xlu0.b32.cont [8/16] 0.0, 128
    %3904 = vxpose.xlu0.b32.cont [9/16] 0.0, 128
    %3905 = vxpose.xlu0.b32.cont [10/16] 0.0, 128
    %3906 = vxpose.xlu0.b32.cont [11/16] 0.0, 128
    %3907 = vxpose.xlu0.b32.cont [12/16] 0.0, 128
    %3908 = vxpose.xlu0.b32.cont [13/16] 0.0, 128
    %3909 = vxpose.xlu0.b32.cont [14/16] 0.0, 128
    %3910 = vxpose.xlu0.b32.cont [15/16] 0.0, 128
    %3911 = vxpose.xlu0.b32.end [16/16] 0.0, 128
    %v3912 = vpop.trf.xlu0
    %v3913 = vpop.trf.xlu0
    %v3914 = vpop.trf.xlu0
    %v3915 = vpop.trf.xlu0
    %v3916 = vpop.trf.xlu0
    %v3917 = vpop.trf.xlu0
    %v3918 = vpop.trf.xlu0
    %v3919 = vpop.trf.xlu0
    %v3920 = vpop.trf.xlu0
    %v3921 = vpop.trf.xlu0
    %v3922 = vpop.trf.xlu0
    %v3923 = vpop.trf.xlu0
    %v3924 = vpop.trf.xlu0
    %v3925 = vpop.trf.xlu0
    %v3926 = vpop.trf.xlu0
    %v3927 = vpop.trf.xlu0
    %3928 = vxpose.xlu0.b32.start [1/16] %v3596, 128
    %3929 = vxpose.xlu0.b32.cont [2/16] %v3601, 128
    %3930 = vxpose.xlu0.b32.cont [3/16] 0.0, 128
    %3931 = vxpose.xlu0.b32.cont [4/16] 0.0, 128
    %3932 = vxpose.xlu0.b32.cont [5/16] 0.0, 128
    %3933 = vxpose.xlu0.b32.cont [6/16] 0.0, 128
    %3934 = vxpose.xlu0.b32.cont [7/16] 0.0, 128
    %3935 = vxpose.xlu0.b32.cont [8/16] 0.0, 128
    %3936 = vxpose.xlu0.b32.cont [9/16] 0.0, 128
    %3937 = vxpose.xlu0.b32.cont [10/16] 0.0, 128
    %3938 = vxpose.xlu0.b32.cont [11/16] 0.0, 128
    %3939 = vxpose.xlu0.b32.cont [12/16] 0.0, 128
    %3940 = vxpose.xlu0.b32.cont [13/16] 0.0, 128
    %3941 = vxpose.xlu0.b32.cont [14/16] 0.0, 128
    %3942 = vxpose.xlu0.b32.cont [15/16] 0.0, 128
    %3943 = vxpose.xlu0.b32.end [16/16] 0.0, 128
    %v3944 = vpop.trf.xlu0
    %v3945 = vpop.trf.xlu0
    %v3946 = vpop.trf.xlu0
    %v3947 = vpop.trf.xlu0
    %v3948 = vpop.trf.xlu0
    %v3949 = vpop.trf.xlu0
    %v3950 = vpop.trf.xlu0
    %v3951 = vpop.trf.xlu0
    %v3952 = vpop.trf.xlu0
    %v3953 = vpop.trf.xlu0
    %v3954 = vpop.trf.xlu0
    %v3955 = vpop.trf.xlu0
    %v3956 = vpop.trf.xlu0
    %v3957 = vpop.trf.xlu0
    %v3958 = vpop.trf.xlu0
    %v3959 = vpop.trf.xlu0
    %3960 = vxpose.xlu0.b32.start [1/16] %v3606, 128
    %3961 = vxpose.xlu0.b32.cont [2/16] %v3611, 128
    %3962 = vxpose.xlu0.b32.cont [3/16] 0.0, 128
    %3963 = vxpose.xlu0.b32.cont [4/16] 0.0, 128
    %3964 = vxpose.xlu0.b32.cont [5/16] 0.0, 128
    %3965 = vxpose.xlu0.b32.cont [6/16] 0.0, 128
    %3966 = vxpose.xlu0.b32.cont [7/16] 0.0, 128
    %3967 = vxpose.xlu0.b32.cont [8/16] 0.0, 128
    %3968 = vxpose.xlu0.b32.cont [9/16] 0.0, 128
    %3969 = vxpose.xlu0.b32.cont [10/16] 0.0, 128
    %3970 = vxpose.xlu0.b32.cont [11/16] 0.0, 128
    %3971 = vxpose.xlu0.b32.cont [12/16] 0.0, 128
    %3972 = vxpose.xlu0.b32.cont [13/16] 0.0, 128
    %3973 = vxpose.xlu0.b32.cont [14/16] 0.0, 128
    %3974 = vxpose.xlu0.b32.cont [15/16] 0.0, 128
    %3975 = vxpose.xlu0.b32.end [16/16] 0.0, 128
    %v3976 = vpop.trf.xlu0
    %v3977 = vpop.trf.xlu0
    %v3978 = vpop.trf.xlu0
    %v3979 = vpop.trf.xlu0
    %v3980 = vpop.trf.xlu0
    %v3981 = vpop.trf.xlu0
    %v3982 = vpop.trf.xlu0
    %v3983 = vpop.trf.xlu0
    %v3984 = vpop.trf.xlu0
    %v3985 = vpop.trf.xlu0
    %v3986 = vpop.trf.xlu0
    %v3987 = vpop.trf.xlu0
    %v3988 = vpop.trf.xlu0
    %v3989 = vpop.trf.xlu0
    %v3990 = vpop.trf.xlu0
    %v3991 = vpop.trf.xlu0
    %3992 = vxpose.xlu0.b32.start [1/16] %v3616, 128
    %3993 = vxpose.xlu0.b32.cont [2/16] %v3621, 128
    %3994 = vxpose.xlu0.b32.cont [3/16] 0.0, 128
    %3995 = vxpose.xlu0.b32.cont [4/16] 0.0, 128
    %3996 = vxpose.xlu0.b32.cont [5/16] 0.0, 128
    %3997 = vxpose.xlu0.b32.cont [6/16] 0.0, 128
    %3998 = vxpose.xlu0.b32.cont [7/16] 0.0, 128
    %3999 = vxpose.xlu0.b32.cont [8/16] 0.0, 128
    %4000 = vxpose.xlu0.b32.cont [9/16] 0.0, 128
    %4001 = vxpose.xlu0.b32.cont [10/16] 0.0, 128
    %4002 = vxpose.xlu0.b32.cont [11/16] 0.0, 128
    %4003 = vxpose.xlu0.b32.cont [12/16] 0.0, 128
    %4004 = vxpose.xlu0.b32.cont [13/16] 0.0, 128
    %4005 = vxpose.xlu0.b32.cont [14/16] 0.0, 128
    %4006 = vxpose.xlu0.b32.cont [15/16] 0.0, 128
    %4007 = vxpose.xlu0.b32.end [16/16] 0.0, 128
    %v4008 = vpop.trf.xlu0
    %v4009 = vpop.trf.xlu0
    %v4010 = vpop.trf.xlu0
    %v4011 = vpop.trf.xlu0
    %v4012 = vpop.trf.xlu0
    %v4013 = vpop.trf.xlu0
    %v4014 = vpop.trf.xlu0
    %v4015 = vpop.trf.xlu0
    %v4016 = vpop.trf.xlu0
    %v4017 = vpop.trf.xlu0
    %v4018 = vpop.trf.xlu0
    %v4019 = vpop.trf.xlu0
    %v4020 = vpop.trf.xlu0
    %v4021 = vpop.trf.xlu0
    %v4022 = vpop.trf.xlu0
    %v4023 = vpop.trf.xlu0
    %4024 = vxpose.xlu0.b32.start [1/16] %v3626, 128
    %4025 = vxpose.xlu0.b32.cont [2/16] %v3631, 128
    %4026 = vxpose.xlu0.b32.cont [3/16] 0.0, 128
    %4027 = vxpose.xlu0.b32.cont [4/16] 0.0, 128
    %4028 = vxpose.xlu0.b32.cont [5/16] 0.0, 128
    %4029 = vxpose.xlu0.b32.cont [6/16] 0.0, 128
    %4030 = vxpose.xlu0.b32.cont [7/16] 0.0, 128
    %4031 = vxpose.xlu0.b32.cont [8/16] 0.0, 128
    %4032 = vxpose.xlu0.b32.cont [9/16] 0.0, 128
    %4033 = vxpose.xlu0.b32.cont [10/16] 0.0, 128
    %4034 = vxpose.xlu0.b32.cont [11/16] 0.0, 128
    %4035 = vxpose.xlu0.b32.cont [12/16] 0.0, 128
    %4036 = vxpose.xlu0.b32.cont [13/16] 0.0, 128
    %4037 = vxpose.xlu0.b32.cont [14/16] 0.0, 128
    %4038 = vxpose.xlu0.b32.cont [15/16] 0.0, 128
    %4039 = vxpose.xlu0.b32.end [16/16] 0.0, 128
    %v4040 = vpop.trf.xlu0
    %v4041 = vpop.trf.xlu0
    %v4042 = vpop.trf.xlu0
    %v4043 = vpop.trf.xlu0
    %v4044 = vpop.trf.xlu0
    %v4045 = vpop.trf.xlu0
    %v4046 = vpop.trf.xlu0
    %v4047 = vpop.trf.xlu0
    %v4048 = vpop.trf.xlu0
    %v4049 = vpop.trf.xlu0
    %v4050 = vpop.trf.xlu0
    %v4051 = vpop.trf.xlu0
    %v4052 = vpop.trf.xlu0
    %v4053 = vpop.trf.xlu0
    %v4054 = vpop.trf.xlu0
    %v4055 = vpop.trf.xlu0
    %4056 = vxpose.xlu0.b32.start [1/16] %v3636, 128
    %4057 = vxpose.xlu0.b32.cont [2/16] %v3641, 128
    %4058 = vxpose.xlu0.b32.cont [3/16] 0.0, 128
    %4059 = vxpose.xlu0.b32.cont [4/16] 0.0, 128
    %4060 = vxpose.xlu0.b32.cont [5/16] 0.0, 128
    %4061 = vxpose.xlu0.b32.cont [6/16] 0.0, 128
    %4062 = vxpose.xlu0.b32.cont [7/16] 0.0, 128
    %4063 = vxpose.xlu0.b32.cont [8/16] 0.0, 128
    %4064 = vxpose.xlu0.b32.cont [9/16] 0.0, 128
    %4065 = vxpose.xlu0.b32.cont [10/16] 0.0, 128
    %4066 = vxpose.xlu0.b32.cont [11/16] 0.0, 128
    %4067 = vxpose.xlu0.b32.cont [12/16] 0.0, 128
    %4068 = vxpose.xlu0.b32.cont [13/16] 0.0, 128
    %4069 = vxpose.xlu0.b32.cont [14/16] 0.0, 128
    %4070 = vxpose.xlu0.b32.cont [15/16] 0.0, 128
    %4071 = vxpose.xlu0.b32.end [16/16] 0.0, 128
    %v4072 = vpop.trf.xlu0
    %v4073 = vpop.trf.xlu0
    %v4074 = vpop.trf.xlu0
    %v4075 = vpop.trf.xlu0
    %v4076 = vpop.trf.xlu0
    %v4077 = vpop.trf.xlu0
    %v4078 = vpop.trf.xlu0
    %v4079 = vpop.trf.xlu0
    %v4080 = vpop.trf.xlu0
    %v4081 = vpop.trf.xlu0
    %v4082 = vpop.trf.xlu0
    %v4083 = vpop.trf.xlu0
    %v4084 = vpop.trf.xlu0
    %v4085 = vpop.trf.xlu0
    %v4086 = vpop.trf.xlu0
    %v4087 = vpop.trf.xlu0
    %4088 = vxpose.xlu0.b32.start [1/16] %v3646, 128
    %4089 = vxpose.xlu0.b32.cont [2/16] %v3651, 128
    %4090 = vxpose.xlu0.b32.cont [3/16] 0.0, 128
    %4091 = vxpose.xlu0.b32.cont [4/16] 0.0, 128
    %4092 = vxpose.xlu0.b32.cont [5/16] 0.0, 128
    %4093 = vxpose.xlu0.b32.cont [6/16] 0.0, 128
    %4094 = vxpose.xlu0.b32.cont [7/16] 0.0, 128
    %4095 = vxpose.xlu0.b32.cont [8/16] 0.0, 128
    %4096 = vxpose.xlu0.b32.cont [9/16] 0.0, 128
    %4097 = vxpose.xlu0.b32.cont [10/16] 0.0, 128
    %4098 = vxpose.xlu0.b32.cont [11/16] 0.0, 128
    %4099 = vxpose.xlu0.b32.cont [12/16] 0.0, 128
    %4100 = vxpose.xlu0.b32.cont [13/16] 0.0, 128
    %4101 = vxpose.xlu0.b32.cont [14/16] 0.0, 128
    %4102 = vxpose.xlu0.b32.cont [15/16] 0.0, 128
    %4103 = vxpose.xlu0.b32.end [16/16] 0.0, 128
    %v4104 = vpop.trf.xlu0
    %v4105 = vpop.trf.xlu0
    %v4106 = vpop.trf.xlu0
    %v4107 = vpop.trf.xlu0
    %v4108 = vpop.trf.xlu0
    %v4109 = vpop.trf.xlu0
    %v4110 = vpop.trf.xlu0
    %v4111 = vpop.trf.xlu0
    %v4112 = vpop.trf.xlu0
    %v4113 = vpop.trf.xlu0
    %v4114 = vpop.trf.xlu0
    %v4115 = vpop.trf.xlu0
    %v4116 = vpop.trf.xlu0
    %v4117 = vpop.trf.xlu0
    %v4118 = vpop.trf.xlu0
    %v4119 = vpop.trf.xlu0
    %4120 = vxpose.xlu0.b32.start [1/16] %v3656, 128
    %4121 = vxpose.xlu0.b32.cont [2/16] %v3661, 128
    %4122 = vxpose.xlu0.b32.cont [3/16] 0.0, 128
    %4123 = vxpose.xlu0.b32.cont [4/16] 0.0, 128
    %4124 = vxpose.xlu0.b32.cont [5/16] 0.0, 128
    %4125 = vxpose.xlu0.b32.cont [6/16] 0.0, 128
    %4126 = vxpose.xlu0.b32.cont [7/16] 0.0, 128
    %4127 = vxpose.xlu0.b32.cont [8/16] 0.0, 128
    %4128 = vxpose.xlu0.b32.cont [9/16] 0.0, 128
    %4129 = vxpose.xlu0.b32.cont [10/16] 0.0, 128
    %4130 = vxpose.xlu0.b32.cont [11/16] 0.0, 128
    %4131 = vxpose.xlu0.b32.cont [12/16] 0.0, 128
    %4132 = vxpose.xlu0.b32.cont [13/16] 0.0, 128
    %4133 = vxpose.xlu0.b32.cont [14/16] 0.0, 128
    %4134 = vxpose.xlu0.b32.cont [15/16] 0.0, 128
    %4135 = vxpose.xlu0.b32.end [16/16] 0.0, 128
    %v4136 = vpop.trf.xlu0
    %v4137 = vpop.trf.xlu0
    %v4138 = vpop.trf.xlu0
    %v4139 = vpop.trf.xlu0
    %v4140 = vpop.trf.xlu0
    %v4141 = vpop.trf.xlu0
    %v4142 = vpop.trf.xlu0
    %v4143 = vpop.trf.xlu0
    %v4144 = vpop.trf.xlu0
    %v4145 = vpop.trf.xlu0
    %v4146 = vpop.trf.xlu0
    %v4147 = vpop.trf.xlu0
    %v4148 = vpop.trf.xlu0
    %v4149 = vpop.trf.xlu0
    %v4150 = vpop.trf.xlu0
    %v4151 = vpop.trf.xlu0
    %4152 = vxpose.xlu0.b32.start [1/16] %v3666, 128
    %4153 = vxpose.xlu0.b32.cont [2/16] %v3671, 128
    %4154 = vxpose.xlu0.b32.cont [3/16] 0.0, 128
    %4155 = vxpose.xlu0.b32.cont [4/16] 0.0, 128
    %4156 = vxpose.xlu0.b32.cont [5/16] 0.0, 128
    %4157 = vxpose.xlu0.b32.cont [6/16] 0.0, 128
    %4158 = vxpose.xlu0.b32.cont [7/16] 0.0, 128
    %4159 = vxpose.xlu0.b32.cont [8/16] 0.0, 128
    %4160 = vxpose.xlu0.b32.cont [9/16] 0.0, 128
    %4161 = vxpose.xlu0.b32.cont [10/16] 0.0, 128
    %4162 = vxpose.xlu0.b32.cont [11/16] 0.0, 128
    %4163 = vxpose.xlu0.b32.cont [12/16] 0.0, 128
    %4164 = vxpose.xlu0.b32.cont [13/16] 0.0, 128
    %4165 = vxpose.xlu0.b32.cont [14/16] 0.0, 128
    %4166 = vxpose.xlu0.b32.cont [15/16] 0.0, 128
    %4167 = vxpose.xlu0.b32.end [16/16] 0.0, 128
    %v4168 = vpop.trf.xlu0
    %v4169 = vpop.trf.xlu0
    %v4170 = vpop.trf.xlu0
    %v4171 = vpop.trf.xlu0
    %v4172 = vpop.trf.xlu0
    %v4173 = vpop.trf.xlu0
    %v4174 = vpop.trf.xlu0
    %v4175 = vpop.trf.xlu0
    %v4176 = vpop.trf.xlu0
    %v4177 = vpop.trf.xlu0
    %v4178 = vpop.trf.xlu0
    %v4179 = vpop.trf.xlu0
    %v4180 = vpop.trf.xlu0
    %v4181 = vpop.trf.xlu0
    %v4182 = vpop.trf.xlu0
    %v4183 = vpop.trf.xlu0
    %4184 = vxpose.xlu0.b32.start [1/16] %v3676, 128
    %4185 = vxpose.xlu0.b32.cont [2/16] %v3681, 128
    %4186 = vxpose.xlu0.b32.cont [3/16] 0.0, 128
    %4187 = vxpose.xlu0.b32.cont [4/16] 0.0, 128
    %4188 = vxpose.xlu0.b32.cont [5/16] 0.0, 128
    %4189 = vxpose.xlu0.b32.cont [6/16] 0.0, 128
    %4190 = vxpose.xlu0.b32.cont [7/16] 0.0, 128
    %4191 = vxpose.xlu0.b32.cont [8/16] 0.0, 128
    %4192 = vxpose.xlu0.b32.cont [9/16] 0.0, 128
    %4193 = vxpose.xlu0.b32.cont [10/16] 0.0, 128
    %4194 = vxpose.xlu0.b32.cont [11/16] 0.0, 128
    %4195 = vxpose.xlu0.b32.cont [12/16] 0.0, 128
    %4196 = vxpose.xlu0.b32.cont [13/16] 0.0, 128
    %4197 = vxpose.xlu0.b32.cont [14/16] 0.0, 128
    %4198 = vxpose.xlu0.b32.cont [15/16] 0.0, 128
    %4199 = vxpose.xlu0.b32.end [16/16] 0.0, 128
    %v4200 = vpop.trf.xlu0
    %v4201 = vpop.trf.xlu0
    %v4202 = vpop.trf.xlu0
    %v4203 = vpop.trf.xlu0
    %v4204 = vpop.trf.xlu0
    %v4205 = vpop.trf.xlu0
    %v4206 = vpop.trf.xlu0
    %v4207 = vpop.trf.xlu0
    %v4208 = vpop.trf.xlu0
    %v4209 = vpop.trf.xlu0
    %v4210 = vpop.trf.xlu0
    %v4211 = vpop.trf.xlu0
    %v4212 = vpop.trf.xlu0
    %v4213 = vpop.trf.xlu0
    %v4214 = vpop.trf.xlu0
    %v4215 = vpop.trf.xlu0
    %4216 = vxpose.xlu0.b32.start [1/16] %v3686, 128
    %4217 = vxpose.xlu0.b32.cont [2/16] %v3691, 128
    %4218 = vxpose.xlu0.b32.cont [3/16] 0.0, 128
    %4219 = vxpose.xlu0.b32.cont [4/16] 0.0, 128
    %4220 = vxpose.xlu0.b32.cont [5/16] 0.0, 128
    %4221 = vxpose.xlu0.b32.cont [6/16] 0.0, 128
    %4222 = vxpose.xlu0.b32.cont [7/16] 0.0, 128
    %4223 = vxpose.xlu0.b32.cont [8/16] 0.0, 128
    %4224 = vxpose.xlu0.b32.cont [9/16] 0.0, 128
    %4225 = vxpose.xlu0.b32.cont [10/16] 0.0, 128
    %4226 = vxpose.xlu0.b32.cont [11/16] 0.0, 128
    %4227 = vxpose.xlu0.b32.cont [12/16] 0.0, 128
    %4228 = vxpose.xlu0.b32.cont [13/16] 0.0, 128
    %4229 = vxpose.xlu0.b32.cont [14/16] 0.0, 128
    %4230 = vxpose.xlu0.b32.cont [15/16] 0.0, 128
    %4231 = vxpose.xlu0.b32.end [16/16] 0.0, 128
    %v4232 = vpop.trf.xlu0
    %v4233 = vpop.trf.xlu0
    %v4234 = vpop.trf.xlu0
    %v4235 = vpop.trf.xlu0
    %v4236 = vpop.trf.xlu0
    %v4237 = vpop.trf.xlu0
    %v4238 = vpop.trf.xlu0
    %v4239 = vpop.trf.xlu0
    %v4240 = vpop.trf.xlu0
    %v4241 = vpop.trf.xlu0
    %v4242 = vpop.trf.xlu0
    %v4243 = vpop.trf.xlu0
    %v4244 = vpop.trf.xlu0
    %v4245 = vpop.trf.xlu0
    %v4246 = vpop.trf.xlu0
    %v4247 = vpop.trf.xlu0
    %4248 = vxpose.xlu0.b32.start [1/16] %v3696, 128
    %4249 = vxpose.xlu0.b32.cont [2/16] %v3701, 128
    %4250 = vxpose.xlu0.b32.cont [3/16] 0.0, 128
    %4251 = vxpose.xlu0.b32.cont [4/16] 0.0, 128
    %4252 = vxpose.xlu0.b32.cont [5/16] 0.0, 128
    %4253 = vxpose.xlu0.b32.cont [6/16] 0.0, 128
    %4254 = vxpose.xlu0.b32.cont [7/16] 0.0, 128
    %4255 = vxpose.xlu0.b32.cont [8/16] 0.0, 128
    %4256 = vxpose.xlu0.b32.cont [9/16] 0.0, 128
    %4257 = vxpose.xlu0.b32.cont [10/16] 0.0, 128
    %4258 = vxpose.xlu0.b32.cont [11/16] 0.0, 128
    %4259 = vxpose.xlu0.b32.cont [12/16] 0.0, 128
    %4260 = vxpose.xlu0.b32.cont [13/16] 0.0, 128
    %4261 = vxpose.xlu0.b32.cont [14/16] 0.0, 128
    %4262 = vxpose.xlu0.b32.cont [15/16] 0.0, 128
    %4263 = vxpose.xlu0.b32.end [16/16] 0.0, 128
    %v4264 = vpop.trf.xlu0
    %v4265 = vpop.trf.xlu0
    %v4266 = vpop.trf.xlu0
    %v4267 = vpop.trf.xlu0
    %v4268 = vpop.trf.xlu0
    %v4269 = vpop.trf.xlu0
    %v4270 = vpop.trf.xlu0
    %v4271 = vpop.trf.xlu0
    %v4272 = vpop.trf.xlu0
    %v4273 = vpop.trf.xlu0
    %v4274 = vpop.trf.xlu0
    %v4275 = vpop.trf.xlu0
    %v4276 = vpop.trf.xlu0
    %v4277 = vpop.trf.xlu0
    %v4278 = vpop.trf.xlu0
    %v4279 = vpop.trf.xlu0
    %v4281 = vsel %vm1008, %v3720, 0
    %v4284 = vsel %vm1008, %v3721, 0
    %v4287 = vsel %vm1008, %v3722, 0
    %v4290 = vsel %vm1008, %v3723, 0
    %v4293 = vsel %vm1008, %v3752, 0
    %v4296 = vsel %vm1008, %v3753, 0
    %v4299 = vsel %vm1008, %v3754, 0
    %v4302 = vsel %vm1008, %v3755, 0
    %v4305 = vsel %vm1008, %v3784, 0
    %v4308 = vsel %vm1008, %v3785, 0
    %v4311 = vsel %vm1008, %v3786, 0
    %v4314 = vsel %vm1008, %v3787, 0
    %v4317 = vsel %vm1008, %v3816, 0
    %v4320 = vsel %vm1008, %v3817, 0
    %v4323 = vsel %vm1008, %v3818, 0
    %v4326 = vsel %vm1008, %v3819, 0
    %v4329 = vsel %vm1008, %v3848, 0
    %v4332 = vsel %vm1008, %v3849, 0
    %v4335 = vsel %vm1008, %v3850, 0
    %v4338 = vsel %vm1008, %v3851, 0
    %v4341 = vsel %vm1008, %v3880, 0
    %v4344 = vsel %vm1008, %v3881, 0
    %v4347 = vsel %vm1008, %v3882, 0
    %v4350 = vsel %vm1008, %v3883, 0
    %v4353 = vsel %vm1008, %v3912, 0
    %v4356 = vsel %vm1008, %v3913, 0
    %v4359 = vsel %vm1008, %v3914, 0
    %v4362 = vsel %vm1008, %v3915, 0
    %v4365 = vsel %vm1008, %v3944, 0
    %v4368 = vsel %vm1008, %v3945, 0
    %v4371 = vsel %vm1008, %v3946, 0
    %v4374 = vsel %vm1008, %v3947, 0
    %v4377 = vsel %vm1008, %v3976, 0
    %v4380 = vsel %vm1008, %v3977, 0
    %v4383 = vsel %vm1008, %v3978, 0
    %v4386 = vsel %vm1008, %v3979, 0
    %v4389 = vsel %vm1008, %v4008, 0
    %v4392 = vsel %vm1008, %v4009, 0
    %v4395 = vsel %vm1008, %v4010, 0
    %v4398 = vsel %vm1008, %v4011, 0
    %v4401 = vsel %vm1008, %v4040, 0
    %v4404 = vsel %vm1008, %v4041, 0
    %v4407 = vsel %vm1008, %v4042, 0
    %v4410 = vsel %vm1008, %v4043, 0
    %v4413 = vsel %vm1008, %v4072, 0
    %v4416 = vsel %vm1008, %v4073, 0
    %v4419 = vsel %vm1008, %v4074, 0
    %v4422 = vsel %vm1008, %v4075, 0
    %v4425 = vsel %vm1008, %v4104, 0
    %v4428 = vsel %vm1008, %v4105, 0
    %v4431 = vsel %vm1008, %v4106, 0
    %v4434 = vsel %vm1008, %v4107, 0
    %v4437 = vsel %vm1008, %v4136, 0
    %v4440 = vsel %vm1008, %v4137, 0
    %v4443 = vsel %vm1008, %v4138, 0
    %v4446 = vsel %vm1008, %v4139, 0
    %v4449 = vsel %vm1008, %v4168, 0
    %v4452 = vsel %vm1008, %v4169, 0
    %v4455 = vsel %vm1008, %v4170, 0
    %v4458 = vsel %vm1008, %v4171, 0
    %v4461 = vsel %vm1008, %v4200, 0
    %v4464 = vsel %vm1008, %v4201, 0
    %v4467 = vsel %vm1008, %v4202, 0
    %v4470 = vsel %vm1008, %v4203, 0
    %v4473 = vsel %vm1008, %v4232, 0
    %v4476 = vsel %vm1008, %v4233, 0
    %v4479 = vsel %vm1008, %v4234, 0
    %v4482 = vsel %vm1008, %v4235, 0
    %v4485 = vsel %vm1008, %v4264, 0
    %v4488 = vsel %vm1008, %v4265, 0
    %v4491 = vsel %vm1008, %v4266, 0
    %v4494 = vsel %vm1008, %v4267, 0
    %4496 = vmatprep.subr.mxu0 0.0
    %4497 = vmatpush1.msra.mxu0 %v3348
    %4498 = vmatprep.subr.mxu0 0.0
    %4499 = vmatpush1.msra.mxu0 %v3349
    %4500 = vmatprep.subr.mxu0 0.0
    %4501 = vmatpush1.msra.mxu0 0.0
    %4502 = vmatprep.subr.mxu0 0.0
    %4503 = vmatpush1.msra.mxu0 0.0
    %4504 = vmatprep.subr.mxu0 0.0
    %4505 = vmatpush1.msra.mxu0 0.0
    %4506 = vmatprep.subr.mxu0 0.0
    %4507 = vmatpush1.msra.mxu0 0.0
    %4508 = vmatprep.subr.mxu0 0.0
    %4509 = vmatpush1.msra.mxu0 0.0
    %4510 = vmatprep.subr.mxu0 0.0
    %4511 = vmatpush1.msra.mxu0 0.0
    %4512 = vmatprep.subr.mxu0 0.0
    %4513 = vmatpush1.msra.mxu0 0.0
    %4514 = vmatprep.subr.mxu0 0.0
    %4515 = vmatpush1.msra.mxu0 0.0
    %4516 = vmatprep.subr.mxu0 0.0
    %4517 = vmatpush1.msra.mxu0 0.0
    %4518 = vmatprep.subr.mxu0 0.0
    %4519 = vmatpush1.msra.mxu0 0.0
    %4520 = vmatprep.subr.mxu0 0.0
    %4521 = vmatpush1.msra.mxu0 0.0
    %4522 = vmatprep.subr.mxu0 0.0
    %4523 = vmatpush1.msra.mxu0 0.0
    %4524 = vmatprep.subr.mxu0 0.0
    %4525 = vmatpush1.msra.mxu0 0.0
    %4526 = vmatprep.subr.mxu0 0.0
    %4527 = vmatpush1.msra.mxu0 0.0
    %4528 = vmatprep.subr.mxu0 0.0
    %4529 = vmatpush1.msra.mxu0 0.0
    %4530 = vmatprep.subr.mxu0 0.0
    %4531 = vmatpush1.msra.mxu0 0.0
    %4532 = vmatprep.subr.mxu0 0.0
    %4533 = vmatpush1.msra.mxu0 0.0
    %4534 = vmatprep.subr.mxu0 0.0
    %4535 = vmatpush1.msra.mxu0 0.0
    %4536 = vmatprep.subr.mxu0 0.0
    %4537 = vmatpush1.msra.mxu0 0.0
    %4538 = vmatprep.subr.mxu0 0.0
    %4539 = vmatpush1.msra.mxu0 0.0
    %4540 = vmatprep.subr.mxu0 0.0
    %4541 = vmatpush1.msra.mxu0 0.0
    %4542 = vmatprep.subr.mxu0 0.0
    %4543 = vmatpush1.msra.mxu0 0.0
    %4544 = vmatprep.subr.mxu0 0.0
    %4545 = vmatpush1.msra.mxu0 0.0
    %4546 = vmatprep.subr.mxu0 0.0
    %4547 = vmatpush1.msra.mxu0 0.0
    %4548 = vmatprep.subr.mxu0 0.0
    %4549 = vmatpush1.msra.mxu0 0.0
    %4550 = vmatprep.subr.mxu0 0.0
    %4551 = vmatpush1.msra.mxu0 0.0
    %4552 = vmatprep.subr.mxu0 0.0
    %4553 = vmatpush1.msra.mxu0 0.0
    %4554 = vmatprep.subr.mxu0 0.0
    %4555 = vmatpush1.msra.mxu0 0.0
    %4556 = vmatprep.subr.mxu0 0.0
    %4557 = vmatpush1.msra.mxu0 0.0
    %4558 = vmatprep.subr.mxu0 0.0
    %4559 = vmatpush1.msra.mxu0 0.0
    %4560 = vmatprep.mubr.f32.mxu0 0.0
    %4561 = vmatmul.mubr.f32.gmra.mrb[0].mxu0 %v4281
    %v4562 = vpop.f32.mrb[0].mxu0
    %v4563 = vadd.f32 0.0, %v4562
    %v4564 = vpop.f32.mrb[0].mxu0
    %4565 = vmatprep.mubr.f32.mxu0 0.0
    %4566 = vmatmul.mubr.f32.gmra.mrb[0].mxu0 %v4284
    %v4567 = vpop.f32.mrb[0].mxu0
    %v4568 = vadd.f32 0.0, %v4567
    %v4569 = vpop.f32.mrb[0].mxu0
    %4570 = vmatprep.mubr.f32.mxu0 0.0
    %4571 = vmatmul.mubr.f32.gmra.mrb[0].mxu0 %v4287
    %v4572 = vpop.f32.mrb[0].mxu0
    %v4573 = vadd.f32 0.0, %v4572
    %v4574 = vpop.f32.mrb[0].mxu0
    %4575 = vmatprep.mubr.f32.mxu0 0.0
    %4576 = vmatmul.mubr.f32.gmra.mrb[0].mxu0 %v4290
    %v4577 = vpop.f32.mrb[0].mxu0
    %v4578 = vadd.f32 0.0, %v4577
    %v4579 = vpop.f32.mrb[0].mxu0
    %4580 = vmatprep.mubr.f32.mxu0 0.0
    %4581 = vmatmul.mubr.f32.gmra.mrb[0].mxu0 %v4293
    %v4582 = vpop.f32.mrb[0].mxu0
    %v4583 = vadd.f32 0.0, %v4582
    %v4584 = vpop.f32.mrb[0].mxu0
    %4585 = vmatprep.mubr.f32.mxu0 0.0
    %4586 = vmatmul.mubr.f32.gmra.mrb[0].mxu0 %v4296
    %v4587 = vpop.f32.mrb[0].mxu0
    %v4588 = vadd.f32 0.0, %v4587
    %v4589 = vpop.f32.mrb[0].mxu0
    %4590 = vmatprep.mubr.f32.mxu0 0.0
    %4591 = vmatmul.mubr.f32.gmra.mrb[0].mxu0 %v4299
    %v4592 = vpop.f32.mrb[0].mxu0
    %v4593 = vadd.f32 0.0, %v4592
    %v4594 = vpop.f32.mrb[0].mxu0
    %4595 = vmatprep.mubr.f32.mxu0 0.0
    %4596 = vmatmul.mubr.f32.gmra.mrb[0].mxu0 %v4302
    %v4597 = vpop.f32.mrb[0].mxu0
    %v4598 = vadd.f32 0.0, %v4597
    %v4599 = vpop.f32.mrb[0].mxu0
    %4600 = vmatprep.mubr.f32.mxu0 0.0
    %4601 = vmatmul.mubr.f32.gmra.mrb[0].mxu0 %v4305
    %v4602 = vpop.f32.mrb[0].mxu0
    %v4603 = vadd.f32 0.0, %v4602
    %v4604 = vpop.f32.mrb[0].mxu0
    %4605 = vmatprep.mubr.f32.mxu0 0.0
    %4606 = vmatmul.mubr.f32.gmra.mrb[0].mxu0 %v4308
    %v4607 = vpop.f32.mrb[0].mxu0
    %v4608 = vadd.f32 0.0, %v4607
    %v4609 = vpop.f32.mrb[0].mxu0
    %4610 = vmatprep.mubr.f32.mxu0 0.0
    %4611 = vmatmul.mubr.f32.gmra.mrb[0].mxu0 %v4311
    %v4612 = vpop.f32.mrb[0].mxu0
    %v4613 = vadd.f32 0.0, %v4612
    %v4614 = vpop.f32.mrb[0].mxu0
    %4615 = vmatprep.mubr.f32.mxu0 0.0
    %4616 = vmatmul.mubr.f32.gmra.mrb[0].mxu0 %v4314
    %v4617 = vpop.f32.mrb[0].mxu0
    %v4618 = vadd.f32 0.0, %v4617
    %v4619 = vpop.f32.mrb[0].mxu0
    %4620 = vmatprep.mubr.f32.mxu0 0.0
    %4621 = vmatmul.mubr.f32.gmra.mrb[0].mxu0 %v4317
    %v4622 = vpop.f32.mrb[0].mxu0
    %v4623 = vadd.f32 0.0, %v4622
    %v4624 = vpop.f32.mrb[0].mxu0
    %4625 = vmatprep.mubr.f32.mxu0 0.0
    %4626 = vmatmul.mubr.f32.gmra.mrb[0].mxu0 %v4320
    %v4627 = vpop.f32.mrb[0].mxu0
    %v4628 = vadd.f32 0.0, %v4627
    %v4629 = vpop.f32.mrb[0].mxu0
    %4630 = vmatprep.mubr.f32.mxu0 0.0
    %4631 = vmatmul.mubr.f32.gmra.mrb[0].mxu0 %v4323
    %v4632 = vpop.f32.mrb[0].mxu0
    %v4633 = vadd.f32 0.0, %v4632
    %v4634 = vpop.f32.mrb[0].mxu0
    %4635 = vmatprep.mubr.f32.mxu0 0.0
    %4636 = vmatmul.mubr.f32.gmra.mrb[0].mxu0 %v4326
    %v4637 = vpop.f32.mrb[0].mxu0
    %v4638 = vadd.f32 0.0, %v4637
    %v4639 = vpop.f32.mrb[0].mxu0
    %4640 = vmatprep.mubr.f32.mxu0 0.0
    %4641 = vmatmul.mubr.f32.gmra.mrb[0].mxu0 %v4329
    %v4642 = vpop.f32.mrb[0].mxu0
    %v4643 = vadd.f32 0.0, %v4642
    %v4644 = vpop.f32.mrb[0].mxu0
    %4645 = vmatprep.mubr.f32.mxu0 0.0
    %4646 = vmatmul.mubr.f32.gmra.mrb[0].mxu0 %v4332
    %v4647 = vpop.f32.mrb[0].mxu0
    %v4648 = vadd.f32 0.0, %v4647
    %v4649 = vpop.f32.mrb[0].mxu0
    %4650 = vmatprep.mubr.f32.mxu0 0.0
    %4651 = vmatmul.mubr.f32.gmra.mrb[0].mxu0 %v4335
    %v4652 = vpop.f32.mrb[0].mxu0
    %v4653 = vadd.f32 0.0, %v4652
    %v4654 = vpop.f32.mrb[0].mxu0
    %4655 = vmatprep.mubr.f32.mxu0 0.0
    %4656 = vmatmul.mubr.f32.gmra.mrb[0].mxu0 %v4338
    %v4657 = vpop.f32.mrb[0].mxu0
    %v4658 = vadd.f32 0.0, %v4657
    %v4659 = vpop.f32.mrb[0].mxu0
    %4660 = vmatprep.mubr.f32.mxu0 0.0
    %4661 = vmatmul.mubr.f32.gmra.mrb[0].mxu0 %v4341
    %v4662 = vpop.f32.mrb[0].mxu0
    %v4663 = vadd.f32 0.0, %v4662
    %v4664 = vpop.f32.mrb[0].mxu0
    %4665 = vmatprep.mubr.f32.mxu0 0.0
    %4666 = vmatmul.mubr.f32.gmra.mrb[0].mxu0 %v4344
    %v4667 = vpop.f32.mrb[0].mxu0
    %v4668 = vadd.f32 0.0, %v4667
    %v4669 = vpop.f32.mrb[0].mxu0
    %4670 = vmatprep.mubr.f32.mxu0 0.0
    %4671 = vmatmul.mubr.f32.gmra.mrb[0].mxu0 %v4347
    %v4672 = vpop.f32.mrb[0].mxu0
    %v4673 = vadd.f32 0.0, %v4672
    %v4674 = vpop.f32.mrb[0].mxu0
    %4675 = vmatprep.mubr.f32.mxu0 0.0
    %4676 = vmatmul.mubr.f32.gmra.mrb[0].mxu0 %v4350
    %v4677 = vpop.f32.mrb[0].mxu0
    %v4678 = vadd.f32 0.0, %v4677
    %v4679 = vpop.f32.mrb[0].mxu0
    %4680 = vmatprep.mubr.f32.mxu0 0.0
    %4681 = vmatmul.mubr.f32.gmra.mrb[0].mxu0 %v4353
    %v4682 = vpop.f32.mrb[0].mxu0
    %v4683 = vadd.f32 0.0, %v4682
    %v4684 = vpop.f32.mrb[0].mxu0
    %4685 = vmatprep.mubr.f32.mxu0 0.0
    %4686 = vmatmul.mubr.f32.gmra.mrb[0].mxu0 %v4356
    %v4687 = vpop.f32.mrb[0].mxu0
    %v4688 = vadd.f32 0.0, %v4687
    %v4689 = vpop.f32.mrb[0].mxu0
    %4690 = vmatprep.mubr.f32.mxu0 0.0
    %4691 = vmatmul.mubr.f32.gmra.mrb[0].mxu0 %v4359
    %v4692 = vpop.f32.mrb[0].mxu0
    %v4693 = vadd.f32 0.0, %v4692
    %v4694 = vpop.f32.mrb[0].mxu0
    %4695 = vmatprep.mubr.f32.mxu0 0.0
    %4696 = vmatmul.mubr.f32.gmra.mrb[0].mxu0 %v4362
    %v4697 = vpop.f32.mrb[0].mxu0
    %v4698 = vadd.f32 0.0, %v4697
    %v4699 = vpop.f32.mrb[0].mxu0
    %4700 = vmatprep.mubr.f32.mxu0 0.0
    %4701 = vmatmul.mubr.f32.gmra.mrb[0].mxu0 %v4365
    %v4702 = vpop.f32.mrb[0].mxu0
    %v4703 = vadd.f32 0.0, %v4702
    %v4704 = vpop.f32.mrb[0].mxu0
    %4705 = vmatprep.mubr.f32.mxu0 0.0
    %4706 = vmatmul.mubr.f32.gmra.mrb[0].mxu0 %v4368
    %v4707 = vpop.f32.mrb[0].mxu0
    %v4708 = vadd.f32 0.0, %v4707
    %v4709 = vpop.f32.mrb[0].mxu0
    %4710 = vmatprep.mubr.f32.mxu0 0.0
    %4711 = vmatmul.mubr.f32.gmra.mrb[0].mxu0 %v4371
    %v4712 = vpop.f32.mrb[0].mxu0
    %v4713 = vadd.f32 0.0, %v4712
    %v4714 = vpop.f32.mrb[0].mxu0
    %4715 = vmatprep.mubr.f32.mxu0 0.0
    %4716 = vmatmul.mubr.f32.gmra.mrb[0].mxu0 %v4374
    %v4717 = vpop.f32.mrb[0].mxu0
    %v4718 = vadd.f32 0.0, %v4717
    %v4719 = vpop.f32.mrb[0].mxu0
    %4720 = vmatprep.mubr.f32.mxu0 0.0
    %4721 = vmatmul.mubr.f32.gmra.mrb[0].mxu0 %v4377
    %v4722 = vpop.f32.mrb[0].mxu0
    %v4723 = vadd.f32 0.0, %v4722
    %v4724 = vpop.f32.mrb[0].mxu0
    %4725 = vmatprep.mubr.f32.mxu0 0.0
    %4726 = vmatmul.mubr.f32.gmra.mrb[0].mxu0 %v4380
    %v4727 = vpop.f32.mrb[0].mxu0
    %v4728 = vadd.f32 0.0, %v4727
    %v4729 = vpop.f32.mrb[0].mxu0
    %4730 = vmatprep.mubr.f32.mxu0 0.0
    %4731 = vmatmul.mubr.f32.gmra.mrb[0].mxu0 %v4383
    %v4732 = vpop.f32.mrb[0].mxu0
    %v4733 = vadd.f32 0.0, %v4732
    %v4734 = vpop.f32.mrb[0].mxu0
    %4735 = vmatprep.mubr.f32.mxu0 0.0
    %4736 = vmatmul.mubr.f32.gmra.mrb[0].mxu0 %v4386
    %v4737 = vpop.f32.mrb[0].mxu0
    %v4738 = vadd.f32 0.0, %v4737
    %v4739 = vpop.f32.mrb[0].mxu0
    %4740 = vmatprep.mubr.f32.mxu0 0.0
    %4741 = vmatmul.mubr.f32.gmra.mrb[0].mxu0 %v4389
    %v4742 = vpop.f32.mrb[0].mxu0
    %v4743 = vadd.f32 0.0, %v4742
    %v4744 = vpop.f32.mrb[0].mxu0
    %4745 = vmatprep.mubr.f32.mxu0 0.0
    %4746 = vmatmul.mubr.f32.gmra.mrb[0].mxu0 %v4392
    %v4747 = vpop.f32.mrb[0].mxu0
    %v4748 = vadd.f32 0.0, %v4747
    %v4749 = vpop.f32.mrb[0].mxu0
    %4750 = vmatprep.mubr.f32.mxu0 0.0
    %4751 = vmatmul.mubr.f32.gmra.mrb[0].mxu0 %v4395
    %v4752 = vpop.f32.mrb[0].mxu0
    %v4753 = vadd.f32 0.0, %v4752
    %v4754 = vpop.f32.mrb[0].mxu0
    %4755 = vmatprep.mubr.f32.mxu0 0.0
    %4756 = vmatmul.mubr.f32.gmra.mrb[0].mxu0 %v4398
    %v4757 = vpop.f32.mrb[0].mxu0
    %v4758 = vadd.f32 0.0, %v4757
    %v4759 = vpop.f32.mrb[0].mxu0
    %4760 = vmatprep.mubr.f32.mxu0 0.0
    %4761 = vmatmul.mubr.f32.gmra.mrb[0].mxu0 %v4401
    %v4762 = vpop.f32.mrb[0].mxu0
    %v4763 = vadd.f32 0.0, %v4762
    %v4764 = vpop.f32.mrb[0].mxu0
    %4765 = vmatprep.mubr.f32.mxu0 0.0
    %4766 = vmatmul.mubr.f32.gmra.mrb[0].mxu0 %v4404
    %v4767 = vpop.f32.mrb[0].mxu0
    %v4768 = vadd.f32 0.0, %v4767
    %v4769 = vpop.f32.mrb[0].mxu0
    %4770 = vmatprep.mubr.f32.mxu0 0.0
    %4771 = vmatmul.mubr.f32.gmra.mrb[0].mxu0 %v4407
    %v4772 = vpop.f32.mrb[0].mxu0
    %v4773 = vadd.f32 0.0, %v4772
    %v4774 = vpop.f32.mrb[0].mxu0
    %4775 = vmatprep.mubr.f32.mxu0 0.0
    %4776 = vmatmul.mubr.f32.gmra.mrb[0].mxu0 %v4410
    %v4777 = vpop.f32.mrb[0].mxu0
    %v4778 = vadd.f32 0.0, %v4777
    %v4779 = vpop.f32.mrb[0].mxu0
    %4780 = vmatprep.mubr.f32.mxu0 0.0
    %4781 = vmatmul.mubr.f32.gmra.mrb[0].mxu0 %v4413
    %v4782 = vpop.f32.mrb[0].mxu0
    %v4783 = vadd.f32 0.0, %v4782
    %v4784 = vpop.f32.mrb[0].mxu0
    %4785 = vmatprep.mubr.f32.mxu0 0.0
    %4786 = vmatmul.mubr.f32.gmra.mrb[0].mxu0 %v4416
    %v4787 = vpop.f32.mrb[0].mxu0
    %v4788 = vadd.f32 0.0, %v4787
    %v4789 = vpop.f32.mrb[0].mxu0
    %4790 = vmatprep.mubr.f32.mxu0 0.0
    %4791 = vmatmul.mubr.f32.gmra.mrb[0].mxu0 %v4419
    %v4792 = vpop.f32.mrb[0].mxu0
    %v4793 = vadd.f32 0.0, %v4792
    %v4794 = vpop.f32.mrb[0].mxu0
    %4795 = vmatprep.mubr.f32.mxu0 0.0
    %4796 = vmatmul.mubr.f32.gmra.mrb[0].mxu0 %v4422
    %v4797 = vpop.f32.mrb[0].mxu0
    %v4798 = vadd.f32 0.0, %v4797
    %v4799 = vpop.f32.mrb[0].mxu0
    %4800 = vmatprep.mubr.f32.mxu0 0.0
    %4801 = vmatmul.mubr.f32.gmra.mrb[0].mxu0 %v4425
    %v4802 = vpop.f32.mrb[0].mxu0
    %v4803 = vadd.f32 0.0, %v4802
    %v4804 = vpop.f32.mrb[0].mxu0
    %4805 = vmatprep.mubr.f32.mxu0 0.0
    %4806 = vmatmul.mubr.f32.gmra.mrb[0].mxu0 %v4428
    %v4807 = vpop.f32.mrb[0].mxu0
    %v4808 = vadd.f32 0.0, %v4807
    %v4809 = vpop.f32.mrb[0].mxu0
    %4810 = vmatprep.mubr.f32.mxu0 0.0
    %4811 = vmatmul.mubr.f32.gmra.mrb[0].mxu0 %v4431
    %v4812 = vpop.f32.mrb[0].mxu0
    %v4813 = vadd.f32 0.0, %v4812
    %v4814 = vpop.f32.mrb[0].mxu0
    %4815 = vmatprep.mubr.f32.mxu0 0.0
    %4816 = vmatmul.mubr.f32.gmra.mrb[0].mxu0 %v4434
    %v4817 = vpop.f32.mrb[0].mxu0
    %v4818 = vadd.f32 0.0, %v4817
    %v4819 = vpop.f32.mrb[0].mxu0
    %4820 = vmatprep.mubr.f32.mxu0 0.0
    %4821 = vmatmul.mubr.f32.gmra.mrb[0].mxu0 %v4437
    %v4822 = vpop.f32.mrb[0].mxu0
    %v4823 = vadd.f32 0.0, %v4822
    %v4824 = vpop.f32.mrb[0].mxu0
    %4825 = vmatprep.mubr.f32.mxu0 0.0
    %4826 = vmatmul.mubr.f32.gmra.mrb[0].mxu0 %v4440
    %v4827 = vpop.f32.mrb[0].mxu0
    %v4828 = vadd.f32 0.0, %v4827
    %v4829 = vpop.f32.mrb[0].mxu0
    %4830 = vmatprep.mubr.f32.mxu0 0.0
    %4831 = vmatmul.mubr.f32.gmra.mrb[0].mxu0 %v4443
    %v4832 = vpop.f32.mrb[0].mxu0
    %v4833 = vadd.f32 0.0, %v4832
    %v4834 = vpop.f32.mrb[0].mxu0
    %4835 = vmatprep.mubr.f32.mxu0 0.0
    %4836 = vmatmul.mubr.f32.gmra.mrb[0].mxu0 %v4446
    %v4837 = vpop.f32.mrb[0].mxu0
    %v4838 = vadd.f32 0.0, %v4837
    %v4839 = vpop.f32.mrb[0].mxu0
    %4840 = vmatprep.mubr.f32.mxu0 0.0
    %4841 = vmatmul.mubr.f32.gmra.mrb[0].mxu0 %v4449
    %v4842 = vpop.f32.mrb[0].mxu0
    %v4843 = vadd.f32 0.0, %v4842
    %v4844 = vpop.f32.mrb[0].mxu0
    %4845 = vmatprep.mubr.f32.mxu0 0.0
    %4846 = vmatmul.mubr.f32.gmra.mrb[0].mxu0 %v4452
    %v4847 = vpop.f32.mrb[0].mxu0
    %v4848 = vadd.f32 0.0, %v4847
    %v4849 = vpop.f32.mrb[0].mxu0
    %4850 = vmatprep.mubr.f32.mxu0 0.0
    %4851 = vmatmul.mubr.f32.gmra.mrb[0].mxu0 %v4455
    %v4852 = vpop.f32.mrb[0].mxu0
    %v4853 = vadd.f32 0.0, %v4852
    %v4854 = vpop.f32.mrb[0].mxu0
    %4855 = vmatprep.mubr.f32.mxu0 0.0
    %4856 = vmatmul.mubr.f32.gmra.mrb[0].mxu0 %v4458
    %v4857 = vpop.f32.mrb[0].mxu0
    %v4858 = vadd.f32 0.0, %v4857
    %v4859 = vpop.f32.mrb[0].mxu0
    %4860 = vmatprep.mubr.f32.mxu0 0.0
    %4861 = vmatmul.mubr.f32.gmra.mrb[0].mxu0 %v4461
    %v4862 = vpop.f32.mrb[0].mxu0
    %v4863 = vadd.f32 0.0, %v4862
    %v4864 = vpop.f32.mrb[0].mxu0
    %4865 = vmatprep.mubr.f32.mxu0 0.0
    %4866 = vmatmul.mubr.f32.gmra.mrb[0].mxu0 %v4464
    %v4867 = vpop.f32.mrb[0].mxu0
    %v4868 = vadd.f32 0.0, %v4867
    %v4869 = vpop.f32.mrb[0].mxu0
    %4870 = vmatprep.mubr.f32.mxu0 0.0
    %4871 = vmatmul.mubr.f32.gmra.mrb[0].mxu0 %v4467
    %v4872 = vpop.f32.mrb[0].mxu0
    %v4873 = vadd.f32 0.0, %v4872
    %v4874 = vpop.f32.mrb[0].mxu0
    %4875 = vmatprep.mubr.f32.mxu0 0.0
    %4876 = vmatmul.mubr.f32.gmra.mrb[0].mxu0 %v4470
    %v4877 = vpop.f32.mrb[0].mxu0
    %v4878 = vadd.f32 0.0, %v4877
    %v4879 = vpop.f32.mrb[0].mxu0
    %4880 = vmatprep.mubr.f32.mxu0 0.0
    %4881 = vmatmul.mubr.f32.gmra.mrb[0].mxu0 %v4473
    %v4882 = vpop.f32.mrb[0].mxu0
    %v4883 = vadd.f32 0.0, %v4882
    %v4884 = vpop.f32.mrb[0].mxu0
    %4885 = vmatprep.mubr.f32.mxu0 0.0
    %4886 = vmatmul.mubr.f32.gmra.mrb[0].mxu0 %v4476
    %v4887 = vpop.f32.mrb[0].mxu0
    %v4888 = vadd.f32 0.0, %v4887
    %v4889 = vpop.f32.mrb[0].mxu0
    %4890 = vmatprep.mubr.f32.mxu0 0.0
    %4891 = vmatmul.mubr.f32.gmra.mrb[0].mxu0 %v4479
    %v4892 = vpop.f32.mrb[0].mxu0
    %v4893 = vadd.f32 0.0, %v4892
    %v4894 = vpop.f32.mrb[0].mxu0
    %4895 = vmatprep.mubr.f32.mxu0 0.0
    %4896 = vmatmul.mubr.f32.gmra.mrb[0].mxu0 %v4482
    %v4897 = vpop.f32.mrb[0].mxu0
    %v4898 = vadd.f32 0.0, %v4897
    %v4899 = vpop.f32.mrb[0].mxu0
    %4900 = vmatprep.mubr.f32.mxu0 0.0
    %4901 = vmatmul.mubr.f32.gmra.mrb[0].mxu0 %v4485
    %v4902 = vpop.f32.mrb[0].mxu0
    %v4903 = vadd.f32 0.0, %v4902
    %v4904 = vpop.f32.mrb[0].mxu0
    %4905 = vmatprep.mubr.f32.mxu0 0.0
    %4906 = vmatmul.mubr.f32.gmra.mrb[0].mxu0 %v4488
    %v4907 = vpop.f32.mrb[0].mxu0
    %v4908 = vadd.f32 0.0, %v4907
    %v4909 = vpop.f32.mrb[0].mxu0
    %4910 = vmatprep.mubr.f32.mxu0 0.0
    %4911 = vmatmul.mubr.f32.gmra.mrb[0].mxu0 %v4491
    %v4912 = vpop.f32.mrb[0].mxu0
    %v4913 = vadd.f32 0.0, %v4912
    %v4914 = vpop.f32.mrb[0].mxu0
    %4915 = vmatprep.mubr.f32.mxu0 0.0
    %4916 = vmatmul.mubr.f32.gmra.mrb[0].mxu0 %v4494
    %v4917 = vpop.f32.mrb[0].mxu0
    %v4918 = vadd.f32 0.0, %v4917
    %v4919 = vpop.f32.mrb[0].mxu0
    %4920 = vdwg.mxu0
    %4921 = vxpose.xlu0.b32.start [1/16] %v4563, 128
    %4922 = vxpose.xlu0.b32.cont [2/16] %v4568, 128
    %4923 = vxpose.xlu0.b32.cont [3/16] %v4573, 128
    %4924 = vxpose.xlu0.b32.cont [4/16] %v4578, 128
    %4925 = vxpose.xlu0.b32.cont [5/16] 0.0, 128
    %4926 = vxpose.xlu0.b32.cont [6/16] 0.0, 128
    %4927 = vxpose.xlu0.b32.cont [7/16] 0.0, 128
    %4928 = vxpose.xlu0.b32.cont [8/16] 0.0, 128
    %4929 = vxpose.xlu0.b32.cont [9/16] 0.0, 128
    %4930 = vxpose.xlu0.b32.cont [10/16] 0.0, 128
    %4931 = vxpose.xlu0.b32.cont [11/16] 0.0, 128
    %4932 = vxpose.xlu0.b32.cont [12/16] 0.0, 128
    %4933 = vxpose.xlu0.b32.cont [13/16] 0.0, 128
    %4934 = vxpose.xlu0.b32.cont [14/16] 0.0, 128
    %4935 = vxpose.xlu0.b32.cont [15/16] 0.0, 128
    %4936 = vxpose.xlu0.b32.end [16/16] 0.0, 128
    %v4937 = vpop.trf.xlu0
    %v4938 = vpop.trf.xlu0
    %v4939 = vpop.trf.xlu0
    %v4940 = vpop.trf.xlu0
    %v4941 = vpop.trf.xlu0
    %v4942 = vpop.trf.xlu0
    %v4943 = vpop.trf.xlu0
    %v4944 = vpop.trf.xlu0
    %v4945 = vpop.trf.xlu0
    %v4946 = vpop.trf.xlu0
    %v4947 = vpop.trf.xlu0
    %v4948 = vpop.trf.xlu0
    %v4949 = vpop.trf.xlu0
    %v4950 = vpop.trf.xlu0
    %v4951 = vpop.trf.xlu0
    %v4952 = vpop.trf.xlu0
    %4953 = vxpose.xlu0.b32.start [1/16] %v4583, 128
    %4954 = vxpose.xlu0.b32.cont [2/16] %v4588, 128
    %4955 = vxpose.xlu0.b32.cont [3/16] %v4593, 128
    %4956 = vxpose.xlu0.b32.cont [4/16] %v4598, 128
    %4957 = vxpose.xlu0.b32.cont [5/16] 0.0, 128
    %4958 = vxpose.xlu0.b32.cont [6/16] 0.0, 128
    %4959 = vxpose.xlu0.b32.cont [7/16] 0.0, 128
    %4960 = vxpose.xlu0.b32.cont [8/16] 0.0, 128
    %4961 = vxpose.xlu0.b32.cont [9/16] 0.0, 128
    %4962 = vxpose.xlu0.b32.cont [10/16] 0.0, 128
    %4963 = vxpose.xlu0.b32.cont [11/16] 0.0, 128
    %4964 = vxpose.xlu0.b32.cont [12/16] 0.0, 128
    %4965 = vxpose.xlu0.b32.cont [13/16] 0.0, 128
    %4966 = vxpose.xlu0.b32.cont [14/16] 0.0, 128
    %4967 = vxpose.xlu0.b32.cont [15/16] 0.0, 128
    %4968 = vxpose.xlu0.b32.end [16/16] 0.0, 128
    %v4969 = vpop.trf.xlu0
    %v4970 = vpop.trf.xlu0
    %v4971 = vpop.trf.xlu0
    %v4972 = vpop.trf.xlu0
    %v4973 = vpop.trf.xlu0
    %v4974 = vpop.trf.xlu0
    %v4975 = vpop.trf.xlu0
    %v4976 = vpop.trf.xlu0
    %v4977 = vpop.trf.xlu0
    %v4978 = vpop.trf.xlu0
    %v4979 = vpop.trf.xlu0
    %v4980 = vpop.trf.xlu0
    %v4981 = vpop.trf.xlu0
    %v4982 = vpop.trf.xlu0
    %v4983 = vpop.trf.xlu0
    %v4984 = vpop.trf.xlu0
    %4985 = vxpose.xlu0.b32.start [1/16] %v4603, 128
    %4986 = vxpose.xlu0.b32.cont [2/16] %v4608, 128
    %4987 = vxpose.xlu0.b32.cont [3/16] %v4613, 128
    %4988 = vxpose.xlu0.b32.cont [4/16] %v4618, 128
    %4989 = vxpose.xlu0.b32.cont [5/16] 0.0, 128
    %4990 = vxpose.xlu0.b32.cont [6/16] 0.0, 128
    %4991 = vxpose.xlu0.b32.cont [7/16] 0.0, 128
    %4992 = vxpose.xlu0.b32.cont [8/16] 0.0, 128
    %4993 = vxpose.xlu0.b32.cont [9/16] 0.0, 128
    %4994 = vxpose.xlu0.b32.cont [10/16] 0.0, 128
    %4995 = vxpose.xlu0.b32.cont [11/16] 0.0, 128
    %4996 = vxpose.xlu0.b32.cont [12/16] 0.0, 128
    %4997 = vxpose.xlu0.b32.cont [13/16] 0.0, 128
    %4998 = vxpose.xlu0.b32.cont [14/16] 0.0, 128
    %4999 = vxpose.xlu0.b32.cont [15/16] 0.0, 128
    %5000 = vxpose.xlu0.b32.end [16/16] 0.0, 128
    %v5001 = vpop.trf.xlu0
    %v5002 = vpop.trf.xlu0
    %v5003 = vpop.trf.xlu0
    %v5004 = vpop.trf.xlu0
    %v5005 = vpop.trf.xlu0
    %v5006 = vpop.trf.xlu0
    %v5007 = vpop.trf.xlu0
    %v5008 = vpop.trf.xlu0
    %v5009 = vpop.trf.xlu0
    %v5010 = vpop.trf.xlu0
    %v5011 = vpop.trf.xlu0
    %v5012 = vpop.trf.xlu0
    %v5013 = vpop.trf.xlu0
    %v5014 = vpop.trf.xlu0
    %v5015 = vpop.trf.xlu0
    %v5016 = vpop.trf.xlu0
    %5017 = vxpose.xlu0.b32.start [1/16] %v4623, 128
    %5018 = vxpose.xlu0.b32.cont [2/16] %v4628, 128
    %5019 = vxpose.xlu0.b32.cont [3/16] %v4633, 128
    %5020 = vxpose.xlu0.b32.cont [4/16] %v4638, 128
    %5021 = vxpose.xlu0.b32.cont [5/16] 0.0, 128
    %5022 = vxpose.xlu0.b32.cont [6/16] 0.0, 128
    %5023 = vxpose.xlu0.b32.cont [7/16] 0.0, 128
    %5024 = vxpose.xlu0.b32.cont [8/16] 0.0, 128
    %5025 = vxpose.xlu0.b32.cont [9/16] 0.0, 128
    %5026 = vxpose.xlu0.b32.cont [10/16] 0.0, 128
    %5027 = vxpose.xlu0.b32.cont [11/16] 0.0, 128
    %5028 = vxpose.xlu0.b32.cont [12/16] 0.0, 128
    %5029 = vxpose.xlu0.b32.cont [13/16] 0.0, 128
    %5030 = vxpose.xlu0.b32.cont [14/16] 0.0, 128
    %5031 = vxpose.xlu0.b32.cont [15/16] 0.0, 128
    %5032 = vxpose.xlu0.b32.end [16/16] 0.0, 128
    %v5033 = vpop.trf.xlu0
    %v5034 = vpop.trf.xlu0
    %v5035 = vpop.trf.xlu0
    %v5036 = vpop.trf.xlu0
    %v5037 = vpop.trf.xlu0
    %v5038 = vpop.trf.xlu0
    %v5039 = vpop.trf.xlu0
    %v5040 = vpop.trf.xlu0
    %v5041 = vpop.trf.xlu0
    %v5042 = vpop.trf.xlu0
    %v5043 = vpop.trf.xlu0
    %v5044 = vpop.trf.xlu0
    %v5045 = vpop.trf.xlu0
    %v5046 = vpop.trf.xlu0
    %v5047 = vpop.trf.xlu0
    %v5048 = vpop.trf.xlu0
    %5049 = vxpose.xlu0.b32.start [1/16] %v4643, 128
    %5050 = vxpose.xlu0.b32.cont [2/16] %v4648, 128
    %5051 = vxpose.xlu0.b32.cont [3/16] %v4653, 128
    %5052 = vxpose.xlu0.b32.cont [4/16] %v4658, 128
    %5053 = vxpose.xlu0.b32.cont [5/16] 0.0, 128
    %5054 = vxpose.xlu0.b32.cont [6/16] 0.0, 128
    %5055 = vxpose.xlu0.b32.cont [7/16] 0.0, 128
    %5056 = vxpose.xlu0.b32.cont [8/16] 0.0, 128
    %5057 = vxpose.xlu0.b32.cont [9/16] 0.0, 128
    %5058 = vxpose.xlu0.b32.cont [10/16] 0.0, 128
    %5059 = vxpose.xlu0.b32.cont [11/16] 0.0, 128
    %5060 = vxpose.xlu0.b32.cont [12/16] 0.0, 128
    %5061 = vxpose.xlu0.b32.cont [13/16] 0.0, 128
    %5062 = vxpose.xlu0.b32.cont [14/16] 0.0, 128
    %5063 = vxpose.xlu0.b32.cont [15/16] 0.0, 128
    %5064 = vxpose.xlu0.b32.end [16/16] 0.0, 128
    %v5065 = vpop.trf.xlu0
    %v5066 = vpop.trf.xlu0
    %v5067 = vpop.trf.xlu0
    %v5068 = vpop.trf.xlu0
    %v5069 = vpop.trf.xlu0
    %v5070 = vpop.trf.xlu0
    %v5071 = vpop.trf.xlu0
    %v5072 = vpop.trf.xlu0
    %v5073 = vpop.trf.xlu0
    %v5074 = vpop.trf.xlu0
    %v5075 = vpop.trf.xlu0
    %v5076 = vpop.trf.xlu0
    %v5077 = vpop.trf.xlu0
    %v5078 = vpop.trf.xlu0
    %v5079 = vpop.trf.xlu0
    %v5080 = vpop.trf.xlu0
    %5081 = vxpose.xlu0.b32.start [1/16] %v4663, 128
    %5082 = vxpose.xlu0.b32.cont [2/16] %v4668, 128
    %5083 = vxpose.xlu0.b32.cont [3/16] %v4673, 128
    %5084 = vxpose.xlu0.b32.cont [4/16] %v4678, 128
    %5085 = vxpose.xlu0.b32.cont [5/16] 0.0, 128
    %5086 = vxpose.xlu0.b32.cont [6/16] 0.0, 128
    %5087 = vxpose.xlu0.b32.cont [7/16] 0.0, 128
    %5088 = vxpose.xlu0.b32.cont [8/16] 0.0, 128
    %5089 = vxpose.xlu0.b32.cont [9/16] 0.0, 128
    %5090 = vxpose.xlu0.b32.cont [10/16] 0.0, 128
    %5091 = vxpose.xlu0.b32.cont [11/16] 0.0, 128
    %5092 = vxpose.xlu0.b32.cont [12/16] 0.0, 128
    %5093 = vxpose.xlu0.b32.cont [13/16] 0.0, 128
    %5094 = vxpose.xlu0.b32.cont [14/16] 0.0, 128
    %5095 = vxpose.xlu0.b32.cont [15/16] 0.0, 128
    %5096 = vxpose.xlu0.b32.end [16/16] 0.0, 128
    %v5097 = vpop.trf.xlu0
    %v5098 = vpop.trf.xlu0
    %v5099 = vpop.trf.xlu0
    %v5100 = vpop.trf.xlu0
    %v5101 = vpop.trf.xlu0
    %v5102 = vpop.trf.xlu0
    %v5103 = vpop.trf.xlu0
    %v5104 = vpop.trf.xlu0
    %v5105 = vpop.trf.xlu0
    %v5106 = vpop.trf.xlu0
    %v5107 = vpop.trf.xlu0
    %v5108 = vpop.trf.xlu0
    %v5109 = vpop.trf.xlu0
    %v5110 = vpop.trf.xlu0
    %v5111 = vpop.trf.xlu0
    %v5112 = vpop.trf.xlu0
    %5113 = vxpose.xlu0.b32.start [1/16] %v4683, 128
    %5114 = vxpose.xlu0.b32.cont [2/16] %v4688, 128
    %5115 = vxpose.xlu0.b32.cont [3/16] %v4693, 128
    %5116 = vxpose.xlu0.b32.cont [4/16] %v4698, 128
    %5117 = vxpose.xlu0.b32.cont [5/16] 0.0, 128
    %5118 = vxpose.xlu0.b32.cont [6/16] 0.0, 128
    %5119 = vxpose.xlu0.b32.cont [7/16] 0.0, 128
    %5120 = vxpose.xlu0.b32.cont [8/16] 0.0, 128
    %5121 = vxpose.xlu0.b32.cont [9/16] 0.0, 128
    %5122 = vxpose.xlu0.b32.cont [10/16] 0.0, 128
    %5123 = vxpose.xlu0.b32.cont [11/16] 0.0, 128
    %5124 = vxpose.xlu0.b32.cont [12/16] 0.0, 128
    %5125 = vxpose.xlu0.b32.cont [13/16] 0.0, 128
    %5126 = vxpose.xlu0.b32.cont [14/16] 0.0, 128
    %5127 = vxpose.xlu0.b32.cont [15/16] 0.0, 128
    %5128 = vxpose.xlu0.b32.end [16/16] 0.0, 128
    %v5129 = vpop.trf.xlu0
    %v5130 = vpop.trf.xlu0
    %v5131 = vpop.trf.xlu0
    %v5132 = vpop.trf.xlu0
    %v5133 = vpop.trf.xlu0
    %v5134 = vpop.trf.xlu0
    %v5135 = vpop.trf.xlu0
    %v5136 = vpop.trf.xlu0
    %v5137 = vpop.trf.xlu0
    %v5138 = vpop.trf.xlu0
    %v5139 = vpop.trf.xlu0
    %v5140 = vpop.trf.xlu0
    %v5141 = vpop.trf.xlu0
    %v5142 = vpop.trf.xlu0
    %v5143 = vpop.trf.xlu0
    %v5144 = vpop.trf.xlu0
    %5145 = vxpose.xlu0.b32.start [1/16] %v4703, 128
    %5146 = vxpose.xlu0.b32.cont [2/16] %v4708, 128
    %5147 = vxpose.xlu0.b32.cont [3/16] %v4713, 128
    %5148 = vxpose.xlu0.b32.cont [4/16] %v4718, 128
    %5149 = vxpose.xlu0.b32.cont [5/16] 0.0, 128
    %5150 = vxpose.xlu0.b32.cont [6/16] 0.0, 128
    %5151 = vxpose.xlu0.b32.cont [7/16] 0.0, 128
    %5152 = vxpose.xlu0.b32.cont [8/16] 0.0, 128
    %5153 = vxpose.xlu0.b32.cont [9/16] 0.0, 128
    %5154 = vxpose.xlu0.b32.cont [10/16] 0.0, 128
    %5155 = vxpose.xlu0.b32.cont [11/16] 0.0, 128
    %5156 = vxpose.xlu0.b32.cont [12/16] 0.0, 128
    %5157 = vxpose.xlu0.b32.cont [13/16] 0.0, 128
    %5158 = vxpose.xlu0.b32.cont [14/16] 0.0, 128
    %5159 = vxpose.xlu0.b32.cont [15/16] 0.0, 128
    %5160 = vxpose.xlu0.b32.end [16/16] 0.0, 128
    %v5161 = vpop.trf.xlu0
    %v5162 = vpop.trf.xlu0
    %v5163 = vpop.trf.xlu0
    %v5164 = vpop.trf.xlu0
    %v5165 = vpop.trf.xlu0
    %v5166 = vpop.trf.xlu0
    %v5167 = vpop.trf.xlu0
    %v5168 = vpop.trf.xlu0
    %v5169 = vpop.trf.xlu0
    %v5170 = vpop.trf.xlu0
    %v5171 = vpop.trf.xlu0
    %v5172 = vpop.trf.xlu0
    %v5173 = vpop.trf.xlu0
    %v5174 = vpop.trf.xlu0
    %v5175 = vpop.trf.xlu0
    %v5176 = vpop.trf.xlu0
    %5177 = vxpose.xlu0.b32.start [1/16] %v4723, 128
    %5178 = vxpose.xlu0.b32.cont [2/16] %v4728, 128
    %5179 = vxpose.xlu0.b32.cont [3/16] %v4733, 128
    %5180 = vxpose.xlu0.b32.cont [4/16] %v4738, 128
    %5181 = vxpose.xlu0.b32.cont [5/16] 0.0, 128
    %5182 = vxpose.xlu0.b32.cont [6/16] 0.0, 128
    %5183 = vxpose.xlu0.b32.cont [7/16] 0.0, 128
    %5184 = vxpose.xlu0.b32.cont [8/16] 0.0, 128
    %5185 = vxpose.xlu0.b32.cont [9/16] 0.0, 128
    %5186 = vxpose.xlu0.b32.cont [10/16] 0.0, 128
    %5187 = vxpose.xlu0.b32.cont [11/16] 0.0, 128
    %5188 = vxpose.xlu0.b32.cont [12/16] 0.0, 128
    %5189 = vxpose.xlu0.b32.cont [13/16] 0.0, 128
    %5190 = vxpose.xlu0.b32.cont [14/16] 0.0, 128
    %5191 = vxpose.xlu0.b32.cont [15/16] 0.0, 128
    %5192 = vxpose.xlu0.b32.end [16/16] 0.0, 128
    %v5193 = vpop.trf.xlu0
    %v5194 = vpop.trf.xlu0
    %v5195 = vpop.trf.xlu0
    %v5196 = vpop.trf.xlu0
    %v5197 = vpop.trf.xlu0
    %v5198 = vpop.trf.xlu0
    %v5199 = vpop.trf.xlu0
    %v5200 = vpop.trf.xlu0
    %v5201 = vpop.trf.xlu0
    %v5202 = vpop.trf.xlu0
    %v5203 = vpop.trf.xlu0
    %v5204 = vpop.trf.xlu0
    %v5205 = vpop.trf.xlu0
    %v5206 = vpop.trf.xlu0
    %v5207 = vpop.trf.xlu0
    %v5208 = vpop.trf.xlu0
    %5209 = vxpose.xlu0.b32.start [1/16] %v4743, 128
    %5210 = vxpose.xlu0.b32.cont [2/16] %v4748, 128
    %5211 = vxpose.xlu0.b32.cont [3/16] %v4753, 128
    %5212 = vxpose.xlu0.b32.cont [4/16] %v4758, 128
    %5213 = vxpose.xlu0.b32.cont [5/16] 0.0, 128
    %5214 = vxpose.xlu0.b32.cont [6/16] 0.0, 128
    %5215 = vxpose.xlu0.b32.cont [7/16] 0.0, 128
    %5216 = vxpose.xlu0.b32.cont [8/16] 0.0, 128
    %5217 = vxpose.xlu0.b32.cont [9/16] 0.0, 128
    %5218 = vxpose.xlu0.b32.cont [10/16] 0.0, 128
    %5219 = vxpose.xlu0.b32.cont [11/16] 0.0, 128
    %5220 = vxpose.xlu0.b32.cont [12/16] 0.0, 128
    %5221 = vxpose.xlu0.b32.cont [13/16] 0.0, 128
    %5222 = vxpose.xlu0.b32.cont [14/16] 0.0, 128
    %5223 = vxpose.xlu0.b32.cont [15/16] 0.0, 128
    %5224 = vxpose.xlu0.b32.end [16/16] 0.0, 128
    %v5225 = vpop.trf.xlu0
    %v5226 = vpop.trf.xlu0
    %v5227 = vpop.trf.xlu0
    %v5228 = vpop.trf.xlu0
    %v5229 = vpop.trf.xlu0
    %v5230 = vpop.trf.xlu0
    %v5231 = vpop.trf.xlu0
    %v5232 = vpop.trf.xlu0
    %v5233 = vpop.trf.xlu0
    %v5234 = vpop.trf.xlu0
    %v5235 = vpop.trf.xlu0
    %v5236 = vpop.trf.xlu0
    %v5237 = vpop.trf.xlu0
    %v5238 = vpop.trf.xlu0
    %v5239 = vpop.trf.xlu0
    %v5240 = vpop.trf.xlu0
    %5241 = vxpose.xlu0.b32.start [1/16] %v4763, 128
    %5242 = vxpose.xlu0.b32.cont [2/16] %v4768, 128
    %5243 = vxpose.xlu0.b32.cont [3/16] %v4773, 128
    %5244 = vxpose.xlu0.b32.cont [4/16] %v4778, 128
    %5245 = vxpose.xlu0.b32.cont [5/16] 0.0, 128
    %5246 = vxpose.xlu0.b32.cont [6/16] 0.0, 128
    %5247 = vxpose.xlu0.b32.cont [7/16] 0.0, 128
    %5248 = vxpose.xlu0.b32.cont [8/16] 0.0, 128
    %5249 = vxpose.xlu0.b32.cont [9/16] 0.0, 128
    %5250 = vxpose.xlu0.b32.cont [10/16] 0.0, 128
    %5251 = vxpose.xlu0.b32.cont [11/16] 0.0, 128
    %5252 = vxpose.xlu0.b32.cont [12/16] 0.0, 128
    %5253 = vxpose.xlu0.b32.cont [13/16] 0.0, 128
    %5254 = vxpose.xlu0.b32.cont [14/16] 0.0, 128
    %5255 = vxpose.xlu0.b32.cont [15/16] 0.0, 128
    %5256 = vxpose.xlu0.b32.end [16/16] 0.0, 128
    %v5257 = vpop.trf.xlu0
    %v5258 = vpop.trf.xlu0
    %v5259 = vpop.trf.xlu0
    %v5260 = vpop.trf.xlu0
    %v5261 = vpop.trf.xlu0
    %v5262 = vpop.trf.xlu0
    %v5263 = vpop.trf.xlu0
    %v5264 = vpop.trf.xlu0
    %v5265 = vpop.trf.xlu0
    %v5266 = vpop.trf.xlu0
    %v5267 = vpop.trf.xlu0
    %v5268 = vpop.trf.xlu0
    %v5269 = vpop.trf.xlu0
    %v5270 = vpop.trf.xlu0
    %v5271 = vpop.trf.xlu0
    %v5272 = vpop.trf.xlu0
    %5273 = vxpose.xlu0.b32.start [1/16] %v4783, 128
    %5274 = vxpose.xlu0.b32.cont [2/16] %v4788, 128
    %5275 = vxpose.xlu0.b32.cont [3/16] %v4793, 128
    %5276 = vxpose.xlu0.b32.cont [4/16] %v4798, 128
    %5277 = vxpose.xlu0.b32.cont [5/16] 0.0, 128
    %5278 = vxpose.xlu0.b32.cont [6/16] 0.0, 128
    %5279 = vxpose.xlu0.b32.cont [7/16] 0.0, 128
    %5280 = vxpose.xlu0.b32.cont [8/16] 0.0, 128
    %5281 = vxpose.xlu0.b32.cont [9/16] 0.0, 128
    %5282 = vxpose.xlu0.b32.cont [10/16] 0.0, 128
    %5283 = vxpose.xlu0.b32.cont [11/16] 0.0, 128
    %5284 = vxpose.xlu0.b32.cont [12/16] 0.0, 128
    %5285 = vxpose.xlu0.b32.cont [13/16] 0.0, 128
    %5286 = vxpose.xlu0.b32.cont [14/16] 0.0, 128
    %5287 = vxpose.xlu0.b32.cont [15/16] 0.0, 128
    %5288 = vxpose.xlu0.b32.end [16/16] 0.0, 128
    %v5289 = vpop.trf.xlu0
    %v5290 = vpop.trf.xlu0
    %v5291 = vpop.trf.xlu0
    %v5292 = vpop.trf.xlu0
    %v5293 = vpop.trf.xlu0
    %v5294 = vpop.trf.xlu0
    %v5295 = vpop.trf.xlu0
    %v5296 = vpop.trf.xlu0
    %v5297 = vpop.trf.xlu0
    %v5298 = vpop.trf.xlu0
    %v5299 = vpop.trf.xlu0
    %v5300 = vpop.trf.xlu0
    %v5301 = vpop.trf.xlu0
    %v5302 = vpop.trf.xlu0
    %v5303 = vpop.trf.xlu0
    %v5304 = vpop.trf.xlu0
    %5305 = vxpose.xlu0.b32.start [1/16] %v4803, 128
    %5306 = vxpose.xlu0.b32.cont [2/16] %v4808, 128
    %5307 = vxpose.xlu0.b32.cont [3/16] %v4813, 128
    %5308 = vxpose.xlu0.b32.cont [4/16] %v4818, 128
    %5309 = vxpose.xlu0.b32.cont [5/16] 0.0, 128
    %5310 = vxpose.xlu0.b32.cont [6/16] 0.0, 128
    %5311 = vxpose.xlu0.b32.cont [7/16] 0.0, 128
    %5312 = vxpose.xlu0.b32.cont [8/16] 0.0, 128
    %5313 = vxpose.xlu0.b32.cont [9/16] 0.0, 128
    %5314 = vxpose.xlu0.b32.cont [10/16] 0.0, 128
    %5315 = vxpose.xlu0.b32.cont [11/16] 0.0, 128
    %5316 = vxpose.xlu0.b32.cont [12/16] 0.0, 128
    %5317 = vxpose.xlu0.b32.cont [13/16] 0.0, 128
    %5318 = vxpose.xlu0.b32.cont [14/16] 0.0, 128
    %5319 = vxpose.xlu0.b32.cont [15/16] 0.0, 128
    %5320 = vxpose.xlu0.b32.end [16/16] 0.0, 128
    %v5321 = vpop.trf.xlu0
    %v5322 = vpop.trf.xlu0
    %v5323 = vpop.trf.xlu0
    %v5324 = vpop.trf.xlu0
    %v5325 = vpop.trf.xlu0
    %v5326 = vpop.trf.xlu0
    %v5327 = vpop.trf.xlu0
    %v5328 = vpop.trf.xlu0
    %v5329 = vpop.trf.xlu0
    %v5330 = vpop.trf.xlu0
    %v5331 = vpop.trf.xlu0
    %v5332 = vpop.trf.xlu0
    %v5333 = vpop.trf.xlu0
    %v5334 = vpop.trf.xlu0
    %v5335 = vpop.trf.xlu0
    %v5336 = vpop.trf.xlu0
    %5337 = vxpose.xlu0.b32.start [1/16] %v4823, 128
    %5338 = vxpose.xlu0.b32.cont [2/16] %v4828, 128
    %5339 = vxpose.xlu0.b32.cont [3/16] %v4833, 128
    %5340 = vxpose.xlu0.b32.cont [4/16] %v4838, 128
    %5341 = vxpose.xlu0.b32.cont [5/16] 0.0, 128
    %5342 = vxpose.xlu0.b32.cont [6/16] 0.0, 128
    %5343 = vxpose.xlu0.b32.cont [7/16] 0.0, 128
    %5344 = vxpose.xlu0.b32.cont [8/16] 0.0, 128
    %5345 = vxpose.xlu0.b32.cont [9/16] 0.0, 128
    %5346 = vxpose.xlu0.b32.cont [10/16] 0.0, 128
    %5347 = vxpose.xlu0.b32.cont [11/16] 0.0, 128
    %5348 = vxpose.xlu0.b32.cont [12/16] 0.0, 128
    %5349 = vxpose.xlu0.b32.cont [13/16] 0.0, 128
    %5350 = vxpose.xlu0.b32.cont [14/16] 0.0, 128
    %5351 = vxpose.xlu0.b32.cont [15/16] 0.0, 128
    %5352 = vxpose.xlu0.b32.end [16/16] 0.0, 128
    %v5353 = vpop.trf.xlu0
    %v5354 = vpop.trf.xlu0
    %v5355 = vpop.trf.xlu0
    %v5356 = vpop.trf.xlu0
    %v5357 = vpop.trf.xlu0
    %v5358 = vpop.trf.xlu0
    %v5359 = vpop.trf.xlu0
    %v5360 = vpop.trf.xlu0
    %v5361 = vpop.trf.xlu0
    %v5362 = vpop.trf.xlu0
    %v5363 = vpop.trf.xlu0
    %v5364 = vpop.trf.xlu0
    %v5365 = vpop.trf.xlu0
    %v5366 = vpop.trf.xlu0
    %v5367 = vpop.trf.xlu0
    %v5368 = vpop.trf.xlu0
    %5369 = vxpose.xlu0.b32.start [1/16] %v4843, 128
    %5370 = vxpose.xlu0.b32.cont [2/16] %v4848, 128
    %5371 = vxpose.xlu0.b32.cont [3/16] %v4853, 128
    %5372 = vxpose.xlu0.b32.cont [4/16] %v4858, 128
    %5373 = vxpose.xlu0.b32.cont [5/16] 0.0, 128
    %5374 = vxpose.xlu0.b32.cont [6/16] 0.0, 128
    %5375 = vxpose.xlu0.b32.cont [7/16] 0.0, 128
    %5376 = vxpose.xlu0.b32.cont [8/16] 0.0, 128
    %5377 = vxpose.xlu0.b32.cont [9/16] 0.0, 128
    %5378 = vxpose.xlu0.b32.cont [10/16] 0.0, 128
    %5379 = vxpose.xlu0.b32.cont [11/16] 0.0, 128
    %5380 = vxpose.xlu0.b32.cont [12/16] 0.0, 128
    %5381 = vxpose.xlu0.b32.cont [13/16] 0.0, 128
    %5382 = vxpose.xlu0.b32.cont [14/16] 0.0, 128
    %5383 = vxpose.xlu0.b32.cont [15/16] 0.0, 128
    %5384 = vxpose.xlu0.b32.end [16/16] 0.0, 128
    %v5385 = vpop.trf.xlu0
    %v5386 = vpop.trf.xlu0
    %v5387 = vpop.trf.xlu0
    %v5388 = vpop.trf.xlu0
    %v5389 = vpop.trf.xlu0
    %v5390 = vpop.trf.xlu0
    %v5391 = vpop.trf.xlu0
    %v5392 = vpop.trf.xlu0
    %v5393 = vpop.trf.xlu0
    %v5394 = vpop.trf.xlu0
    %v5395 = vpop.trf.xlu0
    %v5396 = vpop.trf.xlu0
    %v5397 = vpop.trf.xlu0
    %v5398 = vpop.trf.xlu0
    %v5399 = vpop.trf.xlu0
    %v5400 = vpop.trf.xlu0
    %5401 = vxpose.xlu0.b32.start [1/16] %v4863, 128
    %5402 = vxpose.xlu0.b32.cont [2/16] %v4868, 128
    %5403 = vxpose.xlu0.b32.cont [3/16] %v4873, 128
    %5404 = vxpose.xlu0.b32.cont [4/16] %v4878, 128
    %5405 = vxpose.xlu0.b32.cont [5/16] 0.0, 128
    %5406 = vxpose.xlu0.b32.cont [6/16] 0.0, 128
    %5407 = vxpose.xlu0.b32.cont [7/16] 0.0, 128
    %5408 = vxpose.xlu0.b32.cont [8/16] 0.0, 128
    %5409 = vxpose.xlu0.b32.cont [9/16] 0.0, 128
    %5410 = vxpose.xlu0.b32.cont [10/16] 0.0, 128
    %5411 = vxpose.xlu0.b32.cont [11/16] 0.0, 128
    %5412 = vxpose.xlu0.b32.cont [12/16] 0.0, 128
    %5413 = vxpose.xlu0.b32.cont [13/16] 0.0, 128
    %5414 = vxpose.xlu0.b32.cont [14/16] 0.0, 128
    %5415 = vxpose.xlu0.b32.cont [15/16] 0.0, 128
    %5416 = vxpose.xlu0.b32.end [16/16] 0.0, 128
    %v5417 = vpop.trf.xlu0
    %v5418 = vpop.trf.xlu0
    %v5419 = vpop.trf.xlu0
    %v5420 = vpop.trf.xlu0
    %v5421 = vpop.trf.xlu0
    %v5422 = vpop.trf.xlu0
    %v5423 = vpop.trf.xlu0
    %v5424 = vpop.trf.xlu0
    %v5425 = vpop.trf.xlu0
    %v5426 = vpop.trf.xlu0
    %v5427 = vpop.trf.xlu0
    %v5428 = vpop.trf.xlu0
    %v5429 = vpop.trf.xlu0
    %v5430 = vpop.trf.xlu0
    %v5431 = vpop.trf.xlu0
    %v5432 = vpop.trf.xlu0
    %5433 = vxpose.xlu0.b32.start [1/16] %v4883, 128
    %5434 = vxpose.xlu0.b32.cont [2/16] %v4888, 128
    %5435 = vxpose.xlu0.b32.cont [3/16] %v4893, 128
    %5436 = vxpose.xlu0.b32.cont [4/16] %v4898, 128
    %5437 = vxpose.xlu0.b32.cont [5/16] 0.0, 128
    %5438 = vxpose.xlu0.b32.cont [6/16] 0.0, 128
    %5439 = vxpose.xlu0.b32.cont [7/16] 0.0, 128
    %5440 = vxpose.xlu0.b32.cont [8/16] 0.0, 128
    %5441 = vxpose.xlu0.b32.cont [9/16] 0.0, 128
    %5442 = vxpose.xlu0.b32.cont [10/16] 0.0, 128
    %5443 = vxpose.xlu0.b32.cont [11/16] 0.0, 128
    %5444 = vxpose.xlu0.b32.cont [12/16] 0.0, 128
    %5445 = vxpose.xlu0.b32.cont [13/16] 0.0, 128
    %5446 = vxpose.xlu0.b32.cont [14/16] 0.0, 128
    %5447 = vxpose.xlu0.b32.cont [15/16] 0.0, 128
    %5448 = vxpose.xlu0.b32.end [16/16] 0.0, 128
    %v5449 = vpop.trf.xlu0
    %v5450 = vpop.trf.xlu0
    %v5451 = vpop.trf.xlu0
    %v5452 = vpop.trf.xlu0
    %v5453 = vpop.trf.xlu0
    %v5454 = vpop.trf.xlu0
    %v5455 = vpop.trf.xlu0
    %v5456 = vpop.trf.xlu0
    %v5457 = vpop.trf.xlu0
    %v5458 = vpop.trf.xlu0
    %v5459 = vpop.trf.xlu0
    %v5460 = vpop.trf.xlu0
    %v5461 = vpop.trf.xlu0
    %v5462 = vpop.trf.xlu0
    %v5463 = vpop.trf.xlu0
    %v5464 = vpop.trf.xlu0
    %5465 = vxpose.xlu0.b32.start [1/16] %v4903, 128
    %5466 = vxpose.xlu0.b32.cont [2/16] %v4908, 128
    %5467 = vxpose.xlu0.b32.cont [3/16] %v4913, 128
    %5468 = vxpose.xlu0.b32.cont [4/16] %v4918, 128
    %5469 = vxpose.xlu0.b32.cont [5/16] 0.0, 128
    %5470 = vxpose.xlu0.b32.cont [6/16] 0.0, 128
    %5471 = vxpose.xlu0.b32.cont [7/16] 0.0, 128
    %5472 = vxpose.xlu0.b32.cont [8/16] 0.0, 128
    %5473 = vxpose.xlu0.b32.cont [9/16] 0.0, 128
    %5474 = vxpose.xlu0.b32.cont [10/16] 0.0, 128
    %5475 = vxpose.xlu0.b32.cont [11/16] 0.0, 128
    %5476 = vxpose.xlu0.b32.cont [12/16] 0.0, 128
    %5477 = vxpose.xlu0.b32.cont [13/16] 0.0, 128
    %5478 = vxpose.xlu0.b32.cont [14/16] 0.0, 128
    %5479 = vxpose.xlu0.b32.cont [15/16] 0.0, 128
    %5480 = vxpose.xlu0.b32.end [16/16] 0.0, 128
    %v5481 = vpop.trf.xlu0
    %v5482 = vpop.trf.xlu0
    %v5483 = vpop.trf.xlu0
    %v5484 = vpop.trf.xlu0
    %v5485 = vpop.trf.xlu0
    %v5486 = vpop.trf.xlu0
    %v5487 = vpop.trf.xlu0
    %v5488 = vpop.trf.xlu0
    %v5489 = vpop.trf.xlu0
    %v5490 = vpop.trf.xlu0
    %v5491 = vpop.trf.xlu0
    %v5492 = vpop.trf.xlu0
    %v5493 = vpop.trf.xlu0
    %v5494 = vpop.trf.xlu0
    %v5495 = vpop.trf.xlu0
    %v5496 = vpop.trf.xlu0
    %v5497 = vlaneseq
    %v5498 = vshrl.u32 %v5497, 7
    %v5499 = vsub.s32 0, %v5498
    %v5500 = vrot.slane %v3347, %v5499
    %v5501 = vadd.f32 %v4937, %v5500
    %v5502 = vadd.f32 %v4938, %v5500
    %v5503 = vadd.f32 %v4969, %v5500
    %v5504 = vadd.f32 %v4970, %v5500
    %v5505 = vadd.f32 %v5001, %v5500
    %v5506 = vadd.f32 %v5002, %v5500
    %v5507 = vadd.f32 %v5033, %v5500
    %v5508 = vadd.f32 %v5034, %v5500
    %v5509 = vadd.f32 %v5065, %v5500
    %v5510 = vadd.f32 %v5066, %v5500
    %v5511 = vadd.f32 %v5097, %v5500
    %v5512 = vadd.f32 %v5098, %v5500
    %v5513 = vadd.f32 %v5129, %v5500
    %v5514 = vadd.f32 %v5130, %v5500
    %v5515 = vadd.f32 %v5161, %v5500
    %v5516 = vadd.f32 %v5162, %v5500
    %v5517 = vadd.f32 %v5193, %v5500
    %v5518 = vadd.f32 %v5194, %v5500
    %v5519 = vadd.f32 %v5225, %v5500
    %v5520 = vadd.f32 %v5226, %v5500
    %v5521 = vadd.f32 %v5257, %v5500
    %v5522 = vadd.f32 %v5258, %v5500
    %v5523 = vadd.f32 %v5289, %v5500
    %v5524 = vadd.f32 %v5290, %v5500
    %v5525 = vadd.f32 %v5321, %v5500
    %v5526 = vadd.f32 %v5322, %v5500
    %v5527 = vadd.f32 %v5353, %v5500
    %v5528 = vadd.f32 %v5354, %v5500
    %v5529 = vadd.f32 %v5385, %v5500
    %v5530 = vadd.f32 %v5386, %v5500
    %v5531 = vadd.f32 %v5417, %v5500
    %v5532 = vadd.f32 %v5418, %v5500
    %v5533 = vadd.f32 %v5449, %v5500
    %v5534 = vadd.f32 %v5450, %v5500
    %v5535 = vadd.f32 %v5481, %v5500
    %v5536 = vadd.f32 %v5482, %v5500
    %v5537 = vmax.f32 %v5501, 0.0
    %v5538 = vmax.f32 %v5502, 0.0
    %v5539 = vmax.f32 %v5503, 0.0
    %v5540 = vmax.f32 %v5504, 0.0
    %v5541 = vmax.f32 %v5505, 0.0
    %v5542 = vmax.f32 %v5506, 0.0
    %v5543 = vmax.f32 %v5507, 0.0
    %v5544 = vmax.f32 %v5508, 0.0
    %v5545 = vmax.f32 %v5509, 0.0
    %v5546 = vmax.f32 %v5510, 0.0
    %v5547 = vmax.f32 %v5511, 0.0
    %v5548 = vmax.f32 %v5512, 0.0
    %v5549 = vmax.f32 %v5513, 0.0
    %v5550 = vmax.f32 %v5514, 0.0
    %v5551 = vmax.f32 %v5515, 0.0
    %v5552 = vmax.f32 %v5516, 0.0
    %v5553 = vmax.f32 %v5517, 0.0
    %v5554 = vmax.f32 %v5518, 0.0
    %v5555 = vmax.f32 %v5519, 0.0
    %v5556 = vmax.f32 %v5520, 0.0
    %v5557 = vmax.f32 %v5521, 0.0
    %v5558 = vmax.f32 %v5522, 0.0
    %v5559 = vmax.f32 %v5523, 0.0
    %v5560 = vmax.f32 %v5524, 0.0
    %v5561 = vmax.f32 %v5525, 0.0
    %v5562 = vmax.f32 %v5526, 0.0
    %v5563 = vmax.f32 %v5527, 0.0
    %v5564 = vmax.f32 %v5528, 0.0
    %v5565 = vmax.f32 %v5529, 0.0
    %v5566 = vmax.f32 %v5530, 0.0
    %v5567 = vmax.f32 %v5531, 0.0
    %v5568 = vmax.f32 %v5532, 0.0
    %v5569 = vmax.f32 %v5533, 0.0
    %v5570 = vmax.f32 %v5534, 0.0
    %v5571 = vmax.f32 %v5535, 0.0
    %v5572 = vmax.f32 %v5536, 0.0
    %v5573 = vld [vmem:[#allocation2 + $0xd8] sm:$0xff]
    %v5574 = vld [vmem:[#allocation2 + $0xe0] sm:$0xff]
    %v5575 = vld [vmem:[#allocation2 + $0xe8] sm:$0xff]
    %v5576 = vld [vmem:[#allocation2 + $0xf0] sm:$0xff]
    %v5577 = vld [vmem:[#allocation2 + $0xf8] sm:$0xff]
    %v5578 = vld [vmem:[#allocation2 + $0x100] sm:$0xff]
    %v5579 = vld [vmem:[#allocation2 + $0x108] sm:$0xff]
    %v5580 = vld [vmem:[#allocation2 + $0x110] sm:$0xff]
    %v5581 = vld [vmem:[#allocation2 + $0x118] sm:$0xff]
    %v5582 = vld [vmem:[#allocation2 + $0x120] sm:$0xff]
    %v5583 = vld [vmem:[#allocation2 + $0x128] sm:$0xff]
    %v5584 = vld [vmem:[#allocation2 + $0x130] sm:$0xff]
    %v5585 = vld [vmem:[#allocation2 + $0x138] sm:$0xff]
    %v5586 = vld [vmem:[#allocation2 + $0x140] sm:$0xff]
    %v5587 = vld [vmem:[#allocation2 + $0x148] sm:$0xff]
    %v5588 = vld [vmem:[#allocation2 + $0x150] sm:$0xff]
    %v5589 = vld [vmem:[#allocation2 + $0x158] sm:$0x1]
    %v5590 = vld [vmem:[#allocation2 + $0x160] sm:$0x1]
    %v5592 = vsel %vm3350, %v5545, 0
    %v5595 = vsel %vm3350, %v5546, 0
    %v5598 = vsel %vm3350, %v5547, 0
    %v5601 = vsel %vm3350, %v5548, 0
    %v5604 = vsel %vm3350, %v5549, 0
    %v5607 = vsel %vm3350, %v5550, 0
    %v5610 = vsel %vm3350, %v5551, 0
    %v5613 = vsel %vm3350, %v5552, 0
    %v5616 = vsel %vm3350, %v5553, 0
    %v5619 = vsel %vm3350, %v5554, 0
    %v5622 = vsel %vm3350, %v5563, 0
    %v5625 = vsel %vm3350, %v5564, 0
    %v5628 = vsel %vm3350, %v5565, 0
    %v5631 = vsel %vm3350, %v5566, 0
    %v5634 = vsel %vm3350, %v5567, 0
    %v5637 = vsel %vm3350, %v5568, 0
    %v5640 = vsel %vm3350, %v5569, 0
    %v5643 = vsel %vm3350, %v5570, 0
    %v5646 = vsel %vm3350, %v5571, 0
    %v5649 = vsel %vm3350, %v5572, 0
    %5651 = vmatprep.subr.mxu0 0.0
    %5652 = vmatpush1.msra.mxu0 %v5581
    %5653 = vmatprep.subr.mxu0 0.0
    %5654 = vmatpush1.msra.mxu0 %v5582
    %5655 = vmatprep.subr.mxu0 0.0
    %5656 = vmatpush1.msra.mxu0 %v5583
    %5657 = vmatprep.subr.mxu0 0.0
    %5658 = vmatpush1.msra.mxu0 %v5584
    %5659 = vmatprep.subr.mxu0 0.0
    %5660 = vmatpush1.msra.mxu0 0.0
    %5661 = vmatprep.subr.mxu0 0.0
    %5662 = vmatpush1.msra.mxu0 0.0
    %5663 = vmatprep.subr.mxu0 0.0
    %5664 = vmatpush1.msra.mxu0 0.0
    %5665 = vmatprep.subr.mxu0 0.0
    %5666 = vmatpush1.msra.mxu0 0.0
    %5667 = vmatprep.subr.mxu0 0.0
    %5668 = vmatpush1.msra.mxu0 0.0
    %5669 = vmatprep.subr.mxu0 0.0
    %5670 = vmatpush1.msra.mxu0 0.0
    %5671 = vmatprep.subr.mxu0 0.0
    %5672 = vmatpush1.msra.mxu0 0.0
    %5673 = vmatprep.subr.mxu0 0.0
    %5674 = vmatpush1.msra.mxu0 0.0
    %5675 = vmatprep.subr.mxu0 0.0
    %5676 = vmatpush1.msra.mxu0 0.0
    %5677 = vmatprep.subr.mxu0 0.0
    %5678 = vmatpush1.msra.mxu0 0.0
    %5679 = vmatprep.subr.mxu0 0.0
    %5680 = vmatpush1.msra.mxu0 0.0
    %5681 = vmatprep.subr.mxu0 0.0
    %5682 = vmatpush1.msra.mxu0 0.0
    %5683 = vmatprep.subr.mxu0 0.0
    %5684 = vmatpush1.msra.mxu0 0.0
    %5685 = vmatprep.subr.mxu0 0.0
    %5686 = vmatpush1.msra.mxu0 0.0
    %5687 = vmatprep.subr.mxu0 0.0
    %5688 = vmatpush1.msra.mxu0 0.0
    %5689 = vmatprep.subr.mxu0 0.0
    %5690 = vmatpush1.msra.mxu0 0.0
    %5691 = vmatprep.subr.mxu0 0.0
    %5692 = vmatpush1.msra.mxu0 0.0
    %5693 = vmatprep.subr.mxu0 0.0
    %5694 = vmatpush1.msra.mxu0 0.0
    %5695 = vmatprep.subr.mxu0 0.0
    %5696 = vmatpush1.msra.mxu0 0.0
    %5697 = vmatprep.subr.mxu0 0.0
    %5698 = vmatpush1.msra.mxu0 0.0
    %5699 = vmatprep.subr.mxu0 0.0
    %5700 = vmatpush1.msra.mxu0 0.0
    %5701 = vmatprep.subr.mxu0 0.0
    %5702 = vmatpush1.msra.mxu0 0.0
    %5703 = vmatprep.subr.mxu0 0.0
    %5704 = vmatpush1.msra.mxu0 0.0
    %5705 = vmatprep.subr.mxu0 0.0
    %5706 = vmatpush1.msra.mxu0 0.0
    %5707 = vmatprep.subr.mxu0 0.0
    %5708 = vmatpush1.msra.mxu0 0.0
    %5709 = vmatprep.subr.mxu0 0.0
    %5710 = vmatpush1.msra.mxu0 0.0
    %5711 = vmatprep.subr.mxu0 0.0
    %5712 = vmatpush1.msra.mxu0 0.0
    %5713 = vmatprep.subr.mxu0 0.0
    %5714 = vmatpush1.msra.mxu0 0.0
    %5715 = vmatprep.mubr.f32.mxu0 0.0
    %5716 = vmatmul.mubr.f32.gmra.mrb[0].mxu0 %v5592
    %v5717 = vpop.f32.mrb[0].mxu0
    %v5718 = vadd.f32 0.0, %v5717
    %v5719 = vpop.f32.mrb[0].mxu0
    %5720 = vmatprep.mubr.f32.mxu0 0.0
    %5721 = vmatmul.mubr.f32.gmra.mrb[0].mxu0 %v5595
    %v5722 = vpop.f32.mrb[0].mxu0
    %v5723 = vadd.f32 0.0, %v5722
    %v5724 = vpop.f32.mrb[0].mxu0
    %5725 = vmatprep.mubr.f32.mxu0 0.0
    %5726 = vmatmul.mubr.f32.gmra.mrb[0].mxu0 %v5598
    %v5727 = vpop.f32.mrb[0].mxu0
    %v5728 = vadd.f32 0.0, %v5727
    %v5729 = vpop.f32.mrb[0].mxu0
    %5730 = vmatprep.mubr.f32.mxu0 0.0
    %5731 = vmatmul.mubr.f32.gmra.mrb[0].mxu0 %v5601
    %v5732 = vpop.f32.mrb[0].mxu0
    %v5733 = vadd.f32 0.0, %v5732
    %v5734 = vpop.f32.mrb[0].mxu0
    %5735 = vmatprep.mubr.f32.mxu0 0.0
    %5736 = vmatmul.mubr.f32.gmra.mrb[0].mxu0 %v5604
    %v5737 = vpop.f32.mrb[0].mxu0
    %v5738 = vadd.f32 0.0, %v5737
    %v5739 = vpop.f32.mrb[0].mxu0
    %5740 = vmatprep.mubr.f32.mxu0 0.0
    %5741 = vmatmul.mubr.f32.gmra.mrb[0].mxu0 %v5607
    %v5742 = vpop.f32.mrb[0].mxu0
    %v5743 = vadd.f32 0.0, %v5742
    %v5744 = vpop.f32.mrb[0].mxu0
    %5745 = vmatprep.mubr.f32.mxu0 0.0
    %5746 = vmatmul.mubr.f32.gmra.mrb[0].mxu0 %v5610
    %v5747 = vpop.f32.mrb[0].mxu0
    %v5748 = vadd.f32 0.0, %v5747
    %v5749 = vpop.f32.mrb[0].mxu0
    %5750 = vmatprep.mubr.f32.mxu0 0.0
    %5751 = vmatmul.mubr.f32.gmra.mrb[0].mxu0 %v5613
    %v5752 = vpop.f32.mrb[0].mxu0
    %v5753 = vadd.f32 0.0, %v5752
    %v5754 = vpop.f32.mrb[0].mxu0
    %5755 = vmatprep.mubr.f32.mxu0 0.0
    %5756 = vmatmul.mubr.f32.gmra.mrb[0].mxu0 %v5616
    %v5757 = vpop.f32.mrb[0].mxu0
    %v5758 = vadd.f32 0.0, %v5757
    %v5759 = vpop.f32.mrb[0].mxu0
    %5760 = vmatprep.mubr.f32.mxu0 0.0
    %5761 = vmatmul.mubr.f32.gmra.mrb[0].mxu0 %v5619
    %v5762 = vpop.f32.mrb[0].mxu0
    %v5763 = vadd.f32 0.0, %v5762
    %v5764 = vpop.f32.mrb[0].mxu0
    %5765 = vmatprep.mubr.f32.mxu0 0.0
    %5766 = vmatmul.mubr.f32.gmra.mrb[0].mxu0 %v5622
    %v5767 = vpop.f32.mrb[0].mxu0
    %v5768 = vadd.f32 0.0, %v5767
    %v5769 = vpop.f32.mrb[0].mxu0
    %5770 = vmatprep.mubr.f32.mxu0 0.0
    %5771 = vmatmul.mubr.f32.gmra.mrb[0].mxu0 %v5625
    %v5772 = vpop.f32.mrb[0].mxu0
    %v5773 = vadd.f32 0.0, %v5772
    %v5774 = vpop.f32.mrb[0].mxu0
    %5775 = vmatprep.mubr.f32.mxu0 0.0
    %5776 = vmatmul.mubr.f32.gmra.mrb[0].mxu0 %v5628
    %v5777 = vpop.f32.mrb[0].mxu0
    %v5778 = vadd.f32 0.0, %v5777
    %v5779 = vpop.f32.mrb[0].mxu0
    %5780 = vmatprep.mubr.f32.mxu0 0.0
    %5781 = vmatmul.mubr.f32.gmra.mrb[0].mxu0 %v5631
    %v5782 = vpop.f32.mrb[0].mxu0
    %v5783 = vadd.f32 0.0, %v5782
    %v5784 = vpop.f32.mrb[0].mxu0
    %5785 = vmatprep.mubr.f32.mxu0 0.0
    %5786 = vmatmul.mubr.f32.gmra.mrb[0].mxu0 %v5634
    %v5787 = vpop.f32.mrb[0].mxu0
    %v5788 = vadd.f32 0.0, %v5787
    %v5789 = vpop.f32.mrb[0].mxu0
    %5790 = vmatprep.mubr.f32.mxu0 0.0
    %5791 = vmatmul.mubr.f32.gmra.mrb[0].mxu0 %v5637
    %v5792 = vpop.f32.mrb[0].mxu0
    %v5793 = vadd.f32 0.0, %v5792
    %v5794 = vpop.f32.mrb[0].mxu0
    %5795 = vmatprep.mubr.f32.mxu0 0.0
    %5796 = vmatmul.mubr.f32.gmra.mrb[0].mxu0 %v5640
    %v5797 = vpop.f32.mrb[0].mxu0
    %v5798 = vadd.f32 0.0, %v5797
    %v5799 = vpop.f32.mrb[0].mxu0
    %5800 = vmatprep.mubr.f32.mxu0 0.0
    %5801 = vmatmul.mubr.f32.gmra.mrb[0].mxu0 %v5643
    %v5802 = vpop.f32.mrb[0].mxu0
    %v5803 = vadd.f32 0.0, %v5802
    %v5804 = vpop.f32.mrb[0].mxu0
    %5805 = vmatprep.mubr.f32.mxu0 0.0
    %5806 = vmatmul.mubr.f32.gmra.mrb[0].mxu0 %v5646
    %v5807 = vpop.f32.mrb[0].mxu0
    %v5808 = vadd.f32 0.0, %v5807
    %v5809 = vpop.f32.mrb[0].mxu0
    %5810 = vmatprep.mubr.f32.mxu0 0.0
    %5811 = vmatmul.mubr.f32.gmra.mrb[0].mxu0 %v5649
    %v5812 = vpop.f32.mrb[0].mxu0
    %v5813 = vadd.f32 0.0, %v5812
    %v5814 = vpop.f32.mrb[0].mxu0
    %5815 = vdwg.mxu0
    %v5817 = vsel %vm3350, %v5537, 0
    %v5820 = vsel %vm3350, %v5538, 0
    %v5823 = vsel %vm3350, %v5539, 0
    %v5826 = vsel %vm3350, %v5540, 0
    %v5829 = vsel %vm3350, %v5541, 0
    %v5832 = vsel %vm3350, %v5542, 0
    %v5835 = vsel %vm3350, %v5543, 0
    %v5838 = vsel %vm3350, %v5544, 0
    %v5841 = vsel %vm3350, %v5555, 0
    %v5844 = vsel %vm3350, %v5556, 0
    %v5847 = vsel %vm3350, %v5557, 0
    %v5850 = vsel %vm3350, %v5558, 0
    %v5853 = vsel %vm3350, %v5559, 0
    %v5856 = vsel %vm3350, %v5560, 0
    %v5859 = vsel %vm3350, %v5561, 0
    %v5862 = vsel %vm3350, %v5562, 0
    %5864 = vmatprep.subr.mxu0 0.0
    %5865 = vmatpush1.msra.mxu0 %v5573
    %5866 = vmatprep.subr.mxu0 0.0
    %5867 = vmatpush1.msra.mxu0 %v5574
    %5868 = vmatprep.subr.mxu0 0.0
    %5869 = vmatpush1.msra.mxu0 %v5575
    %5870 = vmatprep.subr.mxu0 0.0
    %5871 = vmatpush1.msra.mxu0 %v5576
    %5872 = vmatprep.subr.mxu0 0.0
    %5873 = vmatpush1.msra.mxu0 0.0
    %5874 = vmatprep.subr.mxu0 0.0
    %5875 = vmatpush1.msra.mxu0 0.0
    %5876 = vmatprep.subr.mxu0 0.0
    %5877 = vmatpush1.msra.mxu0 0.0
    %5878 = vmatprep.subr.mxu0 0.0
    %5879 = vmatpush1.msra.mxu0 0.0
    %5880 = vmatprep.subr.mxu0 0.0
    %5881 = vmatpush1.msra.mxu0 0.0
    %5882 = vmatprep.subr.mxu0 0.0
    %5883 = vmatpush1.msra.mxu0 0.0
    %5884 = vmatprep.subr.mxu0 0.0
    %5885 = vmatpush1.msra.mxu0 0.0
    %5886 = vmatprep.subr.mxu0 0.0
    %5887 = vmatpush1.msra.mxu0 0.0
    %5888 = vmatprep.subr.mxu0 0.0
    %5889 = vmatpush1.msra.mxu0 0.0
    %5890 = vmatprep.subr.mxu0 0.0
    %5891 = vmatpush1.msra.mxu0 0.0
    %5892 = vmatprep.subr.mxu0 0.0
    %5893 = vmatpush1.msra.mxu0 0.0
    %5894 = vmatprep.subr.mxu0 0.0
    %5895 = vmatpush1.msra.mxu0 0.0
    %5896 = vmatprep.subr.mxu0 0.0
    %5897 = vmatpush1.msra.mxu0 0.0
    %5898 = vmatprep.subr.mxu0 0.0
    %5899 = vmatpush1.msra.mxu0 0.0
    %5900 = vmatprep.subr.mxu0 0.0
    %5901 = vmatpush1.msra.mxu0 0.0
    %5902 = vmatprep.subr.mxu0 0.0
    %5903 = vmatpush1.msra.mxu0 0.0
    %5904 = vmatprep.subr.mxu0 0.0
    %5905 = vmatpush1.msra.mxu0 0.0
    %5906 = vmatprep.subr.mxu0 0.0
    %5907 = vmatpush1.msra.mxu0 0.0
    %5908 = vmatprep.subr.mxu0 0.0
    %5909 = vmatpush1.msra.mxu0 0.0
    %5910 = vmatprep.subr.mxu0 0.0
    %5911 = vmatpush1.msra.mxu0 0.0
    %5912 = vmatprep.subr.mxu0 0.0
    %5913 = vmatpush1.msra.mxu0 0.0
    %5914 = vmatprep.subr.mxu0 0.0
    %5915 = vmatpush1.msra.mxu0 0.0
    %5916 = vmatprep.subr.mxu0 0.0
    %5917 = vmatpush1.msra.mxu0 0.0
    %5918 = vmatprep.subr.mxu0 0.0
    %5919 = vmatpush1.msra.mxu0 0.0
    %5920 = vmatprep.subr.mxu0 0.0
    %5921 = vmatpush1.msra.mxu0 0.0
    %5922 = vmatprep.subr.mxu0 0.0
    %5923 = vmatpush1.msra.mxu0 0.0
    %5924 = vmatprep.subr.mxu0 0.0
    %5925 = vmatpush1.msra.mxu0 0.0
    %5926 = vmatprep.subr.mxu0 0.0
    %5927 = vmatpush1.msra.mxu0 0.0
    %5928 = vmatprep.mubr.f32.mxu0 0.0
    %5929 = vmatmul.mubr.f32.gmra.mrb[0].mxu0 %v5817
    %v5930 = vpop.f32.mrb[0].mxu0
    %v5931 = vadd.f32 %v5718, %v5930
    %v5932 = vpop.f32.mrb[0].mxu0
    %5933 = vmatprep.mubr.f32.mxu0 0.0
    %5934 = vmatmul.mubr.f32.gmra.mrb[0].mxu0 %v5820
    %v5935 = vpop.f32.mrb[0].mxu0
    %v5936 = vadd.f32 %v5723, %v5935
    %v5937 = vpop.f32.mrb[0].mxu0
    %5938 = vmatprep.mubr.f32.mxu0 0.0
    %5939 = vmatmul.mubr.f32.gmra.mrb[0].mxu0 %v5823
    %v5940 = vpop.f32.mrb[0].mxu0
    %v5941 = vadd.f32 %v5728, %v5940
    %v5942 = vpop.f32.mrb[0].mxu0
    %5943 = vmatprep.mubr.f32.mxu0 0.0
    %5944 = vmatmul.mubr.f32.gmra.mrb[0].mxu0 %v5826
    %v5945 = vpop.f32.mrb[0].mxu0
    %v5946 = vadd.f32 %v5733, %v5945
    %v5947 = vpop.f32.mrb[0].mxu0
    %5948 = vmatprep.mubr.f32.mxu0 0.0
    %5949 = vmatmul.mubr.f32.gmra.mrb[0].mxu0 %v5829
    %v5950 = vpop.f32.mrb[0].mxu0
    %v5951 = vadd.f32 %v5738, %v5950
    %v5952 = vpop.f32.mrb[0].mxu0
    %5953 = vmatprep.mubr.f32.mxu0 0.0
    %5954 = vmatmul.mubr.f32.gmra.mrb[0].mxu0 %v5832
    %v5955 = vpop.f32.mrb[0].mxu0
    %v5956 = vadd.f32 %v5743, %v5955
    %v5957 = vpop.f32.mrb[0].mxu0
    %5958 = vmatprep.mubr.f32.mxu0 0.0
    %5959 = vmatmul.mubr.f32.gmra.mrb[0].mxu0 %v5835
    %v5960 = vpop.f32.mrb[0].mxu0
    %v5961 = vadd.f32 %v5748, %v5960
    %v5962 = vpop.f32.mrb[0].mxu0
    %5963 = vmatprep.mubr.f32.mxu0 0.0
    %5964 = vmatmul.mubr.f32.gmra.mrb[0].mxu0 %v5838
    %v5965 = vpop.f32.mrb[0].mxu0
    %v5966 = vadd.f32 %v5753, %v5965
    %v5967 = vpop.f32.mrb[0].mxu0
    %5968 = vmatprep.mubr.f32.mxu0 0.0
    %5969 = vmatmul.mubr.f32.gmra.mrb[0].mxu0 %v5592
    %v5970 = vpop.f32.mrb[0].mxu0
    %v5971 = vadd.f32 %v5758, %v5970
    %v5972 = vpop.f32.mrb[0].mxu0
    %5973 = vmatprep.mubr.f32.mxu0 0.0
    %5974 = vmatmul.mubr.f32.gmra.mrb[0].mxu0 %v5595
    %v5975 = vpop.f32.mrb[0].mxu0
    %v5976 = vadd.f32 %v5763, %v5975
    %v5977 = vpop.f32.mrb[0].mxu0
    %5978 = vmatprep.mubr.f32.mxu0 0.0
    %5979 = vmatmul.mubr.f32.gmra.mrb[0].mxu0 %v5841
    %v5980 = vpop.f32.mrb[0].mxu0
    %v5981 = vadd.f32 %v5768, %v5980
    %v5982 = vpop.f32.mrb[0].mxu0
    %5983 = vmatprep.mubr.f32.mxu0 0.0
    %5984 = vmatmul.mubr.f32.gmra.mrb[0].mxu0 %v5844
    %v5985 = vpop.f32.mrb[0].mxu0
    %v5986 = vadd.f32 %v5773, %v5985
    %v5987 = vpop.f32.mrb[0].mxu0
    %5988 = vmatprep.mubr.f32.mxu0 0.0
    %5989 = vmatmul.mubr.f32.gmra.mrb[0].mxu0 %v5847
    %v5990 = vpop.f32.mrb[0].mxu0
    %v5991 = vadd.f32 %v5778, %v5990
    %v5992 = vpop.f32.mrb[0].mxu0
    %5993 = vmatprep.mubr.f32.mxu0 0.0
    %5994 = vmatmul.mubr.f32.gmra.mrb[0].mxu0 %v5850
    %v5995 = vpop.f32.mrb[0].mxu0
    %v5996 = vadd.f32 %v5783, %v5995
    %v5997 = vpop.f32.mrb[0].mxu0
    %5998 = vmatprep.mubr.f32.mxu0 0.0
    %5999 = vmatmul.mubr.f32.gmra.mrb[0].mxu0 %v5853
    %v6000 = vpop.f32.mrb[0].mxu0
    %v6001 = vadd.f32 %v5788, %v6000
    %v6002 = vpop.f32.mrb[0].mxu0
    %6003 = vmatprep.mubr.f32.mxu0 0.0
    %6004 = vmatmul.mubr.f32.gmra.mrb[0].mxu0 %v5856
    %v6005 = vpop.f32.mrb[0].mxu0
    %v6006 = vadd.f32 %v5793, %v6005
    %v6007 = vpop.f32.mrb[0].mxu0
    %6008 = vmatprep.mubr.f32.mxu0 0.0
    %6009 = vmatmul.mubr.f32.gmra.mrb[0].mxu0 %v5859
    %v6010 = vpop.f32.mrb[0].mxu0
    %v6011 = vadd.f32 %v5798, %v6010
    %v6012 = vpop.f32.mrb[0].mxu0
    %6013 = vmatprep.mubr.f32.mxu0 0.0
    %6014 = vmatmul.mubr.f32.gmra.mrb[0].mxu0 %v5862
    %v6015 = vpop.f32.mrb[0].mxu0
    %v6016 = vadd.f32 %v5803, %v6015
    %v6017 = vpop.f32.mrb[0].mxu0
    %6018 = vmatprep.mubr.f32.mxu0 0.0
    %6019 = vmatmul.mubr.f32.gmra.mrb[0].mxu0 %v5622
    %v6020 = vpop.f32.mrb[0].mxu0
    %v6021 = vadd.f32 %v5808, %v6020
    %v6022 = vpop.f32.mrb[0].mxu0
    %6023 = vmatprep.mubr.f32.mxu0 0.0
    %6024 = vmatmul.mubr.f32.gmra.mrb[0].mxu0 %v5625
    %v6025 = vpop.f32.mrb[0].mxu0
    %v6026 = vadd.f32 %v5813, %v6025
    %v6027 = vpop.f32.mrb[0].mxu0
    %6028 = vdwg.mxu0
    %v6029 = vlaneseq
    %v6030 = vshrl.u32 %v6029, 7
    %v6031 = vsub.s32 0, %v6030
    %v6032 = vrot.slane %v5589, %v6031
    %v6033 = vadd.f32 %v5931, %v6032
    %v6034 = vadd.f32 %v5936, %v6032
    %v6035 = vadd.f32 %v5941, %v6032
    %v6036 = vadd.f32 %v5946, %v6032
    %v6037 = vadd.f32 %v5951, %v6032
    %v6038 = vadd.f32 %v5956, %v6032
    %v6039 = vadd.f32 %v5961, %v6032
    %v6040 = vadd.f32 %v5966, %v6032
    %v6041 = vadd.f32 %v5971, %v6032
    %v6042 = vadd.f32 %v5976, %v6032
    %v6043 = vadd.f32 %v5981, %v6032
    %v6044 = vadd.f32 %v5986, %v6032
    %v6045 = vadd.f32 %v5991, %v6032
    %v6046 = vadd.f32 %v5996, %v6032
    %v6047 = vadd.f32 %v6001, %v6032
    %v6048 = vadd.f32 %v6006, %v6032
    %v6049 = vadd.f32 %v6011, %v6032
    %v6050 = vadd.f32 %v6016, %v6032
    %v6051 = vadd.f32 %v6021, %v6032
    %v6052 = vadd.f32 %v6026, %v6032
    %6053 = vmatprep.subr.mxu0 0.0
    %6054 = vmatpush1.msra.mxu0 %v5585
    %6055 = vmatprep.subr.mxu0 0.0
    %6056 = vmatpush1.msra.mxu0 %v5586
    %6057 = vmatprep.subr.mxu0 0.0
    %6058 = vmatpush1.msra.mxu0 %v5587
    %6059 = vmatprep.subr.mxu0 0.0
    %6060 = vmatpush1.msra.mxu0 %v5588
    %6061 = vmatprep.subr.mxu0 0.0
    %6062 = vmatpush1.msra.mxu0 0.0
    %6063 = vmatprep.subr.mxu0 0.0
    %6064 = vmatpush1.msra.mxu0 0.0
    %6065 = vmatprep.subr.mxu0 0.0
    %6066 = vmatpush1.msra.mxu0 0.0
    %6067 = vmatprep.subr.mxu0 0.0
    %6068 = vmatpush1.msra.mxu0 0.0
    %6069 = vmatprep.subr.mxu0 0.0
    %6070 = vmatpush1.msra.mxu0 0.0
    %6071 = vmatprep.subr.mxu0 0.0
    %6072 = vmatpush1.msra.mxu0 0.0
    %6073 = vmatprep.subr.mxu0 0.0
    %6074 = vmatpush1.msra.mxu0 0.0
    %6075 = vmatprep.subr.mxu0 0.0
    %6076 = vmatpush1.msra.mxu0 0.0
    %6077 = vmatprep.subr.mxu0 0.0
    %6078 = vmatpush1.msra.mxu0 0.0
    %6079 = vmatprep.subr.mxu0 0.0
    %6080 = vmatpush1.msra.mxu0 0.0
    %6081 = vmatprep.subr.mxu0 0.0
    %6082 = vmatpush1.msra.mxu0 0.0
    %6083 = vmatprep.subr.mxu0 0.0
    %6084 = vmatpush1.msra.mxu0 0.0
    %6085 = vmatprep.subr.mxu0 0.0
    %6086 = vmatpush1.msra.mxu0 0.0
    %6087 = vmatprep.subr.mxu0 0.0
    %6088 = vmatpush1.msra.mxu0 0.0
    %6089 = vmatprep.subr.mxu0 0.0
    %6090 = vmatpush1.msra.mxu0 0.0
    %6091 = vmatprep.subr.mxu0 0.0
    %6092 = vmatpush1.msra.mxu0 0.0
    %6093 = vmatprep.subr.mxu0 0.0
    %6094 = vmatpush1.msra.mxu0 0.0
    %6095 = vmatprep.subr.mxu0 0.0
    %6096 = vmatpush1.msra.mxu0 0.0
    %6097 = vmatprep.subr.mxu0 0.0
    %6098 = vmatpush1.msra.mxu0 0.0
    %6099 = vmatprep.subr.mxu0 0.0
    %6100 = vmatpush1.msra.mxu0 0.0
    %6101 = vmatprep.subr.mxu0 0.0
    %6102 = vmatpush1.msra.mxu0 0.0
    %6103 = vmatprep.subr.mxu0 0.0
    %6104 = vmatpush1.msra.mxu0 0.0
    %6105 = vmatprep.subr.mxu0 0.0
    %6106 = vmatpush1.msra.mxu0 0.0
    %6107 = vmatprep.subr.mxu0 0.0
    %6108 = vmatpush1.msra.mxu0 0.0
    %6109 = vmatprep.subr.mxu0 0.0
    %6110 = vmatpush1.msra.mxu0 0.0
    %6111 = vmatprep.subr.mxu0 0.0
    %6112 = vmatpush1.msra.mxu0 0.0
    %6113 = vmatprep.subr.mxu0 0.0
    %6114 = vmatpush1.msra.mxu0 0.0
    %6115 = vmatprep.subr.mxu0 0.0
    %6116 = vmatpush1.msra.mxu0 0.0
    %6117 = vmatprep.mubr.f32.mxu0 0.0
    %6118 = vmatmul.mubr.f32.gmra.mrb[0].mxu0 %v5592
    %v6119 = vpop.f32.mrb[0].mxu0
    %v6120 = vadd.f32 0.0, %v6119
    %v6121 = vpop.f32.mrb[0].mxu0
    %6122 = vmatprep.mubr.f32.mxu0 0.0
    %6123 = vmatmul.mubr.f32.gmra.mrb[0].mxu0 %v5595
    %v6124 = vpop.f32.mrb[0].mxu0
    %v6125 = vadd.f32 0.0, %v6124
    %v6126 = vpop.f32.mrb[0].mxu0
    %6127 = vmatprep.mubr.f32.mxu0 0.0
    %6128 = vmatmul.mubr.f32.gmra.mrb[0].mxu0 %v5598
    %v6129 = vpop.f32.mrb[0].mxu0
    %v6130 = vadd.f32 0.0, %v6129
    %v6131 = vpop.f32.mrb[0].mxu0
    %6132 = vmatprep.mubr.f32.mxu0 0.0
    %6133 = vmatmul.mubr.f32.gmra.mrb[0].mxu0 %v5601
    %v6134 = vpop.f32.mrb[0].mxu0
    %v6135 = vadd.f32 0.0, %v6134
    %v6136 = vpop.f32.mrb[0].mxu0
    %6137 = vmatprep.mubr.f32.mxu0 0.0
    %6138 = vmatmul.mubr.f32.gmra.mrb[0].mxu0 %v5604
    %v6139 = vpop.f32.mrb[0].mxu0
    %v6140 = vadd.f32 0.0, %v6139
    %v6141 = vpop.f32.mrb[0].mxu0
    %6142 = vmatprep.mubr.f32.mxu0 0.0
    %6143 = vmatmul.mubr.f32.gmra.mrb[0].mxu0 %v5607
    %v6144 = vpop.f32.mrb[0].mxu0
    %v6145 = vadd.f32 0.0, %v6144
    %v6146 = vpop.f32.mrb[0].mxu0
    %6147 = vmatprep.mubr.f32.mxu0 0.0
    %6148 = vmatmul.mubr.f32.gmra.mrb[0].mxu0 %v5610
    %v6149 = vpop.f32.mrb[0].mxu0
    %v6150 = vadd.f32 0.0, %v6149
    %v6151 = vpop.f32.mrb[0].mxu0
    %6152 = vmatprep.mubr.f32.mxu0 0.0
    %6153 = vmatmul.mubr.f32.gmra.mrb[0].mxu0 %v5613
    %v6154 = vpop.f32.mrb[0].mxu0
    %v6155 = vadd.f32 0.0, %v6154
    %v6156 = vpop.f32.mrb[0].mxu0
    %6157 = vmatprep.mubr.f32.mxu0 0.0
    %6158 = vmatmul.mubr.f32.gmra.mrb[0].mxu0 %v5616
    %v6159 = vpop.f32.mrb[0].mxu0
    %v6160 = vadd.f32 0.0, %v6159
    %v6161 = vpop.f32.mrb[0].mxu0
    %6162 = vmatprep.mubr.f32.mxu0 0.0
    %6163 = vmatmul.mubr.f32.gmra.mrb[0].mxu0 %v5619
    %v6164 = vpop.f32.mrb[0].mxu0
    %v6165 = vadd.f32 0.0, %v6164
    %v6166 = vpop.f32.mrb[0].mxu0
    %6167 = vmatprep.mubr.f32.mxu0 0.0
    %6168 = vmatmul.mubr.f32.gmra.mrb[0].mxu0 %v5622
    %v6169 = vpop.f32.mrb[0].mxu0
    %v6170 = vadd.f32 0.0, %v6169
    %v6171 = vpop.f32.mrb[0].mxu0
    %6172 = vmatprep.mubr.f32.mxu0 0.0
    %6173 = vmatmul.mubr.f32.gmra.mrb[0].mxu0 %v5625
    %v6174 = vpop.f32.mrb[0].mxu0
    %v6175 = vadd.f32 0.0, %v6174
    %v6176 = vpop.f32.mrb[0].mxu0
    %6177 = vmatprep.mubr.f32.mxu0 0.0
    %6178 = vmatmul.mubr.f32.gmra.mrb[0].mxu0 %v5628
    %v6179 = vpop.f32.mrb[0].mxu0
    %v6180 = vadd.f32 0.0, %v6179
    %v6181 = vpop.f32.mrb[0].mxu0
    %6182 = vmatprep.mubr.f32.mxu0 0.0
    %6183 = vmatmul.mubr.f32.gmra.mrb[0].mxu0 %v5631
    %v6184 = vpop.f32.mrb[0].mxu0
    %v6185 = vadd.f32 0.0, %v6184
    %v6186 = vpop.f32.mrb[0].mxu0
    %6187 = vmatprep.mubr.f32.mxu0 0.0
    %6188 = vmatmul.mubr.f32.gmra.mrb[0].mxu0 %v5634
    %v6189 = vpop.f32.mrb[0].mxu0
    %v6190 = vadd.f32 0.0, %v6189
    %v6191 = vpop.f32.mrb[0].mxu0
    %6192 = vmatprep.mubr.f32.mxu0 0.0
    %6193 = vmatmul.mubr.f32.gmra.mrb[0].mxu0 %v5637
    %v6194 = vpop.f32.mrb[0].mxu0
    %v6195 = vadd.f32 0.0, %v6194
    %v6196 = vpop.f32.mrb[0].mxu0
    %6197 = vmatprep.mubr.f32.mxu0 0.0
    %6198 = vmatmul.mubr.f32.gmra.mrb[0].mxu0 %v5640
    %v6199 = vpop.f32.mrb[0].mxu0
    %v6200 = vadd.f32 0.0, %v6199
    %v6201 = vpop.f32.mrb[0].mxu0
    %6202 = vmatprep.mubr.f32.mxu0 0.0
    %6203 = vmatmul.mubr.f32.gmra.mrb[0].mxu0 %v5643
    %v6204 = vpop.f32.mrb[0].mxu0
    %v6205 = vadd.f32 0.0, %v6204
    %v6206 = vpop.f32.mrb[0].mxu0
    %6207 = vmatprep.mubr.f32.mxu0 0.0
    %6208 = vmatmul.mubr.f32.gmra.mrb[0].mxu0 %v5646
    %v6209 = vpop.f32.mrb[0].mxu0
    %v6210 = vadd.f32 0.0, %v6209
    %v6211 = vpop.f32.mrb[0].mxu0
    %6212 = vmatprep.mubr.f32.mxu0 0.0
    %6213 = vmatmul.mubr.f32.gmra.mrb[0].mxu0 %v5649
    %v6214 = vpop.f32.mrb[0].mxu0
    %v6215 = vadd.f32 0.0, %v6214
    %v6216 = vpop.f32.mrb[0].mxu0
    %6217 = vdwg.mxu0
    %6218 = vmatprep.subr.mxu0 0.0
    %6219 = vmatpush1.msra.mxu0 %v5577
    %6220 = vmatprep.subr.mxu0 0.0
    %6221 = vmatpush1.msra.mxu0 %v5578
    %6222 = vmatprep.subr.mxu0 0.0
    %6223 = vmatpush1.msra.mxu0 %v5579
    %6224 = vmatprep.subr.mxu0 0.0
    %6225 = vmatpush1.msra.mxu0 %v5580
    %6226 = vmatprep.subr.mxu0 0.0
    %6227 = vmatpush1.msra.mxu0 0.0
    %6228 = vmatprep.subr.mxu0 0.0
    %6229 = vmatpush1.msra.mxu0 0.0
    %6230 = vmatprep.subr.mxu0 0.0
    %6231 = vmatpush1.msra.mxu0 0.0
    %6232 = vmatprep.subr.mxu0 0.0
    %6233 = vmatpush1.msra.mxu0 0.0
    %6234 = vmatprep.subr.mxu0 0.0
    %6235 = vmatpush1.msra.mxu0 0.0
    %6236 = vmatprep.subr.mxu0 0.0
    %6237 = vmatpush1.msra.mxu0 0.0
    %6238 = vmatprep.subr.mxu0 0.0
    %6239 = vmatpush1.msra.mxu0 0.0
    %6240 = vmatprep.subr.mxu0 0.0
    %6241 = vmatpush1.msra.mxu0 0.0
    %6242 = vmatprep.subr.mxu0 0.0
    %6243 = vmatpush1.msra.mxu0 0.0
    %6244 = vmatprep.subr.mxu0 0.0
    %6245 = vmatpush1.msra.mxu0 0.0
    %6246 = vmatprep.subr.mxu0 0.0
    %6247 = vmatpush1.msra.mxu0 0.0
    %6248 = vmatprep.subr.mxu0 0.0
    %6249 = vmatpush1.msra.mxu0 0.0
    %6250 = vmatprep.subr.mxu0 0.0
    %6251 = vmatpush1.msra.mxu0 0.0
    %6252 = vmatprep.subr.mxu0 0.0
    %6253 = vmatpush1.msra.mxu0 0.0
    %6254 = vmatprep.subr.mxu0 0.0
    %6255 = vmatpush1.msra.mxu0 0.0
    %6256 = vmatprep.subr.mxu0 0.0
    %6257 = vmatpush1.msra.mxu0 0.0
    %6258 = vmatprep.subr.mxu0 0.0
    %6259 = vmatpush1.msra.mxu0 0.0
    %6260 = vmatprep.subr.mxu0 0.0
    %6261 = vmatpush1.msra.mxu0 0.0
    %6262 = vmatprep.subr.mxu0 0.0
    %6263 = vmatpush1.msra.mxu0 0.0
    %6264 = vmatprep.subr.mxu0 0.0
    %6265 = vmatpush1.msra.mxu0 0.0
    %6266 = vmatprep.subr.mxu0 0.0
    %6267 = vmatpush1.msra.mxu0 0.0
    %6268 = vmatprep.subr.mxu0 0.0
    %6269 = vmatpush1.msra.mxu0 0.0
    %6270 = vmatprep.subr.mxu0 0.0
    %6271 = vmatpush1.msra.mxu0 0.0
    %6272 = vmatprep.subr.mxu0 0.0
    %6273 = vmatpush1.msra.mxu0 0.0
    %6274 = vmatprep.subr.mxu0 0.0
    %6275 = vmatpush1.msra.mxu0 0.0
    %6276 = vmatprep.subr.mxu0 0.0
    %6277 = vmatpush1.msra.mxu0 0.0
    %6278 = vmatprep.subr.mxu0 0.0
    %6279 = vmatpush1.msra.mxu0 0.0
    %6280 = vmatprep.subr.mxu0 0.0
    %6281 = vmatpush1.msra.mxu0 0.0
    %6282 = vmatprep.mubr.f32.mxu0 0.0
    %6283 = vmatmul.mubr.f32.gmra.mrb[0].mxu0 %v5817
    %v6284 = vpop.f32.mrb[0].mxu0
    %v6285 = vadd.f32 %v6120, %v6284
    %v6286 = vpop.f32.mrb[0].mxu0
    %6287 = vmatprep.mubr.f32.mxu0 0.0
    %6288 = vmatmul.mubr.f32.gmra.mrb[0].mxu0 %v5820
    %v6289 = vpop.f32.mrb[0].mxu0
    %v6290 = vadd.f32 %v6125, %v6289
    %v6291 = vpop.f32.mrb[0].mxu0
    %6292 = vmatprep.mubr.f32.mxu0 0.0
    %6293 = vmatmul.mubr.f32.gmra.mrb[0].mxu0 %v5823
    %v6294 = vpop.f32.mrb[0].mxu0
    %v6295 = vadd.f32 %v6130, %v6294
    %v6296 = vpop.f32.mrb[0].mxu0
    %6297 = vmatprep.mubr.f32.mxu0 0.0
    %6298 = vmatmul.mubr.f32.gmra.mrb[0].mxu0 %v5826
    %v6299 = vpop.f32.mrb[0].mxu0
    %v6300 = vadd.f32 %v6135, %v6299
    %v6301 = vpop.f32.mrb[0].mxu0
    %6302 = vmatprep.mubr.f32.mxu0 0.0
    %6303 = vmatmul.mubr.f32.gmra.mrb[0].mxu0 %v5829
    %v6304 = vpop.f32.mrb[0].mxu0
    %v6305 = vadd.f32 %v6140, %v6304
    %v6306 = vpop.f32.mrb[0].mxu0
    %6307 = vmatprep.mubr.f32.mxu0 0.0
    %6308 = vmatmul.mubr.f32.gmra.mrb[0].mxu0 %v5832
    %v6309 = vpop.f32.mrb[0].mxu0
    %v6310 = vadd.f32 %v6145, %v6309
    %v6311 = vpop.f32.mrb[0].mxu0
    %6312 = vmatprep.mubr.f32.mxu0 0.0
    %6313 = vmatmul.mubr.f32.gmra.mrb[0].mxu0 %v5835
    %v6314 = vpop.f32.mrb[0].mxu0
    %v6315 = vadd.f32 %v6150, %v6314
    %v6316 = vpop.f32.mrb[0].mxu0
    %6317 = vmatprep.mubr.f32.mxu0 0.0
    %6318 = vmatmul.mubr.f32.gmra.mrb[0].mxu0 %v5838
    %v6319 = vpop.f32.mrb[0].mxu0
    %v6320 = vadd.f32 %v6155, %v6319
    %v6321 = vpop.f32.mrb[0].mxu0
    %6322 = vmatprep.mubr.f32.mxu0 0.0
    %6323 = vmatmul.mubr.f32.gmra.mrb[0].mxu0 %v5592
    %v6324 = vpop.f32.mrb[0].mxu0
    %v6325 = vadd.f32 %v6160, %v6324
    %v6326 = vpop.f32.mrb[0].mxu0
    %6327 = vmatprep.mubr.f32.mxu0 0.0
    %6328 = vmatmul.mubr.f32.gmra.mrb[0].mxu0 %v5595
    %v6329 = vpop.f32.mrb[0].mxu0
    %v6330 = vadd.f32 %v6165, %v6329
    %v6331 = vpop.f32.mrb[0].mxu0
    %6332 = vmatprep.mubr.f32.mxu0 0.0
    %6333 = vmatmul.mubr.f32.gmra.mrb[0].mxu0 %v5841
    %v6334 = vpop.f32.mrb[0].mxu0
    %v6335 = vadd.f32 %v6170, %v6334
    %v6336 = vpop.f32.mrb[0].mxu0
    %6337 = vmatprep.mubr.f32.mxu0 0.0
    %6338 = vmatmul.mubr.f32.gmra.mrb[0].mxu0 %v5844
    %v6339 = vpop.f32.mrb[0].mxu0
    %v6340 = vadd.f32 %v6175, %v6339
    %v6341 = vpop.f32.mrb[0].mxu0
    %6342 = vmatprep.mubr.f32.mxu0 0.0
    %6343 = vmatmul.mubr.f32.gmra.mrb[0].mxu0 %v5847
    %v6344 = vpop.f32.mrb[0].mxu0
    %v6345 = vadd.f32 %v6180, %v6344
    %v6346 = vpop.f32.mrb[0].mxu0
    %6347 = vmatprep.mubr.f32.mxu0 0.0
    %6348 = vmatmul.mubr.f32.gmra.mrb[0].mxu0 %v5850
    %v6349 = vpop.f32.mrb[0].mxu0
    %v6350 = vadd.f32 %v6185, %v6349
    %v6351 = vpop.f32.mrb[0].mxu0
    %6352 = vmatprep.mubr.f32.mxu0 0.0
    %6353 = vmatmul.mubr.f32.gmra.mrb[0].mxu0 %v5853
    %v6354 = vpop.f32.mrb[0].mxu0
    %v6355 = vadd.f32 %v6190, %v6354
    %v6356 = vpop.f32.mrb[0].mxu0
    %6357 = vmatprep.mubr.f32.mxu0 0.0
    %6358 = vmatmul.mubr.f32.gmra.mrb[0].mxu0 %v5856
    %v6359 = vpop.f32.mrb[0].mxu0
    %v6360 = vadd.f32 %v6195, %v6359
    %v6361 = vpop.f32.mrb[0].mxu0
    %6362 = vmatprep.mubr.f32.mxu0 0.0
    %6363 = vmatmul.mubr.f32.gmra.mrb[0].mxu0 %v5859
    %v6364 = vpop.f32.mrb[0].mxu0
    %v6365 = vadd.f32 %v6200, %v6364
    %v6366 = vpop.f32.mrb[0].mxu0
    %6367 = vmatprep.mubr.f32.mxu0 0.0
    %6368 = vmatmul.mubr.f32.gmra.mrb[0].mxu0 %v5862
    %v6369 = vpop.f32.mrb[0].mxu0
    %v6370 = vadd.f32 %v6205, %v6369
    %v6371 = vpop.f32.mrb[0].mxu0
    %6372 = vmatprep.mubr.f32.mxu0 0.0
    %6373 = vmatmul.mubr.f32.gmra.mrb[0].mxu0 %v5622
    %v6374 = vpop.f32.mrb[0].mxu0
    %v6375 = vadd.f32 %v6210, %v6374
    %v6376 = vpop.f32.mrb[0].mxu0
    %6377 = vmatprep.mubr.f32.mxu0 0.0
    %6378 = vmatmul.mubr.f32.gmra.mrb[0].mxu0 %v5625
    %v6379 = vpop.f32.mrb[0].mxu0
    %v6380 = vadd.f32 %v6215, %v6379
    %v6381 = vpop.f32.mrb[0].mxu0
    %6382 = vdwg.mxu0
    %v6383 = vlaneseq
    %v6384 = vshrl.u32 %v6383, 7
    %v6385 = vsub.s32 0, %v6384
    %v6386 = vrot.slane %v5590, %v6385
    %v6387 = vadd.f32 %v6285, %v6386
    %v6388 = vadd.f32 %v6290, %v6386
    %v6389 = vadd.f32 %v6295, %v6386
    %v6390 = vadd.f32 %v6300, %v6386
    %v6391 = vadd.f32 %v6305, %v6386
    %v6392 = vadd.f32 %v6310, %v6386
    %v6393 = vadd.f32 %v6315, %v6386
    %v6394 = vadd.f32 %v6320, %v6386
    %v6395 = vadd.f32 %v6325, %v6386
    %v6396 = vadd.f32 %v6330, %v6386
    %v6397 = vadd.f32 %v6335, %v6386
    %v6398 = vadd.f32 %v6340, %v6386
    %v6399 = vadd.f32 %v6345, %v6386
    %v6400 = vadd.f32 %v6350, %v6386
    %v6401 = vadd.f32 %v6355, %v6386
    %v6402 = vadd.f32 %v6360, %v6386
    %v6403 = vadd.f32 %v6365, %v6386
    %v6404 = vadd.f32 %v6370, %v6386
    %v6405 = vadd.f32 %v6375, %v6386
    %v6406 = vadd.f32 %v6380, %v6386
    %v6407 = vxor.u32 %v6387, 2147483648
    %v6408 = vxor.u32 %v6388, 2147483648
    %v6409 = vxor.u32 %v6389, 2147483648
    %v6410 = vxor.u32 %v6390, 2147483648
    %v6411 = vxor.u32 %v6391, 2147483648
    %v6412 = vxor.u32 %v6392, 2147483648
    %v6413 = vxor.u32 %v6393, 2147483648
    %v6414 = vxor.u32 %v6394, 2147483648
    %v6415 = vxor.u32 %v6395, 2147483648
    %v6416 = vxor.u32 %v6396, 2147483648
    %v6417 = vxor.u32 %v6397, 2147483648
    %v6418 = vxor.u32 %v6398, 2147483648
    %v6419 = vxor.u32 %v6399, 2147483648
    %v6420 = vxor.u32 %v6400, 2147483648
    %v6421 = vxor.u32 %v6401, 2147483648
    %v6422 = vxor.u32 %v6402, 2147483648
    %v6423 = vxor.u32 %v6403, 2147483648
    %v6424 = vxor.u32 %v6404, 2147483648
    %v6425 = vxor.u32 %v6405, 2147483648
    %v6426 = vxor.u32 %v6406, 2147483648
    %v6427 = vmul.f32 %v6407, 1.442695
    %v6428 = vpow.pop %v6427
    %v6429 = vmul.f32 %v6408, 1.442695
    %v6430 = vpow.pop %v6429
    %v6431 = vmul.f32 %v6409, 1.442695
    %v6432 = vpow.pop %v6431
    %v6433 = vmul.f32 %v6410, 1.442695
    %v6434 = vpow.pop %v6433
    %v6435 = vmul.f32 %v6411, 1.442695
    %v6436 = vpow.pop %v6435
    %v6437 = vmul.f32 %v6412, 1.442695
    %v6438 = vpow.pop %v6437
    %v6439 = vmul.f32 %v6413, 1.442695
    %v6440 = vpow.pop %v6439
    %v6441 = vmul.f32 %v6414, 1.442695
    %v6442 = vpow.pop %v6441
    %v6443 = vmul.f32 %v6415, 1.442695
    %v6444 = vpow.pop %v6443
    %v6445 = vmul.f32 %v6416, 1.442695
    %v6446 = vpow.pop %v6445
    %v6447 = vmul.f32 %v6417, 1.442695
    %v6448 = vpow.pop %v6447
    %v6449 = vmul.f32 %v6418, 1.442695
    %v6450 = vpow.pop %v6449
    %v6451 = vmul.f32 %v6419, 1.442695
    %v6452 = vpow.pop %v6451
    %v6453 = vmul.f32 %v6420, 1.442695
    %v6454 = vpow.pop %v6453
    %v6455 = vmul.f32 %v6421, 1.442695
    %v6456 = vpow.pop %v6455
    %v6457 = vmul.f32 %v6422, 1.442695
    %v6458 = vpow.pop %v6457
    %v6459 = vmul.f32 %v6423, 1.442695
    %v6460 = vpow.pop %v6459
    %v6461 = vmul.f32 %v6424, 1.442695
    %v6462 = vpow.pop %v6461
    %v6463 = vmul.f32 %v6425, 1.442695
    %v6464 = vpow.pop %v6463
    %v6465 = vmul.f32 %v6426, 1.442695
    %v6466 = vpow.pop %v6465
    %v6467 = vadd.f32 %v6428, 1.0
    %v6468 = vadd.f32 %v6430, 1.0
    %v6469 = vadd.f32 %v6432, 1.0
    %v6470 = vadd.f32 %v6434, 1.0
    %v6471 = vadd.f32 %v6436, 1.0
    %v6472 = vadd.f32 %v6438, 1.0
    %v6473 = vadd.f32 %v6440, 1.0
    %v6474 = vadd.f32 %v6442, 1.0
    %v6475 = vadd.f32 %v6444, 1.0
    %v6476 = vadd.f32 %v6446, 1.0
    %v6477 = vadd.f32 %v6448, 1.0
    %v6478 = vadd.f32 %v6450, 1.0
    %v6479 = vadd.f32 %v6452, 1.0
    %v6480 = vadd.f32 %v6454, 1.0
    %v6481 = vadd.f32 %v6456, 1.0
    %v6482 = vadd.f32 %v6458, 1.0
    %v6483 = vadd.f32 %v6460, 1.0
    %v6484 = vadd.f32 %v6462, 1.0
    %v6485 = vadd.f32 %v6464, 1.0
    %v6486 = vadd.f32 %v6466, 1.0
    %v6487 = vrcp.pop %v6467
    %v6488 = vmul.f32 1.0, %v6487
    %v6489 = vrcp.pop %v6468
    %v6490 = vmul.f32 1.0, %v6489
    %v6491 = vrcp.pop %v6469
    %v6492 = vmul.f32 1.0, %v6491
    %v6493 = vrcp.pop %v6470
    %v6494 = vmul.f32 1.0, %v6493
    %v6495 = vrcp.pop %v6471
    %v6496 = vmul.f32 1.0, %v6495
    %v6497 = vrcp.pop %v6472
    %v6498 = vmul.f32 1.0, %v6497
    %v6499 = vrcp.pop %v6473
    %v6500 = vmul.f32 1.0, %v6499
    %v6501 = vrcp.pop %v6474
    %v6502 = vmul.f32 1.0, %v6501
    %v6503 = vrcp.pop %v6475
    %v6504 = vmul.f32 1.0, %v6503
    %v6505 = vrcp.pop %v6476
    %v6506 = vmul.f32 1.0, %v6505
    %v6507 = vrcp.pop %v6477
    %v6508 = vmul.f32 1.0, %v6507
    %v6509 = vrcp.pop %v6478
    %v6510 = vmul.f32 1.0, %v6509
    %v6511 = vrcp.pop %v6479
    %v6512 = vmul.f32 1.0, %v6511
    %v6513 = vrcp.pop %v6480
    %v6514 = vmul.f32 1.0, %v6513
    %v6515 = vrcp.pop %v6481
    %v6516 = vmul.f32 1.0, %v6515
    %v6517 = vrcp.pop %v6482
    %v6518 = vmul.f32 1.0, %v6517
    %v6519 = vrcp.pop %v6483
    %v6520 = vmul.f32 1.0, %v6519
    %v6521 = vrcp.pop %v6484
    %v6522 = vmul.f32 1.0, %v6521
    %v6523 = vrcp.pop %v6485
    %v6524 = vmul.f32 1.0, %v6523
    %v6525 = vrcp.pop %v6486
    %v6526 = vmul.f32 1.0, %v6525
    %v6527 = vmul.f32 %v6033, %v6488
    %v6528 = vmul.f32 %v6034, %v6490
    %v6529 = vmul.f32 %v6035, %v6492
    %v6530 = vmul.f32 %v6036, %v6494
    %v6531 = vmul.f32 %v6037, %v6496
    %v6532 = vmul.f32 %v6038, %v6498
    %v6533 = vmul.f32 %v6039, %v6500
    %v6534 = vmul.f32 %v6040, %v6502
    %v6535 = vmul.f32 %v6041, %v6504
    %v6536 = vmul.f32 %v6042, %v6506
    %v6537 = vmul.f32 %v6043, %v6508
    %v6538 = vmul.f32 %v6044, %v6510
    %v6539 = vmul.f32 %v6045, %v6512
    %v6540 = vmul.f32 %v6046, %v6514
    %v6541 = vmul.f32 %v6047, %v6516
    %v6542 = vmul.f32 %v6048, %v6518
    %v6543 = vmul.f32 %v6049, %v6520
    %v6544 = vmul.f32 %v6050, %v6522
    %v6545 = vmul.f32 %v6051, %v6524
    %v6546 = vmul.f32 %v6052, %v6526
    %v6547 = vld [vmem:[#allocation2 + $0x168] sm:$0xff]
    %v6548 = vld [vmem:[#allocation2 + $0x170] sm:$0xff]
    %v6549 = vld [vmem:[#allocation2 + $0x178] sm:$0xff]
    %v6550 = vld [vmem:[#allocation2 + $0x180] sm:$0xff]
    %vm6551 = vcmask 523264
    %v6552 = vsel %vm6551, %v6527, 0.0
    %6553 = vadd.xlane.f32.xlu0 %v6552
    %v6554 = vpop.xlane.xlu0 %6553
    %v6555 = vsel %vm6551, %v6528, 0.0
    %6556 = vadd.xlane.f32.xlu0 %v6555
    %v6557 = vpop.xlane.xlu0 %6556
    %v6558 = vsel %vm6551, %v6529, 0.0
    %6559 = vadd.xlane.f32.xlu0 %v6558
    %v6560 = vpop.xlane.xlu0 %6559
    %v6561 = vsel %vm6551, %v6530, 0.0
    %6562 = vadd.xlane.f32.xlu0 %v6561
    %v6563 = vpop.xlane.xlu0 %6562
    %v6564 = vsel %vm6551, %v6531, 0.0
    %6565 = vadd.xlane.f32.xlu0 %v6564
    %v6566 = vpop.xlane.xlu0 %6565
    %v6567 = vsel %vm6551, %v6532, 0.0
    %6568 = vadd.xlane.f32.xlu0 %v6567
    %v6569 = vpop.xlane.xlu0 %6568
    %v6570 = vsel %vm6551, %v6533, 0.0
    %6571 = vadd.xlane.f32.xlu0 %v6570
    %v6572 = vpop.xlane.xlu0 %6571
    %v6573 = vsel %vm6551, %v6534, 0.0
    %6574 = vadd.xlane.f32.xlu0 %v6573
    %v6575 = vpop.xlane.xlu0 %6574
    %v6576 = vsel %vm6551, %v6535, 0.0
    %6577 = vadd.xlane.f32.xlu0 %v6576
    %v6578 = vpop.xlane.xlu0 %6577
    %v6579 = vsel %vm6551, %v6536, 0.0
    %6580 = vadd.xlane.f32.xlu0 %v6579
    %v6581 = vpop.xlane.xlu0 %6580
    %v6582 = vsel %vm6551, %v6537, 0.0
    %6583 = vadd.xlane.f32.xlu0 %v6582
    %v6584 = vpop.xlane.xlu0 %6583
    %v6585 = vsel %vm6551, %v6538, 0.0
    %6586 = vadd.xlane.f32.xlu0 %v6585
    %v6587 = vpop.xlane.xlu0 %6586
    %v6588 = vsel %vm6551, %v6539, 0.0
    %6589 = vadd.xlane.f32.xlu0 %v6588
    %v6590 = vpop.xlane.xlu0 %6589
    %v6591 = vsel %vm6551, %v6540, 0.0
    %6592 = vadd.xlane.f32.xlu0 %v6591
    %v6593 = vpop.xlane.xlu0 %6592
    %v6594 = vsel %vm6551, %v6541, 0.0
    %6595 = vadd.xlane.f32.xlu0 %v6594
    %v6596 = vpop.xlane.xlu0 %6595
    %v6597 = vsel %vm6551, %v6542, 0.0
    %6598 = vadd.xlane.f32.xlu0 %v6597
    %v6599 = vpop.xlane.xlu0 %6598
    %v6600 = vsel %vm6551, %v6543, 0.0
    %6601 = vadd.xlane.f32.xlu0 %v6600
    %v6602 = vpop.xlane.xlu0 %6601
    %v6603 = vsel %vm6551, %v6544, 0.0
    %6604 = vadd.xlane.f32.xlu0 %v6603
    %v6605 = vpop.xlane.xlu0 %6604
    %v6606 = vsel %vm6551, %v6545, 0.0
    %6607 = vadd.xlane.f32.xlu0 %v6606
    %v6608 = vpop.xlane.xlu0 %6607
    %v6609 = vsel %vm6551, %v6546, 0.0
    %6610 = vadd.xlane.f32.xlu0 %v6609
    %v6611 = vpop.xlane.xlu0 %6610
    %v6612 = vadd.f32 %v6554, %v6557
    %v6613 = vrot.slane %v6612, 4
    %v6614 = vadd.f32 %v6612, %v6613
    %v6615 = vrot.slane %v6614, 2
    %v6616 = vadd.f32 %v6614, %v6615
    %v6617 = vrot.slane %v6616, 1
    %v6618 = vadd.f32 %v6616, %v6617
    %v6619 = vadd.f32 %v6560, %v6563
    %v6620 = vrot.slane %v6619, 4
    %v6621 = vadd.f32 %v6619, %v6620
    %v6622 = vrot.slane %v6621, 2
    %v6623 = vadd.f32 %v6621, %v6622
    %v6624 = vrot.slane %v6623, 1
    %v6625 = vadd.f32 %v6623, %v6624
    %v6626 = vadd.f32 %v6566, %v6569
    %v6627 = vrot.slane %v6626, 4
    %v6628 = vadd.f32 %v6626, %v6627
    %v6629 = vrot.slane %v6628, 2
    %v6630 = vadd.f32 %v6628, %v6629
    %v6631 = vrot.slane %v6630, 1
    %v6632 = vadd.f32 %v6630, %v6631
    %v6633 = vadd.f32 %v6572, %v6575
    %v6634 = vrot.slane %v6633, 4
    %v6635 = vadd.f32 %v6633, %v6634
    %v6636 = vrot.slane %v6635, 2
    %v6637 = vadd.f32 %v6635, %v6636
    %v6638 = vrot.slane %v6637, 1
    %v6639 = vadd.f32 %v6637, %v6638
    %v6640 = vadd.f32 %v6578, %v6581
    %v6641 = vrot.slane %v6640, 4
    %v6642 = vadd.f32 %v6640, %v6641
    %v6643 = vrot.slane %v6642, 2
    %v6644 = vadd.f32 %v6642, %v6643
    %v6645 = vrot.slane %v6644, 1
    %v6646 = vadd.f32 %v6644, %v6645
    %v6647 = vadd.f32 %v6584, %v6587
    %v6648 = vrot.slane %v6647, 4
    %v6649 = vadd.f32 %v6647, %v6648
    %v6650 = vrot.slane %v6649, 2
    %v6651 = vadd.f32 %v6649, %v6650
    %v6652 = vrot.slane %v6651, 1
    %v6653 = vadd.f32 %v6651, %v6652
    %v6654 = vadd.f32 %v6590, %v6593
    %v6655 = vrot.slane %v6654, 4
    %v6656 = vadd.f32 %v6654, %v6655
    %v6657 = vrot.slane %v6656, 2
    %v6658 = vadd.f32 %v6656, %v6657
    %v6659 = vrot.slane %v6658, 1
    %v6660 = vadd.f32 %v6658, %v6659
    %v6661 = vadd.f32 %v6596, %v6599
    %v6662 = vrot.slane %v6661, 4
    %v6663 = vadd.f32 %v6661, %v6662
    %v6664 = vrot.slane %v6663, 2
    %v6665 = vadd.f32 %v6663, %v6664
    %v6666 = vrot.slane %v6665, 1
    %v6667 = vadd.f32 %v6665, %v6666
    %v6668 = vadd.f32 %v6602, %v6605
    %v6669 = vrot.slane %v6668, 4
    %v6670 = vadd.f32 %v6668, %v6669
    %v6671 = vrot.slane %v6670, 2
    %v6672 = vadd.f32 %v6670, %v6671
    %v6673 = vrot.slane %v6672, 1
    %v6674 = vadd.f32 %v6672, %v6673
    %v6675 = vadd.f32 %v6608, %v6611
    %v6676 = vrot.slane %v6675, 4
    %v6677 = vadd.f32 %v6675, %v6676
    %v6678 = vrot.slane %v6677, 2
    %v6679 = vadd.f32 %v6677, %v6678
    %v6680 = vrot.slane %v6679, 1
    %v6681 = vadd.f32 %v6679, %v6680
    %v6682 = vmul.f32 %v6618, 0.0009765625
    %v6683 = vmul.f32 %v6625, 0.0009765625
    %v6684 = vmul.f32 %v6632, 0.0009765625
    %v6685 = vmul.f32 %v6639, 0.0009765625
    %v6686 = vmul.f32 %v6646, 0.0009765625
    %v6687 = vmul.f32 %v6653, 0.0009765625
    %v6688 = vmul.f32 %v6660, 0.0009765625
    %v6689 = vmul.f32 %v6667, 0.0009765625
    %v6690 = vmul.f32 %v6674, 0.0009765625
    %v6691 = vmul.f32 %v6681, 0.0009765625
    %v6692 = vsub.f32 %v6527, %v6682
    %v6693 = vsub.f32 %v6528, %v6682
    %v6694 = vsub.f32 %v6529, %v6683
    %v6695 = vsub.f32 %v6530, %v6683
    %v6696 = vsub.f32 %v6531, %v6684
    %v6697 = vsub.f32 %v6532, %v6684
    %v6698 = vsub.f32 %v6533, %v6685
    %v6699 = vsub.f32 %v6534, %v6685
    %v6700 = vsub.f32 %v6535, %v6686
    %v6701 = vsub.f32 %v6536, %v6686
    %v6702 = vsub.f32 %v6537, %v6687
    %v6703 = vsub.f32 %v6538, %v6687
    %v6704 = vsub.f32 %v6539, %v6688
    %v6705 = vsub.f32 %v6540, %v6688
    %v6706 = vsub.f32 %v6541, %v6689
    %v6707 = vsub.f32 %v6542, %v6689
    %v6708 = vsub.f32 %v6543, %v6690
    %v6709 = vsub.f32 %v6544, %v6690
    %v6710 = vsub.f32 %v6545, %v6691
    %v6711 = vsub.f32 %v6546, %v6691
    %v6712 = vmul.f32 %v6692, %v6692
    %v6713 = vmul.f32 %v6693, %v6693
    %v6714 = vmul.f32 %v6694, %v6694
    %v6715 = vmul.f32 %v6695, %v6695
    %v6716 = vmul.f32 %v6696, %v6696
    %v6717 = vmul.f32 %v6697, %v6697
    %v6718 = vmul.f32 %v6698, %v6698
    %v6719 = vmul.f32 %v6699, %v6699
    %v6720 = vmul.f32 %v6700, %v6700
    %v6721 = vmul.f32 %v6701, %v6701
    %v6722 = vmul.f32 %v6702, %v6702
    %v6723 = vmul.f32 %v6703, %v6703
    %v6724 = vmul.f32 %v6704, %v6704
    %v6725 = vmul.f32 %v6705, %v6705
    %v6726 = vmul.f32 %v6706, %v6706
    %v6727 = vmul.f32 %v6707, %v6707
    %v6728 = vmul.f32 %v6708, %v6708
    %v6729 = vmul.f32 %v6709, %v6709
    %v6730 = vmul.f32 %v6710, %v6710
    %v6731 = vmul.f32 %v6711, %v6711
    %v6732 = vsel %vm6551, %v6712, 0.0
    %6733 = vadd.xlane.f32.xlu0 %v6732
    %v6734 = vpop.xlane.xlu0 %6733
    %v6735 = vsel %vm6551, %v6713, 0.0
    %6736 = vadd.xlane.f32.xlu0 %v6735
    %v6737 = vpop.xlane.xlu0 %6736
    %v6738 = vsel %vm6551, %v6714, 0.0
    %6739 = vadd.xlane.f32.xlu0 %v6738
    %v6740 = vpop.xlane.xlu0 %6739
    %v6741 = vsel %vm6551, %v6715, 0.0
    %6742 = vadd.xlane.f32.xlu0 %v6741
    %v6743 = vpop.xlane.xlu0 %6742
    %v6744 = vsel %vm6551, %v6716, 0.0
    %6745 = vadd.xlane.f32.xlu0 %v6744
    %v6746 = vpop.xlane.xlu0 %6745
    %v6747 = vsel %vm6551, %v6717, 0.0
    %6748 = vadd.xlane.f32.xlu0 %v6747
    %v6749 = vpop.xlane.xlu0 %6748
    %v6750 = vsel %vm6551, %v6718, 0.0
    %6751 = vadd.xlane.f32.xlu0 %v6750
    %v6752 = vpop.xlane.xlu0 %6751
    %v6753 = vsel %vm6551, %v6719, 0.0
    %6754 = vadd.xlane.f32.xlu0 %v6753
    %v6755 = vpop.xlane.xlu0 %6754
    %v6756 = vsel %vm6551, %v6720, 0.0
    %6757 = vadd.xlane.f32.xlu0 %v6756
    %v6758 = vpop.xlane.xlu0 %6757
    %v6759 = vsel %vm6551, %v6721, 0.0
    %6760 = vadd.xlane.f32.xlu0 %v6759
    %v6761 = vpop.xlane.xlu0 %6760
    %v6762 = vsel %vm6551, %v6722, 0.0
    %6763 = vadd.xlane.f32.xlu0 %v6762
    %v6764 = vpop.xlane.xlu0 %6763
    %v6765 = vsel %vm6551, %v6723, 0.0
    %6766 = vadd.xlane.f32.xlu0 %v6765
    %v6767 = vpop.xlane.xlu0 %6766
    %v6768 = vsel %vm6551, %v6724, 0.0
    %6769 = vadd.xlane.f32.xlu0 %v6768
    %v6770 = vpop.xlane.xlu0 %6769
    %v6771 = vsel %vm6551, %v6725, 0.0
    %6772 = vadd.xlane.f32.xlu0 %v6771
    %v6773 = vpop.xlane.xlu0 %6772
    %v6774 = vsel %vm6551, %v6726, 0.0
    %6775 = vadd.xlane.f32.xlu0 %v6774
    %v6776 = vpop.xlane.xlu0 %6775
    %v6777 = vsel %vm6551, %v6727, 0.0
    %6778 = vadd.xlane.f32.xlu0 %v6777
    %v6779 = vpop.xlane.xlu0 %6778
    %v6780 = vsel %vm6551, %v6728, 0.0
    %6781 = vadd.xlane.f32.xlu0 %v6780
    %v6782 = vpop.xlane.xlu0 %6781
    %v6783 = vsel %vm6551, %v6729, 0.0
    %6784 = vadd.xlane.f32.xlu0 %v6783
    %v6785 = vpop.xlane.xlu0 %6784
    %v6786 = vsel %vm6551, %v6730, 0.0
    %6787 = vadd.xlane.f32.xlu0 %v6786
    %v6788 = vpop.xlane.xlu0 %6787
    %v6789 = vsel %vm6551, %v6731, 0.0
    %6790 = vadd.xlane.f32.xlu0 %v6789
    %v6791 = vpop.xlane.xlu0 %6790
    %v6792 = vadd.f32 %v6734, %v6737
    %v6793 = vrot.slane %v6792, 4
    %v6794 = vadd.f32 %v6792, %v6793
    %v6795 = vrot.slane %v6794, 2
    %v6796 = vadd.f32 %v6794, %v6795
    %v6797 = vrot.slane %v6796, 1
    %v6798 = vadd.f32 %v6796, %v6797
    %v6799 = vadd.f32 %v6740, %v6743
    %v6800 = vrot.slane %v6799, 4
    %v6801 = vadd.f32 %v6799, %v6800
    %v6802 = vrot.slane %v6801, 2
    %v6803 = vadd.f32 %v6801, %v6802
    %v6804 = vrot.slane %v6803, 1
    %v6805 = vadd.f32 %v6803, %v6804
    %v6806 = vadd.f32 %v6746, %v6749
    %v6807 = vrot.slane %v6806, 4
    %v6808 = vadd.f32 %v6806, %v6807
    %v6809 = vrot.slane %v6808, 2
    %v6810 = vadd.f32 %v6808, %v6809
    %v6811 = vrot.slane %v6810, 1
    %v6812 = vadd.f32 %v6810, %v6811
    %v6813 = vadd.f32 %v6752, %v6755
    %v6814 = vrot.slane %v6813, 4
    %v6815 = vadd.f32 %v6813, %v6814
    %v6816 = vrot.slane %v6815, 2
    %v6817 = vadd.f32 %v6815, %v6816
    %v6818 = vrot.slane %v6817, 1
    %v6819 = vadd.f32 %v6817, %v6818
    %v6820 = vadd.f32 %v6758, %v6761
    %v6821 = vrot.slane %v6820, 4
    %v6822 = vadd.f32 %v6820, %v6821
    %v6823 = vrot.slane %v6822, 2
    %v6824 = vadd.f32 %v6822, %v6823
    %v6825 = vrot.slane %v6824, 1
    %v6826 = vadd.f32 %v6824, %v6825
    %v6827 = vadd.f32 %v6764, %v6767
    %v6828 = vrot.slane %v6827, 4
    %v6829 = vadd.f32 %v6827, %v6828
    %v6830 = vrot.slane %v6829, 2
    %v6831 = vadd.f32 %v6829, %v6830
    %v6832 = vrot.slane %v6831, 1
    %v6833 = vadd.f32 %v6831, %v6832
    %v6834 = vadd.f32 %v6770, %v6773
    %v6835 = vrot.slane %v6834, 4
    %v6836 = vadd.f32 %v6834, %v6835
    %v6837 = vrot.slane %v6836, 2
    %v6838 = vadd.f32 %v6836, %v6837
    %v6839 = vrot.slane %v6838, 1
    %v6840 = vadd.f32 %v6838, %v6839
    %v6841 = vadd.f32 %v6776, %v6779
    %v6842 = vrot.slane %v6841, 4
    %v6843 = vadd.f32 %v6841, %v6842
    %v6844 = vrot.slane %v6843, 2
    %v6845 = vadd.f32 %v6843, %v6844
    %v6846 = vrot.slane %v6845, 1
    %v6847 = vadd.f32 %v6845, %v6846
    %v6848 = vadd.f32 %v6782, %v6785
    %v6849 = vrot.slane %v6848, 4
    %v6850 = vadd.f32 %v6848, %v6849
    %v6851 = vrot.slane %v6850, 2
    %v6852 = vadd.f32 %v6850, %v6851
    %v6853 = vrot.slane %v6852, 1
    %v6854 = vadd.f32 %v6852, %v6853
    %v6855 = vadd.f32 %v6788, %v6791
    %v6856 = vrot.slane %v6855, 4
    %v6857 = vadd.f32 %v6855, %v6856
    %v6858 = vrot.slane %v6857, 2
    %v6859 = vadd.f32 %v6857, %v6858
    %v6860 = vrot.slane %v6859, 1
    %v6861 = vadd.f32 %v6859, %v6860
    %v6862 = vmul.f32 %v6798, 0.0009765625
    %v6863 = vmul.f32 %v6805, 0.0009765625
    %v6864 = vmul.f32 %v6812, 0.0009765625
    %v6865 = vmul.f32 %v6819, 0.0009765625
    %v6866 = vmul.f32 %v6826, 0.0009765625
    %v6867 = vmul.f32 %v6833, 0.0009765625
    %v6868 = vmul.f32 %v6840, 0.0009765625
    %v6869 = vmul.f32 %v6847, 0.0009765625
    %v6870 = vmul.f32 %v6854, 0.0009765625
    %v6871 = vmul.f32 %v6861, 0.0009765625
    %v6872 = vadd.f32 %v6862, 1e-05
    %v6873 = vadd.f32 %v6863, 1e-05
    %v6874 = vadd.f32 %v6864, 1e-05
    %v6875 = vadd.f32 %v6865, 1e-05
    %v6876 = vadd.f32 %v6866, 1e-05
    %v6877 = vadd.f32 %v6867, 1e-05
    %v6878 = vadd.f32 %v6868, 1e-05
    %v6879 = vadd.f32 %v6869, 1e-05
    %v6880 = vadd.f32 %v6870, 1e-05
    %v6881 = vadd.f32 %v6871, 1e-05
    %v6882 = vrsqrt.pop %v6872
    %v6883 = vrsqrt.pop %v6873
    %v6884 = vrsqrt.pop %v6874
    %v6885 = vrsqrt.pop %v6875
    %v6886 = vrsqrt.pop %v6876
    %v6887 = vrsqrt.pop %v6877
    %v6888 = vrsqrt.pop %v6878
    %v6889 = vrsqrt.pop %v6879
    %v6890 = vrsqrt.pop %v6880
    %v6891 = vrsqrt.pop %v6881
    %v6892 = vmul.f32 %v6692, %v6882
    %v6893 = vmul.f32 %v6693, %v6882
    %v6894 = vmul.f32 %v6694, %v6883
    %v6895 = vmul.f32 %v6695, %v6883
    %v6896 = vmul.f32 %v6696, %v6884
    %v6897 = vmul.f32 %v6697, %v6884
    %v6898 = vmul.f32 %v6698, %v6885
    %v6899 = vmul.f32 %v6699, %v6885
    %v6900 = vmul.f32 %v6700, %v6886
    %v6901 = vmul.f32 %v6701, %v6886
    %v6902 = vmul.f32 %v6702, %v6887
    %v6903 = vmul.f32 %v6703, %v6887
    %v6904 = vmul.f32 %v6704, %v6888
    %v6905 = vmul.f32 %v6705, %v6888
    %v6906 = vmul.f32 %v6706, %v6889
    %v6907 = vmul.f32 %v6707, %v6889
    %v6908 = vmul.f32 %v6708, %v6890
    %v6909 = vmul.f32 %v6709, %v6890
    %v6910 = vmul.f32 %v6710, %v6891
    %v6911 = vmul.f32 %v6711, %v6891
    %v6912 = vmul.f32 %v6892, %v6547
    %v6913 = vmul.f32 %v6893, %v6548
    %v6914 = vmul.f32 %v6894, %v6547
    %v6915 = vmul.f32 %v6895, %v6548
    %v6916 = vmul.f32 %v6896, %v6547
    %v6917 = vmul.f32 %v6897, %v6548
    %v6918 = vmul.f32 %v6898, %v6547
    %v6919 = vmul.f32 %v6899, %v6548
    %v6920 = vmul.f32 %v6900, %v6547
    %v6921 = vmul.f32 %v6901, %v6548
    %v6922 = vmul.f32 %v6902, %v6547
    %v6923 = vmul.f32 %v6903, %v6548
    %v6924 = vmul.f32 %v6904, %v6547
    %v6925 = vmul.f32 %v6905, %v6548
    %v6926 = vmul.f32 %v6906, %v6547
    %v6927 = vmul.f32 %v6907, %v6548
    %v6928 = vmul.f32 %v6908, %v6547
    %v6929 = vmul.f32 %v6909, %v6548
    %v6930 = vmul.f32 %v6910, %v6547
    %v6931 = vmul.f32 %v6911, %v6548
    %v6932 = vadd.f32 %v6912, %v6549
    %v6933 = vadd.f32 %v6913, %v6550
    %v6934 = vadd.f32 %v6914, %v6549
    %v6935 = vadd.f32 %v6915, %v6550
    %v6936 = vadd.f32 %v6916, %v6549
    %v6937 = vadd.f32 %v6917, %v6550
    %v6938 = vadd.f32 %v6918, %v6549
    %v6939 = vadd.f32 %v6919, %v6550
    %v6940 = vadd.f32 %v6920, %v6549
    %v6941 = vadd.f32 %v6921, %v6550
    %v6942 = vadd.f32 %v6922, %v6549
    %v6943 = vadd.f32 %v6923, %v6550
    %v6944 = vadd.f32 %v6924, %v6549
    %v6945 = vadd.f32 %v6925, %v6550
    %v6946 = vadd.f32 %v6926, %v6549
    %v6947 = vadd.f32 %v6927, %v6550
    %v6948 = vadd.f32 %v6928, %v6549
    %v6949 = vadd.f32 %v6929, %v6550
    %v6950 = vadd.f32 %v6930, %v6549
    %v6951 = vadd.f32 %v6931, %v6550
    %v6952 = vld [vmem:[#allocation2 + $0x188] sm:$0xff]
    %v6953 = vld [vmem:[#allocation2 + $0x190] sm:$0xff]
    %v6954 = vld [vmem:[#allocation2 + $0x198] sm:$0xff]
    %v6955 = vld [vmem:[#allocation2 + $0x1a0] sm:$0xff]
    %v6956 = vld [vmem:[#allocation2 + $0x1a8] sm:$0xff]
    %v6957 = vld [vmem:[#allocation2 + $0x1b0] sm:$0xff]
    %v6958 = vld [vmem:[#allocation2 + $0x1b8] sm:$0xff]
    %v6959 = vld [vmem:[#allocation2 + $0x1c0] sm:$0xff]
    %v6960 = vld [vmem:[#allocation2 + $0x1c8] sm:$0xff]
    %v6961 = vld [vmem:[#allocation2 + $0x1d0] sm:$0xff]
    %v6962 = vld [vmem:[#allocation2 + $0x1d8] sm:$0xff]
    %v6963 = vld [vmem:[#allocation2 + $0x1e0] sm:$0xff]
    %v6964 = vld [vmem:[#allocation2 + $0x1e8] sm:$0xff]
    %v6965 = vld [vmem:[#allocation2 + $0x1f0] sm:$0xff]
    %v6966 = vld [vmem:[#allocation2 + $0x1f8] sm:$0xff]
    %v6967 = vld [vmem:[#allocation2 + $0x200] sm:$0xff]
    %v6968 = vld [vmem:[#allocation2 + $0x208] sm:$0xff]
    %v6969 = vld [vmem:[#allocation2 + $0x210] sm:$0xff]
    %v6970 = vld [vmem:[#allocation2 + $0x218] sm:$0xff]
    %v6971 = vld [vmem:[#allocation2 + $0x220] sm:$0xff]
    %v6972 = vld [vmem:[#allocation2 + $0x228] sm:$0xff]
    %v6973 = vld [vmem:[#allocation2 + $0x230] sm:$0xff]
    %v6974 = vld [vmem:[#allocation2 + $0x238] sm:$0xff]
    %v6975 = vld [vmem:[#allocation2 + $0x240] sm:$0xff]
    %v6976 = vld [vmem:[#allocation2 + $0x248] sm:$0xff]
    %v6977 = vld [vmem:[#allocation2 + $0x250] sm:$0xff]
    %v6978 = vld [vmem:[#allocation2 + $0x258] sm:$0xff]
    %v6979 = vld [vmem:[#allocation2 + $0x260] sm:$0xff]
    %v6980 = vld [vmem:[#allocation2 + $0x268] sm:$0xff]
    %v6981 = vld [vmem:[#allocation2 + $0x270] sm:$0xff]
    %v6982 = vld [vmem:[#allocation2 + $0x278] sm:$0xff]
    %v6983 = vld [vmem:[#allocation2 + $0x280] sm:$0xff]
    %v6984 = vld [vmem:[#allocation2 + $0x288] sm:$0xff]
    %v6985 = vld [vmem:[#allocation2 + $0x290] sm:$0xff]
    %v6986 = vld [vmem:[#allocation2 + $0x298] sm:$0xff]
    %v6987 = vld [vmem:[#allocation2 + $0x2a0] sm:$0xff]
    %v6988 = vld [vmem:[#allocation2 + $0x2a8] sm:$0xff]
    %v6989 = vld [vmem:[#allocation2 + $0x2b0] sm:$0xff]
    %v6990 = vld [vmem:[#allocation2 + $0x2b8] sm:$0xff]
    %v6991 = vld [vmem:[#allocation2 + $0x2c0] sm:$0xff]
    %v6992 = vld [vmem:[#allocation2 + $0x2c8] sm:$0xff]
    %v6993 = vld [vmem:[#allocation2 + $0x2d0] sm:$0xff]
    %v6994 = vld [vmem:[#allocation2 + $0x2d8] sm:$0xff]
    %v6995 = vld [vmem:[#allocation2 + $0x2e0] sm:$0xff]
    %v6996 = vld [vmem:[#allocation2 + $0x2e8] sm:$0xff]
    %v6997 = vld [vmem:[#allocation2 + $0x2f0] sm:$0xff]
    %v6998 = vld [vmem:[#allocation2 + $0x2f8] sm:$0xff]
    %v6999 = vld [vmem:[#allocation2 + $0x300] sm:$0xff]
    %v7000 = vld [vmem:[#allocation2 + $0x308] sm:$0xff]
    %v7001 = vld [vmem:[#allocation2 + $0x310] sm:$0xff]
    %v7002 = vld [vmem:[#allocation2 + $0x318] sm:$0xff]
    %v7003 = vld [vmem:[#allocation2 + $0x320] sm:$0xff]
    %v7004 = vld [vmem:[#allocation2 + $0x328] sm:$0xff]
    %v7005 = vld [vmem:[#allocation2 + $0x330] sm:$0xff]
    %v7006 = vld [vmem:[#allocation2 + $0x338] sm:$0xff]
    %v7007 = vld [vmem:[#allocation2 + $0x340] sm:$0xff]
    %v7008 = vld [vmem:[#allocation2 + $0x348] sm:$0xff]
    %v7009 = vld [vmem:[#allocation2 + $0x350] sm:$0xff]
    %v7010 = vld [vmem:[#allocation2 + $0x358] sm:$0xff]
    %v7011 = vld [vmem:[#allocation2 + $0x360] sm:$0xff]
    %v7012 = vld [vmem:[#allocation2 + $0x368] sm:$0xff]
    %v7013 = vld [vmem:[#allocation2 + $0x370] sm:$0xff]
    %v7014 = vld [vmem:[#allocation2 + $0x378] sm:$0xff]
    %v7015 = vld [vmem:[#allocation2 + $0x380] sm:$0xff]
    %v7016 = vld [vmem:[#allocation2 + $0x388] sm:$0xff]
    %v7017 = vld [vmem:[#allocation2 + $0x390] sm:$0xff]
    %v7018 = vld [vmem:[#allocation2 + $0x398] sm:$0xff]
    %v7019 = vld [vmem:[#allocation2 + $0x3a0] sm:$0xff]
    %v7020 = vld [vmem:[#allocation2 + $0x3a8] sm:$0xff]
    %v7021 = vld [vmem:[#allocation2 + $0x3b0] sm:$0xff]
    %v7022 = vld [vmem:[#allocation2 + $0x3b8] sm:$0xff]
    %v7023 = vld [vmem:[#allocation2 + $0x3c0] sm:$0xff]
    %v7024 = vld [vmem:[#allocation2 + $0x3c8] sm:$0xff]
    %v7025 = vld [vmem:[#allocation2 + $0x3d0] sm:$0xff]
    %v7026 = vld [vmem:[#allocation2 + $0x3d8] sm:$0xff]
    %v7027 = vld [vmem:[#allocation2 + $0x3e0] sm:$0xff]
    %v7028 = vld [vmem:[#allocation2 + $0x3e8] sm:$0xff]
    %v7029 = vld [vmem:[#allocation2 + $0x3f0] sm:$0xff]
    %v7030 = vld [vmem:[#allocation2 + $0x3f8] sm:$0xff]
    %v7031 = vld [vmem:[#allocation2 + $0x400] sm:$0xff]
    %v7032 = vld [vmem:[#allocation2 + $0x408] sm:$0xff]
    %v7033 = vld [vmem:[#allocation2 + $0x410] sm:$0xff]
    %v7034 = vld [vmem:[#allocation2 + $0x418] sm:$0xff]
    %v7035 = vld [vmem:[#allocation2 + $0x420] sm:$0xff]
    %v7036 = vld [vmem:[#allocation2 + $0x428] sm:$0xff]
    %v7037 = vld [vmem:[#allocation2 + $0x430] sm:$0xff]
    %v7038 = vld [vmem:[#allocation2 + $0x438] sm:$0xff]
    %v7039 = vld [vmem:[#allocation2 + $0x440] sm:$0xff]
    %v7040 = vld [vmem:[#allocation2 + $0x448] sm:$0x1]
    %7041 = vxpose.xlu0.b32.start [1/16] %v6932, 128
    %7042 = vxpose.xlu0.b32.cont [2/16] %v6933, 128
    %7043 = vxpose.xlu0.b32.cont [3/16] 0.0, 128
    %7044 = vxpose.xlu0.b32.cont [4/16] 0.0, 128
    %7045 = vxpose.xlu0.b32.cont [5/16] 0.0, 128
    %7046 = vxpose.xlu0.b32.cont [6/16] 0.0, 128
    %7047 = vxpose.xlu0.b32.cont [7/16] 0.0, 128
    %7048 = vxpose.xlu0.b32.cont [8/16] 0.0, 128
    %7049 = vxpose.xlu0.b32.cont [9/16] 0.0, 128
    %7050 = vxpose.xlu0.b32.cont [10/16] 0.0, 128
    %7051 = vxpose.xlu0.b32.cont [11/16] 0.0, 128
    %7052 = vxpose.xlu0.b32.cont [12/16] 0.0, 128
    %7053 = vxpose.xlu0.b32.cont [13/16] 0.0, 128
    %7054 = vxpose.xlu0.b32.cont [14/16] 0.0, 128
    %7055 = vxpose.xlu0.b32.cont [15/16] 0.0, 128
    %7056 = vxpose.xlu0.b32.end [16/16] 0.0, 128
    %v7057 = vpop.trf.xlu0
    %v7058 = vpop.trf.xlu0
    %v7059 = vpop.trf.xlu0
    %v7060 = vpop.trf.xlu0
    %v7061 = vpop.trf.xlu0
    %v7062 = vpop.trf.xlu0
    %v7063 = vpop.trf.xlu0
    %v7064 = vpop.trf.xlu0
    %v7065 = vpop.trf.xlu0
    %v7066 = vpop.trf.xlu0
    %v7067 = vpop.trf.xlu0
    %v7068 = vpop.trf.xlu0
    %v7069 = vpop.trf.xlu0
    %v7070 = vpop.trf.xlu0
    %v7071 = vpop.trf.xlu0
    %v7072 = vpop.trf.xlu0
    %7073 = vxpose.xlu0.b32.start [1/16] %v6934, 128
    %7074 = vxpose.xlu0.b32.cont [2/16] %v6935, 128
    %7075 = vxpose.xlu0.b32.cont [3/16] 0.0, 128
    %7076 = vxpose.xlu0.b32.cont [4/16] 0.0, 128
    %7077 = vxpose.xlu0.b32.cont [5/16] 0.0, 128
    %7078 = vxpose.xlu0.b32.cont [6/16] 0.0, 128
    %7079 = vxpose.xlu0.b32.cont [7/16] 0.0, 128
    %7080 = vxpose.xlu0.b32.cont [8/16] 0.0, 128
    %7081 = vxpose.xlu0.b32.cont [9/16] 0.0, 128
    %7082 = vxpose.xlu0.b32.cont [10/16] 0.0, 128
    %7083 = vxpose.xlu0.b32.cont [11/16] 0.0, 128
    %7084 = vxpose.xlu0.b32.cont [12/16] 0.0, 128
    %7085 = vxpose.xlu0.b32.cont [13/16] 0.0, 128
    %7086 = vxpose.xlu0.b32.cont [14/16] 0.0, 128
    %7087 = vxpose.xlu0.b32.cont [15/16] 0.0, 128
    %7088 = vxpose.xlu0.b32.end [16/16] 0.0, 128
    %v7089 = vpop.trf.xlu0
    %v7090 = vpop.trf.xlu0
    %v7091 = vpop.trf.xlu0
    %v7092 = vpop.trf.xlu0
    %v7093 = vpop.trf.xlu0
    %v7094 = vpop.trf.xlu0
    %v7095 = vpop.trf.xlu0
    %v7096 = vpop.trf.xlu0
    %v7097 = vpop.trf.xlu0
    %v7098 = vpop.trf.xlu0
    %v7099 = vpop.trf.xlu0
    %v7100 = vpop.trf.xlu0
    %v7101 = vpop.trf.xlu0
    %v7102 = vpop.trf.xlu0
    %v7103 = vpop.trf.xlu0
    %v7104 = vpop.trf.xlu0
    %7105 = vxpose.xlu0.b32.start [1/16] %v6936, 128
    %7106 = vxpose.xlu0.b32.cont [2/16] %v6937, 128
    %7107 = vxpose.xlu0.b32.cont [3/16] 0.0, 128
    %7108 = vxpose.xlu0.b32.cont [4/16] 0.0, 128
    %7109 = vxpose.xlu0.b32.cont [5/16] 0.0, 128
    %7110 = vxpose.xlu0.b32.cont [6/16] 0.0, 128
    %7111 = vxpose.xlu0.b32.cont [7/16] 0.0, 128
    %7112 = vxpose.xlu0.b32.cont [8/16] 0.0, 128
    %7113 = vxpose.xlu0.b32.cont [9/16] 0.0, 128
    %7114 = vxpose.xlu0.b32.cont [10/16] 0.0, 128
    %7115 = vxpose.xlu0.b32.cont [11/16] 0.0, 128
    %7116 = vxpose.xlu0.b32.cont [12/16] 0.0, 128
    %7117 = vxpose.xlu0.b32.cont [13/16] 0.0, 128
    %7118 = vxpose.xlu0.b32.cont [14/16] 0.0, 128
    %7119 = vxpose.xlu0.b32.cont [15/16] 0.0, 128
    %7120 = vxpose.xlu0.b32.end [16/16] 0.0, 128
    %v7121 = vpop.trf.xlu0
    %v7122 = vpop.trf.xlu0
    %v7123 = vpop.trf.xlu0
    %v7124 = vpop.trf.xlu0
    %v7125 = vpop.trf.xlu0
    %v7126 = vpop.trf.xlu0
    %v7127 = vpop.trf.xlu0
    %v7128 = vpop.trf.xlu0
    %v7129 = vpop.trf.xlu0
    %v7130 = vpop.trf.xlu0
    %v7131 = vpop.trf.xlu0
    %v7132 = vpop.trf.xlu0
    %v7133 = vpop.trf.xlu0
    %v7134 = vpop.trf.xlu0
    %v7135 = vpop.trf.xlu0
    %v7136 = vpop.trf.xlu0
    %7137 = vxpose.xlu0.b32.start [1/16] %v6938, 128
    %7138 = vxpose.xlu0.b32.cont [2/16] %v6939, 128
    %7139 = vxpose.xlu0.b32.cont [3/16] 0.0, 128
    %7140 = vxpose.xlu0.b32.cont [4/16] 0.0, 128
    %7141 = vxpose.xlu0.b32.cont [5/16] 0.0, 128
    %7142 = vxpose.xlu0.b32.cont [6/16] 0.0, 128
    %7143 = vxpose.xlu0.b32.cont [7/16] 0.0, 128
    %7144 = vxpose.xlu0.b32.cont [8/16] 0.0, 128
    %7145 = vxpose.xlu0.b32.cont [9/16] 0.0, 128
    %7146 = vxpose.xlu0.b32.cont [10/16] 0.0, 128
    %7147 = vxpose.xlu0.b32.cont [11/16] 0.0, 128
    %7148 = vxpose.xlu0.b32.cont [12/16] 0.0, 128
    %7149 = vxpose.xlu0.b32.cont [13/16] 0.0, 128
    %7150 = vxpose.xlu0.b32.cont [14/16] 0.0, 128
    %7151 = vxpose.xlu0.b32.cont [15/16] 0.0, 128
    %7152 = vxpose.xlu0.b32.end [16/16] 0.0, 128
    %v7153 = vpop.trf.xlu0
    %v7154 = vpop.trf.xlu0
    %v7155 = vpop.trf.xlu0
    %v7156 = vpop.trf.xlu0
    %v7157 = vpop.trf.xlu0
    %v7158 = vpop.trf.xlu0
    %v7159 = vpop.trf.xlu0
    %v7160 = vpop.trf.xlu0
    %v7161 = vpop.trf.xlu0
    %v7162 = vpop.trf.xlu0
    %v7163 = vpop.trf.xlu0
    %v7164 = vpop.trf.xlu0
    %v7165 = vpop.trf.xlu0
    %v7166 = vpop.trf.xlu0
    %v7167 = vpop.trf.xlu0
    %v7168 = vpop.trf.xlu0
    %7169 = vxpose.xlu0.b32.start [1/16] %v6940, 128
    %7170 = vxpose.xlu0.b32.cont [2/16] %v6941, 128
    %7171 = vxpose.xlu0.b32.cont [3/16] 0.0, 128
    %7172 = vxpose.xlu0.b32.cont [4/16] 0.0, 128
    %7173 = vxpose.xlu0.b32.cont [5/16] 0.0, 128
    %7174 = vxpose.xlu0.b32.cont [6/16] 0.0, 128
    %7175 = vxpose.xlu0.b32.cont [7/16] 0.0, 128
    %7176 = vxpose.xlu0.b32.cont [8/16] 0.0, 128
    %7177 = vxpose.xlu0.b32.cont [9/16] 0.0, 128
    %7178 = vxpose.xlu0.b32.cont [10/16] 0.0, 128
    %7179 = vxpose.xlu0.b32.cont [11/16] 0.0, 128
    %7180 = vxpose.xlu0.b32.cont [12/16] 0.0, 128
    %7181 = vxpose.xlu0.b32.cont [13/16] 0.0, 128
    %7182 = vxpose.xlu0.b32.cont [14/16] 0.0, 128
    %7183 = vxpose.xlu0.b32.cont [15/16] 0.0, 128
    %7184 = vxpose.xlu0.b32.end [16/16] 0.0, 128
    %v7185 = vpop.trf.xlu0
    %v7186 = vpop.trf.xlu0
    %v7187 = vpop.trf.xlu0
    %v7188 = vpop.trf.xlu0
    %v7189 = vpop.trf.xlu0
    %v7190 = vpop.trf.xlu0
    %v7191 = vpop.trf.xlu0
    %v7192 = vpop.trf.xlu0
    %v7193 = vpop.trf.xlu0
    %v7194 = vpop.trf.xlu0
    %v7195 = vpop.trf.xlu0
    %v7196 = vpop.trf.xlu0
    %v7197 = vpop.trf.xlu0
    %v7198 = vpop.trf.xlu0
    %v7199 = vpop.trf.xlu0
    %v7200 = vpop.trf.xlu0
    %7201 = vxpose.xlu0.b32.start [1/16] %v6942, 128
    %7202 = vxpose.xlu0.b32.cont [2/16] %v6943, 128
    %7203 = vxpose.xlu0.b32.cont [3/16] 0.0, 128
    %7204 = vxpose.xlu0.b32.cont [4/16] 0.0, 128
    %7205 = vxpose.xlu0.b32.cont [5/16] 0.0, 128
    %7206 = vxpose.xlu0.b32.cont [6/16] 0.0, 128
    %7207 = vxpose.xlu0.b32.cont [7/16] 0.0, 128
    %7208 = vxpose.xlu0.b32.cont [8/16] 0.0, 128
    %7209 = vxpose.xlu0.b32.cont [9/16] 0.0, 128
    %7210 = vxpose.xlu0.b32.cont [10/16] 0.0, 128
    %7211 = vxpose.xlu0.b32.cont [11/16] 0.0, 128
    %7212 = vxpose.xlu0.b32.cont [12/16] 0.0, 128
    %7213 = vxpose.xlu0.b32.cont [13/16] 0.0, 128
    %7214 = vxpose.xlu0.b32.cont [14/16] 0.0, 128
    %7215 = vxpose.xlu0.b32.cont [15/16] 0.0, 128
    %7216 = vxpose.xlu0.b32.end [16/16] 0.0, 128
    %v7217 = vpop.trf.xlu0
    %v7218 = vpop.trf.xlu0
    %v7219 = vpop.trf.xlu0
    %v7220 = vpop.trf.xlu0
    %v7221 = vpop.trf.xlu0
    %v7222 = vpop.trf.xlu0
    %v7223 = vpop.trf.xlu0
    %v7224 = vpop.trf.xlu0
    %v7225 = vpop.trf.xlu0
    %v7226 = vpop.trf.xlu0
    %v7227 = vpop.trf.xlu0
    %v7228 = vpop.trf.xlu0
    %v7229 = vpop.trf.xlu0
    %v7230 = vpop.trf.xlu0
    %v7231 = vpop.trf.xlu0
    %v7232 = vpop.trf.xlu0
    %7233 = vxpose.xlu0.b32.start [1/16] %v6944, 128
    %7234 = vxpose.xlu0.b32.cont [2/16] %v6945, 128
    %7235 = vxpose.xlu0.b32.cont [3/16] 0.0, 128
    %7236 = vxpose.xlu0.b32.cont [4/16] 0.0, 128
    %7237 = vxpose.xlu0.b32.cont [5/16] 0.0, 128
    %7238 = vxpose.xlu0.b32.cont [6/16] 0.0, 128
    %7239 = vxpose.xlu0.b32.cont [7/16] 0.0, 128
    %7240 = vxpose.xlu0.b32.cont [8/16] 0.0, 128
    %7241 = vxpose.xlu0.b32.cont [9/16] 0.0, 128
    %7242 = vxpose.xlu0.b32.cont [10/16] 0.0, 128
    %7243 = vxpose.xlu0.b32.cont [11/16] 0.0, 128
    %7244 = vxpose.xlu0.b32.cont [12/16] 0.0, 128
    %7245 = vxpose.xlu0.b32.cont [13/16] 0.0, 128
    %7246 = vxpose.xlu0.b32.cont [14/16] 0.0, 128
    %7247 = vxpose.xlu0.b32.cont [15/16] 0.0, 128
    %7248 = vxpose.xlu0.b32.end [16/16] 0.0, 128
    %v7249 = vpop.trf.xlu0
    %v7250 = vpop.trf.xlu0
    %v7251 = vpop.trf.xlu0
    %v7252 = vpop.trf.xlu0
    %v7253 = vpop.trf.xlu0
    %v7254 = vpop.trf.xlu0
    %v7255 = vpop.trf.xlu0
    %v7256 = vpop.trf.xlu0
    %v7257 = vpop.trf.xlu0
    %v7258 = vpop.trf.xlu0
    %v7259 = vpop.trf.xlu0
    %v7260 = vpop.trf.xlu0
    %v7261 = vpop.trf.xlu0
    %v7262 = vpop.trf.xlu0
    %v7263 = vpop.trf.xlu0
    %v7264 = vpop.trf.xlu0
    %7265 = vxpose.xlu0.b32.start [1/16] %v6946, 128
    %7266 = vxpose.xlu0.b32.cont [2/16] %v6947, 128
    %7267 = vxpose.xlu0.b32.cont [3/16] 0.0, 128
    %7268 = vxpose.xlu0.b32.cont [4/16] 0.0, 128
    %7269 = vxpose.xlu0.b32.cont [5/16] 0.0, 128
    %7270 = vxpose.xlu0.b32.cont [6/16] 0.0, 128
    %7271 = vxpose.xlu0.b32.cont [7/16] 0.0, 128
    %7272 = vxpose.xlu0.b32.cont [8/16] 0.0, 128
    %7273 = vxpose.xlu0.b32.cont [9/16] 0.0, 128
    %7274 = vxpose.xlu0.b32.cont [10/16] 0.0, 128
    %7275 = vxpose.xlu0.b32.cont [11/16] 0.0, 128
    %7276 = vxpose.xlu0.b32.cont [12/16] 0.0, 128
    %7277 = vxpose.xlu0.b32.cont [13/16] 0.0, 128
    %7278 = vxpose.xlu0.b32.cont [14/16] 0.0, 128
    %7279 = vxpose.xlu0.b32.cont [15/16] 0.0, 128
    %7280 = vxpose.xlu0.b32.end [16/16] 0.0, 128
    %v7281 = vpop.trf.xlu0
    %v7282 = vpop.trf.xlu0
    %v7283 = vpop.trf.xlu0
    %v7284 = vpop.trf.xlu0
    %v7285 = vpop.trf.xlu0
    %v7286 = vpop.trf.xlu0
    %v7287 = vpop.trf.xlu0
    %v7288 = vpop.trf.xlu0
    %v7289 = vpop.trf.xlu0
    %v7290 = vpop.trf.xlu0
    %v7291 = vpop.trf.xlu0
    %v7292 = vpop.trf.xlu0
    %v7293 = vpop.trf.xlu0
    %v7294 = vpop.trf.xlu0
    %v7295 = vpop.trf.xlu0
    %v7296 = vpop.trf.xlu0
    %7297 = vxpose.xlu0.b32.start [1/16] %v6948, 128
    %7298 = vxpose.xlu0.b32.cont [2/16] %v6949, 128
    %7299 = vxpose.xlu0.b32.cont [3/16] 0.0, 128
    %7300 = vxpose.xlu0.b32.cont [4/16] 0.0, 128
    %7301 = vxpose.xlu0.b32.cont [5/16] 0.0, 128
    %7302 = vxpose.xlu0.b32.cont [6/16] 0.0, 128
    %7303 = vxpose.xlu0.b32.cont [7/16] 0.0, 128
    %7304 = vxpose.xlu0.b32.cont [8/16] 0.0, 128
    %7305 = vxpose.xlu0.b32.cont [9/16] 0.0, 128
    %7306 = vxpose.xlu0.b32.cont [10/16] 0.0, 128
    %7307 = vxpose.xlu0.b32.cont [11/16] 0.0, 128
    %7308 = vxpose.xlu0.b32.cont [12/16] 0.0, 128
    %7309 = vxpose.xlu0.b32.cont [13/16] 0.0, 128
    %7310 = vxpose.xlu0.b32.cont [14/16] 0.0, 128
    %7311 = vxpose.xlu0.b32.cont [15/16] 0.0, 128
    %7312 = vxpose.xlu0.b32.end [16/16] 0.0, 128
    %v7313 = vpop.trf.xlu0
    %v7314 = vpop.trf.xlu0
    %v7315 = vpop.trf.xlu0
    %v7316 = vpop.trf.xlu0
    %v7317 = vpop.trf.xlu0
    %v7318 = vpop.trf.xlu0
    %v7319 = vpop.trf.xlu0
    %v7320 = vpop.trf.xlu0
    %v7321 = vpop.trf.xlu0
    %v7322 = vpop.trf.xlu0
    %v7323 = vpop.trf.xlu0
    %v7324 = vpop.trf.xlu0
    %v7325 = vpop.trf.xlu0
    %v7326 = vpop.trf.xlu0
    %v7327 = vpop.trf.xlu0
    %v7328 = vpop.trf.xlu0
    %7329 = vxpose.xlu0.b32.start [1/16] %v6950, 128
    %7330 = vxpose.xlu0.b32.cont [2/16] %v6951, 128
    %7331 = vxpose.xlu0.b32.cont [3/16] 0.0, 128
    %7332 = vxpose.xlu0.b32.cont [4/16] 0.0, 128
    %7333 = vxpose.xlu0.b32.cont [5/16] 0.0, 128
    %7334 = vxpose.xlu0.b32.cont [6/16] 0.0, 128
    %7335 = vxpose.xlu0.b32.cont [7/16] 0.0, 128
    %7336 = vxpose.xlu0.b32.cont [8/16] 0.0, 128
    %7337 = vxpose.xlu0.b32.cont [9/16] 0.0, 128
    %7338 = vxpose.xlu0.b32.cont [10/16] 0.0, 128
    %7339 = vxpose.xlu0.b32.cont [11/16] 0.0, 128
    %7340 = vxpose.xlu0.b32.cont [12/16] 0.0, 128
    %7341 = vxpose.xlu0.b32.cont [13/16] 0.0, 128
    %7342 = vxpose.xlu0.b32.cont [14/16] 0.0, 128
    %7343 = vxpose.xlu0.b32.cont [15/16] 0.0, 128
    %7344 = vxpose.xlu0.b32.end [16/16] 0.0, 128
    %v7345 = vpop.trf.xlu0
    %v7346 = vpop.trf.xlu0
    %v7347 = vpop.trf.xlu0
    %v7348 = vpop.trf.xlu0
    %v7349 = vpop.trf.xlu0
    %v7350 = vpop.trf.xlu0
    %v7351 = vpop.trf.xlu0
    %v7352 = vpop.trf.xlu0
    %v7353 = vpop.trf.xlu0
    %v7354 = vpop.trf.xlu0
    %v7355 = vpop.trf.xlu0
    %v7356 = vpop.trf.xlu0
    %v7357 = vpop.trf.xlu0
    %v7358 = vpop.trf.xlu0
    %v7359 = vpop.trf.xlu0
    %v7360 = vpop.trf.xlu0
    %7361 = vxpose.xlu0.b32.start [1/16] %v6952, 128
    %7362 = vxpose.xlu0.b32.cont [2/16] %v6953, 128
    %7363 = vxpose.xlu0.b32.cont [3/16] %v6954, 128
    %7364 = vxpose.xlu0.b32.cont [4/16] %v6955, 128
    %7365 = vxpose.xlu0.b32.cont [5/16] %v6956, 128
    %7366 = vxpose.xlu0.b32.cont [6/16] %v6957, 128
    %7367 = vxpose.xlu0.b32.cont [7/16] %v6958, 128
    %7368 = vxpose.xlu0.b32.cont [8/16] %v6959, 128
    %7369 = vxpose.xlu0.b32.cont [9/16] %v6960, 128
    %7370 = vxpose.xlu0.b32.cont [10/16] %v6961, 128
    %7371 = vxpose.xlu0.b32.cont [11/16] %v6962, 128
    %7372 = vxpose.xlu0.b32.cont [12/16] %v6963, 128
    %7373 = vxpose.xlu0.b32.cont [13/16] %v6964, 128
    %7374 = vxpose.xlu0.b32.cont [14/16] %v6965, 128
    %7375 = vxpose.xlu0.b32.cont [15/16] %v6966, 128
    %7376 = vxpose.xlu0.b32.end [16/16] %v6967, 128
    %v7377 = vpop.trf.xlu0
    %v7378 = vpop.trf.xlu0
    %v7379 = vpop.trf.xlu0
    %v7380 = vpop.trf.xlu0
    %v7381 = vpop.trf.xlu0
    %v7382 = vpop.trf.xlu0
    %v7383 = vpop.trf.xlu0
    %v7384 = vpop.trf.xlu0
    %v7385 = vpop.trf.xlu0
    %v7386 = vpop.trf.xlu0
    %v7387 = vpop.trf.xlu0
    %v7388 = vpop.trf.xlu0
    %v7389 = vpop.trf.xlu0
    %v7390 = vpop.trf.xlu0
    %v7391 = vpop.trf.xlu0
    %v7392 = vpop.trf.xlu0
    %7393 = vxpose.xlu0.b32.start [1/16] %v6968, 128
    %7394 = vxpose.xlu0.b32.cont [2/16] %v6969, 128
    %7395 = vxpose.xlu0.b32.cont [3/16] %v6970, 128
    %7396 = vxpose.xlu0.b32.cont [4/16] %v6971, 128
    %7397 = vxpose.xlu0.b32.cont [5/16] %v6972, 128
    %7398 = vxpose.xlu0.b32.cont [6/16] %v6973, 128
    %7399 = vxpose.xlu0.b32.cont [7/16] %v6974, 128
    %7400 = vxpose.xlu0.b32.cont [8/16] %v6975, 128
    %7401 = vxpose.xlu0.b32.cont [9/16] %v6976, 128
    %7402 = vxpose.xlu0.b32.cont [10/16] %v6977, 128
    %7403 = vxpose.xlu0.b32.cont [11/16] %v6978, 128
    %7404 = vxpose.xlu0.b32.cont [12/16] %v6979, 128
    %7405 = vxpose.xlu0.b32.cont [13/16] %v6980, 128
    %7406 = vxpose.xlu0.b32.cont [14/16] %v6981, 128
    %7407 = vxpose.xlu0.b32.cont [15/16] %v6982, 128
    %7408 = vxpose.xlu0.b32.end [16/16] %v6983, 128
    %v7409 = vpop.trf.xlu0
    %v7410 = vpop.trf.xlu0
    %v7411 = vpop.trf.xlu0
    %v7412 = vpop.trf.xlu0
    %v7413 = vpop.trf.xlu0
    %v7414 = vpop.trf.xlu0
    %v7415 = vpop.trf.xlu0
    %v7416 = vpop.trf.xlu0
    %v7417 = vpop.trf.xlu0
    %v7418 = vpop.trf.xlu0
    %v7419 = vpop.trf.xlu0
    %v7420 = vpop.trf.xlu0
    %v7421 = vpop.trf.xlu0
    %v7422 = vpop.trf.xlu0
    %v7423 = vpop.trf.xlu0
    %v7424 = vpop.trf.xlu0
    %7425 = vxpose.xlu0.b32.start [1/16] %v6984, 128
    %7426 = vxpose.xlu0.b32.cont [2/16] %v6985, 128
    %7427 = vxpose.xlu0.b32.cont [3/16] %v6986, 128
    %7428 = vxpose.xlu0.b32.cont [4/16] %v6987, 128
    %7429 = vxpose.xlu0.b32.cont [5/16] %v6988, 128
    %7430 = vxpose.xlu0.b32.cont [6/16] %v6989, 128
    %7431 = vxpose.xlu0.b32.cont [7/16] %v6990, 128
    %7432 = vxpose.xlu0.b32.cont [8/16] %v6991, 128
    %7433 = vxpose.xlu0.b32.cont [9/16] 0.0, 128
    %7434 = vxpose.xlu0.b32.cont [10/16] 0.0, 128
    %7435 = vxpose.xlu0.b32.cont [11/16] 0.0, 128
    %7436 = vxpose.xlu0.b32.cont [12/16] 0.0, 128
    %7437 = vxpose.xlu0.b32.cont [13/16] 0.0, 128
    %7438 = vxpose.xlu0.b32.cont [14/16] 0.0, 128
    %7439 = vxpose.xlu0.b32.cont [15/16] 0.0, 128
    %7440 = vxpose.xlu0.b32.end [16/16] 0.0, 128
    %v7441 = vpop.trf.xlu0
    %v7442 = vpop.trf.xlu0
    %v7443 = vpop.trf.xlu0
    %v7444 = vpop.trf.xlu0
    %v7445 = vpop.trf.xlu0
    %v7446 = vpop.trf.xlu0
    %v7447 = vpop.trf.xlu0
    %v7448 = vpop.trf.xlu0
    %v7449 = vpop.trf.xlu0
    %v7450 = vpop.trf.xlu0
    %v7451 = vpop.trf.xlu0
    %v7452 = vpop.trf.xlu0
    %v7453 = vpop.trf.xlu0
    %v7454 = vpop.trf.xlu0
    %v7455 = vpop.trf.xlu0
    %v7456 = vpop.trf.xlu0
    %7458 = vset.pattern.permute.xlu0 0
    %7459 = vperm.xlu0 %7458, %v6992
    %v7460 = vpop.permute.xlu0 %7459
    %7463 = vset.pattern.permute.xlu0 0
    %7464 = vperm.xlu0 %7463, %v6993
    %v7465 = vpop.permute.xlu0 %7464
    %7468 = vset.pattern.permute.xlu0 0
    %7469 = vperm.xlu0 %7468, %v6994
    %v7470 = vpop.permute.xlu0 %7469
    %7473 = vset.pattern.permute.xlu0 0
    %7474 = vperm.xlu0 %7473, %v6995
    %v7475 = vpop.permute.xlu0 %7474
    %7478 = vset.pattern.permute.xlu0 0
    %7479 = vperm.xlu0 %7478, %v6996
    %v7480 = vpop.permute.xlu0 %7479
    %7483 = vset.pattern.permute.xlu0 0
    %7484 = vperm.xlu0 %7483, %v6997
    %v7485 = vpop.permute.xlu0 %7484
    %7488 = vset.pattern.permute.xlu0 0
    %7489 = vperm.xlu0 %7488, %v6998
    %v7490 = vpop.permute.xlu0 %7489
    %7493 = vset.pattern.permute.xlu0 0
    %7494 = vperm.xlu0 %7493, %v6999
    %v7495 = vpop.permute.xlu0 %7494
    %v7498 = vsel %vm6551, %v7441, 0
    %v7501 = vsel %vm6551, %v7442, 0
    %v7504 = vsel %vm6551, %v7443, 0
    %v7507 = vsel %vm6551, %v7444, 0
    %v7510 = vsel %vm6551, %v7445, 0
    %v7513 = vsel %vm6551, %v7446, 0
    %v7516 = vsel %vm6551, %v7447, 0
    %v7519 = vsel %vm6551, %v7448, 0
    %7521 = vmatprep.subr.mxu0 0.0
    %7522 = vmatpush1.msra.mxu0 %v7057
    %7523 = vmatprep.subr.mxu0 0.0
    %7524 = vmatpush1.msra.mxu0 %v7058
    %7525 = vmatprep.subr.mxu0 0.0
    %7526 = vmatpush1.msra.mxu0 %v7059
    %7527 = vmatprep.subr.mxu0 0.0
    %7528 = vmatpush1.msra.mxu0 %v7060
    %7529 = vmatprep.subr.mxu0 0.0
    %7530 = vmatpush1.msra.mxu0 %v7061
    %7531 = vmatprep.subr.mxu0 0.0
    %7532 = vmatpush1.msra.mxu0 %v7062
    %7533 = vmatprep.subr.mxu0 0.0
    %7534 = vmatpush1.msra.mxu0 %v7063
    %7535 = vmatprep.subr.mxu0 0.0
    %7536 = vmatpush1.msra.mxu0 %v7064
    %7537 = vmatprep.subr.mxu0 0.0
    %7538 = vmatpush1.msra.mxu0 %v7089
    %7539 = vmatprep.subr.mxu0 0.0
    %7540 = vmatpush1.msra.mxu0 %v7090
    %7541 = vmatprep.subr.mxu0 0.0
    %7542 = vmatpush1.msra.mxu0 %v7091
    %7543 = vmatprep.subr.mxu0 0.0
    %7544 = vmatpush1.msra.mxu0 %v7092
    %7545 = vmatprep.subr.mxu0 0.0
    %7546 = vmatpush1.msra.mxu0 %v7093
    %7547 = vmatprep.subr.mxu0 0.0
    %7548 = vmatpush1.msra.mxu0 %v7094
    %7549 = vmatprep.subr.mxu0 0.0
    %7550 = vmatpush1.msra.mxu0 %v7095
    %7551 = vmatprep.subr.mxu0 0.0
    %7552 = vmatpush1.msra.mxu0 %v7096
    %7553 = vmatprep.subr.mxu0 0.0
    %7554 = vmatpush1.msra.mxu0 %v7121
    %7555 = vmatprep.subr.mxu0 0.0
    %7556 = vmatpush1.msra.mxu0 %v7122
    %7557 = vmatprep.subr.mxu0 0.0
    %7558 = vmatpush1.msra.mxu0 %v7123
    %7559 = vmatprep.subr.mxu0 0.0
    %7560 = vmatpush1.msra.mxu0 %v7124
    %7561 = vmatprep.subr.mxu0 0.0
    %7562 = vmatpush1.msra.mxu0 %v7125
    %7563 = vmatprep.subr.mxu0 0.0
    %7564 = vmatpush1.msra.mxu0 %v7126
    %7565 = vmatprep.subr.mxu0 0.0
    %7566 = vmatpush1.msra.mxu0 %v7127
    %7567 = vmatprep.subr.mxu0 0.0
    %7568 = vmatpush1.msra.mxu0 %v7128
    %7569 = vmatprep.subr.mxu0 0.0
    %7570 = vmatpush1.msra.mxu0 %v7153
    %7571 = vmatprep.subr.mxu0 0.0
    %7572 = vmatpush1.msra.mxu0 %v7154
    %7573 = vmatprep.subr.mxu0 0.0
    %7574 = vmatpush1.msra.mxu0 %v7155
    %7575 = vmatprep.subr.mxu0 0.0
    %7576 = vmatpush1.msra.mxu0 %v7156
    %7577 = vmatprep.subr.mxu0 0.0
    %7578 = vmatpush1.msra.mxu0 %v7157
    %7579 = vmatprep.subr.mxu0 0.0
    %7580 = vmatpush1.msra.mxu0 %v7158
    %7581 = vmatprep.subr.mxu0 0.0
    %7582 = vmatpush1.msra.mxu0 %v7159
    %7583 = vmatprep.subr.mxu0 0.0
    %7584 = vmatpush1.msra.mxu0 %v7160
    %7585 = vmatprep.mubr.f32.mxu0 %v7409
    %7586 = vmatmul.mubr.f32.gmra.mrb[0].mxu0 %v7377
    %v7587 = vpop.f32.mrb[0].mxu0
    %v7588 = vadd.f32 %v7460, %v7587
    %v7589 = vpop.f32.mrb[0].mxu0
    %7590 = vmatprep.mubr.f32.mxu0 %v7410
    %7591 = vmatmul.mubr.f32.gmra.mrb[0].mxu0 %v7378
    %v7592 = vpop.f32.mrb[0].mxu0
    %v7593 = vadd.f32 %v7465, %v7592
    %v7594 = vpop.f32.mrb[0].mxu0
    %7595 = vmatprep.mubr.f32.mxu0 %v7411
    %7596 = vmatmul.mubr.f32.gmra.mrb[0].mxu0 %v7379
    %v7597 = vpop.f32.mrb[0].mxu0
    %v7598 = vadd.f32 %v7470, %v7597
    %v7599 = vpop.f32.mrb[0].mxu0
    %7600 = vmatprep.mubr.f32.mxu0 %v7412
    %7601 = vmatmul.mubr.f32.gmra.mrb[0].mxu0 %v7380
    %v7602 = vpop.f32.mrb[0].mxu0
    %v7603 = vadd.f32 %v7475, %v7602
    %v7604 = vpop.f32.mrb[0].mxu0
    %7605 = vmatprep.mubr.f32.mxu0 %v7413
    %7606 = vmatmul.mubr.f32.gmra.mrb[0].mxu0 %v7381
    %v7607 = vpop.f32.mrb[0].mxu0
    %v7608 = vadd.f32 %v7480, %v7607
    %v7609 = vpop.f32.mrb[0].mxu0
    %7610 = vmatprep.mubr.f32.mxu0 %v7414
    %7611 = vmatmul.mubr.f32.gmra.mrb[0].mxu0 %v7382
    %v7612 = vpop.f32.mrb[0].mxu0
    %v7613 = vadd.f32 %v7485, %v7612
    %v7614 = vpop.f32.mrb[0].mxu0
    %7615 = vmatprep.mubr.f32.mxu0 %v7415
    %7616 = vmatmul.mubr.f32.gmra.mrb[0].mxu0 %v7383
    %v7617 = vpop.f32.mrb[0].mxu0
    %v7618 = vadd.f32 %v7490, %v7617
    %v7619 = vpop.f32.mrb[0].mxu0
    %7620 = vmatprep.mubr.f32.mxu0 %v7416
    %7621 = vmatmul.mubr.f32.gmra.mrb[0].mxu0 %v7384
    %v7622 = vpop.f32.mrb[0].mxu0
    %v7623 = vadd.f32 %v7495, %v7622
    %v7624 = vpop.f32.mrb[0].mxu0
    %7625 = vdwg.mxu0
    %7626 = vmatprep.subr.mxu0 0.0
    %7627 = vmatpush1.msra.mxu0 %v7185
    %7628 = vmatprep.subr.mxu0 0.0
    %7629 = vmatpush1.msra.mxu0 %v7186
    %7630 = vmatprep.subr.mxu0 0.0
    %7631 = vmatpush1.msra.mxu0 %v7187
    %7632 = vmatprep.subr.mxu0 0.0
    %7633 = vmatpush1.msra.mxu0 %v7188
    %7634 = vmatprep.subr.mxu0 0.0
    %7635 = vmatpush1.msra.mxu0 %v7189
    %7636 = vmatprep.subr.mxu0 0.0
    %7637 = vmatpush1.msra.mxu0 %v7190
    %7638 = vmatprep.subr.mxu0 0.0
    %7639 = vmatpush1.msra.mxu0 %v7191
    %7640 = vmatprep.subr.mxu0 0.0
    %7641 = vmatpush1.msra.mxu0 %v7192
    %7642 = vmatprep.subr.mxu0 0.0
    %7643 = vmatpush1.msra.mxu0 0.0
    %7644 = vmatprep.subr.mxu0 0.0
    %7645 = vmatpush1.msra.mxu0 0.0
    %7646 = vmatprep.subr.mxu0 0.0
    %7647 = vmatpush1.msra.mxu0 0.0
    %7648 = vmatprep.subr.mxu0 0.0
    %7649 = vmatpush1.msra.mxu0 0.0
    %7650 = vmatprep.subr.mxu0 0.0
    %7651 = vmatpush1.msra.mxu0 0.0
    %7652 = vmatprep.subr.mxu0 0.0
    %7653 = vmatpush1.msra.mxu0 0.0
    %7654 = vmatprep.subr.mxu0 0.0
    %7655 = vmatpush1.msra.mxu0 0.0
    %7656 = vmatprep.subr.mxu0 0.0
    %7657 = vmatpush1.msra.mxu0 0.0
    %7658 = vmatprep.subr.mxu0 0.0
    %7659 = vmatpush1.msra.mxu0 0.0
    %7660 = vmatprep.subr.mxu0 0.0
    %7661 = vmatpush1.msra.mxu0 0.0
    %7662 = vmatprep.subr.mxu0 0.0
    %7663 = vmatpush1.msra.mxu0 0.0
    %7664 = vmatprep.subr.mxu0 0.0
    %7665 = vmatpush1.msra.mxu0 0.0
    %7666 = vmatprep.subr.mxu0 0.0
    %7667 = vmatpush1.msra.mxu0 0.0
    %7668 = vmatprep.subr.mxu0 0.0
    %7669 = vmatpush1.msra.mxu0 0.0
    %7670 = vmatprep.subr.mxu0 0.0
    %7671 = vmatpush1.msra.mxu0 0.0
    %7672 = vmatprep.subr.mxu0 0.0
    %7673 = vmatpush1.msra.mxu0 0.0
    %7674 = vmatprep.subr.mxu0 0.0
    %7675 = vmatpush1.msra.mxu0 0.0
    %7676 = vmatprep.subr.mxu0 0.0
    %7677 = vmatpush1.msra.mxu0 0.0
    %7678 = vmatprep.subr.mxu0 0.0
    %7679 = vmatpush1.msra.mxu0 0.0
    %7680 = vmatprep.subr.mxu0 0.0
    %7681 = vmatpush1.msra.mxu0 0.0
    %7682 = vmatprep.subr.mxu0 0.0
    %7683 = vmatpush1.msra.mxu0 0.0
    %7684 = vmatprep.subr.mxu0 0.0
    %7685 = vmatpush1.msra.mxu0 0.0
    %7686 = vmatprep.subr.mxu0 0.0
    %7687 = vmatpush1.msra.mxu0 0.0
    %7688 = vmatprep.subr.mxu0 0.0
    %7689 = vmatpush1.msra.mxu0 0.0
    %7690 = vmatprep.mubr.f32.mxu0 0.0
    %7691 = vmatmul.mubr.f32.gmra.mrb[0].mxu0 %v7498
    %v7692 = vpop.f32.mrb[0].mxu0
    %v7693 = vadd.f32 %v7588, %v7692
    %v7694 = vpop.f32.mrb[0].mxu0
    %7695 = vmatprep.mubr.f32.mxu0 0.0
    %7696 = vmatmul.mubr.f32.gmra.mrb[0].mxu0 %v7501
    %v7697 = vpop.f32.mrb[0].mxu0
    %v7698 = vadd.f32 %v7593, %v7697
    %v7699 = vpop.f32.mrb[0].mxu0
    %7700 = vmatprep.mubr.f32.mxu0 0.0
    %7701 = vmatmul.mubr.f32.gmra.mrb[0].mxu0 %v7504
    %v7702 = vpop.f32.mrb[0].mxu0
    %v7703 = vadd.f32 %v7598, %v7702
    %v7704 = vpop.f32.mrb[0].mxu0
    %7705 = vmatprep.mubr.f32.mxu0 0.0
    %7706 = vmatmul.mubr.f32.gmra.mrb[0].mxu0 %v7507
    %v7707 = vpop.f32.mrb[0].mxu0
    %v7708 = vadd.f32 %v7603, %v7707
    %v7709 = vpop.f32.mrb[0].mxu0
    %7710 = vmatprep.mubr.f32.mxu0 0.0
    %7711 = vmatmul.mubr.f32.gmra.mrb[0].mxu0 %v7510
    %v7712 = vpop.f32.mrb[0].mxu0
    %v7713 = vadd.f32 %v7608, %v7712
    %v7714 = vpop.f32.mrb[0].mxu0
    %7715 = vmatprep.mubr.f32.mxu0 0.0
    %7716 = vmatmul.mubr.f32.gmra.mrb[0].mxu0 %v7513
    %v7717 = vpop.f32.mrb[0].mxu0
    %v7718 = vadd.f32 %v7613, %v7717
    %v7719 = vpop.f32.mrb[0].mxu0
    %7720 = vmatprep.mubr.f32.mxu0 0.0
    %7721 = vmatmul.mubr.f32.gmra.mrb[0].mxu0 %v7516
    %v7722 = vpop.f32.mrb[0].mxu0
    %v7723 = vadd.f32 %v7618, %v7722
    %v7724 = vpop.f32.mrb[0].mxu0
    %7725 = vmatprep.mubr.f32.mxu0 0.0
    %7726 = vmatmul.mubr.f32.gmra.mrb[0].mxu0 %v7519
    %v7727 = vpop.f32.mrb[0].mxu0
    %v7728 = vadd.f32 %v7623, %v7727
    %v7729 = vpop.f32.mrb[0].mxu0
    %7730 = vdwg.mxu0
    %v7731 = vsel %vm1008, %v7693, 0.0
    %7732 = vadd.xlane.f32.xlu0 %v7731
    %v7733 = vpop.xlane.xlu0 %7732
    %v7734 = vsel %vm1008, %v7698, 0.0
    %7735 = vadd.xlane.f32.xlu0 %v7734
    %v7736 = vpop.xlane.xlu0 %7735
    %v7737 = vsel %vm1008, %v7703, 0.0
    %7738 = vadd.xlane.f32.xlu0 %v7737
    %v7739 = vpop.xlane.xlu0 %7738
    %v7740 = vsel %vm1008, %v7708, 0.0
    %7741 = vadd.xlane.f32.xlu0 %v7740
    %v7742 = vpop.xlane.xlu0 %7741
    %v7743 = vsel %vm1008, %v7713, 0.0
    %7744 = vadd.xlane.f32.xlu0 %v7743
    %v7745 = vpop.xlane.xlu0 %7744
    %v7746 = vsel %vm1008, %v7718, 0.0
    %7747 = vadd.xlane.f32.xlu0 %v7746
    %v7748 = vpop.xlane.xlu0 %7747
    %v7749 = vsel %vm1008, %v7723, 0.0
    %7750 = vadd.xlane.f32.xlu0 %v7749
    %v7751 = vpop.xlane.xlu0 %7750
    %v7752 = vsel %vm1008, %v7728, 0.0
    %7753 = vadd.xlane.f32.xlu0 %v7752
    %v7754 = vpop.xlane.xlu0 %7753
    %v7755 = vadd.f32 %v7733, %v7736
    %v7756 = vadd.f32 %v7755, %v7739
    %v7757 = vadd.f32 %v7756, %v7742
    %v7758 = vadd.f32 %v7757, %v7745
    %v7759 = vadd.f32 %v7758, %v7748
    %v7760 = vadd.f32 %v7759, %v7751
    %v7761 = vadd.f32 %v7760, %v7754
    %v7762 = vrot.slane %v7761, 4
    %v7763 = vadd.f32 %v7761, %v7762
    %v7764 = vrot.slane %v7763, 2
    %v7765 = vadd.f32 %v7763, %v7764
    %v7766 = vrot.slane %v7765, 1
    %v7767 = vadd.f32 %v7765, %v7766
    %v7768 = vmul.f32 %v7767, 0.0009765625
    %v7769 = vsub.f32 %v7693, %v7768
    %v7770 = vsub.f32 %v7698, %v7768
    %v7771 = vsub.f32 %v7703, %v7768
    %v7772 = vsub.f32 %v7708, %v7768
    %v7773 = vsub.f32 %v7713, %v7768
    %v7774 = vsub.f32 %v7718, %v7768
    %v7775 = vsub.f32 %v7723, %v7768
    %v7776 = vsub.f32 %v7728, %v7768
    %v7777 = vmul.f32 %v7769, %v7769
    %v7778 = vmul.f32 %v7770, %v7770
    %v7779 = vmul.f32 %v7771, %v7771
    %v7780 = vmul.f32 %v7772, %v7772
    %v7781 = vmul.f32 %v7773, %v7773
    %v7782 = vmul.f32 %v7774, %v7774
    %v7783 = vmul.f32 %v7775, %v7775
    %v7784 = vmul.f32 %v7776, %v7776
    %v7785 = vsel %vm1008, %v7777, 0.0
    %7786 = vadd.xlane.f32.xlu0 %v7785
    %v7787 = vpop.xlane.xlu0 %7786
    %v7788 = vsel %vm1008, %v7778, 0.0
    %7789 = vadd.xlane.f32.xlu0 %v7788
    %v7790 = vpop.xlane.xlu0 %7789
    %v7791 = vsel %vm1008, %v7779, 0.0
    %7792 = vadd.xlane.f32.xlu0 %v7791
    %v7793 = vpop.xlane.xlu0 %7792
    %v7794 = vsel %vm1008, %v7780, 0.0
    %7795 = vadd.xlane.f32.xlu0 %v7794
    %v7796 = vpop.xlane.xlu0 %7795
    %v7797 = vsel %vm1008, %v7781, 0.0
    %7798 = vadd.xlane.f32.xlu0 %v7797
    %v7799 = vpop.xlane.xlu0 %7798
    %v7800 = vsel %vm1008, %v7782, 0.0
    %7801 = vadd.xlane.f32.xlu0 %v7800
    %v7802 = vpop.xlane.xlu0 %7801
    %v7803 = vsel %vm1008, %v7783, 0.0
    %7804 = vadd.xlane.f32.xlu0 %v7803
    %v7805 = vpop.xlane.xlu0 %7804
    %v7806 = vsel %vm1008, %v7784, 0.0
    %7807 = vadd.xlane.f32.xlu0 %v7806
    %v7808 = vpop.xlane.xlu0 %7807
    %v7809 = vadd.f32 %v7787, %v7790
    %v7810 = vadd.f32 %v7809, %v7793
    %v7811 = vadd.f32 %v7810, %v7796
    %v7812 = vadd.f32 %v7811, %v7799
    %v7813 = vadd.f32 %v7812, %v7802
    %v7814 = vadd.f32 %v7813, %v7805
    %v7815 = vadd.f32 %v7814, %v7808
    %v7816 = vrot.slane %v7815, 4
    %v7817 = vadd.f32 %v7815, %v7816
    %v7818 = vrot.slane %v7817, 2
    %v7819 = vadd.f32 %v7817, %v7818
    %v7820 = vrot.slane %v7819, 1
    %v7821 = vadd.f32 %v7819, %v7820
    %v7822 = vmul.f32 %v7821, 0.0009765625
    %v7823 = vadd.f32 %v7822, 1e-05
    %v7824 = vrsqrt.pop %v7823
    %v7825 = vmul.f32 %v7769, %v7824
    %v7826 = vmul.f32 %v7770, %v7824
    %v7827 = vmul.f32 %v7771, %v7824
    %v7828 = vmul.f32 %v7772, %v7824
    %v7829 = vmul.f32 %v7773, %v7824
    %v7830 = vmul.f32 %v7774, %v7824
    %v7831 = vmul.f32 %v7775, %v7824
    %v7832 = vmul.f32 %v7776, %v7824
    %v7833 = vmul.f32 %v7825, %v7000
    %v7834 = vmul.f32 %v7826, %v7001
    %v7835 = vmul.f32 %v7827, %v7002
    %v7836 = vmul.f32 %v7828, %v7003
    %v7837 = vmul.f32 %v7829, %v7004
    %v7838 = vmul.f32 %v7830, %v7005
    %v7839 = vmul.f32 %v7831, %v7006
    %v7840 = vmul.f32 %v7832, %v7007
    %v7841 = vadd.f32 %v7833, %v7008
    %v7842 = vadd.f32 %v7834, %v7009
    %v7843 = vadd.f32 %v7835, %v7010
    %v7844 = vadd.f32 %v7836, %v7011
    %v7845 = vadd.f32 %v7837, %v7012
    %v7846 = vadd.f32 %v7838, %v7013
    %v7847 = vadd.f32 %v7839, %v7014
    %v7848 = vadd.f32 %v7840, %v7015
    %7850 = vset.pattern.permute.xlu0 0
    %7851 = vperm.xlu0 %7850, %v7024
    %v7852 = vpop.permute.xlu0 %7851
    %7855 = vset.pattern.permute.xlu0 0
    %7856 = vperm.xlu0 %7855, %v7025
    %v7857 = vpop.permute.xlu0 %7856
    %7860 = vset.pattern.permute.xlu0 0
    %7861 = vperm.xlu0 %7860, %v7026
    %v7862 = vpop.permute.xlu0 %7861
    %7865 = vset.pattern.permute.xlu0 0
    %7866 = vperm.xlu0 %7865, %v7027
    %v7867 = vpop.permute.xlu0 %7866
    %7870 = vset.pattern.permute.xlu0 0
    %7871 = vperm.xlu0 %7870, %v7028
    %v7872 = vpop.permute.xlu0 %7871
    %7875 = vset.pattern.permute.xlu0 0
    %7876 = vperm.xlu0 %7875, %v7029
    %v7877 = vpop.permute.xlu0 %7876
    %7880 = vset.pattern.permute.xlu0 0
    %7881 = vperm.xlu0 %7880, %v7030
    %v7882 = vpop.permute.xlu0 %7881
    %7885 = vset.pattern.permute.xlu0 0
    %7886 = vperm.xlu0 %7885, %v7031
    %v7887 = vpop.permute.xlu0 %7886
    %v7890 = vsel %vm6551, %v7016, 0
    %v7893 = vsel %vm6551, %v7017, 0
    %v7896 = vsel %vm6551, %v7018, 0
    %v7899 = vsel %vm6551, %v7019, 0
    %v7902 = vsel %vm6551, %v7020, 0
    %v7905 = vsel %vm6551, %v7021, 0
    %v7908 = vsel %vm6551, %v7022, 0
    %v7911 = vsel %vm6551, %v7023, 0
    %7913 = vmatprep.subr.mxu0 0.0
    %7914 = vmatpush1.msra.mxu0 %v7841
    %7915 = vmatprep.subr.mxu0 0.0
    %7916 = vmatpush1.msra.mxu0 %v7842
    %7917 = vmatprep.subr.mxu0 0.0
    %7918 = vmatpush1.msra.mxu0 %v7843
    %7919 = vmatprep.subr.mxu0 0.0
    %7920 = vmatpush1.msra.mxu0 %v7844
    %7921 = vmatprep.subr.mxu0 0.0
    %7922 = vmatpush1.msra.mxu0 %v7845
    %7923 = vmatprep.subr.mxu0 0.0
    %7924 = vmatpush1.msra.mxu0 %v7846
    %7925 = vmatprep.subr.mxu0 0.0
    %7926 = vmatpush1.msra.mxu0 %v7847
    %7927 = vmatprep.subr.mxu0 0.0
    %7928 = vmatpush1.msra.mxu0 %v7848
    %7929 = vmatprep.subr.mxu0 0.0
    %7930 = vmatpush1.msra.mxu0 0.0
    %7931 = vmatprep.subr.mxu0 0.0
    %7932 = vmatpush1.msra.mxu0 0.0
    %7933 = vmatprep.subr.mxu0 0.0
    %7934 = vmatpush1.msra.mxu0 0.0
    %7935 = vmatprep.subr.mxu0 0.0
    %7936 = vmatpush1.msra.mxu0 0.0
    %7937 = vmatprep.subr.mxu0 0.0
    %7938 = vmatpush1.msra.mxu0 0.0
    %7939 = vmatprep.subr.mxu0 0.0
    %7940 = vmatpush1.msra.mxu0 0.0
    %7941 = vmatprep.subr.mxu0 0.0
    %7942 = vmatpush1.msra.mxu0 0.0
    %7943 = vmatprep.subr.mxu0 0.0
    %7944 = vmatpush1.msra.mxu0 0.0
    %7945 = vmatprep.subr.mxu0 0.0
    %7946 = vmatpush1.msra.mxu0 0.0
    %7947 = vmatprep.subr.mxu0 0.0
    %7948 = vmatpush1.msra.mxu0 0.0
    %7949 = vmatprep.subr.mxu0 0.0
    %7950 = vmatpush1.msra.mxu0 0.0
    %7951 = vmatprep.subr.mxu0 0.0
    %7952 = vmatpush1.msra.mxu0 0.0
    %7953 = vmatprep.subr.mxu0 0.0
    %7954 = vmatpush1.msra.mxu0 0.0
    %7955 = vmatprep.subr.mxu0 0.0
    %7956 = vmatpush1.msra.mxu0 0.0
    %7957 = vmatprep.subr.mxu0 0.0
    %7958 = vmatpush1.msra.mxu0 0.0
    %7959 = vmatprep.subr.mxu0 0.0
    %7960 = vmatpush1.msra.mxu0 0.0
    %7961 = vmatprep.subr.mxu0 0.0
    %7962 = vmatpush1.msra.mxu0 0.0
    %7963 = vmatprep.subr.mxu0 0.0
    %7964 = vmatpush1.msra.mxu0 0.0
    %7965 = vmatprep.subr.mxu0 0.0
    %7966 = vmatpush1.msra.mxu0 0.0
    %7967 = vmatprep.subr.mxu0 0.0
    %7968 = vmatpush1.msra.mxu0 0.0
    %7969 = vmatprep.subr.mxu0 0.0
    %7970 = vmatpush1.msra.mxu0 0.0
    %7971 = vmatprep.subr.mxu0 0.0
    %7972 = vmatpush1.msra.mxu0 0.0
    %7973 = vmatprep.subr.mxu0 0.0
    %7974 = vmatpush1.msra.mxu0 0.0
    %7975 = vmatprep.subr.mxu0 0.0
    %7976 = vmatpush1.msra.mxu0 0.0
    %7977 = vmatprep.mubr.f32.mxu0 0.0
    %7978 = vmatmul.mubr.f32.gmra.mrb[0].mxu0 %v7890
    %v7979 = vpop.f32.mrb[0].mxu0
    %v7980 = vadd.f32 %v7852, %v7979
    %v7981 = vpop.f32.mrb[0].mxu0
    %7982 = vmatprep.mubr.f32.mxu0 0.0
    %7983 = vmatmul.mubr.f32.gmra.mrb[0].mxu0 %v7893
    %v7984 = vpop.f32.mrb[0].mxu0
    %v7985 = vadd.f32 %v7857, %v7984
    %v7986 = vpop.f32.mrb[0].mxu0
    %7987 = vmatprep.mubr.f32.mxu0 0.0
    %7988 = vmatmul.mubr.f32.gmra.mrb[0].mxu0 %v7896
    %v7989 = vpop.f32.mrb[0].mxu0
    %v7990 = vadd.f32 %v7862, %v7989
    %v7991 = vpop.f32.mrb[0].mxu0
    %7992 = vmatprep.mubr.f32.mxu0 0.0
    %7993 = vmatmul.mubr.f32.gmra.mrb[0].mxu0 %v7899
    %v7994 = vpop.f32.mrb[0].mxu0
    %v7995 = vadd.f32 %v7867, %v7994
    %v7996 = vpop.f32.mrb[0].mxu0
    %7997 = vmatprep.mubr.f32.mxu0 0.0
    %7998 = vmatmul.mubr.f32.gmra.mrb[0].mxu0 %v7902
    %v7999 = vpop.f32.mrb[0].mxu0
    %v8000 = vadd.f32 %v7872, %v7999
    %v8001 = vpop.f32.mrb[0].mxu0
    %8002 = vmatprep.mubr.f32.mxu0 0.0
    %8003 = vmatmul.mubr.f32.gmra.mrb[0].mxu0 %v7905
    %v8004 = vpop.f32.mrb[0].mxu0
    %v8005 = vadd.f32 %v7877, %v8004
    %v8006 = vpop.f32.mrb[0].mxu0
    %8007 = vmatprep.mubr.f32.mxu0 0.0
    %8008 = vmatmul.mubr.f32.gmra.mrb[0].mxu0 %v7908
    %v8009 = vpop.f32.mrb[0].mxu0
    %v8010 = vadd.f32 %v7882, %v8009
    %v8011 = vpop.f32.mrb[0].mxu0
    %8012 = vmatprep.mubr.f32.mxu0 0.0
    %8013 = vmatmul.mubr.f32.gmra.mrb[0].mxu0 %v7911
    %v8014 = vpop.f32.mrb[0].mxu0
    %v8015 = vadd.f32 %v7887, %v8014
    %v8016 = vpop.f32.mrb[0].mxu0
    %8017 = vdwg.mxu0
    %8019 = vset.pattern.permute.xlu0 0
    %8020 = vperm.xlu0 %8019, %v7032
    %v8021 = vpop.permute.xlu0 %8020
    %8024 = vset.pattern.permute.xlu0 0
    %8025 = vperm.xlu0 %8024, %v7033
    %v8026 = vpop.permute.xlu0 %8025
    %8029 = vset.pattern.permute.xlu0 0
    %8030 = vperm.xlu0 %8029, %v7034
    %v8031 = vpop.permute.xlu0 %8030
    %8034 = vset.pattern.permute.xlu0 0
    %8035 = vperm.xlu0 %8034, %v7035
    %v8036 = vpop.permute.xlu0 %8035
    %8039 = vset.pattern.permute.xlu0 0
    %8040 = vperm.xlu0 %8039, %v7036
    %v8041 = vpop.permute.xlu0 %8040
    %8044 = vset.pattern.permute.xlu0 0
    %8045 = vperm.xlu0 %8044, %v7037
    %v8046 = vpop.permute.xlu0 %8045
    %8049 = vset.pattern.permute.xlu0 0
    %8050 = vperm.xlu0 %8049, %v7038
    %v8051 = vpop.permute.xlu0 %8050
    %8054 = vset.pattern.permute.xlu0 0
    %8055 = vperm.xlu0 %8054, %v7039
    %v8056 = vpop.permute.xlu0 %8055
    %v8058 = vmul.f32 %v7980, %v8021
    %v8059 = vmul.f32 %v7985, %v8026
    %v8060 = vmul.f32 %v7990, %v8031
    %v8061 = vmul.f32 %v7995, %v8036
    %v8062 = vmul.f32 %v8000, %v8041
    %v8063 = vmul.f32 %v8005, %v8046
    %v8064 = vmul.f32 %v8010, %v8051
    %v8065 = vmul.f32 %v8015, %v8056
    %v8066 = vsel %vm1008, %v8058, 0.0
    %v8067 = vsel %vm1008, %v8059, 0.0
    %v8068 = vadd.f32 %v8066, %v8067
    %v8069 = vsel %vm1008, %v8060, 0.0
    %v8070 = vadd.f32 %v8068, %v8069
    %v8071 = vsel %vm1008, %v8061, 0.0
    %v8072 = vadd.f32 %v8070, %v8071
    %v8073 = vsel %vm1008, %v8062, 0.0
    %v8074 = vadd.f32 %v8072, %v8073
    %v8075 = vsel %vm1008, %v8063, 0.0
    %v8076 = vadd.f32 %v8074, %v8075
    %v8077 = vsel %vm1008, %v8064, 0.0
    %v8078 = vadd.f32 %v8076, %v8077
    %v8079 = vsel %vm1008, %v8065, 0.0
    %v8080 = vadd.f32 %v8078, %v8079
    %v8081 = vrot.slane %v8080, 4
    %v8082 = vadd.f32 %v8080, %v8081
    %v8083 = vrot.slane %v8082, 2
    %v8084 = vadd.f32 %v8082, %v8083
    %v8085 = vrot.slane %v8084, 1
    %v8086 = vadd.f32 %v8084, %v8085
    %8088 = vset.pattern.permute.xlu0 0
    %8089 = vperm.xlu0 %8088, %v7040
    %v8090 = vpop.permute.xlu0 %8089
    %v8092 = vadd.f32 %v8086, %v8090
    %8093 = vmatprep.subr.mxu0 0.0
    %8094 = vmatpush1.msra.mxu0 %v7217
    %8095 = vmatprep.subr.mxu0 0.0
    %8096 = vmatpush1.msra.mxu0 %v7218
    %8097 = vmatprep.subr.mxu0 0.0
    %8098 = vmatpush1.msra.mxu0 %v7219
    %8099 = vmatprep.subr.mxu0 0.0
    %8100 = vmatpush1.msra.mxu0 %v7220
    %8101 = vmatprep.subr.mxu0 0.0
    %8102 = vmatpush1.msra.mxu0 %v7221
    %8103 = vmatprep.subr.mxu0 0.0
    %8104 = vmatpush1.msra.mxu0 %v7222
    %8105 = vmatprep.subr.mxu0 0.0
    %8106 = vmatpush1.msra.mxu0 %v7223
    %8107 = vmatprep.subr.mxu0 0.0
    %8108 = vmatpush1.msra.mxu0 %v7224
    %8109 = vmatprep.subr.mxu0 0.0
    %8110 = vmatpush1.msra.mxu0 %v7249
    %8111 = vmatprep.subr.mxu0 0.0
    %8112 = vmatpush1.msra.mxu0 %v7250
    %8113 = vmatprep.subr.mxu0 0.0
    %8114 = vmatpush1.msra.mxu0 %v7251
    %8115 = vmatprep.subr.mxu0 0.0
    %8116 = vmatpush1.msra.mxu0 %v7252
    %8117 = vmatprep.subr.mxu0 0.0
    %8118 = vmatpush1.msra.mxu0 %v7253
    %8119 = vmatprep.subr.mxu0 0.0
    %8120 = vmatpush1.msra.mxu0 %v7254
    %8121 = vmatprep.subr.mxu0 0.0
    %8122 = vmatpush1.msra.mxu0 %v7255
    %8123 = vmatprep.subr.mxu0 0.0
    %8124 = vmatpush1.msra.mxu0 %v7256
    %8125 = vmatprep.subr.mxu0 0.0
    %8126 = vmatpush1.msra.mxu0 %v7281
    %8127 = vmatprep.subr.mxu0 0.0
    %8128 = vmatpush1.msra.mxu0 %v7282
    %8129 = vmatprep.subr.mxu0 0.0
    %8130 = vmatpush1.msra.mxu0 %v7283
    %8131 = vmatprep.subr.mxu0 0.0
    %8132 = vmatpush1.msra.mxu0 %v7284
    %8133 = vmatprep.subr.mxu0 0.0
    %8134 = vmatpush1.msra.mxu0 %v7285
    %8135 = vmatprep.subr.mxu0 0.0
    %8136 = vmatpush1.msra.mxu0 %v7286
    %8137 = vmatprep.subr.mxu0 0.0
    %8138 = vmatpush1.msra.mxu0 %v7287
    %8139 = vmatprep.subr.mxu0 0.0
    %8140 = vmatpush1.msra.mxu0 %v7288
    %8141 = vmatprep.subr.mxu0 0.0
    %8142 = vmatpush1.msra.mxu0 %v7313
    %8143 = vmatprep.subr.mxu0 0.0
    %8144 = vmatpush1.msra.mxu0 %v7314
    %8145 = vmatprep.subr.mxu0 0.0
    %8146 = vmatpush1.msra.mxu0 %v7315
    %8147 = vmatprep.subr.mxu0 0.0
    %8148 = vmatpush1.msra.mxu0 %v7316
    %8149 = vmatprep.subr.mxu0 0.0
    %8150 = vmatpush1.msra.mxu0 %v7317
    %8151 = vmatprep.subr.mxu0 0.0
    %8152 = vmatpush1.msra.mxu0 %v7318
    %8153 = vmatprep.subr.mxu0 0.0
    %8154 = vmatpush1.msra.mxu0 %v7319
    %8155 = vmatprep.subr.mxu0 0.0
    %8156 = vmatpush1.msra.mxu0 %v7320
    %8157 = vmatprep.mubr.f32.mxu0 %v7409
    %8158 = vmatmul.mubr.f32.gmra.mrb[0].mxu0 %v7377
    %v8159 = vpop.f32.mrb[0].mxu0
    %v8160 = vadd.f32 %v7460, %v8159
    %v8161 = vpop.f32.mrb[0].mxu0
    %8162 = vmatprep.mubr.f32.mxu0 %v7410
    %8163 = vmatmul.mubr.f32.gmra.mrb[0].mxu0 %v7378
    %v8164 = vpop.f32.mrb[0].mxu0
    %v8165 = vadd.f32 %v7465, %v8164
    %v8166 = vpop.f32.mrb[0].mxu0
    %8167 = vmatprep.mubr.f32.mxu0 %v7411
    %8168 = vmatmul.mubr.f32.gmra.mrb[0].mxu0 %v7379
    %v8169 = vpop.f32.mrb[0].mxu0
    %v8170 = vadd.f32 %v7470, %v8169
    %v8171 = vpop.f32.mrb[0].mxu0
    %8172 = vmatprep.mubr.f32.mxu0 %v7412
    %8173 = vmatmul.mubr.f32.gmra.mrb[0].mxu0 %v7380
    %v8174 = vpop.f32.mrb[0].mxu0
    %v8175 = vadd.f32 %v7475, %v8174
    %v8176 = vpop.f32.mrb[0].mxu0
    %8177 = vmatprep.mubr.f32.mxu0 %v7413
    %8178 = vmatmul.mubr.f32.gmra.mrb[0].mxu0 %v7381
    %v8179 = vpop.f32.mrb[0].mxu0
    %v8180 = vadd.f32 %v7480, %v8179
    %v8181 = vpop.f32.mrb[0].mxu0
    %8182 = vmatprep.mubr.f32.mxu0 %v7414
    %8183 = vmatmul.mubr.f32.gmra.mrb[0].mxu0 %v7382
    %v8184 = vpop.f32.mrb[0].mxu0
    %v8185 = vadd.f32 %v7485, %v8184
    %v8186 = vpop.f32.mrb[0].mxu0
    %8187 = vmatprep.mubr.f32.mxu0 %v7415
    %8188 = vmatmul.mubr.f32.gmra.mrb[0].mxu0 %v7383
    %v8189 = vpop.f32.mrb[0].mxu0
    %v8190 = vadd.f32 %v7490, %v8189
    %v8191 = vpop.f32.mrb[0].mxu0
    %8192 = vmatprep.mubr.f32.mxu0 %v7416
    %8193 = vmatmul.mubr.f32.gmra.mrb[0].mxu0 %v7384
    %v8194 = vpop.f32.mrb[0].mxu0
    %v8195 = vadd.f32 %v7495, %v8194
    %v8196 = vpop.f32.mrb[0].mxu0
    %8197 = vdwg.mxu0
    %8198 = vmatprep.subr.mxu0 0.0
    %8199 = vmatpush1.msra.mxu0 %v7345
    %8200 = vmatprep.subr.mxu0 0.0
    %8201 = vmatpush1.msra.mxu0 %v7346
    %8202 = vmatprep.subr.mxu0 0.0
    %8203 = vmatpush1.msra.mxu0 %v7347
    %8204 = vmatprep.subr.mxu0 0.0
    %8205 = vmatpush1.msra.mxu0 %v7348
    %8206 = vmatprep.subr.mxu0 0.0
    %8207 = vmatpush1.msra.mxu0 %v7349
    %8208 = vmatprep.subr.mxu0 0.0
    %8209 = vmatpush1.msra.mxu0 %v7350
    %8210 = vmatprep.subr.mxu0 0.0
    %8211 = vmatpush1.msra.mxu0 %v7351
    %8212 = vmatprep.subr.mxu0 0.0
    %8213 = vmatpush1.msra.mxu0 %v7352
    %8214 = vmatprep.subr.mxu0 0.0
    %8215 = vmatpush1.msra.mxu0 0.0
    %8216 = vmatprep.subr.mxu0 0.0
    %8217 = vmatpush1.msra.mxu0 0.0
    %8218 = vmatprep.subr.mxu0 0.0
    %8219 = vmatpush1.msra.mxu0 0.0
    %8220 = vmatprep.subr.mxu0 0.0
    %8221 = vmatpush1.msra.mxu0 0.0
    %8222 = vmatprep.subr.mxu0 0.0
    %8223 = vmatpush1.msra.mxu0 0.0
    %8224 = vmatprep.subr.mxu0 0.0
    %8225 = vmatpush1.msra.mxu0 0.0
    %8226 = vmatprep.subr.mxu0 0.0
    %8227 = vmatpush1.msra.mxu0 0.0
    %8228 = vmatprep.subr.mxu0 0.0
    %8229 = vmatpush1.msra.mxu0 0.0
    %8230 = vmatprep.subr.mxu0 0.0
    %8231 = vmatpush1.msra.mxu0 0.0
    %8232 = vmatprep.subr.mxu0 0.0
    %8233 = vmatpush1.msra.mxu0 0.0
    %8234 = vmatprep.subr.mxu0 0.0
    %8235 = vmatpush1.msra.mxu0 0.0
    %8236 = vmatprep.subr.mxu0 0.0
    %8237 = vmatpush1.msra.mxu0 0.0
    %8238 = vmatprep.subr.mxu0 0.0
    %8239 = vmatpush1.msra.mxu0 0.0
    %8240 = vmatprep.subr.mxu0 0.0
    %8241 = vmatpush1.msra.mxu0 0.0
    %8242 = vmatprep.subr.mxu0 0.0
    %8243 = vmatpush1.msra.mxu0 0.0
    %8244 = vmatprep.subr.mxu0 0.0
    %8245 = vmatpush1.msra.mxu0 0.0
    %8246 = vmatprep.subr.mxu0 0.0
    %8247 = vmatpush1.msra.mxu0 0.0
    %8248 = vmatprep.subr.mxu0 0.0
    %8249 = vmatpush1.msra.mxu0 0.0
    %8250 = vmatprep.subr.mxu0 0.0
    %8251 = vmatpush1.msra.mxu0 0.0
    %8252 = vmatprep.subr.mxu0 0.0
    %8253 = vmatpush1.msra.mxu0 0.0
    %8254 = vmatprep.subr.mxu0 0.0
    %8255 = vmatpush1.msra.mxu0 0.0
    %8256 = vmatprep.subr.mxu0 0.0
    %8257 = vmatpush1.msra.mxu0 0.0
    %8258 = vmatprep.subr.mxu0 0.0
    %8259 = vmatpush1.msra.mxu0 0.0
    %8260 = vmatprep.subr.mxu0 0.0
    %8261 = vmatpush1.msra.mxu0 0.0
    %8262 = vmatprep.mubr.f32.mxu0 0.0
    %8263 = vmatmul.mubr.f32.gmra.mrb[0].mxu0 %v7498
    %v8264 = vpop.f32.mrb[0].mxu0
    %v8265 = vadd.f32 %v8160, %v8264
    %v8266 = vpop.f32.mrb[0].mxu0
    %8267 = vmatprep.mubr.f32.mxu0 0.0
    %8268 = vmatmul.mubr.f32.gmra.mrb[0].mxu0 %v7501
    %v8269 = vpop.f32.mrb[0].mxu0
    %v8270 = vadd.f32 %v8165, %v8269
    %v8271 = vpop.f32.mrb[0].mxu0
    %8272 = vmatprep.mubr.f32.mxu0 0.0
    %8273 = vmatmul.mubr.f32.gmra.mrb[0].mxu0 %v7504
    %v8274 = vpop.f32.mrb[0].mxu0
    %v8275 = vadd.f32 %v8170, %v8274
    %v8276 = vpop.f32.mrb[0].mxu0
    %8277 = vmatprep.mubr.f32.mxu0 0.0
    %8278 = vmatmul.mubr.f32.gmra.mrb[0].mxu0 %v7507
    %v8279 = vpop.f32.mrb[0].mxu0
    %v8280 = vadd.f32 %v8175, %v8279
    %v8281 = vpop.f32.mrb[0].mxu0
    %8282 = vmatprep.mubr.f32.mxu0 0.0
    %8283 = vmatmul.mubr.f32.gmra.mrb[0].mxu0 %v7510
    %v8284 = vpop.f32.mrb[0].mxu0
    %v8285 = vadd.f32 %v8180, %v8284
    %v8286 = vpop.f32.mrb[0].mxu0
    %8287 = vmatprep.mubr.f32.mxu0 0.0
    %8288 = vmatmul.mubr.f32.gmra.mrb[0].mxu0 %v7513
    %v8289 = vpop.f32.mrb[0].mxu0
    %v8290 = vadd.f32 %v8185, %v8289
    %v8291 = vpop.f32.mrb[0].mxu0
    %8292 = vmatprep.mubr.f32.mxu0 0.0
    %8293 = vmatmul.mubr.f32.gmra.mrb[0].mxu0 %v7516
    %v8294 = vpop.f32.mrb[0].mxu0
    %v8295 = vadd.f32 %v8190, %v8294
    %v8296 = vpop.f32.mrb[0].mxu0
    %8297 = vmatprep.mubr.f32.mxu0 0.0
    %8298 = vmatmul.mubr.f32.gmra.mrb[0].mxu0 %v7519
    %v8299 = vpop.f32.mrb[0].mxu0
    %v8300 = vadd.f32 %v8195, %v8299
    %v8301 = vpop.f32.mrb[0].mxu0
    %8302 = vdwg.mxu0
    %v8303 = vsel %vm1008, %v8265, 0.0
    %8304 = vadd.xlane.f32.xlu0 %v8303
    %v8305 = vpop.xlane.xlu0 %8304
    %v8306 = vsel %vm1008, %v8270, 0.0
    %8307 = vadd.xlane.f32.xlu0 %v8306
    %v8308 = vpop.xlane.xlu0 %8307
    %v8309 = vsel %vm1008, %v8275, 0.0
    %8310 = vadd.xlane.f32.xlu0 %v8309
    %v8311 = vpop.xlane.xlu0 %8310
    %v8312 = vsel %vm1008, %v8280, 0.0
    %8313 = vadd.xlane.f32.xlu0 %v8312
    %v8314 = vpop.xlane.xlu0 %8313
    %v8315 = vsel %vm1008, %v8285, 0.0
    %8316 = vadd.xlane.f32.xlu0 %v8315
    %v8317 = vpop.xlane.xlu0 %8316
    %v8318 = vsel %vm1008, %v8290, 0.0
    %8319 = vadd.xlane.f32.xlu0 %v8318
    %v8320 = vpop.xlane.xlu0 %8319
    %v8321 = vsel %vm1008, %v8295, 0.0
    %8322 = vadd.xlane.f32.xlu0 %v8321
    %v8323 = vpop.xlane.xlu0 %8322
    %v8324 = vsel %vm1008, %v8300, 0.0
    %8325 = vadd.xlane.f32.xlu0 %v8324
    %v8326 = vpop.xlane.xlu0 %8325
    %v8327 = vadd.f32 %v8305, %v8308
    %v8328 = vadd.f32 %v8327, %v8311
    %v8329 = vadd.f32 %v8328, %v8314
    %v8330 = vadd.f32 %v8329, %v8317
    %v8331 = vadd.f32 %v8330, %v8320
    %v8332 = vadd.f32 %v8331, %v8323
    %v8333 = vadd.f32 %v8332, %v8326
    %v8334 = vrot.slane %v8333, 4
    %v8335 = vadd.f32 %v8333, %v8334
    %v8336 = vrot.slane %v8335, 2
    %v8337 = vadd.f32 %v8335, %v8336
    %v8338 = vrot.slane %v8337, 1
    %v8339 = vadd.f32 %v8337, %v8338
    %v8340 = vmul.f32 %v8339, 0.0009765625
    %v8341 = vsub.f32 %v8265, %v8340
    %v8342 = vsub.f32 %v8270, %v8340
    %v8343 = vsub.f32 %v8275, %v8340
    %v8344 = vsub.f32 %v8280, %v8340
    %v8345 = vsub.f32 %v8285, %v8340
    %v8346 = vsub.f32 %v8290, %v8340
    %v8347 = vsub.f32 %v8295, %v8340
    %v8348 = vsub.f32 %v8300, %v8340
    %v8349 = vmul.f32 %v8341, %v8341
    %v8350 = vmul.f32 %v8342, %v8342
    %v8351 = vmul.f32 %v8343, %v8343
    %v8352 = vmul.f32 %v8344, %v8344
    %v8353 = vmul.f32 %v8345, %v8345
    %v8354 = vmul.f32 %v8346, %v8346
    %v8355 = vmul.f32 %v8347, %v8347
    %v8356 = vmul.f32 %v8348, %v8348
    %v8357 = vsel %vm1008, %v8349, 0.0
    %8358 = vadd.xlane.f32.xlu0 %v8357
    %v8359 = vpop.xlane.xlu0 %8358
    %v8360 = vsel %vm1008, %v8350, 0.0
    %8361 = vadd.xlane.f32.xlu0 %v8360
    %v8362 = vpop.xlane.xlu0 %8361
    %v8363 = vsel %vm1008, %v8351, 0.0
    %8364 = vadd.xlane.f32.xlu0 %v8363
    %v8365 = vpop.xlane.xlu0 %8364
    %v8366 = vsel %vm1008, %v8352, 0.0
    %8367 = vadd.xlane.f32.xlu0 %v8366
    %v8368 = vpop.xlane.xlu0 %8367
    %v8369 = vsel %vm1008, %v8353, 0.0
    %8370 = vadd.xlane.f32.xlu0 %v8369
    %v8371 = vpop.xlane.xlu0 %8370
    %v8372 = vsel %vm1008, %v8354, 0.0
    %8373 = vadd.xlane.f32.xlu0 %v8372
    %v8374 = vpop.xlane.xlu0 %8373
    %v8375 = vsel %vm1008, %v8355, 0.0
    %8376 = vadd.xlane.f32.xlu0 %v8375
    %v8377 = vpop.xlane.xlu0 %8376
    %v8378 = vsel %vm1008, %v8356, 0.0
    %8379 = vadd.xlane.f32.xlu0 %v8378
    %v8380 = vpop.xlane.xlu0 %8379
    %v8381 = vadd.f32 %v8359, %v8362
    %v8382 = vadd.f32 %v8381, %v8365
    %v8383 = vadd.f32 %v8382, %v8368
    %v8384 = vadd.f32 %v8383, %v8371
    %v8385 = vadd.f32 %v8384, %v8374
    %v8386 = vadd.f32 %v8385, %v8377
    %v8387 = vadd.f32 %v8386, %v8380
    %v8388 = vrot.slane %v8387, 4
    %v8389 = vadd.f32 %v8387, %v8388
    %v8390 = vrot.slane %v8389, 2
    %v8391 = vadd.f32 %v8389, %v8390
    %v8392 = vrot.slane %v8391, 1
    %v8393 = vadd.f32 %v8391, %v8392
    %v8394 = vmul.f32 %v8393, 0.0009765625
    %v8395 = vadd.f32 %v8394, 1e-05
    %v8396 = vrsqrt.pop %v8395
    %v8397 = vmul.f32 %v8341, %v8396
    %v8398 = vmul.f32 %v8342, %v8396
    %v8399 = vmul.f32 %v8343, %v8396
    %v8400 = vmul.f32 %v8344, %v8396
    %v8401 = vmul.f32 %v8345, %v8396
    %v8402 = vmul.f32 %v8346, %v8396
    %v8403 = vmul.f32 %v8347, %v8396
    %v8404 = vmul.f32 %v8348, %v8396
    %v8405 = vmul.f32 %v8397, %v7000
    %v8406 = vmul.f32 %v8398, %v7001
    %v8407 = vmul.f32 %v8399, %v7002
    %v8408 = vmul.f32 %v8400, %v7003
    %v8409 = vmul.f32 %v8401, %v7004
    %v8410 = vmul.f32 %v8402, %v7005
    %v8411 = vmul.f32 %v8403, %v7006
    %v8412 = vmul.f32 %v8404, %v7007
    %v8413 = vadd.f32 %v8405, %v7008
    %v8414 = vadd.f32 %v8406, %v7009
    %v8415 = vadd.f32 %v8407, %v7010
    %v8416 = vadd.f32 %v8408, %v7011
    %v8417 = vadd.f32 %v8409, %v7012
    %v8418 = vadd.f32 %v8410, %v7013
    %v8419 = vadd.f32 %v8411, %v7014
    %v8420 = vadd.f32 %v8412, %v7015
    %8421 = vmatprep.subr.mxu0 0.0
    %8422 = vmatpush1.msra.mxu0 %v8413
    %8423 = vmatprep.subr.mxu0 0.0
    %8424 = vmatpush1.msra.mxu0 %v8414
    %8425 = vmatprep.subr.mxu0 0.0
    %8426 = vmatpush1.msra.mxu0 %v8415
    %8427 = vmatprep.subr.mxu0 0.0
    %8428 = vmatpush1.msra.mxu0 %v8416
    %8429 = vmatprep.subr.mxu0 0.0
    %8430 = vmatpush1.msra.mxu0 %v8417
    %8431 = vmatprep.subr.mxu0 0.0
    %8432 = vmatpush1.msra.mxu0 %v8418
    %8433 = vmatprep.subr.mxu0 0.0
    %8434 = vmatpush1.msra.mxu0 %v8419
    %8435 = vmatprep.subr.mxu0 0.0
    %8436 = vmatpush1.msra.mxu0 %v8420
    %8437 = vmatprep.subr.mxu0 0.0
    %8438 = vmatpush1.msra.mxu0 0.0
    %8439 = vmatprep.subr.mxu0 0.0
    %8440 = vmatpush1.msra.mxu0 0.0
    %8441 = vmatprep.subr.mxu0 0.0
    %8442 = vmatpush1.msra.mxu0 0.0
    %8443 = vmatprep.subr.mxu0 0.0
    %8444 = vmatpush1.msra.mxu0 0.0
    %8445 = vmatprep.subr.mxu0 0.0
    %8446 = vmatpush1.msra.mxu0 0.0
    %8447 = vmatprep.subr.mxu0 0.0
    %8448 = vmatpush1.msra.mxu0 0.0
    %8449 = vmatprep.subr.mxu0 0.0
    %8450 = vmatpush1.msra.mxu0 0.0
    %8451 = vmatprep.subr.mxu0 0.0
    %8452 = vmatpush1.msra.mxu0 0.0
    %8453 = vmatprep.subr.mxu0 0.0
    %8454 = vmatpush1.msra.mxu0 0.0
    %8455 = vmatprep.subr.mxu0 0.0
    %8456 = vmatpush1.msra.mxu0 0.0
    %8457 = vmatprep.subr.mxu0 0.0
    %8458 = vmatpush1.msra.mxu0 0.0
    %8459 = vmatprep.subr.mxu0 0.0
    %8460 = vmatpush1.msra.mxu0 0.0
    %8461 = vmatprep.subr.mxu0 0.0
    %8462 = vmatpush1.msra.mxu0 0.0
    %8463 = vmatprep.subr.mxu0 0.0
    %8464 = vmatpush1.msra.mxu0 0.0
    %8465 = vmatprep.subr.mxu0 0.0
    %8466 = vmatpush1.msra.mxu0 0.0
    %8467 = vmatprep.subr.mxu0 0.0
    %8468 = vmatpush1.msra.mxu0 0.0
    %8469 = vmatprep.subr.mxu0 0.0
    %8470 = vmatpush1.msra.mxu0 0.0
    %8471 = vmatprep.subr.mxu0 0.0
    %8472 = vmatpush1.msra.mxu0 0.0
    %8473 = vmatprep.subr.mxu0 0.0
    %8474 = vmatpush1.msra.mxu0 0.0
    %8475 = vmatprep.subr.mxu0 0.0
    %8476 = vmatpush1.msra.mxu0 0.0
    %8477 = vmatprep.subr.mxu0 0.0
    %8478 = vmatpush1.msra.mxu0 0.0
    %8479 = vmatprep.subr.mxu0 0.0
    %8480 = vmatpush1.msra.mxu0 0.0
    %8481 = vmatprep.subr.mxu0 0.0
    %8482 = vmatpush1.msra.mxu0 0.0
    %8483 = vmatprep.subr.mxu0 0.0
    %8484 = vmatpush1.msra.mxu0 0.0
    %8485 = vmatprep.mubr.f32.mxu0 0.0
    %8486 = vmatmul.mubr.f32.gmra.mrb[0].mxu0 %v7890
    %v8487 = vpop.f32.mrb[0].mxu0
    %v8488 = vadd.f32 %v7852, %v8487
    %v8489 = vpop.f32.mrb[0].mxu0
    %8490 = vmatprep.mubr.f32.mxu0 0.0
    %8491 = vmatmul.mubr.f32.gmra.mrb[0].mxu0 %v7893
    %v8492 = vpop.f32.mrb[0].mxu0
    %v8493 = vadd.f32 %v7857, %v8492
    %v8494 = vpop.f32.mrb[0].mxu0
    %8495 = vmatprep.mubr.f32.mxu0 0.0
    %8496 = vmatmul.mubr.f32.gmra.mrb[0].mxu0 %v7896
    %v8497 = vpop.f32.mrb[0].mxu0
    %v8498 = vadd.f32 %v7862, %v8497
    %v8499 = vpop.f32.mrb[0].mxu0
    %8500 = vmatprep.mubr.f32.mxu0 0.0
    %8501 = vmatmul.mubr.f32.gmra.mrb[0].mxu0 %v7899
    %v8502 = vpop.f32.mrb[0].mxu0
    %v8503 = vadd.f32 %v7867, %v8502
    %v8504 = vpop.f32.mrb[0].mxu0
    %8505 = vmatprep.mubr.f32.mxu0 0.0
    %8506 = vmatmul.mubr.f32.gmra.mrb[0].mxu0 %v7902
    %v8507 = vpop.f32.mrb[0].mxu0
    %v8508 = vadd.f32 %v7872, %v8507
    %v8509 = vpop.f32.mrb[0].mxu0
    %8510 = vmatprep.mubr.f32.mxu0 0.0
    %8511 = vmatmul.mubr.f32.gmra.mrb[0].mxu0 %v7905
    %v8512 = vpop.f32.mrb[0].mxu0
    %v8513 = vadd.f32 %v7877, %v8512
    %v8514 = vpop.f32.mrb[0].mxu0
    %8515 = vmatprep.mubr.f32.mxu0 0.0
    %8516 = vmatmul.mubr.f32.gmra.mrb[0].mxu0 %v7908
    %v8517 = vpop.f32.mrb[0].mxu0
    %v8518 = vadd.f32 %v7882, %v8517
    %v8519 = vpop.f32.mrb[0].mxu0
    %8520 = vmatprep.mubr.f32.mxu0 0.0
    %8521 = vmatmul.mubr.f32.gmra.mrb[0].mxu0 %v7911
    %v8522 = vpop.f32.mrb[0].mxu0
    %v8523 = vadd.f32 %v7887, %v8522
    %v8524 = vpop.f32.mrb[0].mxu0
    %8525 = vdwg.mxu0
    %v8526 = vmul.f32 %v8488, %v8021
    %v8527 = vmul.f32 %v8493, %v8026
    %v8528 = vmul.f32 %v8498, %v8031
    %v8529 = vmul.f32 %v8503, %v8036
    %v8530 = vmul.f32 %v8508, %v8041
    %v8531 = vmul.f32 %v8513, %v8046
    %v8532 = vmul.f32 %v8518, %v8051
    %v8533 = vmul.f32 %v8523, %v8056
    %v8534 = vsel %vm1008, %v8526, 0.0
    %v8535 = vsel %vm1008, %v8527, 0.0
    %v8536 = vadd.f32 %v8534, %v8535
    %v8537 = vsel %vm1008, %v8528, 0.0
    %v8538 = vadd.f32 %v8536, %v8537
    %v8539 = vsel %vm1008, %v8529, 0.0
    %v8540 = vadd.f32 %v8538, %v8539
    %v8541 = vsel %vm1008, %v8530, 0.0
    %v8542 = vadd.f32 %v8540, %v8541
    %v8543 = vsel %vm1008, %v8531, 0.0
    %v8544 = vadd.f32 %v8542, %v8543
    %v8545 = vsel %vm1008, %v8532, 0.0
    %v8546 = vadd.f32 %v8544, %v8545
    %v8547 = vsel %vm1008, %v8533, 0.0
    %v8548 = vadd.f32 %v8546, %v8547
    %v8549 = vrot.slane %v8548, 4
    %v8550 = vadd.f32 %v8548, %v8549
    %v8551 = vrot.slane %v8550, 2
    %v8552 = vadd.f32 %v8550, %v8551
    %v8553 = vrot.slane %v8552, 1
    %v8554 = vadd.f32 %v8552, %v8553
    %v8555 = vadd.f32 %v8554, %v8090
    %v8557 = vrot.slane %v8555, 7
    %vm8559 = vcmask 1040384
    %v8560 = vsel %vm8559, %v8092, %v8557
    %vm8561 = vcmask 123904
    %8562 = vst.msk [vmem:[#allocation5] sm:$0x3] %vm8561, %v8560
    // Predicated region
    $region14: #{tpu_custom_call.1} parent=1 // pred_check
      _
    $region15: #{tpu_custom_call.1} parent=1 // pred_check_branch
      %8564 = sbr.rel (0) target = $region17
    $region16: #{tpu_custom_call.1} parent=1 // pred_region
      %s8566 = ssub.s32 32, 32
      %8567 = vsyncadd [#allocation4], %s8566
      %s8569 = sshll.u32 [#allocation5], 4
      %s8570 = int_to_ptr.vmem [resolvable:$true] %s8569
      %8572 = dma.vmem_to_hbm [thread:$0]  %s8570, 32, %s2, [#allocation4]
    $region17: #{tpu_custom_call.1} parent=1 // pred_fallthru
      _
    // Predicated region
    $region18: #{tpu_custom_call.1} parent=1 // pred_check
      _
    $region19: #{tpu_custom_call.1} parent=1 // pred_check_branch
      %8574 = sbr.rel (0) target = $region21
    $region20: #{tpu_custom_call.1} parent=1 // pred_region
      %8575 = dma.done [#allocation4], 32
    $region21: #{tpu_custom_call.1} parent=1 // pred_fallthru
      _
    %8576 = vsyncpa [#allocation3], 1
    %8577 = vsyncpa [#allocation4], 1

</llo_original>
